<compile_context>
chip_gen: v7x
topology: tpu7x:2x2x1
jax: 0.10.0
libtpu: 0.0.40
codegen_flags: <defaults>
</compile_context>

<pallas_src>
import jax
import jax.numpy as jnp
from jax.experimental import pallas as pl
from jax.experimental.pallas import tpu as pltpu


def _round_up(v, m):
    return ((v + m - 1) // m) * m


def _resblock_kernel(x_ref, w1_ref, b1_ref, w2_ref, b2_ref, out_ref, xpad_ref):
    """Fused ResBlock for a block of NB images (NHWC inside the kernel).

    x_ref    : (NB, H, W, C)       input block, original (unpadded) channels
    w1_ref   : (9, Cp, Cp) bf16    conv1 weights, one (Cin, Cout) matrix per tap
    b1_ref   : (1, Cp) f32         conv1 bias
    w2_ref   : (9, Cp, Cp) bf16    conv2 weights
    b2_ref   : (1, Cp) f32         conv2 bias
    out_ref  : (NB, H, W, C)       output block (only real channels)
    xpad_ref : (NB, H+2, W+2, Cp)  f32 scratch: spatially padded activations,
                                   reused for both x and relu(conv1(x))
    """
    NB, Hp2, Wp2, Cp = xpad_ref.shape
    H, W = Hp2 - 2, Wp2 - 2
    C = x_ref.shape[-1]
    M = NB * H * W

    # ---- zero the 1-px border ring (cheap strips, every step: no cross-step
    # scratch state, which keeps the "parallel" grid axis safe on multi-core
    # parts). The interior is fully overwritten below. -----------------------
    zrow = jnp.zeros((NB, 1, Wp2, Cp), jnp.float32)
    zcol = jnp.zeros((NB, H, 1, Cp), jnp.float32)
    xpad_ref[:, 0:1, :, :] = zrow
    xpad_ref[:, Hp2 - 1:Hp2, :, :] = zrow
    xpad_ref[:, 1:H + 1, 0:1, :] = zcol
    xpad_ref[:, 1:H + 1, Wp2 - 1:Wp2, :] = zcol

    # ---- in-VMEM spatial + channel padding of the input block --------------
    x = x_ref[...].astype(jnp.float32)          # (NB, H, W, C), reused for the residual
    if C != Cp:
        x_full = jnp.concatenate(
            [x, jnp.zeros((NB, H, W, Cp - C), jnp.float32)], axis=-1)
    else:
        x_full = x
    xpad_ref[:, 1:H + 1, 1:W + 1, :] = x_full

    def conv3x3(w_ref, b_ref):
        # Per-tap accumulation: 9 (M, Cp) @ (Cp, Cp) bf16 MXU matmuls into a
        # single f32 accumulator (no im2col temp).
        # TODO(synk): the dx=1,2 slices shift the sublane axis by 1; a
        #   pltpu.roll-based swizzle would move that work to the XLU slot.
        acc = jnp.zeros((M, Cp), jnp.float32)
        t = 0
        for dy in range(3):
            for dx in range(3):
                tap = xpad_ref[:, dy:dy + H, dx:dx + W, :].reshape(M, Cp)
                acc = acc + jnp.dot(tap.astype(jnp.bfloat16), w_ref[t],
                                    preferred_element_type=jnp.float32)
                t += 1
        return acc + b_ref[...]

    # ---- conv1 + bias + ReLU ------------------------------------------------
    y1 = jnp.maximum(conv3x3(w1_ref, b1_ref), 0.0)

    # xpad's input contents are dead after conv1's reads: reuse the same
    # scratch (borders are still zero) for the padded relu(conv1) activations.
    xpad_ref[:, 1:H + 1, 1:W + 1, :] = y1.reshape(NB, H, W, Cp)

    # ---- conv2 + bias -------------------------------------------------------
    y2 = conv3x3(w2_ref, b2_ref).reshape(NB, H, W, Cp)

    # ---- residual add; write back only the real C channels -----------------
    out_ref[...] = (x + y2[..., :C]).astype(out_ref.dtype)


def resblock_pallas(x_nchw, w1, b1, w2, b2, *, images_per_step=1):
    """x_nchw: (N, C, H, W) f32; w1/w2: (C, C, 3, 3) OIHW; b1/b2: (C,)."""
    N, C, H, W = x_nchw.shape
    Cp = _round_up(C, 128)                      # lane-dense channel axis (VMEM only)
    NB = images_per_step if (N % images_per_step == 0) else 1

    # NCHW -> NHWC.  NOTE: no channel padding in HBM — the kernel pads to Cp
    # inside VMEM, so HBM traffic is proportional to the real C.
    x_nhwc = jnp.transpose(x_nchw, (0, 2, 3, 1)).astype(jnp.float32)

    def prep_w(w):
        # OIHW -> (dy, dx, cin, cout), zero-pad channels, -> (9, Cp, Cp) bf16.
        w = jnp.transpose(w.astype(jnp.float32), (2, 3, 1, 0))
        if Cp != C:
            w = jnp.pad(w, ((0, 0), (0, 0), (0, Cp - C), (0, Cp - C)))
        return w.reshape(9, Cp, Cp).astype(jnp.bfloat16)

    def prep_b(b):
        b = b.astype(jnp.float32)
        if Cp != C:
            b = jnp.pad(b, ((0, Cp - C),))
        return b.reshape(1, Cp)

    w1s, w2s = prep_w(w1), prep_w(w2)
    b1r, b2r = prep_b(b1), prep_b(b2)

    out_nhwc = pl.pallas_call(
        _resblock_kernel,
        out_shape=jax.ShapeDtypeStruct((N, H, W, C), jnp.float32),
        grid_spec=pltpu.PrefetchScalarGridSpec(
            num_scalar_prefetch=0,
            grid=(N // NB,),
            in_specs=[
                pl.BlockSpec((NB, H, W, C), lambda n: (n, 0, 0, 0)),
                pl.BlockSpec((9, Cp, Cp), lambda n: (0, 0, 0)),
                pl.BlockSpec((1, Cp), lambda n: (0, 0)),
                pl.BlockSpec((9, Cp, Cp), lambda n: (0, 0, 0)),
                pl.BlockSpec((1, Cp), lambda n: (0, 0)),
            ],
            out_specs=pl.BlockSpec((NB, H, W, C), lambda n: (n, 0, 0, 0)),
            scratch_shapes=[
                pltpu.VMEM((NB, H + 2, W + 2, Cp), jnp.float32),
            ],
        ),
        compiler_params=pltpu.CompilerParams(
            dimension_semantics=("parallel",),
        ),
    )(x_nhwc, w1s, b1r, w2s, b2r)

    # NHWC -> NCHW to match the PyTorch module.
    return jnp.transpose(out_nhwc, (0, 3, 1, 2))


def _resblock_reference(x_nchw, w1, b1, w2, b2):
    """Pure-JAX reference (lax conv) mirroring nn.Conv2d semantics."""
    dn = jax.lax.conv_dimension_numbers(x_nchw.shape, w1.shape,
                                        ("NCHW", "OIHW", "NCHW"))
    y = jax.lax.conv_general_dilated(
        x_nchw, w1, window_strides=(1, 1), padding=((1, 1), (1, 1)),
        dimension_numbers=dn, precision="highest")
    y = y + b1.reshape(1, -1, 1, 1)
    y = jnp.maximum(y, 0.0)
    y = jax.lax.conv_general_dilated(
        y, w2, window_strides=(1, 1), padding=((1, 1), (1, 1)),
        dimension_numbers=dn, precision="highest")
    y = y + b2.reshape(1, -1, 1, 1)
    return x_nchw + y


if __name__ == "__main__":
    # Small, deterministic problem: batch=2, channels=4, spatial=16x16.
    N, C, H, W = 2, 4, 16, 16
    key = jax.random.PRNGKey(0)
    kx, kw1, kb1, kw2, kb2 = jax.random.split(key, 5)

    x = jax.random.normal(kx, (N, C, H, W), dtype=jnp.float32)
    # nn.Conv2d(channels, channels, 3) weight: (C_out, C_in, 3, 3); bias: (C,)
    w1 = jax.random.normal(kw1, (C, C, 3, 3), dtype=jnp.float32) * 0.1
    b1 = jax.random.normal(kb1, (C,), dtype=jnp.float32) * 0.1
    w2 = jax.random.normal(kw2, (C, C, 3, 3), dtype=jnp.float32) * 0.1
    b2 = jax.random.normal(kb2, (C,), dtype=jnp.float32) * 0.1

    out = resblock_pallas(x, w1, b1, w2, b2)
    out = jax.block_until_ready(out)

    ref = jax.block_until_ready(_resblock_reference(x, w1, b1, w2, b2))

    assert out.shape == (N, C, H, W), out.shape
    # bf16 matmul operands (f32 accumulation) -> loosened tolerance vs the
    # highest-precision f32 reference.
    max_err = float(jnp.max(jnp.abs(out - ref)))
    assert jnp.allclose(out, ref, atol=5e-2, rtol=5e-2), max_err

    print("KERNEL_OK")
</pallas_src>

<mosaic_0001>
module attributes {stable_mosaic.version = 11 : i64} {
  func.func @_resblock_kernel(%arg0: i32, %arg1: memref<1x16x16x4xf32, #tpu.memory_space<vmem>>, %arg2: memref<9x128x128xbf16, #tpu.memory_space<vmem>>, %arg3: memref<1x128xf32, #tpu.memory_space<vmem>>, %arg4: memref<9x128x128xbf16, #tpu.memory_space<vmem>>, %arg5: memref<1x128xf32, #tpu.memory_space<vmem>>, %arg6: memref<1x16x16x4xf32, #tpu.memory_space<vmem>>, %arg7: memref<1x18x18x128xf32, #tpu.memory_space<vmem>>) attributes {dimension_semantics = [#tpu.dimension_semantics<parallel>], iteration_bounds = array<i64: 2>, scalar_prefetch = 0 : i64, scratch_operands = 1 : i64, tpu.core_type = #tpu.core_type<tc>, window_params = [{transform_indices = @transform_0, window_bounds = array<i64: 1, 16, 16, 4>}, {pipeline_mode = #tpu.pipeline_mode<synchronous>, transform_indices = @transform_1, window_bounds = array<i64: 9, 128, 128>}, {pipeline_mode = #tpu.pipeline_mode<synchronous>, transform_indices = @transform_2, window_bounds = array<i64: 1, 128>}, {pipeline_mode = #tpu.pipeline_mode<synchronous>, transform_indices = @transform_3, window_bounds = array<i64: 9, 128, 128>}, {pipeline_mode = #tpu.pipeline_mode<synchronous>, transform_indices = @transform_4, window_bounds = array<i64: 1, 128>}, {transform_indices = @transform_5, window_bounds = array<i64: 1, 16, 16, 4>}]} {
    %cst = arith.constant 0.000000e+00 : f32
    %0 = vector.broadcast %cst : f32 to vector<1x1x18x128xf32>
    %cst_0 = arith.constant 0.000000e+00 : f32
    %1 = vector.broadcast %cst_0 : f32 to vector<1x16x1x128xf32>
    %c0 = arith.constant 0 : index
    %c0_1 = arith.constant 0 : index
    %c0_2 = arith.constant 0 : index
    %c0_3 = arith.constant 0 : index
    %2 = vector.load %arg7[%c0, %c0_1, %c0_2, %c0_3] : memref<1x18x18x128xf32, #tpu.memory_space<vmem>>, vector<1x1x18x128xf32>
    tpu.vector_store %arg7[%c0, %c0_1, %c0_2, %c0_3], %0 {strides = array<i32>} : memref<1x18x18x128xf32, #tpu.memory_space<vmem>>, vector<1x1x18x128xf32>,
    %c0_4 = arith.constant 0 : index
    %c17 = arith.constant 17 : index
    %c0_5 = arith.constant 0 : index
    %c0_6 = arith.constant 0 : index
    %3 = vector.load %arg7[%c0_4, %c17, %c0_5, %c0_6] : memref<1x18x18x128xf32, #tpu.memory_space<vmem>>, vector<1x1x18x128xf32>
    tpu.vector_store %arg7[%c0_4, %c17, %c0_5, %c0_6], %0 {strides = array<i32>} : memref<1x18x18x128xf32, #tpu.memory_space<vmem>>, vector<1x1x18x128xf32>,
    %c0_7 = arith.constant 0 : index
    %c1 = arith.constant 1 : index
    %c0_8 = arith.constant 0 : index
    %c0_9 = arith.constant 0 : index
    %4 = vector.load %arg7[%c0_7, %c1, %c0_8, %c0_9] : memref<1x18x18x128xf32, #tpu.memory_space<vmem>>, vector<1x16x1x128xf32>
    tpu.vector_store %arg7[%c0_7, %c1, %c0_8, %c0_9], %1 {strides = array<i32>} : memref<1x18x18x128xf32, #tpu.memory_space<vmem>>, vector<1x16x1x128xf32>,
    %c0_10 = arith.constant 0 : index
    %c1_11 = arith.constant 1 : index
    %c17_12 = arith.constant 17 : index
    %c0_13 = arith.constant 0 : index
    %5 = vector.load %arg7[%c0_10, %c1_11, %c17_12, %c0_13] : memref<1x18x18x128xf32, #tpu.memory_space<vmem>>, vector<1x16x1x128xf32>
    tpu.vector_store %arg7[%c0_10, %c1_11, %c17_12, %c0_13], %1 {strides = array<i32>} : memref<1x18x18x128xf32, #tpu.memory_space<vmem>>, vector<1x16x1x128xf32>,
    %c0_14 = arith.constant 0 : index
    %c0_15 = arith.constant 0 : index
    %c0_16 = arith.constant 0 : index
    %c0_17 = arith.constant 0 : index
    %6 = vector.load %arg1[%c0_14, %c0_15, %c0_16, %c0_17] : memref<1x16x16x4xf32, #tpu.memory_space<vmem>>, vector<1x16x16x4xf32>
    %cst_18 = arith.constant 0.000000e+00 : f32
    %7 = vector.broadcast %cst_18 : f32 to vector<1x16x16x124xf32>
    %8 = tpu.concatenate %6, %7 in 3 : vector<1x16x16x4xf32>, vector<1x16x16x124xf32> -> vector<1x16x16x128xf32>
    %c0_19 = arith.constant 0 : index
    %c1_20 = arith.constant 1 : index
    %c1_21 = arith.constant 1 : index
    %c0_22 = arith.constant 0 : index
    %9 = vector.load %arg7[%c0_19, %c1_20, %c1_21, %c0_22] : memref<1x18x18x128xf32, #tpu.memory_space<vmem>>, vector<1x16x16x128xf32>
    tpu.vector_store %arg7[%c0_19, %c1_20, %c1_21, %c0_22], %8 {strides = array<i32>} : memref<1x18x18x128xf32, #tpu.memory_space<vmem>>, vector<1x16x16x128xf32>,
    %cst_23 = arith.constant 0.000000e+00 : f32
    %10 = vector.broadcast %cst_23 : f32 to vector<256x128xf32>
    %c0_24 = arith.constant 0 : index
    %c0_25 = arith.constant 0 : index
    %c0_26 = arith.constant 0 : index
    %c0_27 = arith.constant 0 : index
    %11 = vector.load %arg7[%c0_24, %c0_25, %c0_26, %c0_27] : memref<1x18x18x128xf32, #tpu.memory_space<vmem>>, vector<1x16x16x128xf32>
    %12 = vector.shape_cast %11 : vector<1x16x16x128xf32> to vector<256x128xf32>
    %13 = arith.truncf %12 : vector<256x128xf32> to vector<256x128xbf16>
    %c0_28 = arith.constant 0 : index
    %c0_29 = arith.constant 0 : index
    %c0_30 = arith.constant 0 : index
    %14 = vector.load %arg2[%c0_28, %c0_29, %c0_30] : memref<9x128x128xbf16, #tpu.memory_space<vmem>>, vector<1x128x128xbf16>
    %15 = vector.shape_cast %14 : vector<1x128x128xbf16> to vector<128x128xbf16>
    %cst_31 = arith.constant dense<0.000000e+00> : vector<256x128xf32>
    %16 = tpu.matmul %13, %15, %cst_31 {dimension_numbers = #tpu.dot_dimension_numbers<[1], [0], [0], [1], [0, 0, 1, 1], [], []>} : vector<256x128xbf16>, vector<128x128xbf16>, vector<256x128xf32> -> vector<256x128xf32>
    %17 = arith.addf %10, %16 : vector<256x128xf32>
    %c0_32 = arith.constant 0 : index
    %c0_33 = arith.constant 0 : index
    %c1_34 = arith.constant 1 : index
    %c0_35 = arith.constant 0 : index
    %18 = vector.load %arg7[%c0_32, %c0_33, %c1_34, %c0_35] : memref<1x18x18x128xf32, #tpu.memory_space<vmem>>, vector<1x16x16x128xf32>
    %19 = vector.shape_cast %18 : vector<1x16x16x128xf32> to vector<256x128xf32>
    %20 = arith.truncf %19 : vector<256x128xf32> to vector<256x128xbf16>
    %c1_36 = arith.constant 1 : index
    %c0_37 = arith.constant 0 : index
    %c0_38 = arith.constant 0 : index
    %21 = vector.load %arg2[%c1_36, %c0_37, %c0_38] : memref<9x128x128xbf16, #tpu.memory_space<vmem>>, vector<1x128x128xbf16>
    %22 = vector.shape_cast %21 : vector<1x128x128xbf16> to vector<128x128xbf16>
    %cst_39 = arith.constant dense<0.000000e+00> : vector<256x128xf32>
    %23 = tpu.matmul %20, %22, %cst_39 {dimension_numbers = #tpu.dot_dimension_numbers<[1], [0], [0], [1], [0, 0, 1, 1], [], []>} : vector<256x128xbf16>, vector<128x128xbf16>, vector<256x128xf32> -> vector<256x128xf32>
    %24 = arith.addf %17, %23 : vector<256x128xf32>
    %c0_40 = arith.constant 0 : index
    %c0_41 = arith.constant 0 : index
    %c2 = arith.constant 2 : index
    %c0_42 = arith.constant 0 : index
    %25 = vector.load %arg7[%c0_40, %c0_41, %c2, %c0_42] : memref<1x18x18x128xf32, #tpu.memory_space<vmem>>, vector<1x16x16x128xf32>
    %26 = vector.shape_cast %25 : vector<1x16x16x128xf32> to vector<256x128xf32>
    %27 = arith.truncf %26 : vector<256x128xf32> to vector<256x128xbf16>
    %c2_43 = arith.constant 2 : index
    %c0_44 = arith.constant 0 : index
    %c0_45 = arith.constant 0 : index
    %28 = vector.load %arg2[%c2_43, %c0_44, %c0_45] : memref<9x128x128xbf16, #tpu.memory_space<vmem>>, vector<1x128x128xbf16>
    %29 = vector.shape_cast %28 : vector<1x128x128xbf16> to vector<128x128xbf16>
    %cst_46 = arith.constant dense<0.000000e+00> : vector<256x128xf32>
    %30 = tpu.matmul %27, %29, %cst_46 {dimension_numbers = #tpu.dot_dimension_numbers<[1], [0], [0], [1], [0, 0, 1, 1], [], []>} : vector<256x128xbf16>, vector<128x128xbf16>, vector<256x128xf32> -> vector<256x128xf32>
    %31 = arith.addf %24, %30 : vector<256x128xf32>
    %c0_47 = arith.constant 0 : index
    %c1_48 = arith.constant 1 : index
    %c0_49 = arith.constant 0 : index
    %c0_50 = arith.constant 0 : index
    %32 = vector.load %arg7[%c0_47, %c1_48, %c0_49, %c0_50] : memref<1x18x18x128xf32, #tpu.memory_space<vmem>>, vector<1x16x16x128xf32>
    %33 = vector.shape_cast %32 : vector<1x16x16x128xf32> to vector<256x128xf32>
    %34 = arith.truncf %33 : vector<256x128xf32> to vector<256x128xbf16>
    %c3 = arith.constant 3 : index
    %c0_51 = arith.constant 0 : index
    %c0_52 = arith.constant 0 : index
    %35 = vector.load %arg2[%c3, %c0_51, %c0_52] : memref<9x128x128xbf16, #tpu.memory_space<vmem>>, vector<1x128x128xbf16>
    %36 = vector.shape_cast %35 : vector<1x128x128xbf16> to vector<128x128xbf16>
    %cst_53 = arith.constant dense<0.000000e+00> : vector<256x128xf32>
    %37 = tpu.matmul %34, %36, %cst_53 {dimension_numbers = #tpu.dot_dimension_numbers<[1], [0], [0], [1], [0, 0, 1, 1], [], []>} : vector<256x128xbf16>, vector<128x128xbf16>, vector<256x128xf32> -> vector<256x128xf32>
    %38 = arith.addf %31, %37 : vector<256x128xf32>
    %c0_54 = arith.constant 0 : index
    %c1_55 = arith.constant 1 : index
    %c1_56 = arith.constant 1 : index
    %c0_57 = arith.constant 0 : index
    %39 = vector.load %arg7[%c0_54, %c1_55, %c1_56, %c0_57] : memref<1x18x18x128xf32, #tpu.memory_space<vmem>>, vector<1x16x16x128xf32>
    %40 = vector.shape_cast %39 : vector<1x16x16x128xf32> to vector<256x128xf32>
    %41 = arith.truncf %40 : vector<256x128xf32> to vector<256x128xbf16>
    %c4 = arith.constant 4 : index
    %c0_58 = arith.constant 0 : index
    %c0_59 = arith.constant 0 : index
    %42 = vector.load %arg2[%c4, %c0_58, %c0_59] : memref<9x128x128xbf16, #tpu.memory_space<vmem>>, vector<1x128x128xbf16>
    %43 = vector.shape_cast %42 : vector<1x128x128xbf16> to vector<128x128xbf16>
    %cst_60 = arith.constant dense<0.000000e+00> : vector<256x128xf32>
    %44 = tpu.matmul %41, %43, %cst_60 {dimension_numbers = #tpu.dot_dimension_numbers<[1], [0], [0], [1], [0, 0, 1, 1], [], []>} : vector<256x128xbf16>, vector<128x128xbf16>, vector<256x128xf32> -> vector<256x128xf32>
    %45 = arith.addf %38, %44 : vector<256x128xf32>
    %c0_61 = arith.constant 0 : index
    %c1_62 = arith.constant 1 : index
    %c2_63 = arith.constant 2 : index
    %c0_64 = arith.constant 0 : index
    %46 = vector.load %arg7[%c0_61, %c1_62, %c2_63, %c0_64] : memref<1x18x18x128xf32, #tpu.memory_space<vmem>>, vector<1x16x16x128xf32>
    %47 = vector.shape_cast %46 : vector<1x16x16x128xf32> to vector<256x128xf32>
    %48 = arith.truncf %47 : vector<256x128xf32> to vector<256x128xbf16>
    %c5 = arith.constant 5 : index
    %c0_65 = arith.constant 0 : index
    %c0_66 = arith.constant 0 : index
    %49 = vector.load %arg2[%c5, %c0_65, %c0_66] : memref<9x128x128xbf16, #tpu.memory_space<vmem>>, vector<1x128x128xbf16>
    %50 = vector.shape_cast %49 : vector<1x128x128xbf16> to vector<128x128xbf16>
    %cst_67 = arith.constant dense<0.000000e+00> : vector<256x128xf32>
    %51 = tpu.matmul %48, %50, %cst_67 {dimension_numbers = #tpu.dot_dimension_numbers<[1], [0], [0], [1], [0, 0, 1, 1], [], []>} : vector<256x128xbf16>, vector<128x128xbf16>, vector<256x128xf32> -> vector<256x128xf32>
    %52 = arith.addf %45, %51 : vector<256x128xf32>
    %c0_68 = arith.constant 0 : index
    %c2_69 = arith.constant 2 : index
    %c0_70 = arith.constant 0 : index
    %c0_71 = arith.constant 0 : index
    %53 = vector.load %arg7[%c0_68, %c2_69, %c0_70, %c0_71] : memref<1x18x18x128xf32, #tpu.memory_space<vmem>>, vector<1x16x16x128xf32>
    %54 = vector.shape_cast %53 : vector<1x16x16x128xf32> to vector<256x128xf32>
    %55 = arith.truncf %54 : vector<256x128xf32> to vector<256x128xbf16>
    %c6 = arith.constant 6 : index
    %c0_72 = arith.constant 0 : index
    %c0_73 = arith.constant 0 : index
    %56 = vector.load %arg2[%c6, %c0_72, %c0_73] : memref<9x128x128xbf16, #tpu.memory_space<vmem>>, vector<1x128x128xbf16>
    %57 = vector.shape_cast %56 : vector<1x128x128xbf16> to vector<128x128xbf16>
    %cst_74 = arith.constant dense<0.000000e+00> : vector<256x128xf32>
    %58 = tpu.matmul %55, %57, %cst_74 {dimension_numbers = #tpu.dot_dimension_numbers<[1], [0], [0], [1], [0, 0, 1, 1], [], []>} : vector<256x128xbf16>, vector<128x128xbf16>, vector<256x128xf32> -> vector<256x128xf32>
    %59 = arith.addf %52, %58 : vector<256x128xf32>
    %c0_75 = arith.constant 0 : index
    %c2_76 = arith.constant 2 : index
    %c1_77 = arith.constant 1 : index
    %c0_78 = arith.constant 0 : index
    %60 = vector.load %arg7[%c0_75, %c2_76, %c1_77, %c0_78] : memref<1x18x18x128xf32, #tpu.memory_space<vmem>>, vector<1x16x16x128xf32>
    %61 = vector.shape_cast %60 : vector<1x16x16x128xf32> to vector<256x128xf32>
    %62 = arith.truncf %61 : vector<256x128xf32> to vector<256x128xbf16>
    %c7 = arith.constant 7 : index
    %c0_79 = arith.constant 0 : index
    %c0_80 = arith.constant 0 : index
    %63 = vector.load %arg2[%c7, %c0_79, %c0_80] : memref<9x128x128xbf16, #tpu.memory_space<vmem>>, vector<1x128x128xbf16>
    %64 = vector.shape_cast %63 : vector<1x128x128xbf16> to vector<128x128xbf16>
    %cst_81 = arith.constant dense<0.000000e+00> : vector<256x128xf32>
    %65 = tpu.matmul %62, %64, %cst_81 {dimension_numbers = #tpu.dot_dimension_numbers<[1], [0], [0], [1], [0, 0, 1, 1], [], []>} : vector<256x128xbf16>, vector<128x128xbf16>, vector<256x128xf32> -> vector<256x128xf32>
    %66 = arith.addf %59, %65 : vector<256x128xf32>
    %c0_82 = arith.constant 0 : index
    %c2_83 = arith.constant 2 : index
    %c2_84 = arith.constant 2 : index
    %c0_85 = arith.constant 0 : index
    %67 = vector.load %arg7[%c0_82, %c2_83, %c2_84, %c0_85] : memref<1x18x18x128xf32, #tpu.memory_space<vmem>>, vector<1x16x16x128xf32>
    %68 = vector.shape_cast %67 : vector<1x16x16x128xf32> to vector<256x128xf32>
    %69 = arith.truncf %68 : vector<256x128xf32> to vector<256x128xbf16>
    %c8 = arith.constant 8 : index
    %c0_86 = arith.constant 0 : index
    %c0_87 = arith.constant 0 : index
    %70 = vector.load %arg2[%c8, %c0_86, %c0_87] : memref<9x128x128xbf16, #tpu.memory_space<vmem>>, vector<1x128x128xbf16>
    %71 = vector.shape_cast %70 : vector<1x128x128xbf16> to vector<128x128xbf16>
    %cst_88 = arith.constant dense<0.000000e+00> : vector<256x128xf32>
    %72 = tpu.matmul %69, %71, %cst_88 {dimension_numbers = #tpu.dot_dimension_numbers<[1], [0], [0], [1], [0, 0, 1, 1], [], []>} : vector<256x128xbf16>, vector<128x128xbf16>, vector<256x128xf32> -> vector<256x128xf32>
    %73 = arith.addf %66, %72 : vector<256x128xf32>
    %c0_89 = arith.constant 0 : index
    %c0_90 = arith.constant 0 : index
    %74 = vector.load %arg3[%c0_89, %c0_90] : memref<1x128xf32, #tpu.memory_space<vmem>>, vector<1x128xf32>
    %75 = vector.broadcast %74 : vector<1x128xf32> to vector<256x128xf32>
    %76 = arith.addf %73, %75 : vector<256x128xf32>
    %cst_91 = arith.constant 0.000000e+00 : f32
    %77 = vector.broadcast %cst_91 : f32 to vector<256x128xf32>
    %78 = arith.maximumf %76, %77 : vector<256x128xf32>
    %79 = vector.shape_cast %78 : vector<256x128xf32> to vector<1x16x16x128xf32>
    %c0_92 = arith.constant 0 : index
    %c1_93 = arith.constant 1 : index
    %c1_94 = arith.constant 1 : index
    %c0_95 = arith.constant 0 : index
    %80 = vector.load %arg7[%c0_92, %c1_93, %c1_94, %c0_95] : memref<1x18x18x128xf32, #tpu.memory_space<vmem>>, vector<1x16x16x128xf32>
    tpu.vector_store %arg7[%c0_92, %c1_93, %c1_94, %c0_95], %79 {strides = array<i32>} : memref<1x18x18x128xf32, #tpu.memory_space<vmem>>, vector<1x16x16x128xf32>,
    %cst_96 = arith.constant 0.000000e+00 : f32
    %81 = vector.broadcast %cst_96 : f32 to vector<256x128xf32>
    %c0_97 = arith.constant 0 : index
    %c0_98 = arith.constant 0 : index
    %c0_99 = arith.constant 0 : index
    %c0_100 = arith.constant 0 : index
    %82 = vector.load %arg7[%c0_97, %c0_98, %c0_99, %c0_100] : memref<1x18x18x128xf32, #tpu.memory_space<vmem>>, vector<1x16x16x128xf32>
    %83 = vector.shape_cast %82 : vector<1x16x16x128xf32> to vector<256x128xf32>
    %84 = arith.truncf %83 : vector<256x128xf32> to vector<256x128xbf16>
    %c0_101 = arith.constant 0 : index
    %c0_102 = arith.constant 0 : index
    %c0_103 = arith.constant 0 : index
    %85 = vector.load %arg4[%c0_101, %c0_102, %c0_103] : memref<9x128x128xbf16, #tpu.memory_space<vmem>>, vector<1x128x128xbf16>
    %86 = vector.shape_cast %85 : vector<1x128x128xbf16> to vector<128x128xbf16>
    %cst_104 = arith.constant dense<0.000000e+00> : vector<256x128xf32>
    %87 = tpu.matmul %84, %86, %cst_104 {dimension_numbers = #tpu.dot_dimension_numbers<[1], [0], [0], [1], [0, 0, 1, 1], [], []>} : vector<256x128xbf16>, vector<128x128xbf16>, vector<256x128xf32> -> vector<256x128xf32>
    %88 = arith.addf %81, %87 : vector<256x128xf32>
    %c0_105 = arith.constant 0 : index
    %c0_106 = arith.constant 0 : index
    %c1_107 = arith.constant 1 : index
    %c0_108 = arith.constant 0 : index
    %89 = vector.load %arg7[%c0_105, %c0_106, %c1_107, %c0_108] : memref<1x18x18x128xf32, #tpu.memory_space<vmem>>, vector<1x16x16x128xf32>
    %90 = vector.shape_cast %89 : vector<1x16x16x128xf32> to vector<256x128xf32>
    %91 = arith.truncf %90 : vector<256x128xf32> to vector<256x128xbf16>
    %c1_109 = arith.constant 1 : index
    %c0_110 = arith.constant 0 : index
    %c0_111 = arith.constant 0 : index
    %92 = vector.load %arg4[%c1_109, %c0_110, %c0_111] : memref<9x128x128xbf16, #tpu.memory_space<vmem>>, vector<1x128x128xbf16>
    %93 = vector.shape_cast %92 : vector<1x128x128xbf16> to vector<128x128xbf16>
    %cst_112 = arith.constant dense<0.000000e+00> : vector<256x128xf32>
    %94 = tpu.matmul %91, %93, %cst_112 {dimension_numbers = #tpu.dot_dimension_numbers<[1], [0], [0], [1], [0, 0, 1, 1], [], []>} : vector<256x128xbf16>, vector<128x128xbf16>, vector<256x128xf32> -> vector<256x128xf32>
    %95 = arith.addf %88, %94 : vector<256x128xf32>
    %c0_113 = arith.constant 0 : index
    %c0_114 = arith.constant 0 : index
    %c2_115 = arith.constant 2 : index
    %c0_116 = arith.constant 0 : index
    %96 = vector.load %arg7[%c0_113, %c0_114, %c2_115, %c0_116] : memref<1x18x18x128xf32, #tpu.memory_space<vmem>>, vector<1x16x16x128xf32>
    %97 = vector.shape_cast %96 : vector<1x16x16x128xf32> to vector<256x128xf32>
    %98 = arith.truncf %97 : vector<256x128xf32> to vector<256x128xbf16>
    %c2_117 = arith.constant 2 : index
    %c0_118 = arith.constant 0 : index
    %c0_119 = arith.constant 0 : index
    %99 = vector.load %arg4[%c2_117, %c0_118, %c0_119] : memref<9x128x128xbf16, #tpu.memory_space<vmem>>, vector<1x128x128xbf16>
    %100 = vector.shape_cast %99 : vector<1x128x128xbf16> to vector<128x128xbf16>
    %cst_120 = arith.constant dense<0.000000e+00> : vector<256x128xf32>
    %101 = tpu.matmul %98, %100, %cst_120 {dimension_numbers = #tpu.dot_dimension_numbers<[1], [0], [0], [1], [0, 0, 1, 1], [], []>} : vector<256x128xbf16>, vector<128x128xbf16>, vector<256x128xf32> -> vector<256x128xf32>
    %102 = arith.addf %95, %101 : vector<256x128xf32>
    %c0_121 = arith.constant 0 : index
    %c1_122 = arith.constant 1 : index
    %c0_123 = arith.constant 0 : index
    %c0_124 = arith.constant 0 : index
    %103 = vector.load %arg7[%c0_121, %c1_122, %c0_123, %c0_124] : memref<1x18x18x128xf32, #tpu.memory_space<vmem>>, vector<1x16x16x128xf32>
    %104 = vector.shape_cast %103 : vector<1x16x16x128xf32> to vector<256x128xf32>
    %105 = arith.truncf %104 : vector<256x128xf32> to vector<256x128xbf16>
    %c3_125 = arith.constant 3 : index
    %c0_126 = arith.constant 0 : index
    %c0_127 = arith.constant 0 : index
    %106 = vector.load %arg4[%c3_125, %c0_126, %c0_127] : memref<9x128x128xbf16, #tpu.memory_space<vmem>>, vector<1x128x128xbf16>
    %107 = vector.shape_cast %106 : vector<1x128x128xbf16> to vector<128x128xbf16>
    %cst_128 = arith.constant dense<0.000000e+00> : vector<256x128xf32>
    %108 = tpu.matmul %105, %107, %cst_128 {dimension_numbers = #tpu.dot_dimension_numbers<[1], [0], [0], [1], [0, 0, 1, 1], [], []>} : vector<256x128xbf16>, vector<128x128xbf16>, vector<256x128xf32> -> vector<256x128xf32>
    %109 = arith.addf %102, %108 : vector<256x128xf32>
    %c0_129 = arith.constant 0 : index
    %c1_130 = arith.constant 1 : index
    %c1_131 = arith.constant 1 : index
    %c0_132 = arith.constant 0 : index
    %110 = vector.load %arg7[%c0_129, %c1_130, %c1_131, %c0_132] : memref<1x18x18x128xf32, #tpu.memory_space<vmem>>, vector<1x16x16x128xf32>
    %111 = vector.shape_cast %110 : vector<1x16x16x128xf32> to vector<256x128xf32>
    %112 = arith.truncf %111 : vector<256x128xf32> to vector<256x128xbf16>
    %c4_133 = arith.constant 4 : index
    %c0_134 = arith.constant 0 : index
    %c0_135 = arith.constant 0 : index
    %113 = vector.load %arg4[%c4_133, %c0_134, %c0_135] : memref<9x128x128xbf16, #tpu.memory_space<vmem>>, vector<1x128x128xbf16>
    %114 = vector.shape_cast %113 : vector<1x128x128xbf16> to vector<128x128xbf16>
    %cst_136 = arith.constant dense<0.000000e+00> : vector<256x128xf32>
    %115 = tpu.matmul %112, %114, %cst_136 {dimension_numbers = #tpu.dot_dimension_numbers<[1], [0], [0], [1], [0, 0, 1, 1], [], []>} : vector<256x128xbf16>, vector<128x128xbf16>, vector<256x128xf32> -> vector<256x128xf32>
    %116 = arith.addf %109, %115 : vector<256x128xf32>
    %c0_137 = arith.constant 0 : index
    %c1_138 = arith.constant 1 : index
    %c2_139 = arith.constant 2 : index
    %c0_140 = arith.constant 0 : index
    %117 = vector.load %arg7[%c0_137, %c1_138, %c2_139, %c0_140] : memref<1x18x18x128xf32, #tpu.memory_space<vmem>>, vector<1x16x16x128xf32>
    %118 = vector.shape_cast %117 : vector<1x16x16x128xf32> to vector<256x128xf32>
    %119 = arith.truncf %118 : vector<256x128xf32> to vector<256x128xbf16>
    %c5_141 = arith.constant 5 : index
    %c0_142 = arith.constant 0 : index
    %c0_143 = arith.constant 0 : index
    %120 = vector.load %arg4[%c5_141, %c0_142, %c0_143] : memref<9x128x128xbf16, #tpu.memory_space<vmem>>, vector<1x128x128xbf16>
    %121 = vector.shape_cast %120 : vector<1x128x128xbf16> to vector<128x128xbf16>
    %cst_144 = arith.constant dense<0.000000e+00> : vector<256x128xf32>
    %122 = tpu.matmul %119, %121, %cst_144 {dimension_numbers = #tpu.dot_dimension_numbers<[1], [0], [0], [1], [0, 0, 1, 1], [], []>} : vector<256x128xbf16>, vector<128x128xbf16>, vector<256x128xf32> -> vector<256x128xf32>
    %123 = arith.addf %116, %122 : vector<256x128xf32>
    %c0_145 = arith.constant 0 : index
    %c2_146 = arith.constant 2 : index
    %c0_147 = arith.constant 0 : index
    %c0_148 = arith.constant 0 : index
    %124 = vector.load %arg7[%c0_145, %c2_146, %c0_147, %c0_148] : memref<1x18x18x128xf32, #tpu.memory_space<vmem>>, vector<1x16x16x128xf32>
    %125 = vector.shape_cast %124 : vector<1x16x16x128xf32> to vector<256x128xf32>
    %126 = arith.truncf %125 : vector<256x128xf32> to vector<256x128xbf16>
    %c6_149 = arith.constant 6 : index
    %c0_150 = arith.constant 0 : index
    %c0_151 = arith.constant 0 : index
    %127 = vector.load %arg4[%c6_149, %c0_150, %c0_151] : memref<9x128x128xbf16, #tpu.memory_space<vmem>>, vector<1x128x128xbf16>
    %128 = vector.shape_cast %127 : vector<1x128x128xbf16> to vector<128x128xbf16>
    %cst_152 = arith.constant dense<0.000000e+00> : vector<256x128xf32>
    %129 = tpu.matmul %126, %128, %cst_152 {dimension_numbers = #tpu.dot_dimension_numbers<[1], [0], [0], [1], [0, 0, 1, 1], [], []>} : vector<256x128xbf16>, vector<128x128xbf16>, vector<256x128xf32> -> vector<256x128xf32>
    %130 = arith.addf %123, %129 : vector<256x128xf32>
    %c0_153 = arith.constant 0 : index
    %c2_154 = arith.constant 2 : index
    %c1_155 = arith.constant 1 : index
    %c0_156 = arith.constant 0 : index
    %131 = vector.load %arg7[%c0_153, %c2_154, %c1_155, %c0_156] : memref<1x18x18x128xf32, #tpu.memory_space<vmem>>, vector<1x16x16x128xf32>
    %132 = vector.shape_cast %131 : vector<1x16x16x128xf32> to vector<256x128xf32>
    %133 = arith.truncf %132 : vector<256x128xf32> to vector<256x128xbf16>
    %c7_157 = arith.constant 7 : index
    %c0_158 = arith.constant 0 : index
    %c0_159 = arith.constant 0 : index
    %134 = vector.load %arg4[%c7_157, %c0_158, %c0_159] : memref<9x128x128xbf16, #tpu.memory_space<vmem>>, vector<1x128x128xbf16>
    %135 = vector.shape_cast %134 : vector<1x128x128xbf16> to vector<128x128xbf16>
    %cst_160 = arith.constant dense<0.000000e+00> : vector<256x128xf32>
    %136 = tpu.matmul %133, %135, %cst_160 {dimension_numbers = #tpu.dot_dimension_numbers<[1], [0], [0], [1], [0, 0, 1, 1], [], []>} : vector<256x128xbf16>, vector<128x128xbf16>, vector<256x128xf32> -> vector<256x128xf32>
    %137 = arith.addf %130, %136 : vector<256x128xf32>
    %c0_161 = arith.constant 0 : index
    %c2_162 = arith.constant 2 : index
    %c2_163 = arith.constant 2 : index
    %c0_164 = arith.constant 0 : index
    %138 = vector.load %arg7[%c0_161, %c2_162, %c2_163, %c0_164] : memref<1x18x18x128xf32, #tpu.memory_space<vmem>>, vector<1x16x16x128xf32>
    %139 = vector.shape_cast %138 : vector<1x16x16x128xf32> to vector<256x128xf32>
    %140 = arith.truncf %139 : vector<256x128xf32> to vector<256x128xbf16>
    %c8_165 = arith.constant 8 : index
    %c0_166 = arith.constant 0 : index
    %c0_167 = arith.constant 0 : index
    %141 = vector.load %arg4[%c8_165, %c0_166, %c0_167] : memref<9x128x128xbf16, #tpu.memory_space<vmem>>, vector<1x128x128xbf16>
    %142 = vector.shape_cast %141 : vector<1x128x128xbf16> to vector<128x128xbf16>
    %cst_168 = arith.constant dense<0.000000e+00> : vector<256x128xf32>
    %143 = tpu.matmul %140, %142, %cst_168 {dimension_numbers = #tpu.dot_dimension_numbers<[1], [0], [0], [1], [0, 0, 1, 1], [], []>} : vector<256x128xbf16>, vector<128x128xbf16>, vector<256x128xf32> -> vector<256x128xf32>
    %144 = arith.addf %137, %143 : vector<256x128xf32>
    %c0_169 = arith.constant 0 : index
    %c0_170 = arith.constant 0 : index
    %145 = vector.load %arg5[%c0_169, %c0_170] : memref<1x128xf32, #tpu.memory_space<vmem>>, vector<1x128xf32>
    %146 = vector.broadcast %145 : vector<1x128xf32> to vector<256x128xf32>
    %147 = arith.addf %144, %146 : vector<256x128xf32>
    %148 = vector.shape_cast %147 : vector<256x128xf32> to vector<1x16x16x128xf32>
    %149 = vector.extract_strided_slice %148 {offsets = [0, 0, 0, 0], sizes = [1, 16, 16, 4], strides = [1, 1, 1, 1]} : vector<1x16x16x128xf32> to vector<1x16x16x4xf32>
    %150 = arith.addf %6, %149 : vector<1x16x16x4xf32>
    %c0_171 = arith.constant 0 : index
    %c0_172 = arith.constant 0 : index
    %c0_173 = arith.constant 0 : index
    %c0_174 = arith.constant 0 : index
    %151 = vector.load %arg6[%c0_171, %c0_172, %c0_173, %c0_174] : memref<1x16x16x4xf32, #tpu.memory_space<vmem>>, vector<1x16x16x4xf32>
    tpu.vector_store %arg6[%c0_171, %c0_172, %c0_173, %c0_174], %150 {strides = array<i32>} : memref<1x16x16x4xf32, #tpu.memory_space<vmem>>, vector<1x16x16x4xf32>,
    return
  }
  func.func @transform_0(%arg0: i32) -> (i32, i32, i32, i32) {
    %c0_i32 = arith.constant 0 : i32
    %c0_i32_0 = arith.constant 0 : i32
    %c0_i32_1 = arith.constant 0 : i32
    %c0_i32_2 = arith.constant 0 : i32
    return %arg0, %c0_i32, %c0_i32_0, %c0_i32_1 : i32, i32, i32, i32
  }
  func.func @transform_1(%arg0: i32) -> (i32, i32, i32) {
    %c0_i32 = arith.constant 0 : i32
    %c0_i32_0 = arith.constant 0 : i32
    %c0_i32_1 = arith.constant 0 : i32
    %c0_i32_2 = arith.constant 0 : i32
    return %c0_i32, %c0_i32_0, %c0_i32_1 : i32, i32, i32
  }
  func.func @transform_2(%arg0: i32) -> (i32, i32) {
    %c0_i32 = arith.constant 0 : i32
    %c0_i32_0 = arith.constant 0 : i32
    %c0_i32_1 = arith.constant 0 : i32
    return %c0_i32, %c0_i32_0 : i32, i32
  }
  func.func @transform_3(%arg0: i32) -> (i32, i32, i32) {
    %c0_i32 = arith.constant 0 : i32
    %c0_i32_0 = arith.constant 0 : i32
    %c0_i32_1 = arith.constant 0 : i32
    %c0_i32_2 = arith.constant 0 : i32
    return %c0_i32, %c0_i32_0, %c0_i32_1 : i32, i32, i32
  }
  func.func @transform_4(%arg0: i32) -> (i32, i32) {
    %c0_i32 = arith.constant 0 : i32
    %c0_i32_0 = arith.constant 0 : i32
    %c0_i32_1 = arith.constant 0 : i32
    return %c0_i32, %c0_i32_0 : i32, i32
  }
  func.func @transform_5(%arg0: i32) -> (i32, i32, i32, i32) {
    %c0_i32 = arith.constant 0 : i32
    %c0_i32_0 = arith.constant 0 : i32
    %c0_i32_1 = arith.constant 0 : i32
    %c0_i32_2 = arith.constant 0 : i32
    return %arg0, %c0_i32, %c0_i32_0, %c0_i32_1 : i32, i32, i32, i32
  }
}

</mosaic_0001>

<llo_original>
// kernel: tpu_custom_call.1
$region0: #{tpu_custom_call.1}
  #allocation0 [shape = 'u32[]', space=smem, size = 0x4, offset = 0x4, fixed_abs, tag = 'smem constant byte address 0x4 - core index']
  #allocation1 [shape = 'u32[144,128]{1,0:T(1,128)}', space=vmem, size = 0x12000, scoped, tag = 'internal scratch']
  #allocation2 [shape = 'f32[1,18,18,128]{3,2,1,0:T(8,128)}', space=vmem, size = 0x36000, scoped, tag = 'scratch operand']
  %s0 = inlined_call_operand.vmem [shape: f32[2,16,16,4], index: 0, kind: input, shape index: {}]
  %s1 = inlined_call_operand.vmem [shape: bf16[9,128,128], index: 1, kind: input, shape index: {}]
  %s2 = inlined_call_operand.vmem [shape: f32[1,128], index: 2, kind: input, shape index: {}]
  %s3 = inlined_call_operand.hbm [shape: bf16[9,128,128], index: 3, kind: input, shape index: {}]
  %s4 = inlined_call_operand.vmem [shape: f32[1,128], index: 4, kind: input, shape index: {}]
  %s5 = inlined_call_operand.vmem [shape: f32[2,16,16,4], index: 5, kind: output, shape index: {}]
  %s6 = sld [smem:[#allocation0]]
  $region57: #{tpu_custom_call.1} parent=0
    _
  %s8 = ssub.s32 1, %s6
  %s9 = scalar_select 0, %s8, %s6
  $region1: #{tpu_custom_call.1} parent=0
    #allocation3 [shape = 'u8[294912]{0}', space=vmem, size = 0x48000, scoped, tag = 'input window, operand 3, single buffered']
    #allocation4 [shape = 's32[2]{0}', space=sflag, size = 0x8, scoped, tag = 'scoped memory for tpu_custom_call.1']
    %10 = vsyncpa [#allocation4], 0
    loop: start=0, step=1, limit=4
    $region2: #{tpu_custom_call.1} parent=1 // loop_pre_header
      _
    $region3: #{tpu_custom_call.1} parent=1 // loop_header
      %s12 = sphi 0, %s16
      %p13 = scmp.ge.s32.totalorder %s12, 4
      %s22 = sphi 0, %s24
      %s25 = sphi 0, %s22
      %s26 = sphi 0, %s25
      %s42 = sphi 0, %s26
      %s46 = sphi 0, %s46
      %s48 = sphi 0, %s46
      %s49 = sphi 0, %s48
      %s63 = sphi 0, %s49
      %s67 = sphi 0, %s67
      %s69 = sphi 0, %s67
      %s70 = sphi 0, %s69
      %s84 = sphi 0, %s70
      %s88 = sphi 0, %s88
      %s90 = sphi 0, %s88
      %s91 = sphi 0, %s90
      %s105 = sphi 0, %s91
      %s109 = sphi 0, %s109
      %s111 = sphi 0, %s109
      %s112 = sphi 0, %s111
      %s126 = sphi 0, %s112
      %s132 = sphi 0, %s134
      %s135 = sphi 0, %s132
      %s136 = sphi 0, %s135
      %s152 = sphi 0, %s136
    $region4: #{tpu_custom_call.1} parent=1 // loop_header_branch
      %15 = sbr.rel (%p13) target = $region8
    $region5: #{tpu_custom_call.1} parent=1 // loop_body
      %s17 = ssub.s32 %s12, 1
      %s18 = ssub.s32 %s12, 2
      %s19 = sadd.s32 %s12, 1
      %s20 = ssub.s32 %s12, %s19
      %p21 = scmp.eq.s32.totalorder %s20, 0
      %s23 = sadd.s32 %s22, 1
      %s24 = scalar_select %p21, %s22, %s23
      %p27 = pneg %p21
      %p28 = scmp.eq.s32.totalorder %s12, 1
      %p29 = por %p27, %p28
      %p30 = scmp.ne.s32.totalorder %s22, %s25
      %p31 = scmp.eq.s32.totalorder %s12, 0
      %p32 = por %p30, %p31
      %p33 = scmp.ne.s32.totalorder %s22, %s25
      %p34 = scmp.eq.s32.totalorder %s17, 1
      %p35 = por %p33, %p34
      %p36 = scmp.ne.s32.totalorder %s25, %s26
      %p37 = scmp.eq.s32.totalorder %s17, 0
      %p38 = por %p36, %p37
      %p39 = scmp.ne.s32.totalorder %s25, %s26
      %p40 = scmp.eq.s32.totalorder %s18, 1
      %p41 = por %p39, %p40
      %p43 = scmp.ne.s32.totalorder %s26, %s42
      %p44 = scmp.eq.s32.totalorder %s18, 0
      %p45 = por %p43, %p44
      %s47 = sadd.s32 %s46, 1
      %p50 = scmp.eq.s32.totalorder %s12, 1
      %p51 = scmp.ne.s32.totalorder %s46, %s48
      %p52 = scmp.eq.s32.totalorder %s12, 0
      %p53 = por %p51, %p52
      %p54 = scmp.ne.s32.totalorder %s46, %s48
      %p55 = scmp.eq.s32.totalorder %s17, 1
      %p56 = por %p54, %p55
      %p57 = scmp.ne.s32.totalorder %s48, %s49
      %p58 = scmp.eq.s32.totalorder %s17, 0
      %p59 = por %p57, %p58
      %p60 = scmp.ne.s32.totalorder %s48, %s49
      %p61 = scmp.eq.s32.totalorder %s18, 1
      %p62 = por %p60, %p61
      %p64 = scmp.ne.s32.totalorder %s49, %s63
      %p65 = scmp.eq.s32.totalorder %s18, 0
      %p66 = por %p64, %p65
      %s68 = sadd.s32 %s67, 1
      %p71 = scmp.eq.s32.totalorder %s12, 1
      %p72 = scmp.ne.s32.totalorder %s67, %s69
      %p73 = scmp.eq.s32.totalorder %s12, 0
      %p74 = por %p72, %p73
      %p75 = scmp.ne.s32.totalorder %s67, %s69
      %p76 = scmp.eq.s32.totalorder %s17, 1
      %p77 = por %p75, %p76
      %p78 = scmp.ne.s32.totalorder %s69, %s70
      %p79 = scmp.eq.s32.totalorder %s17, 0
      %p80 = por %p78, %p79
      %p81 = scmp.ne.s32.totalorder %s69, %s70
      %p82 = scmp.eq.s32.totalorder %s18, 1
      %p83 = por %p81, %p82
      %p85 = scmp.ne.s32.totalorder %s70, %s84
      %p86 = scmp.eq.s32.totalorder %s18, 0
      %p87 = por %p85, %p86
      %s89 = sadd.s32 %s88, 1
      %p92 = scmp.eq.s32.totalorder %s12, 1
      %p93 = scmp.ne.s32.totalorder %s88, %s90
      %p94 = scmp.eq.s32.totalorder %s12, 0
      %p95 = por %p93, %p94
      %p96 = scmp.ne.s32.totalorder %s88, %s90
      %p97 = scmp.eq.s32.totalorder %s17, 1
      %p98 = por %p96, %p97
      %p99 = scmp.ne.s32.totalorder %s90, %s91
      %p100 = scmp.eq.s32.totalorder %s17, 0
      %p101 = por %p99, %p100
      %p102 = scmp.ne.s32.totalorder %s90, %s91
      %p103 = scmp.eq.s32.totalorder %s18, 1
      %p104 = por %p102, %p103
      %p106 = scmp.ne.s32.totalorder %s91, %s105
      %p107 = scmp.eq.s32.totalorder %s18, 0
      %p108 = por %p106, %p107
      %s110 = sadd.s32 %s109, 1
      %p113 = scmp.eq.s32.totalorder %s12, 1
      %p114 = scmp.ne.s32.totalorder %s109, %s111
      %p115 = scmp.eq.s32.totalorder %s12, 0
      %p116 = por %p114, %p115
      %p117 = scmp.ne.s32.totalorder %s109, %s111
      %p118 = scmp.eq.s32.totalorder %s17, 1
      %p119 = por %p117, %p118
      %p120 = scmp.ne.s32.totalorder %s111, %s112
      %p121 = scmp.eq.s32.totalorder %s17, 0
      %p122 = por %p120, %p121
      %p123 = scmp.ne.s32.totalorder %s111, %s112
      %p124 = scmp.eq.s32.totalorder %s18, 1
      %p125 = por %p123, %p124
      %p127 = scmp.ne.s32.totalorder %s112, %s126
      %p128 = scmp.eq.s32.totalorder %s18, 0
      %p129 = por %p127, %p128
      %s130 = ssub.s32 %s12, %s19
      %p131 = scmp.eq.s32.totalorder %s130, 0
      %s133 = sadd.s32 %s132, 1
      %s134 = scalar_select %p131, %s132, %s133
      %p137 = pneg %p131
      %p138 = scmp.eq.s32.totalorder %s12, 1
      %p139 = por %p137, %p138
      %p140 = scmp.ne.s32.totalorder %s132, %s135
      %p141 = scmp.eq.s32.totalorder %s12, 0
      %p142 = por %p140, %p141
      %p143 = scmp.ne.s32.totalorder %s132, %s135
      %p144 = scmp.eq.s32.totalorder %s17, 1
      %p145 = por %p143, %p144
      %p146 = scmp.ne.s32.totalorder %s135, %s136
      %p147 = scmp.eq.s32.totalorder %s17, 0
      %p148 = por %p146, %p147
      %p149 = scmp.ne.s32.totalorder %s135, %s136
      %p150 = scmp.eq.s32.totalorder %s18, 1
      %p151 = por %p149, %p150
      %p153 = scmp.ne.s32.totalorder %s136, %s152
      %p154 = scmp.eq.s32.totalorder %s18, 0
      %p155 = por %p153, %p154
      %p156 = scmp.le.s32.totalorder 1, %s12
      %p157 = scmp.lt.s32.totalorder %s12, 3
      %p158 = pnand %p156, %p157
      %p159 = pneg %p158
      // Predicated region
      $region9: #{tpu_custom_call.1} parent=5 // pred_check
        _
      $region10: #{tpu_custom_call.1} parent=5 // pred_check_branch
        %161 = sbr.rel (%p158) target = $region12
      $region11: #{tpu_custom_call.1} parent=5 // pred_region
        %s162 = ssub.s32 %s12, 1
        // Predicated region
        $region13: #{tpu_custom_call.1} parent=11 // pred_check
          %p163 = pneg %p59
        $region14: #{tpu_custom_call.1} parent=11 // pred_check_branch
          %165 = sbr.rel (%p163) target = $region16
        $region15: #{tpu_custom_call.1} parent=11 // pred_region
          _
        $region16: #{tpu_custom_call.1} parent=11 // pred_fallthru
          _
        // Predicated region
        $region17: #{tpu_custom_call.1} parent=11 // pred_check
          %p166 = pneg %p80
        $region18: #{tpu_custom_call.1} parent=11 // pred_check_branch
          %168 = sbr.rel (%p166) target = $region20
        $region19: #{tpu_custom_call.1} parent=11 // pred_region
          _
        $region20: #{tpu_custom_call.1} parent=11 // pred_fallthru
          _
        // Predicated region
        $region21: #{tpu_custom_call.1} parent=11 // pred_check
          %p169 = pneg %p101
        $region22: #{tpu_custom_call.1} parent=11 // pred_check_branch
          %171 = sbr.rel (%p169) target = $region24
        $region23: #{tpu_custom_call.1} parent=11 // pred_region
          %s173 = ssub.s32 9216, 9216
          %174 = vsyncadd [#allocation4], %s173
          %s175 = sshll.u32 [#allocation3], 4
          %s176 = int_to_ptr.vmem [resolvable:$true] %s175
          %181 = dma.hbm_to_vmem [thread:$0]  %s3, 9216, %s176, [#allocation4], 64, 64, 4
        $region24: #{tpu_custom_call.1} parent=11 // pred_fallthru
          _
        // Predicated region
        $region25: #{tpu_custom_call.1} parent=11 // pred_check
          %p182 = pneg %p122
        $region26: #{tpu_custom_call.1} parent=11 // pred_check_branch
          %184 = sbr.rel (%p182) target = $region28
        $region27: #{tpu_custom_call.1} parent=11 // pred_region
          _
        $region28: #{tpu_custom_call.1} parent=11 // pred_fallthru
          _
      $region12: #{tpu_custom_call.1} parent=5 // pred_fallthru
        _
      %p185 = scmp.lt.s32.totalorder %s12, 2
      // Predicated region
      $region29: #{tpu_custom_call.1} parent=5 // pred_check
        %p186 = pneg %p185
      $region30: #{tpu_custom_call.1} parent=5 // pred_check_branch
        %188 = sbr.rel (%p186) target = $region32
      $region31: #{tpu_custom_call.1} parent=5 // pred_region
        // Predicated region
        $region33: #{tpu_custom_call.1} parent=31 // pred_check
          %p189 = pneg %p32
        $region34: #{tpu_custom_call.1} parent=31 // pred_check_branch
          %191 = sbr.rel (%p189) target = $region36
        $region35: #{tpu_custom_call.1} parent=31 // pred_region
          %p192 = scmp.lt.s32.totalorder %s12, 1
          %s193 = scalar_select %p192, %s12, 1
          %s194 = smul.addr %s193, 32
          %s195 = smul.addr %s194, 8
          %s196 = scalar_lea.vmem %s0, %s195
        $region36: #{tpu_custom_call.1} parent=31 // pred_fallthru
          _
      $region32: #{tpu_custom_call.1} parent=5 // pred_fallthru
        _
      %p197 = scmp.le.s32.totalorder 1, %s12
      %p198 = scmp.lt.s32.totalorder %s12, 3
      %p199 = pnand %p197, %p198
      %p200 = pneg %p199
      // Predicated region
      $region37: #{tpu_custom_call.1} parent=5 // pred_check
        _
      $region38: #{tpu_custom_call.1} parent=5 // pred_check_branch
        %202 = sbr.rel (%p199) target = $region40
      $region39: #{tpu_custom_call.1} parent=5 // pred_region
        %s203 = ssub.s32 %s12, 1
        // Predicated region
        $region41: #{tpu_custom_call.1} parent=39 // pred_check
          %p204 = pneg %p101
        $region42: #{tpu_custom_call.1} parent=39 // pred_check_branch
          %206 = sbr.rel (%p204) target = $region44
        $region43: #{tpu_custom_call.1} parent=39 // pred_region
          %207 = dma.done [#allocation4], 9216
        $region44: #{tpu_custom_call.1} parent=39 // pred_fallthru
          _
        %p208 = scmp.lt.s32.totalorder %s17, 1
        %s209 = scalar_select %p208, %s17, 1
        %s210 = smul.addr %s209, 32
        %s211 = smul.addr %s210, 8
        %s212 = scalar_lea.vmem %s0, %s211
        %p213 = pneg %p38
        %p214 = pneg %p35
        %p215 = pneg %p59
        %p216 = pneg %p56
        %p217 = pneg %p80
        %p218 = pneg %p77
        %p219 = pneg %p101
        %p220 = pneg %p98
        %p221 = pneg %p122
        %p222 = pneg %p119
        %p223 = pneg %p148
        %p224 = pneg %p145
        %p225 = scmp.lt.s32.totalorder %s17, 1
        %s226 = scalar_select %p225, %s17, 1
        %s227 = smul.addr %s226, 32
        %s228 = smul.addr %s227, 8
        %s229 = scalar_lea.vmem %s5, %s228
        %p230 = scmp.lt.s32.totalorder %s17, 1
        %s231 = scalar_select %p230, %s17, 1
        %s232 = smul.addr %s231, 32
        %s233 = smul.addr %s232, 8
        %s234 = scalar_lea.vmem %s0, %s233
        %p235 = scmp.lt.s32.totalorder %s17, 1
        %s236 = scalar_select %p235, %s17, 1
        %s237 = smul.addr %s236, 32
        %s238 = smul.addr %s237, 8
        %s239 = scalar_lea.vmem %s5, %s238
        %241 = vst [vmem:[#allocation2] sm:$0xff] 0.0
        %242 = vst [vmem:[#allocation2 + $0x8] sm:$0xff] 0.0
        %243 = vst [vmem:[#allocation2 + $0x10] sm:$0x3] 0.0
        %s244 = scalar_lea.vmem [#allocation2], 408
        %245 = vst [vmem:[%s244] sm:$0xff] 0.0
        %246 = vst [vmem:[%s244 + $0x8] sm:$0xff] 0.0
        %247 = vst [vmem:[%s244 + $0x10] sm:$0x3] 0.0
        %s248 = scalar_lea.vmem [#allocation2], 24
        %249 = vst [vmem:[%s248] sm:$0x1] 0.0
        %250 = vst [vmem:[%s248 + $0x18] sm:$0x1] 0.0
        %251 = vst [vmem:[%s248 + $0x30] sm:$0x1] 0.0
        %252 = vst [vmem:[%s248 + $0x48] sm:$0x1] 0.0
        %253 = vst [vmem:[%s248 + $0x60] sm:$0x1] 0.0
        %254 = vst [vmem:[%s248 + $0x78] sm:$0x1] 0.0
        %255 = vst [vmem:[%s248 + $0x90] sm:$0x1] 0.0
        %256 = vst [vmem:[%s248 + $0xa8] sm:$0x1] 0.0
        %257 = vst [vmem:[%s248 + $0xc0] sm:$0x1] 0.0
        %258 = vst [vmem:[%s248 + $0xd8] sm:$0x1] 0.0
        %259 = vst [vmem:[%s248 + $0xf0] sm:$0x1] 0.0
        %260 = vst [vmem:[%s248 + $0x108] sm:$0x1] 0.0
        %261 = vst [vmem:[%s248 + $0x120] sm:$0x1] 0.0
        %262 = vst [vmem:[%s248 + $0x138] sm:$0x1] 0.0
        %263 = vst [vmem:[%s248 + $0x150] sm:$0x1] 0.0
        %264 = vst [vmem:[%s248 + $0x168] sm:$0x1] 0.0
        %265 = vst [vmem:[%s248 + $0x11] sm:$0x1] 0.0
        %266 = vst [vmem:[%s248 + $0x29] sm:$0x1] 0.0
        %267 = vst [vmem:[%s248 + $0x41] sm:$0x1] 0.0
        %268 = vst [vmem:[%s248 + $0x59] sm:$0x1] 0.0
        %269 = vst [vmem:[%s248 + $0x71] sm:$0x1] 0.0
        %270 = vst [vmem:[%s248 + $0x89] sm:$0x1] 0.0
        %271 = vst [vmem:[%s248 + $0xa1] sm:$0x1] 0.0
        %272 = vst [vmem:[%s248 + $0xb9] sm:$0x1] 0.0
        %273 = vst [vmem:[%s248 + $0xd1] sm:$0x1] 0.0
        %274 = vst [vmem:[%s248 + $0xe9] sm:$0x1] 0.0
        %275 = vst [vmem:[%s248 + $0x101] sm:$0x1] 0.0
        %276 = vst [vmem:[%s248 + $0x119] sm:$0x1] 0.0
        %277 = vst [vmem:[%s248 + $0x131] sm:$0x1] 0.0
        %278 = vst [vmem:[%s248 + $0x149] sm:$0x1] 0.0
        %279 = vst [vmem:[%s248 + $0x161] sm:$0x1] 0.0
        %280 = vst [vmem:[%s248 + $0x179] sm:$0x1] 0.0
        %v281 = vld [vmem:[%s234] sm:$0xff]
        %v282 = vld [vmem:[%s234 + $0x8] sm:$0xff]
        %v283 = vld [vmem:[%s234 + $0x10] sm:$0xff]
        %v284 = vld [vmem:[%s234 + $0x18] sm:$0xff]
        %v285 = vld [vmem:[%s234 + $0x20] sm:$0xff]
        %v286 = vld [vmem:[%s234 + $0x28] sm:$0xff]
        %v287 = vld [vmem:[%s234 + $0x30] sm:$0xff]
        %v288 = vld [vmem:[%s234 + $0x38] sm:$0xff]
        %v289 = vld [vmem:[%s234 + $0x40] sm:$0xff]
        %v290 = vld [vmem:[%s234 + $0x48] sm:$0xff]
        %v291 = vld [vmem:[%s234 + $0x50] sm:$0xff]
        %v292 = vld [vmem:[%s234 + $0x58] sm:$0xff]
        %v293 = vld [vmem:[%s234 + $0x60] sm:$0xff]
        %v294 = vld [vmem:[%s234 + $0x68] sm:$0xff]
        %v295 = vld [vmem:[%s234 + $0x70] sm:$0xff]
        %v296 = vld [vmem:[%s234 + $0x78] sm:$0xff]
        %v297 = vld [vmem:[%s234 + $0x80] sm:$0xff]
        %v298 = vld [vmem:[%s234 + $0x88] sm:$0xff]
        %v299 = vld [vmem:[%s234 + $0x90] sm:$0xff]
        %v300 = vld [vmem:[%s234 + $0x98] sm:$0xff]
        %v301 = vld [vmem:[%s234 + $0xa0] sm:$0xff]
        %v302 = vld [vmem:[%s234 + $0xa8] sm:$0xff]
        %v303 = vld [vmem:[%s234 + $0xb0] sm:$0xff]
        %v304 = vld [vmem:[%s234 + $0xb8] sm:$0xff]
        %v305 = vld [vmem:[%s234 + $0xc0] sm:$0xff]
        %v306 = vld [vmem:[%s234 + $0xc8] sm:$0xff]
        %v307 = vld [vmem:[%s234 + $0xd0] sm:$0xff]
        %v308 = vld [vmem:[%s234 + $0xd8] sm:$0xff]
        %v309 = vld [vmem:[%s234 + $0xe0] sm:$0xff]
        %v310 = vld [vmem:[%s234 + $0xe8] sm:$0xff]
        %v311 = vld [vmem:[%s234 + $0xf0] sm:$0xff]
        %v312 = vld [vmem:[%s234 + $0xf8] sm:$0xff]
        %vm313 = vcmask 31744
        %v314 = vsel %vm313, %v281, 0.0
        %v315 = vsel %vm313, %v282, 0.0
        %v316 = vsel %vm313, %v283, 0.0
        %v317 = vsel %vm313, %v284, 0.0
        %v318 = vsel %vm313, %v285, 0.0
        %v319 = vsel %vm313, %v286, 0.0
        %v320 = vsel %vm313, %v287, 0.0
        %v321 = vsel %vm313, %v288, 0.0
        %v322 = vsel %vm313, %v289, 0.0
        %v323 = vsel %vm313, %v290, 0.0
        %v324 = vsel %vm313, %v291, 0.0
        %v325 = vsel %vm313, %v292, 0.0
        %v326 = vsel %vm313, %v293, 0.0
        %v327 = vsel %vm313, %v294, 0.0
        %v328 = vsel %vm313, %v295, 0.0
        %v329 = vsel %vm313, %v296, 0.0
        %v330 = vsel %vm313, %v297, 0.0
        %v331 = vsel %vm313, %v298, 0.0
        %v332 = vsel %vm313, %v299, 0.0
        %v333 = vsel %vm313, %v300, 0.0
        %v334 = vsel %vm313, %v301, 0.0
        %v335 = vsel %vm313, %v302, 0.0
        %v336 = vsel %vm313, %v303, 0.0
        %v337 = vsel %vm313, %v304, 0.0
        %v338 = vsel %vm313, %v305, 0.0
        %v339 = vsel %vm313, %v306, 0.0
        %v340 = vsel %vm313, %v307, 0.0
        %v341 = vsel %vm313, %v308, 0.0
        %v342 = vsel %vm313, %v309, 0.0
        %v343 = vsel %vm313, %v310, 0.0
        %v344 = vsel %vm313, %v311, 0.0
        %v345 = vsel %vm313, %v312, 0.0
        %346 = vst [vmem:[%s248 + $0x1] sm:$0xff] %v314
        %347 = vst [vmem:[%s248 + $0x9] sm:$0xff] %v315
        %348 = vst [vmem:[%s248 + $0x19] sm:$0xff] %v316
        %349 = vst [vmem:[%s248 + $0x21] sm:$0xff] %v317
        %350 = vst [vmem:[%s248 + $0x31] sm:$0xff] %v318
        %351 = vst [vmem:[%s248 + $0x39] sm:$0xff] %v319
        %352 = vst [vmem:[%s248 + $0x49] sm:$0xff] %v320
        %353 = vst [vmem:[%s248 + $0x51] sm:$0xff] %v321
        %354 = vst [vmem:[%s248 + $0x61] sm:$0xff] %v322
        %355 = vst [vmem:[%s248 + $0x69] sm:$0xff] %v323
        %356 = vst [vmem:[%s248 + $0x79] sm:$0xff] %v324
        %357 = vst [vmem:[%s248 + $0x81] sm:$0xff] %v325
        %358 = vst [vmem:[%s248 + $0x91] sm:$0xff] %v326
        %359 = vst [vmem:[%s248 + $0x99] sm:$0xff] %v327
        %360 = vst [vmem:[%s248 + $0xa9] sm:$0xff] %v328
        %361 = vst [vmem:[%s248 + $0xb1] sm:$0xff] %v329
        %362 = vst [vmem:[%s248 + $0xc1] sm:$0xff] %v330
        %363 = vst [vmem:[%s248 + $0xc9] sm:$0xff] %v331
        %364 = vst [vmem:[%s248 + $0xd9] sm:$0xff] %v332
        %365 = vst [vmem:[%s248 + $0xe1] sm:$0xff] %v333
        %366 = vst [vmem:[%s248 + $0xf1] sm:$0xff] %v334
        %367 = vst [vmem:[%s248 + $0xf9] sm:$0xff] %v335
        %368 = vst [vmem:[%s248 + $0x109] sm:$0xff] %v336
        %369 = vst [vmem:[%s248 + $0x111] sm:$0xff] %v337
        %370 = vst [vmem:[%s248 + $0x121] sm:$0xff] %v338
        %371 = vst [vmem:[%s248 + $0x129] sm:$0xff] %v339
        %372 = vst [vmem:[%s248 + $0x139] sm:$0xff] %v340
        %373 = vst [vmem:[%s248 + $0x141] sm:$0xff] %v341
        %374 = vst [vmem:[%s248 + $0x151] sm:$0xff] %v342
        %375 = vst [vmem:[%s248 + $0x159] sm:$0xff] %v343
        %376 = vst [vmem:[%s248 + $0x169] sm:$0xff] %v344
        %377 = vst [vmem:[%s248 + $0x171] sm:$0xff] %v345
        %v378 = vld [vmem:[#allocation2] sm:$0xff]
        %v379 = vld [vmem:[#allocation2 + $0x8] sm:$0xff]
        %v380 = vld [vmem:[#allocation2 + $0x18] sm:$0xff]
        %v381 = vld [vmem:[#allocation2 + $0x20] sm:$0xff]
        %v382 = vld [vmem:[#allocation2 + $0x30] sm:$0xff]
        %v383 = vld [vmem:[#allocation2 + $0x38] sm:$0xff]
        %v384 = vld [vmem:[#allocation2 + $0x48] sm:$0xff]
        %v385 = vld [vmem:[#allocation2 + $0x50] sm:$0xff]
        %v386 = vld [vmem:[#allocation2 + $0x60] sm:$0xff]
        %v387 = vld [vmem:[#allocation2 + $0x68] sm:$0xff]
        %v388 = vld [vmem:[#allocation2 + $0x78] sm:$0xff]
        %v389 = vld [vmem:[#allocation2 + $0x80] sm:$0xff]
        %v390 = vld [vmem:[#allocation2 + $0x90] sm:$0xff]
        %v391 = vld [vmem:[#allocation2 + $0x98] sm:$0xff]
        %v392 = vld [vmem:[#allocation2 + $0xa8] sm:$0xff]
        %v393 = vld [vmem:[#allocation2 + $0xb0] sm:$0xff]
        %v394 = vld [vmem:[#allocation2 + $0xc0] sm:$0xff]
        %v395 = vld [vmem:[#allocation2 + $0xc8] sm:$0xff]
        %v396 = vld [vmem:[#allocation2 + $0xd8] sm:$0xff]
        %v397 = vld [vmem:[#allocation2 + $0xe0] sm:$0xff]
        %v398 = vld [vmem:[#allocation2 + $0xf0] sm:$0xff]
        %v399 = vld [vmem:[#allocation2 + $0xf8] sm:$0xff]
        %v400 = vld [vmem:[#allocation2 + $0x108] sm:$0xff]
        %v401 = vld [vmem:[#allocation2 + $0x110] sm:$0xff]
        %v402 = vld [vmem:[#allocation2 + $0x120] sm:$0xff]
        %v403 = vld [vmem:[#allocation2 + $0x128] sm:$0xff]
        %v404 = vld [vmem:[#allocation2 + $0x138] sm:$0xff]
        %v405 = vld [vmem:[#allocation2 + $0x140] sm:$0xff]
        %v406 = vld [vmem:[#allocation2 + $0x150] sm:$0xff]
        %v407 = vld [vmem:[#allocation2 + $0x158] sm:$0xff]
        %v408 = vld [vmem:[#allocation2 + $0x168] sm:$0xff]
        %v409 = vld [vmem:[#allocation2 + $0x170] sm:$0xff]
        %v410 = vpack.c.bf16 %v379, %v378
        %v411 = vpack.c.bf16 %v381, %v380
        %v412 = vpack.c.bf16 %v383, %v382
        %v413 = vpack.c.bf16 %v385, %v384
        %v414 = vpack.c.bf16 %v387, %v386
        %v415 = vpack.c.bf16 %v389, %v388
        %v416 = vpack.c.bf16 %v391, %v390
        %v417 = vpack.c.bf16 %v393, %v392
        %v418 = vpack.c.bf16 %v395, %v394
        %v419 = vpack.c.bf16 %v397, %v396
        %v420 = vpack.c.bf16 %v399, %v398
        %v421 = vpack.c.bf16 %v401, %v400
        %v422 = vpack.c.bf16 %v403, %v402
        %v423 = vpack.c.bf16 %v405, %v404
        %v424 = vpack.c.bf16 %v407, %v406
        %v425 = vpack.c.bf16 %v409, %v408
        %v426 = vld [vmem:[%s1] sm:$0xf]
        %v427 = vld [vmem:[%s1 + $0x4] sm:$0xf]
        %v428 = vld [vmem:[%s1 + $0x8] sm:$0xf]
        %v429 = vld [vmem:[%s1 + $0xc] sm:$0xf]
        %v430 = vld [vmem:[%s1 + $0x10] sm:$0xf]
        %v431 = vld [vmem:[%s1 + $0x14] sm:$0xf]
        %v432 = vld [vmem:[%s1 + $0x18] sm:$0xf]
        %v433 = vld [vmem:[%s1 + $0x1c] sm:$0xf]
        %v434 = vld [vmem:[%s1 + $0x20] sm:$0xf]
        %v435 = vld [vmem:[%s1 + $0x24] sm:$0xf]
        %v436 = vld [vmem:[%s1 + $0x28] sm:$0xf]
        %v437 = vld [vmem:[%s1 + $0x2c] sm:$0xf]
        %v438 = vld [vmem:[%s1 + $0x30] sm:$0xf]
        %v439 = vld [vmem:[%s1 + $0x34] sm:$0xf]
        %v440 = vld [vmem:[%s1 + $0x38] sm:$0xf]
        %v441 = vld [vmem:[%s1 + $0x3c] sm:$0xf]
        %v442 = vld [vmem:[#allocation2 + $0x1] sm:$0xff]
        %v443 = vld [vmem:[#allocation2 + $0x9] sm:$0xff]
        %v444 = vld [vmem:[#allocation2 + $0x19] sm:$0xff]
        %v445 = vld [vmem:[#allocation2 + $0x21] sm:$0xff]
        %v446 = vld [vmem:[#allocation2 + $0x31] sm:$0xff]
        %v447 = vld [vmem:[#allocation2 + $0x39] sm:$0xff]
        %v448 = vld [vmem:[#allocation2 + $0x49] sm:$0xff]
        %v449 = vld [vmem:[#allocation2 + $0x51] sm:$0xff]
        %v450 = vld [vmem:[#allocation2 + $0x61] sm:$0xff]
        %v451 = vld [vmem:[#allocation2 + $0x69] sm:$0xff]
        %v452 = vld [vmem:[#allocation2 + $0x79] sm:$0xff]
        %v453 = vld [vmem:[#allocation2 + $0x81] sm:$0xff]
        %v454 = vld [vmem:[#allocation2 + $0x91] sm:$0xff]
        %v455 = vld [vmem:[#allocation2 + $0x99] sm:$0xff]
        %v456 = vld [vmem:[#allocation2 + $0xa9] sm:$0xff]
        %v457 = vld [vmem:[#allocation2 + $0xb1] sm:$0xff]
        %v458 = vld [vmem:[#allocation2 + $0xc1] sm:$0xff]
        %v459 = vld [vmem:[#allocation2 + $0xc9] sm:$0xff]
        %v460 = vld [vmem:[#allocation2 + $0xd9] sm:$0xff]
        %v461 = vld [vmem:[#allocation2 + $0xe1] sm:$0xff]
        %v462 = vld [vmem:[#allocation2 + $0xf1] sm:$0xff]
        %v463 = vld [vmem:[#allocation2 + $0xf9] sm:$0xff]
        %v464 = vld [vmem:[#allocation2 + $0x109] sm:$0xff]
        %v465 = vld [vmem:[#allocation2 + $0x111] sm:$0xff]
        %v466 = vld [vmem:[#allocation2 + $0x121] sm:$0xff]
        %v467 = vld [vmem:[#allocation2 + $0x129] sm:$0xff]
        %v468 = vld [vmem:[#allocation2 + $0x139] sm:$0xff]
        %v469 = vld [vmem:[#allocation2 + $0x141] sm:$0xff]
        %v470 = vld [vmem:[#allocation2 + $0x151] sm:$0xff]
        %v471 = vld [vmem:[#allocation2 + $0x159] sm:$0xff]
        %v472 = vld [vmem:[#allocation2 + $0x169] sm:$0xff]
        %v473 = vld [vmem:[#allocation2 + $0x171] sm:$0xff]
        %v474 = vpack.c.bf16 %v443, %v442
        %v475 = vpack.c.bf16 %v445, %v444
        %v476 = vpack.c.bf16 %v447, %v446
        %v477 = vpack.c.bf16 %v449, %v448
        %v478 = vpack.c.bf16 %v451, %v450
        %v479 = vpack.c.bf16 %v453, %v452
        %v480 = vpack.c.bf16 %v455, %v454
        %v481 = vpack.c.bf16 %v457, %v456
        %v482 = vpack.c.bf16 %v459, %v458
        %v483 = vpack.c.bf16 %v461, %v460
        %v484 = vpack.c.bf16 %v463, %v462
        %v485 = vpack.c.bf16 %v465, %v464
        %v486 = vpack.c.bf16 %v467, %v466
        %v487 = vpack.c.bf16 %v469, %v468
        %v488 = vpack.c.bf16 %v471, %v470
        %v489 = vpack.c.bf16 %v473, %v472
        %s490 = scalar_lea.vmem %s1, 64
        %v491 = vld [vmem:[%s490] sm:$0xf]
        %v492 = vld [vmem:[%s490 + $0x4] sm:$0xf]
        %v493 = vld [vmem:[%s490 + $0x8] sm:$0xf]
        %v494 = vld [vmem:[%s490 + $0xc] sm:$0xf]
        %v495 = vld [vmem:[%s490 + $0x10] sm:$0xf]
        %v496 = vld [vmem:[%s490 + $0x14] sm:$0xf]
        %v497 = vld [vmem:[%s490 + $0x18] sm:$0xf]
        %v498 = vld [vmem:[%s490 + $0x1c] sm:$0xf]
        %v499 = vld [vmem:[%s490 + $0x20] sm:$0xf]
        %v500 = vld [vmem:[%s490 + $0x24] sm:$0xf]
        %v501 = vld [vmem:[%s490 + $0x28] sm:$0xf]
        %v502 = vld [vmem:[%s490 + $0x2c] sm:$0xf]
        %v503 = vld [vmem:[%s490 + $0x30] sm:$0xf]
        %v504 = vld [vmem:[%s490 + $0x34] sm:$0xf]
        %v505 = vld [vmem:[%s490 + $0x38] sm:$0xf]
        %v506 = vld [vmem:[%s490 + $0x3c] sm:$0xf]
        %v523 = vunpack.c.l.b16 %v491
        %v524 = vunpack.c.l.b16 %v492
        %v525 = vunpack.c.l.b16 %v493
        %v526 = vunpack.c.l.b16 %v494
        %v527 = vunpack.c.l.b16 %v495
        %v528 = vunpack.c.l.b16 %v496
        %v529 = vunpack.c.l.b16 %v497
        %v530 = vunpack.c.l.b16 %v498
        %v531 = vunpack.c.l.b16 %v499
        %v532 = vunpack.c.l.b16 %v500
        %v533 = vunpack.c.l.b16 %v501
        %v534 = vunpack.c.l.b16 %v502
        %v535 = vunpack.c.l.b16 %v503
        %v536 = vunpack.c.l.b16 %v504
        %v537 = vunpack.c.l.b16 %v505
        %v538 = vunpack.c.l.b16 %v506
        %v539 = vpack.c.b16 %v524, %v523
        %v540 = vpack.c.b16 %v526, %v525
        %v541 = vpack.c.b16 %v528, %v527
        %v542 = vpack.c.b16 %v530, %v529
        %v543 = vpack.c.b16 %v532, %v531
        %v544 = vpack.c.b16 %v534, %v533
        %v545 = vpack.c.b16 %v536, %v535
        %v546 = vpack.c.b16 %v538, %v537
        %555 = vmatprep.subr.bf16.mxu0 0
        %556 = vmatpush1.bf16.msra.mxu0 %v539
        %557 = vmatprep.subr.bf16.mxu0 0
        %558 = vmatpush1.bf16.msra.mxu0 %v540
        %559 = vmatprep.subr.bf16.mxu0 0
        %560 = vmatpush1.bf16.msra.mxu0 %v541
        %561 = vmatprep.subr.bf16.mxu0 0
        %562 = vmatpush1.bf16.msra.mxu0 %v542
        %563 = vmatprep.subr.bf16.mxu0 0
        %564 = vmatpush1.bf16.msra.mxu0 %v543
        %565 = vmatprep.subr.bf16.mxu0 0
        %566 = vmatpush1.bf16.msra.mxu0 %v544
        %567 = vmatprep.subr.bf16.mxu0 0
        %568 = vmatpush1.bf16.msra.mxu0 %v545
        %569 = vmatprep.subr.bf16.mxu0 0
        %570 = vmatpush1.bf16.msra.mxu0 %v546
        %571 = vmatprep.subr.bf16.mxu0 0
        %572 = vmatpush1.bf16.msra.mxu0 0
        %573 = vmatprep.subr.bf16.mxu0 0
        %574 = vmatpush1.bf16.msra.mxu0 0
        %575 = vmatprep.subr.bf16.mxu0 0
        %576 = vmatpush1.bf16.msra.mxu0 0
        %577 = vmatprep.subr.bf16.mxu0 0
        %578 = vmatpush1.bf16.msra.mxu0 0
        %579 = vmatprep.subr.bf16.mxu0 0
        %580 = vmatpush1.bf16.msra.mxu0 0
        %581 = vmatprep.subr.bf16.mxu0 0
        %582 = vmatpush1.bf16.msra.mxu0 0
        %583 = vmatprep.subr.bf16.mxu0 0
        %584 = vmatpush1.bf16.msra.mxu0 0
        %585 = vmatprep.subr.bf16.mxu0 0
        %586 = vmatpush1.bf16.msra.mxu0 0
        %587 = vmatprep.mubr.bf16.mxu0 0
        %588 = vmatmul.mubr.bf16.gmra.mrb[0].mxu0 %v474
        %v589 = vpop.f32.mrb[0].mxu0
        %v590 = vadd.f32 0.0, %v589
        %v591 = vpop.f32.mrb[0].mxu0
        %v592 = vpop.f32.mrb[0].mxu0
        %v593 = vadd.f32 0.0, %v592
        %v594 = vpop.f32.mrb[0].mxu0
        %595 = vmatprep.mubr.bf16.mxu0 0
        %596 = vmatmul.mubr.bf16.gmra.mrb[0].mxu0 %v475
        %v597 = vpop.f32.mrb[0].mxu0
        %v598 = vadd.f32 0.0, %v597
        %v599 = vpop.f32.mrb[0].mxu0
        %v600 = vpop.f32.mrb[0].mxu0
        %v601 = vadd.f32 0.0, %v600
        %v602 = vpop.f32.mrb[0].mxu0
        %603 = vmatprep.mubr.bf16.mxu0 0
        %604 = vmatmul.mubr.bf16.gmra.mrb[0].mxu0 %v476
        %v605 = vpop.f32.mrb[0].mxu0
        %v606 = vadd.f32 0.0, %v605
        %v607 = vpop.f32.mrb[0].mxu0
        %v608 = vpop.f32.mrb[0].mxu0
        %v609 = vadd.f32 0.0, %v608
        %v610 = vpop.f32.mrb[0].mxu0
        %611 = vmatprep.mubr.bf16.mxu0 0
        %612 = vmatmul.mubr.bf16.gmra.mrb[0].mxu0 %v477
        %v613 = vpop.f32.mrb[0].mxu0
        %v614 = vadd.f32 0.0, %v613
        %v615 = vpop.f32.mrb[0].mxu0
        %v616 = vpop.f32.mrb[0].mxu0
        %v617 = vadd.f32 0.0, %v616
        %v618 = vpop.f32.mrb[0].mxu0
        %619 = vmatprep.mubr.bf16.mxu0 0
        %620 = vmatmul.mubr.bf16.gmra.mrb[0].mxu0 %v478
        %v621 = vpop.f32.mrb[0].mxu0
        %v622 = vadd.f32 0.0, %v621
        %v623 = vpop.f32.mrb[0].mxu0
        %v624 = vpop.f32.mrb[0].mxu0
        %v625 = vadd.f32 0.0, %v624
        %v626 = vpop.f32.mrb[0].mxu0
        %627 = vmatprep.mubr.bf16.mxu0 0
        %628 = vmatmul.mubr.bf16.gmra.mrb[0].mxu0 %v479
        %v629 = vpop.f32.mrb[0].mxu0
        %v630 = vadd.f32 0.0, %v629
        %v631 = vpop.f32.mrb[0].mxu0
        %v632 = vpop.f32.mrb[0].mxu0
        %v633 = vadd.f32 0.0, %v632
        %v634 = vpop.f32.mrb[0].mxu0
        %635 = vmatprep.mubr.bf16.mxu0 0
        %636 = vmatmul.mubr.bf16.gmra.mrb[0].mxu0 %v480
        %v637 = vpop.f32.mrb[0].mxu0
        %v638 = vadd.f32 0.0, %v637
        %v639 = vpop.f32.mrb[0].mxu0
        %v640 = vpop.f32.mrb[0].mxu0
        %v641 = vadd.f32 0.0, %v640
        %v642 = vpop.f32.mrb[0].mxu0
        %643 = vmatprep.mubr.bf16.mxu0 0
        %644 = vmatmul.mubr.bf16.gmra.mrb[0].mxu0 %v481
        %v645 = vpop.f32.mrb[0].mxu0
        %v646 = vadd.f32 0.0, %v645
        %v647 = vpop.f32.mrb[0].mxu0
        %v648 = vpop.f32.mrb[0].mxu0
        %v649 = vadd.f32 0.0, %v648
        %v650 = vpop.f32.mrb[0].mxu0
        %651 = vmatprep.mubr.bf16.mxu0 0
        %652 = vmatmul.mubr.bf16.gmra.mrb[0].mxu0 %v482
        %v653 = vpop.f32.mrb[0].mxu0
        %v654 = vadd.f32 0.0, %v653
        %v655 = vpop.f32.mrb[0].mxu0
        %v656 = vpop.f32.mrb[0].mxu0
        %v657 = vadd.f32 0.0, %v656
        %v658 = vpop.f32.mrb[0].mxu0
        %659 = vmatprep.mubr.bf16.mxu0 0
        %660 = vmatmul.mubr.bf16.gmra.mrb[0].mxu0 %v483
        %v661 = vpop.f32.mrb[0].mxu0
        %v662 = vadd.f32 0.0, %v661
        %v663 = vpop.f32.mrb[0].mxu0
        %v664 = vpop.f32.mrb[0].mxu0
        %v665 = vadd.f32 0.0, %v664
        %v666 = vpop.f32.mrb[0].mxu0
        %667 = vmatprep.mubr.bf16.mxu0 0
        %668 = vmatmul.mubr.bf16.gmra.mrb[0].mxu0 %v484
        %v669 = vpop.f32.mrb[0].mxu0
        %v670 = vadd.f32 0.0, %v669
        %v671 = vpop.f32.mrb[0].mxu0
        %v672 = vpop.f32.mrb[0].mxu0
        %v673 = vadd.f32 0.0, %v672
        %v674 = vpop.f32.mrb[0].mxu0
        %675 = vmatprep.mubr.bf16.mxu0 0
        %676 = vmatmul.mubr.bf16.gmra.mrb[0].mxu0 %v485
        %v677 = vpop.f32.mrb[0].mxu0
        %v678 = vadd.f32 0.0, %v677
        %v679 = vpop.f32.mrb[0].mxu0
        %v680 = vpop.f32.mrb[0].mxu0
        %v681 = vadd.f32 0.0, %v680
        %v682 = vpop.f32.mrb[0].mxu0
        %683 = vmatprep.mubr.bf16.mxu0 0
        %684 = vmatmul.mubr.bf16.gmra.mrb[0].mxu0 %v486
        %v685 = vpop.f32.mrb[0].mxu0
        %v686 = vadd.f32 0.0, %v685
        %v687 = vpop.f32.mrb[0].mxu0
        %v688 = vpop.f32.mrb[0].mxu0
        %v689 = vadd.f32 0.0, %v688
        %v690 = vpop.f32.mrb[0].mxu0
        %691 = vmatprep.mubr.bf16.mxu0 0
        %692 = vmatmul.mubr.bf16.gmra.mrb[0].mxu0 %v487
        %v693 = vpop.f32.mrb[0].mxu0
        %v694 = vadd.f32 0.0, %v693
        %v695 = vpop.f32.mrb[0].mxu0
        %v696 = vpop.f32.mrb[0].mxu0
        %v697 = vadd.f32 0.0, %v696
        %v698 = vpop.f32.mrb[0].mxu0
        %699 = vmatprep.mubr.bf16.mxu0 0
        %700 = vmatmul.mubr.bf16.gmra.mrb[0].mxu0 %v488
        %v701 = vpop.f32.mrb[0].mxu0
        %v702 = vadd.f32 0.0, %v701
        %v703 = vpop.f32.mrb[0].mxu0
        %v704 = vpop.f32.mrb[0].mxu0
        %v705 = vadd.f32 0.0, %v704
        %v706 = vpop.f32.mrb[0].mxu0
        %707 = vmatprep.mubr.bf16.mxu0 0
        %708 = vmatmul.mubr.bf16.gmra.mrb[0].mxu0 %v489
        %v709 = vpop.f32.mrb[0].mxu0
        %v710 = vadd.f32 0.0, %v709
        %v711 = vpop.f32.mrb[0].mxu0
        %v712 = vpop.f32.mrb[0].mxu0
        %v713 = vadd.f32 0.0, %v712
        %v714 = vpop.f32.mrb[0].mxu0
        %715 = vdwg.mxu0
        %v732 = vunpack.c.l.b16 %v426
        %v733 = vunpack.c.l.b16 %v427
        %v734 = vunpack.c.l.b16 %v428
        %v735 = vunpack.c.l.b16 %v429
        %v736 = vunpack.c.l.b16 %v430
        %v737 = vunpack.c.l.b16 %v431
        %v738 = vunpack.c.l.b16 %v432
        %v739 = vunpack.c.l.b16 %v433
        %v740 = vunpack.c.l.b16 %v434
        %v741 = vunpack.c.l.b16 %v435
        %v742 = vunpack.c.l.b16 %v436
        %v743 = vunpack.c.l.b16 %v437
        %v744 = vunpack.c.l.b16 %v438
        %v745 = vunpack.c.l.b16 %v439
        %v746 = vunpack.c.l.b16 %v440
        %v747 = vunpack.c.l.b16 %v441
        %v748 = vpack.c.b16 %v733, %v732
        %v749 = vpack.c.b16 %v735, %v734
        %v750 = vpack.c.b16 %v737, %v736
        %v751 = vpack.c.b16 %v739, %v738
        %v752 = vpack.c.b16 %v741, %v740
        %v753 = vpack.c.b16 %v743, %v742
        %v754 = vpack.c.b16 %v745, %v744
        %v755 = vpack.c.b16 %v747, %v746
        %764 = vmatprep.subr.bf16.mxu0 0
        %765 = vmatpush1.bf16.msra.mxu0 %v748
        %766 = vmatprep.subr.bf16.mxu0 0
        %767 = vmatpush1.bf16.msra.mxu0 %v749
        %768 = vmatprep.subr.bf16.mxu0 0
        %769 = vmatpush1.bf16.msra.mxu0 %v750
        %770 = vmatprep.subr.bf16.mxu0 0
        %771 = vmatpush1.bf16.msra.mxu0 %v751
        %772 = vmatprep.subr.bf16.mxu0 0
        %773 = vmatpush1.bf16.msra.mxu0 %v752
        %774 = vmatprep.subr.bf16.mxu0 0
        %775 = vmatpush1.bf16.msra.mxu0 %v753
        %776 = vmatprep.subr.bf16.mxu0 0
        %777 = vmatpush1.bf16.msra.mxu0 %v754
        %778 = vmatprep.subr.bf16.mxu0 0
        %779 = vmatpush1.bf16.msra.mxu0 %v755
        %780 = vmatprep.subr.bf16.mxu0 0
        %781 = vmatpush1.bf16.msra.mxu0 0
        %782 = vmatprep.subr.bf16.mxu0 0
        %783 = vmatpush1.bf16.msra.mxu0 0
        %784 = vmatprep.subr.bf16.mxu0 0
        %785 = vmatpush1.bf16.msra.mxu0 0
        %786 = vmatprep.subr.bf16.mxu0 0
        %787 = vmatpush1.bf16.msra.mxu0 0
        %788 = vmatprep.subr.bf16.mxu0 0
        %789 = vmatpush1.bf16.msra.mxu0 0
        %790 = vmatprep.subr.bf16.mxu0 0
        %791 = vmatpush1.bf16.msra.mxu0 0
        %792 = vmatprep.subr.bf16.mxu0 0
        %793 = vmatpush1.bf16.msra.mxu0 0
        %794 = vmatprep.subr.bf16.mxu0 0
        %795 = vmatpush1.bf16.msra.mxu0 0
        %796 = vmatprep.mubr.bf16.mxu0 0
        %797 = vmatmul.mubr.bf16.gmra.mrb[0].mxu0 %v410
        %v798 = vpop.f32.mrb[0].mxu0
        %v799 = vadd.f32 %v590, %v798
        %v800 = vpop.f32.mrb[0].mxu0
        %v801 = vpop.f32.mrb[0].mxu0
        %v802 = vadd.f32 %v593, %v801
        %v803 = vpop.f32.mrb[0].mxu0
        %804 = vmatprep.mubr.bf16.mxu0 0
        %805 = vmatmul.mubr.bf16.gmra.mrb[0].mxu0 %v411
        %v806 = vpop.f32.mrb[0].mxu0
        %v807 = vadd.f32 %v598, %v806
        %v808 = vpop.f32.mrb[0].mxu0
        %v809 = vpop.f32.mrb[0].mxu0
        %v810 = vadd.f32 %v601, %v809
        %v811 = vpop.f32.mrb[0].mxu0
        %812 = vmatprep.mubr.bf16.mxu0 0
        %813 = vmatmul.mubr.bf16.gmra.mrb[0].mxu0 %v412
        %v814 = vpop.f32.mrb[0].mxu0
        %v815 = vadd.f32 %v606, %v814
        %v816 = vpop.f32.mrb[0].mxu0
        %v817 = vpop.f32.mrb[0].mxu0
        %v818 = vadd.f32 %v609, %v817
        %v819 = vpop.f32.mrb[0].mxu0
        %820 = vmatprep.mubr.bf16.mxu0 0
        %821 = vmatmul.mubr.bf16.gmra.mrb[0].mxu0 %v413
        %v822 = vpop.f32.mrb[0].mxu0
        %v823 = vadd.f32 %v614, %v822
        %v824 = vpop.f32.mrb[0].mxu0
        %v825 = vpop.f32.mrb[0].mxu0
        %v826 = vadd.f32 %v617, %v825
        %v827 = vpop.f32.mrb[0].mxu0
        %828 = vmatprep.mubr.bf16.mxu0 0
        %829 = vmatmul.mubr.bf16.gmra.mrb[0].mxu0 %v414
        %v830 = vpop.f32.mrb[0].mxu0
        %v831 = vadd.f32 %v622, %v830
        %v832 = vpop.f32.mrb[0].mxu0
        %v833 = vpop.f32.mrb[0].mxu0
        %v834 = vadd.f32 %v625, %v833
        %v835 = vpop.f32.mrb[0].mxu0
        %836 = vmatprep.mubr.bf16.mxu0 0
        %837 = vmatmul.mubr.bf16.gmra.mrb[0].mxu0 %v415
        %v838 = vpop.f32.mrb[0].mxu0
        %v839 = vadd.f32 %v630, %v838
        %v840 = vpop.f32.mrb[0].mxu0
        %v841 = vpop.f32.mrb[0].mxu0
        %v842 = vadd.f32 %v633, %v841
        %v843 = vpop.f32.mrb[0].mxu0
        %844 = vmatprep.mubr.bf16.mxu0 0
        %845 = vmatmul.mubr.bf16.gmra.mrb[0].mxu0 %v416
        %v846 = vpop.f32.mrb[0].mxu0
        %v847 = vadd.f32 %v638, %v846
        %v848 = vpop.f32.mrb[0].mxu0
        %v849 = vpop.f32.mrb[0].mxu0
        %v850 = vadd.f32 %v641, %v849
        %v851 = vpop.f32.mrb[0].mxu0
        %852 = vmatprep.mubr.bf16.mxu0 0
        %853 = vmatmul.mubr.bf16.gmra.mrb[0].mxu0 %v417
        %v854 = vpop.f32.mrb[0].mxu0
        %v855 = vadd.f32 %v646, %v854
        %v856 = vpop.f32.mrb[0].mxu0
        %v857 = vpop.f32.mrb[0].mxu0
        %v858 = vadd.f32 %v649, %v857
        %v859 = vpop.f32.mrb[0].mxu0
        %860 = vmatprep.mubr.bf16.mxu0 0
        %861 = vmatmul.mubr.bf16.gmra.mrb[0].mxu0 %v418
        %v862 = vpop.f32.mrb[0].mxu0
        %v863 = vadd.f32 %v654, %v862
        %v864 = vpop.f32.mrb[0].mxu0
        %v865 = vpop.f32.mrb[0].mxu0
        %v866 = vadd.f32 %v657, %v865
        %v867 = vpop.f32.mrb[0].mxu0
        %868 = vmatprep.mubr.bf16.mxu0 0
        %869 = vmatmul.mubr.bf16.gmra.mrb[0].mxu0 %v419
        %v870 = vpop.f32.mrb[0].mxu0
        %v871 = vadd.f32 %v662, %v870
        %v872 = vpop.f32.mrb[0].mxu0
        %v873 = vpop.f32.mrb[0].mxu0
        %v874 = vadd.f32 %v665, %v873
        %v875 = vpop.f32.mrb[0].mxu0
        %876 = vmatprep.mubr.bf16.mxu0 0
        %877 = vmatmul.mubr.bf16.gmra.mrb[0].mxu0 %v420
        %v878 = vpop.f32.mrb[0].mxu0
        %v879 = vadd.f32 %v670, %v878
        %v880 = vpop.f32.mrb[0].mxu0
        %v881 = vpop.f32.mrb[0].mxu0
        %v882 = vadd.f32 %v673, %v881
        %v883 = vpop.f32.mrb[0].mxu0
        %884 = vmatprep.mubr.bf16.mxu0 0
        %885 = vmatmul.mubr.bf16.gmra.mrb[0].mxu0 %v421
        %v886 = vpop.f32.mrb[0].mxu0
        %v887 = vadd.f32 %v678, %v886
        %v888 = vpop.f32.mrb[0].mxu0
        %v889 = vpop.f32.mrb[0].mxu0
        %v890 = vadd.f32 %v681, %v889
        %v891 = vpop.f32.mrb[0].mxu0
        %892 = vmatprep.mubr.bf16.mxu0 0
        %893 = vmatmul.mubr.bf16.gmra.mrb[0].mxu0 %v422
        %v894 = vpop.f32.mrb[0].mxu0
        %v895 = vadd.f32 %v686, %v894
        %v896 = vpop.f32.mrb[0].mxu0
        %v897 = vpop.f32.mrb[0].mxu0
        %v898 = vadd.f32 %v689, %v897
        %v899 = vpop.f32.mrb[0].mxu0
        %900 = vmatprep.mubr.bf16.mxu0 0
        %901 = vmatmul.mubr.bf16.gmra.mrb[0].mxu0 %v423
        %v902 = vpop.f32.mrb[0].mxu0
        %v903 = vadd.f32 %v694, %v902
        %v904 = vpop.f32.mrb[0].mxu0
        %v905 = vpop.f32.mrb[0].mxu0
        %v906 = vadd.f32 %v697, %v905
        %v907 = vpop.f32.mrb[0].mxu0
        %908 = vmatprep.mubr.bf16.mxu0 0
        %909 = vmatmul.mubr.bf16.gmra.mrb[0].mxu0 %v424
        %v910 = vpop.f32.mrb[0].mxu0
        %v911 = vadd.f32 %v702, %v910
        %v912 = vpop.f32.mrb[0].mxu0
        %v913 = vpop.f32.mrb[0].mxu0
        %v914 = vadd.f32 %v705, %v913
        %v915 = vpop.f32.mrb[0].mxu0
        %916 = vmatprep.mubr.bf16.mxu0 0
        %917 = vmatmul.mubr.bf16.gmra.mrb[0].mxu0 %v425
        %v918 = vpop.f32.mrb[0].mxu0
        %v919 = vadd.f32 %v710, %v918
        %v920 = vpop.f32.mrb[0].mxu0
        %v921 = vpop.f32.mrb[0].mxu0
        %v922 = vadd.f32 %v713, %v921
        %v923 = vpop.f32.mrb[0].mxu0
        %924 = vdwg.mxu0
        %v925 = vld [vmem:[#allocation2 + $0x2] sm:$0xff]
        %v926 = vld [vmem:[#allocation2 + $0xa] sm:$0xff]
        %v927 = vld [vmem:[#allocation2 + $0x1a] sm:$0xff]
        %v928 = vld [vmem:[#allocation2 + $0x22] sm:$0xff]
        %v929 = vld [vmem:[#allocation2 + $0x32] sm:$0xff]
        %v930 = vld [vmem:[#allocation2 + $0x3a] sm:$0xff]
        %v931 = vld [vmem:[#allocation2 + $0x4a] sm:$0xff]
        %v932 = vld [vmem:[#allocation2 + $0x52] sm:$0xff]
        %v933 = vld [vmem:[#allocation2 + $0x62] sm:$0xff]
        %v934 = vld [vmem:[#allocation2 + $0x6a] sm:$0xff]
        %v935 = vld [vmem:[#allocation2 + $0x7a] sm:$0xff]
        %v936 = vld [vmem:[#allocation2 + $0x82] sm:$0xff]
        %v937 = vld [vmem:[#allocation2 + $0x92] sm:$0xff]
        %v938 = vld [vmem:[#allocation2 + $0x9a] sm:$0xff]
        %v939 = vld [vmem:[#allocation2 + $0xaa] sm:$0xff]
        %v940 = vld [vmem:[#allocation2 + $0xb2] sm:$0xff]
        %v941 = vld [vmem:[#allocation2 + $0xc2] sm:$0xff]
        %v942 = vld [vmem:[#allocation2 + $0xca] sm:$0xff]
        %v943 = vld [vmem:[#allocation2 + $0xda] sm:$0xff]
        %v944 = vld [vmem:[#allocation2 + $0xe2] sm:$0xff]
        %v945 = vld [vmem:[#allocation2 + $0xf2] sm:$0xff]
        %v946 = vld [vmem:[#allocation2 + $0xfa] sm:$0xff]
        %v947 = vld [vmem:[#allocation2 + $0x10a] sm:$0xff]
        %v948 = vld [vmem:[#allocation2 + $0x112] sm:$0xff]
        %v949 = vld [vmem:[#allocation2 + $0x122] sm:$0xff]
        %v950 = vld [vmem:[#allocation2 + $0x12a] sm:$0xff]
        %v951 = vld [vmem:[#allocation2 + $0x13a] sm:$0xff]
        %v952 = vld [vmem:[#allocation2 + $0x142] sm:$0xff]
        %v953 = vld [vmem:[#allocation2 + $0x152] sm:$0xff]
        %v954 = vld [vmem:[#allocation2 + $0x15a] sm:$0xff]
        %v955 = vld [vmem:[#allocation2 + $0x16a] sm:$0xff]
        %v956 = vld [vmem:[#allocation2 + $0x172] sm:$0xff]
        %v957 = vpack.c.bf16 %v926, %v925
        %v958 = vpack.c.bf16 %v928, %v927
        %v959 = vpack.c.bf16 %v930, %v929
        %v960 = vpack.c.bf16 %v932, %v931
        %v961 = vpack.c.bf16 %v934, %v933
        %v962 = vpack.c.bf16 %v936, %v935
        %v963 = vpack.c.bf16 %v938, %v937
        %v964 = vpack.c.bf16 %v940, %v939
        %v965 = vpack.c.bf16 %v942, %v941
        %v966 = vpack.c.bf16 %v944, %v943
        %v967 = vpack.c.bf16 %v946, %v945
        %v968 = vpack.c.bf16 %v948, %v947
        %v969 = vpack.c.bf16 %v950, %v949
        %v970 = vpack.c.bf16 %v952, %v951
        %v971 = vpack.c.bf16 %v954, %v953
        %v972 = vpack.c.bf16 %v956, %v955
        %s973 = scalar_lea.vmem %s1, 128
        %v974 = vld [vmem:[%s973] sm:$0xf]
        %v975 = vld [vmem:[%s973 + $0x4] sm:$0xf]
        %v976 = vld [vmem:[%s973 + $0x8] sm:$0xf]
        %v977 = vld [vmem:[%s973 + $0xc] sm:$0xf]
        %v978 = vld [vmem:[%s973 + $0x10] sm:$0xf]
        %v979 = vld [vmem:[%s973 + $0x14] sm:$0xf]
        %v980 = vld [vmem:[%s973 + $0x18] sm:$0xf]
        %v981 = vld [vmem:[%s973 + $0x1c] sm:$0xf]
        %v982 = vld [vmem:[%s973 + $0x20] sm:$0xf]
        %v983 = vld [vmem:[%s973 + $0x24] sm:$0xf]
        %v984 = vld [vmem:[%s973 + $0x28] sm:$0xf]
        %v985 = vld [vmem:[%s973 + $0x2c] sm:$0xf]
        %v986 = vld [vmem:[%s973 + $0x30] sm:$0xf]
        %v987 = vld [vmem:[%s973 + $0x34] sm:$0xf]
        %v988 = vld [vmem:[%s973 + $0x38] sm:$0xf]
        %v989 = vld [vmem:[%s973 + $0x3c] sm:$0xf]
        %v1006 = vunpack.c.l.b16 %v974
        %v1007 = vunpack.c.l.b16 %v975
        %v1008 = vunpack.c.l.b16 %v976
        %v1009 = vunpack.c.l.b16 %v977
        %v1010 = vunpack.c.l.b16 %v978
        %v1011 = vunpack.c.l.b16 %v979
        %v1012 = vunpack.c.l.b16 %v980
        %v1013 = vunpack.c.l.b16 %v981
        %v1014 = vunpack.c.l.b16 %v982
        %v1015 = vunpack.c.l.b16 %v983
        %v1016 = vunpack.c.l.b16 %v984
        %v1017 = vunpack.c.l.b16 %v985
        %v1018 = vunpack.c.l.b16 %v986
        %v1019 = vunpack.c.l.b16 %v987
        %v1020 = vunpack.c.l.b16 %v988
        %v1021 = vunpack.c.l.b16 %v989
        %v1022 = vpack.c.b16 %v1007, %v1006
        %v1023 = vpack.c.b16 %v1009, %v1008
        %v1024 = vpack.c.b16 %v1011, %v1010
        %v1025 = vpack.c.b16 %v1013, %v1012
        %v1026 = vpack.c.b16 %v1015, %v1014
        %v1027 = vpack.c.b16 %v1017, %v1016
        %v1028 = vpack.c.b16 %v1019, %v1018
        %v1029 = vpack.c.b16 %v1021, %v1020
        %1038 = vmatprep.subr.bf16.mxu0 0
        %1039 = vmatpush1.bf16.msra.mxu0 %v1022
        %1040 = vmatprep.subr.bf16.mxu0 0
        %1041 = vmatpush1.bf16.msra.mxu0 %v1023
        %1042 = vmatprep.subr.bf16.mxu0 0
        %1043 = vmatpush1.bf16.msra.mxu0 %v1024
        %1044 = vmatprep.subr.bf16.mxu0 0
        %1045 = vmatpush1.bf16.msra.mxu0 %v1025
        %1046 = vmatprep.subr.bf16.mxu0 0
        %1047 = vmatpush1.bf16.msra.mxu0 %v1026
        %1048 = vmatprep.subr.bf16.mxu0 0
        %1049 = vmatpush1.bf16.msra.mxu0 %v1027
        %1050 = vmatprep.subr.bf16.mxu0 0
        %1051 = vmatpush1.bf16.msra.mxu0 %v1028
        %1052 = vmatprep.subr.bf16.mxu0 0
        %1053 = vmatpush1.bf16.msra.mxu0 %v1029
        %1054 = vmatprep.subr.bf16.mxu0 0
        %1055 = vmatpush1.bf16.msra.mxu0 0
        %1056 = vmatprep.subr.bf16.mxu0 0
        %1057 = vmatpush1.bf16.msra.mxu0 0
        %1058 = vmatprep.subr.bf16.mxu0 0
        %1059 = vmatpush1.bf16.msra.mxu0 0
        %1060 = vmatprep.subr.bf16.mxu0 0
        %1061 = vmatpush1.bf16.msra.mxu0 0
        %1062 = vmatprep.subr.bf16.mxu0 0
        %1063 = vmatpush1.bf16.msra.mxu0 0
        %1064 = vmatprep.subr.bf16.mxu0 0
        %1065 = vmatpush1.bf16.msra.mxu0 0
        %1066 = vmatprep.subr.bf16.mxu0 0
        %1067 = vmatpush1.bf16.msra.mxu0 0
        %1068 = vmatprep.subr.bf16.mxu0 0
        %1069 = vmatpush1.bf16.msra.mxu0 0
        %1070 = vmatprep.mubr.bf16.mxu0 0
        %1071 = vmatmul.mubr.bf16.gmra.mrb[0].mxu0 %v957
        %v1072 = vpop.f32.mrb[0].mxu0
        %v1073 = vadd.f32 0.0, %v1072
        %v1074 = vpop.f32.mrb[0].mxu0
        %v1075 = vpop.f32.mrb[0].mxu0
        %v1076 = vadd.f32 0.0, %v1075
        %v1077 = vpop.f32.mrb[0].mxu0
        %1078 = vmatprep.mubr.bf16.mxu0 0
        %1079 = vmatmul.mubr.bf16.gmra.mrb[0].mxu0 %v958
        %v1080 = vpop.f32.mrb[0].mxu0
        %v1081 = vadd.f32 0.0, %v1080
        %v1082 = vpop.f32.mrb[0].mxu0
        %v1083 = vpop.f32.mrb[0].mxu0
        %v1084 = vadd.f32 0.0, %v1083
        %v1085 = vpop.f32.mrb[0].mxu0
        %1086 = vmatprep.mubr.bf16.mxu0 0
        %1087 = vmatmul.mubr.bf16.gmra.mrb[0].mxu0 %v959
        %v1088 = vpop.f32.mrb[0].mxu0
        %v1089 = vadd.f32 0.0, %v1088
        %v1090 = vpop.f32.mrb[0].mxu0
        %v1091 = vpop.f32.mrb[0].mxu0
        %v1092 = vadd.f32 0.0, %v1091
        %v1093 = vpop.f32.mrb[0].mxu0
        %1094 = vmatprep.mubr.bf16.mxu0 0
        %1095 = vmatmul.mubr.bf16.gmra.mrb[0].mxu0 %v960
        %v1096 = vpop.f32.mrb[0].mxu0
        %v1097 = vadd.f32 0.0, %v1096
        %v1098 = vpop.f32.mrb[0].mxu0
        %v1099 = vpop.f32.mrb[0].mxu0
        %v1100 = vadd.f32 0.0, %v1099
        %v1101 = vpop.f32.mrb[0].mxu0
        %1102 = vmatprep.mubr.bf16.mxu0 0
        %1103 = vmatmul.mubr.bf16.gmra.mrb[0].mxu0 %v961
        %v1104 = vpop.f32.mrb[0].mxu0
        %v1105 = vadd.f32 0.0, %v1104
        %v1106 = vpop.f32.mrb[0].mxu0
        %v1107 = vpop.f32.mrb[0].mxu0
        %v1108 = vadd.f32 0.0, %v1107
        %v1109 = vpop.f32.mrb[0].mxu0
        %1110 = vmatprep.mubr.bf16.mxu0 0
        %1111 = vmatmul.mubr.bf16.gmra.mrb[0].mxu0 %v962
        %v1112 = vpop.f32.mrb[0].mxu0
        %v1113 = vadd.f32 0.0, %v1112
        %v1114 = vpop.f32.mrb[0].mxu0
        %v1115 = vpop.f32.mrb[0].mxu0
        %v1116 = vadd.f32 0.0, %v1115
        %v1117 = vpop.f32.mrb[0].mxu0
        %1118 = vmatprep.mubr.bf16.mxu0 0
        %1119 = vmatmul.mubr.bf16.gmra.mrb[0].mxu0 %v963
        %v1120 = vpop.f32.mrb[0].mxu0
        %v1121 = vadd.f32 0.0, %v1120
        %v1122 = vpop.f32.mrb[0].mxu0
        %v1123 = vpop.f32.mrb[0].mxu0
        %v1124 = vadd.f32 0.0, %v1123
        %v1125 = vpop.f32.mrb[0].mxu0
        %1126 = vmatprep.mubr.bf16.mxu0 0
        %1127 = vmatmul.mubr.bf16.gmra.mrb[0].mxu0 %v964
        %v1128 = vpop.f32.mrb[0].mxu0
        %v1129 = vadd.f32 0.0, %v1128
        %v1130 = vpop.f32.mrb[0].mxu0
        %v1131 = vpop.f32.mrb[0].mxu0
        %v1132 = vadd.f32 0.0, %v1131
        %v1133 = vpop.f32.mrb[0].mxu0
        %1134 = vmatprep.mubr.bf16.mxu0 0
        %1135 = vmatmul.mubr.bf16.gmra.mrb[0].mxu0 %v965
        %v1136 = vpop.f32.mrb[0].mxu0
        %v1137 = vadd.f32 0.0, %v1136
        %v1138 = vpop.f32.mrb[0].mxu0
        %v1139 = vpop.f32.mrb[0].mxu0
        %v1140 = vadd.f32 0.0, %v1139
        %v1141 = vpop.f32.mrb[0].mxu0
        %1142 = vmatprep.mubr.bf16.mxu0 0
        %1143 = vmatmul.mubr.bf16.gmra.mrb[0].mxu0 %v966
        %v1144 = vpop.f32.mrb[0].mxu0
        %v1145 = vadd.f32 0.0, %v1144
        %v1146 = vpop.f32.mrb[0].mxu0
        %v1147 = vpop.f32.mrb[0].mxu0
        %v1148 = vadd.f32 0.0, %v1147
        %v1149 = vpop.f32.mrb[0].mxu0
        %1150 = vmatprep.mubr.bf16.mxu0 0
        %1151 = vmatmul.mubr.bf16.gmra.mrb[0].mxu0 %v967
        %v1152 = vpop.f32.mrb[0].mxu0
        %v1153 = vadd.f32 0.0, %v1152
        %v1154 = vpop.f32.mrb[0].mxu0
        %v1155 = vpop.f32.mrb[0].mxu0
        %v1156 = vadd.f32 0.0, %v1155
        %v1157 = vpop.f32.mrb[0].mxu0
        %1158 = vmatprep.mubr.bf16.mxu0 0
        %1159 = vmatmul.mubr.bf16.gmra.mrb[0].mxu0 %v968
        %v1160 = vpop.f32.mrb[0].mxu0
        %v1161 = vadd.f32 0.0, %v1160
        %v1162 = vpop.f32.mrb[0].mxu0
        %v1163 = vpop.f32.mrb[0].mxu0
        %v1164 = vadd.f32 0.0, %v1163
        %v1165 = vpop.f32.mrb[0].mxu0
        %1166 = vmatprep.mubr.bf16.mxu0 0
        %1167 = vmatmul.mubr.bf16.gmra.mrb[0].mxu0 %v969
        %v1168 = vpop.f32.mrb[0].mxu0
        %v1169 = vadd.f32 0.0, %v1168
        %v1170 = vpop.f32.mrb[0].mxu0
        %v1171 = vpop.f32.mrb[0].mxu0
        %v1172 = vadd.f32 0.0, %v1171
        %v1173 = vpop.f32.mrb[0].mxu0
        %1174 = vmatprep.mubr.bf16.mxu0 0
        %1175 = vmatmul.mubr.bf16.gmra.mrb[0].mxu0 %v970
        %v1176 = vpop.f32.mrb[0].mxu0
        %v1177 = vadd.f32 0.0, %v1176
        %v1178 = vpop.f32.mrb[0].mxu0
        %v1179 = vpop.f32.mrb[0].mxu0
        %v1180 = vadd.f32 0.0, %v1179
        %v1181 = vpop.f32.mrb[0].mxu0
        %1182 = vmatprep.mubr.bf16.mxu0 0
        %1183 = vmatmul.mubr.bf16.gmra.mrb[0].mxu0 %v971
        %v1184 = vpop.f32.mrb[0].mxu0
        %v1185 = vadd.f32 0.0, %v1184
        %v1186 = vpop.f32.mrb[0].mxu0
        %v1187 = vpop.f32.mrb[0].mxu0
        %v1188 = vadd.f32 0.0, %v1187
        %v1189 = vpop.f32.mrb[0].mxu0
        %1190 = vmatprep.mubr.bf16.mxu0 0
        %1191 = vmatmul.mubr.bf16.gmra.mrb[0].mxu0 %v972
        %v1192 = vpop.f32.mrb[0].mxu0
        %v1193 = vadd.f32 0.0, %v1192
        %v1194 = vpop.f32.mrb[0].mxu0
        %v1195 = vpop.f32.mrb[0].mxu0
        %v1196 = vadd.f32 0.0, %v1195
        %v1197 = vpop.f32.mrb[0].mxu0
        %1198 = vdwg.mxu0
        %v1199 = vadd.f32 %v799, %v1073
        %v1200 = vadd.f32 %v802, %v1076
        %v1201 = vadd.f32 %v807, %v1081
        %v1202 = vadd.f32 %v810, %v1084
        %v1203 = vadd.f32 %v815, %v1089
        %v1204 = vadd.f32 %v818, %v1092
        %v1205 = vadd.f32 %v823, %v1097
        %v1206 = vadd.f32 %v826, %v1100
        %v1207 = vadd.f32 %v831, %v1105
        %v1208 = vadd.f32 %v834, %v1108
        %v1209 = vadd.f32 %v839, %v1113
        %v1210 = vadd.f32 %v842, %v1116
        %v1211 = vadd.f32 %v847, %v1121
        %v1212 = vadd.f32 %v850, %v1124
        %v1213 = vadd.f32 %v855, %v1129
        %v1214 = vadd.f32 %v858, %v1132
        %v1215 = vadd.f32 %v863, %v1137
        %v1216 = vadd.f32 %v866, %v1140
        %v1217 = vadd.f32 %v871, %v1145
        %v1218 = vadd.f32 %v874, %v1148
        %v1219 = vadd.f32 %v879, %v1153
        %v1220 = vadd.f32 %v882, %v1156
        %v1221 = vadd.f32 %v887, %v1161
        %v1222 = vadd.f32 %v890, %v1164
        %v1223 = vadd.f32 %v895, %v1169
        %v1224 = vadd.f32 %v898, %v1172
        %v1225 = vadd.f32 %v903, %v1177
        %v1226 = vadd.f32 %v906, %v1180
        %v1227 = vadd.f32 %v911, %v1185
        %v1228 = vadd.f32 %v914, %v1188
        %v1229 = vadd.f32 %v919, %v1193
        %v1230 = vadd.f32 %v922, %v1196
        %v1231 = vld [vmem:[%s248] sm:$0xff]
        %v1232 = vld [vmem:[%s248 + $0x8] sm:$0xff]
        %v1233 = vld [vmem:[%s248 + $0x18] sm:$0xff]
        %v1234 = vld [vmem:[%s248 + $0x20] sm:$0xff]
        %v1235 = vld [vmem:[%s248 + $0x30] sm:$0xff]
        %v1236 = vld [vmem:[%s248 + $0x38] sm:$0xff]
        %v1237 = vld [vmem:[%s248 + $0x48] sm:$0xff]
        %v1238 = vld [vmem:[%s248 + $0x50] sm:$0xff]
        %v1239 = vld [vmem:[%s248 + $0x60] sm:$0xff]
        %v1240 = vld [vmem:[%s248 + $0x68] sm:$0xff]
        %v1241 = vld [vmem:[%s248 + $0x78] sm:$0xff]
        %v1242 = vld [vmem:[%s248 + $0x80] sm:$0xff]
        %v1243 = vld [vmem:[%s248 + $0x90] sm:$0xff]
        %v1244 = vld [vmem:[%s248 + $0x98] sm:$0xff]
        %v1245 = vld [vmem:[%s248 + $0xa8] sm:$0xff]
        %v1246 = vld [vmem:[%s248 + $0xb0] sm:$0xff]
        %v1247 = vld [vmem:[%s248 + $0xc0] sm:$0xff]
        %v1248 = vld [vmem:[%s248 + $0xc8] sm:$0xff]
        %v1249 = vld [vmem:[%s248 + $0xd8] sm:$0xff]
        %v1250 = vld [vmem:[%s248 + $0xe0] sm:$0xff]
        %v1251 = vld [vmem:[%s248 + $0xf0] sm:$0xff]
        %v1252 = vld [vmem:[%s248 + $0xf8] sm:$0xff]
        %v1253 = vld [vmem:[%s248 + $0x108] sm:$0xff]
        %v1254 = vld [vmem:[%s248 + $0x110] sm:$0xff]
        %v1255 = vld [vmem:[%s248 + $0x120] sm:$0xff]
        %v1256 = vld [vmem:[%s248 + $0x128] sm:$0xff]
        %v1257 = vld [vmem:[%s248 + $0x138] sm:$0xff]
        %v1258 = vld [vmem:[%s248 + $0x140] sm:$0xff]
        %v1259 = vld [vmem:[%s248 + $0x150] sm:$0xff]
        %v1260 = vld [vmem:[%s248 + $0x158] sm:$0xff]
        %v1261 = vld [vmem:[%s248 + $0x168] sm:$0xff]
        %v1262 = vld [vmem:[%s248 + $0x170] sm:$0xff]
        %v1263 = vpack.c.bf16 %v1232, %v1231
        %v1264 = vpack.c.bf16 %v1234, %v1233
        %v1265 = vpack.c.bf16 %v1236, %v1235
        %v1266 = vpack.c.bf16 %v1238, %v1237
        %v1267 = vpack.c.bf16 %v1240, %v1239
        %v1268 = vpack.c.bf16 %v1242, %v1241
        %v1269 = vpack.c.bf16 %v1244, %v1243
        %v1270 = vpack.c.bf16 %v1246, %v1245
        %v1271 = vpack.c.bf16 %v1248, %v1247
        %v1272 = vpack.c.bf16 %v1250, %v1249
        %v1273 = vpack.c.bf16 %v1252, %v1251
        %v1274 = vpack.c.bf16 %v1254, %v1253
        %v1275 = vpack.c.bf16 %v1256, %v1255
        %v1276 = vpack.c.bf16 %v1258, %v1257
        %v1277 = vpack.c.bf16 %v1260, %v1259
        %v1278 = vpack.c.bf16 %v1262, %v1261
        %s1279 = scalar_lea.vmem %s1, 192
        %v1280 = vld [vmem:[%s1279] sm:$0xf]
        %v1281 = vld [vmem:[%s1279 + $0x4] sm:$0xf]
        %v1282 = vld [vmem:[%s1279 + $0x8] sm:$0xf]
        %v1283 = vld [vmem:[%s1279 + $0xc] sm:$0xf]
        %v1284 = vld [vmem:[%s1279 + $0x10] sm:$0xf]
        %v1285 = vld [vmem:[%s1279 + $0x14] sm:$0xf]
        %v1286 = vld [vmem:[%s1279 + $0x18] sm:$0xf]
        %v1287 = vld [vmem:[%s1279 + $0x1c] sm:$0xf]
        %v1288 = vld [vmem:[%s1279 + $0x20] sm:$0xf]
        %v1289 = vld [vmem:[%s1279 + $0x24] sm:$0xf]
        %v1290 = vld [vmem:[%s1279 + $0x28] sm:$0xf]
        %v1291 = vld [vmem:[%s1279 + $0x2c] sm:$0xf]
        %v1292 = vld [vmem:[%s1279 + $0x30] sm:$0xf]
        %v1293 = vld [vmem:[%s1279 + $0x34] sm:$0xf]
        %v1294 = vld [vmem:[%s1279 + $0x38] sm:$0xf]
        %v1295 = vld [vmem:[%s1279 + $0x3c] sm:$0xf]
        %v1312 = vunpack.c.l.b16 %v1280
        %v1313 = vunpack.c.l.b16 %v1281
        %v1314 = vunpack.c.l.b16 %v1282
        %v1315 = vunpack.c.l.b16 %v1283
        %v1316 = vunpack.c.l.b16 %v1284
        %v1317 = vunpack.c.l.b16 %v1285
        %v1318 = vunpack.c.l.b16 %v1286
        %v1319 = vunpack.c.l.b16 %v1287
        %v1320 = vunpack.c.l.b16 %v1288
        %v1321 = vunpack.c.l.b16 %v1289
        %v1322 = vunpack.c.l.b16 %v1290
        %v1323 = vunpack.c.l.b16 %v1291
        %v1324 = vunpack.c.l.b16 %v1292
        %v1325 = vunpack.c.l.b16 %v1293
        %v1326 = vunpack.c.l.b16 %v1294
        %v1327 = vunpack.c.l.b16 %v1295
        %v1328 = vpack.c.b16 %v1313, %v1312
        %v1329 = vpack.c.b16 %v1315, %v1314
        %v1330 = vpack.c.b16 %v1317, %v1316
        %v1331 = vpack.c.b16 %v1319, %v1318
        %v1332 = vpack.c.b16 %v1321, %v1320
        %v1333 = vpack.c.b16 %v1323, %v1322
        %v1334 = vpack.c.b16 %v1325, %v1324
        %v1335 = vpack.c.b16 %v1327, %v1326
        %1344 = vmatprep.subr.bf16.mxu0 0
        %1345 = vmatpush1.bf16.msra.mxu0 %v1328
        %1346 = vmatprep.subr.bf16.mxu0 0
        %1347 = vmatpush1.bf16.msra.mxu0 %v1329
        %1348 = vmatprep.subr.bf16.mxu0 0
        %1349 = vmatpush1.bf16.msra.mxu0 %v1330
        %1350 = vmatprep.subr.bf16.mxu0 0
        %1351 = vmatpush1.bf16.msra.mxu0 %v1331
        %1352 = vmatprep.subr.bf16.mxu0 0
        %1353 = vmatpush1.bf16.msra.mxu0 %v1332
        %1354 = vmatprep.subr.bf16.mxu0 0
        %1355 = vmatpush1.bf16.msra.mxu0 %v1333
        %1356 = vmatprep.subr.bf16.mxu0 0
        %1357 = vmatpush1.bf16.msra.mxu0 %v1334
        %1358 = vmatprep.subr.bf16.mxu0 0
        %1359 = vmatpush1.bf16.msra.mxu0 %v1335
        %1360 = vmatprep.subr.bf16.mxu0 0
        %1361 = vmatpush1.bf16.msra.mxu0 0
        %1362 = vmatprep.subr.bf16.mxu0 0
        %1363 = vmatpush1.bf16.msra.mxu0 0
        %1364 = vmatprep.subr.bf16.mxu0 0
        %1365 = vmatpush1.bf16.msra.mxu0 0
        %1366 = vmatprep.subr.bf16.mxu0 0
        %1367 = vmatpush1.bf16.msra.mxu0 0
        %1368 = vmatprep.subr.bf16.mxu0 0
        %1369 = vmatpush1.bf16.msra.mxu0 0
        %1370 = vmatprep.subr.bf16.mxu0 0
        %1371 = vmatpush1.bf16.msra.mxu0 0
        %1372 = vmatprep.subr.bf16.mxu0 0
        %1373 = vmatpush1.bf16.msra.mxu0 0
        %1374 = vmatprep.subr.bf16.mxu0 0
        %1375 = vmatpush1.bf16.msra.mxu0 0
        %1376 = vmatprep.mubr.bf16.mxu0 0
        %1377 = vmatmul.mubr.bf16.gmra.mrb[0].mxu0 %v1263
        %v1378 = vpop.f32.mrb[0].mxu0
        %v1379 = vadd.f32 0.0, %v1378
        %v1380 = vpop.f32.mrb[0].mxu0
        %v1381 = vpop.f32.mrb[0].mxu0
        %v1382 = vadd.f32 0.0, %v1381
        %v1383 = vpop.f32.mrb[0].mxu0
        %1384 = vmatprep.mubr.bf16.mxu0 0
        %1385 = vmatmul.mubr.bf16.gmra.mrb[0].mxu0 %v1264
        %v1386 = vpop.f32.mrb[0].mxu0
        %v1387 = vadd.f32 0.0, %v1386
        %v1388 = vpop.f32.mrb[0].mxu0
        %v1389 = vpop.f32.mrb[0].mxu0
        %v1390 = vadd.f32 0.0, %v1389
        %v1391 = vpop.f32.mrb[0].mxu0
        %1392 = vmatprep.mubr.bf16.mxu0 0
        %1393 = vmatmul.mubr.bf16.gmra.mrb[0].mxu0 %v1265
        %v1394 = vpop.f32.mrb[0].mxu0
        %v1395 = vadd.f32 0.0, %v1394
        %v1396 = vpop.f32.mrb[0].mxu0
        %v1397 = vpop.f32.mrb[0].mxu0
        %v1398 = vadd.f32 0.0, %v1397
        %v1399 = vpop.f32.mrb[0].mxu0
        %1400 = vmatprep.mubr.bf16.mxu0 0
        %1401 = vmatmul.mubr.bf16.gmra.mrb[0].mxu0 %v1266
        %v1402 = vpop.f32.mrb[0].mxu0
        %v1403 = vadd.f32 0.0, %v1402
        %v1404 = vpop.f32.mrb[0].mxu0
        %v1405 = vpop.f32.mrb[0].mxu0
        %v1406 = vadd.f32 0.0, %v1405
        %v1407 = vpop.f32.mrb[0].mxu0
        %1408 = vmatprep.mubr.bf16.mxu0 0
        %1409 = vmatmul.mubr.bf16.gmra.mrb[0].mxu0 %v1267
        %v1410 = vpop.f32.mrb[0].mxu0
        %v1411 = vadd.f32 0.0, %v1410
        %v1412 = vpop.f32.mrb[0].mxu0
        %v1413 = vpop.f32.mrb[0].mxu0
        %v1414 = vadd.f32 0.0, %v1413
        %v1415 = vpop.f32.mrb[0].mxu0
        %1416 = vmatprep.mubr.bf16.mxu0 0
        %1417 = vmatmul.mubr.bf16.gmra.mrb[0].mxu0 %v1268
        %v1418 = vpop.f32.mrb[0].mxu0
        %v1419 = vadd.f32 0.0, %v1418
        %v1420 = vpop.f32.mrb[0].mxu0
        %v1421 = vpop.f32.mrb[0].mxu0
        %v1422 = vadd.f32 0.0, %v1421
        %v1423 = vpop.f32.mrb[0].mxu0
        %1424 = vmatprep.mubr.bf16.mxu0 0
        %1425 = vmatmul.mubr.bf16.gmra.mrb[0].mxu0 %v1269
        %v1426 = vpop.f32.mrb[0].mxu0
        %v1427 = vadd.f32 0.0, %v1426
        %v1428 = vpop.f32.mrb[0].mxu0
        %v1429 = vpop.f32.mrb[0].mxu0
        %v1430 = vadd.f32 0.0, %v1429
        %v1431 = vpop.f32.mrb[0].mxu0
        %1432 = vmatprep.mubr.bf16.mxu0 0
        %1433 = vmatmul.mubr.bf16.gmra.mrb[0].mxu0 %v1270
        %v1434 = vpop.f32.mrb[0].mxu0
        %v1435 = vadd.f32 0.0, %v1434
        %v1436 = vpop.f32.mrb[0].mxu0
        %v1437 = vpop.f32.mrb[0].mxu0
        %v1438 = vadd.f32 0.0, %v1437
        %v1439 = vpop.f32.mrb[0].mxu0
        %1440 = vmatprep.mubr.bf16.mxu0 0
        %1441 = vmatmul.mubr.bf16.gmra.mrb[0].mxu0 %v1271
        %v1442 = vpop.f32.mrb[0].mxu0
        %v1443 = vadd.f32 0.0, %v1442
        %v1444 = vpop.f32.mrb[0].mxu0
        %v1445 = vpop.f32.mrb[0].mxu0
        %v1446 = vadd.f32 0.0, %v1445
        %v1447 = vpop.f32.mrb[0].mxu0
        %1448 = vmatprep.mubr.bf16.mxu0 0
        %1449 = vmatmul.mubr.bf16.gmra.mrb[0].mxu0 %v1272
        %v1450 = vpop.f32.mrb[0].mxu0
        %v1451 = vadd.f32 0.0, %v1450
        %v1452 = vpop.f32.mrb[0].mxu0
        %v1453 = vpop.f32.mrb[0].mxu0
        %v1454 = vadd.f32 0.0, %v1453
        %v1455 = vpop.f32.mrb[0].mxu0
        %1456 = vmatprep.mubr.bf16.mxu0 0
        %1457 = vmatmul.mubr.bf16.gmra.mrb[0].mxu0 %v1273
        %v1458 = vpop.f32.mrb[0].mxu0
        %v1459 = vadd.f32 0.0, %v1458
        %v1460 = vpop.f32.mrb[0].mxu0
        %v1461 = vpop.f32.mrb[0].mxu0
        %v1462 = vadd.f32 0.0, %v1461
        %v1463 = vpop.f32.mrb[0].mxu0
        %1464 = vmatprep.mubr.bf16.mxu0 0
        %1465 = vmatmul.mubr.bf16.gmra.mrb[0].mxu0 %v1274
        %v1466 = vpop.f32.mrb[0].mxu0
        %v1467 = vadd.f32 0.0, %v1466
        %v1468 = vpop.f32.mrb[0].mxu0
        %v1469 = vpop.f32.mrb[0].mxu0
        %v1470 = vadd.f32 0.0, %v1469
        %v1471 = vpop.f32.mrb[0].mxu0
        %1472 = vmatprep.mubr.bf16.mxu0 0
        %1473 = vmatmul.mubr.bf16.gmra.mrb[0].mxu0 %v1275
        %v1474 = vpop.f32.mrb[0].mxu0
        %v1475 = vadd.f32 0.0, %v1474
        %v1476 = vpop.f32.mrb[0].mxu0
        %v1477 = vpop.f32.mrb[0].mxu0
        %v1478 = vadd.f32 0.0, %v1477
        %v1479 = vpop.f32.mrb[0].mxu0
        %1480 = vmatprep.mubr.bf16.mxu0 0
        %1481 = vmatmul.mubr.bf16.gmra.mrb[0].mxu0 %v1276
        %v1482 = vpop.f32.mrb[0].mxu0
        %v1483 = vadd.f32 0.0, %v1482
        %v1484 = vpop.f32.mrb[0].mxu0
        %v1485 = vpop.f32.mrb[0].mxu0
        %v1486 = vadd.f32 0.0, %v1485
        %v1487 = vpop.f32.mrb[0].mxu0
        %1488 = vmatprep.mubr.bf16.mxu0 0
        %1489 = vmatmul.mubr.bf16.gmra.mrb[0].mxu0 %v1277
        %v1490 = vpop.f32.mrb[0].mxu0
        %v1491 = vadd.f32 0.0, %v1490
        %v1492 = vpop.f32.mrb[0].mxu0
        %v1493 = vpop.f32.mrb[0].mxu0
        %v1494 = vadd.f32 0.0, %v1493
        %v1495 = vpop.f32.mrb[0].mxu0
        %1496 = vmatprep.mubr.bf16.mxu0 0
        %1497 = vmatmul.mubr.bf16.gmra.mrb[0].mxu0 %v1278
        %v1498 = vpop.f32.mrb[0].mxu0
        %v1499 = vadd.f32 0.0, %v1498
        %v1500 = vpop.f32.mrb[0].mxu0
        %v1501 = vpop.f32.mrb[0].mxu0
        %v1502 = vadd.f32 0.0, %v1501
        %v1503 = vpop.f32.mrb[0].mxu0
        %1504 = vdwg.mxu0
        %v1505 = vadd.f32 %v1199, %v1379
        %v1506 = vadd.f32 %v1200, %v1382
        %v1507 = vadd.f32 %v1201, %v1387
        %v1508 = vadd.f32 %v1202, %v1390
        %v1509 = vadd.f32 %v1203, %v1395
        %v1510 = vadd.f32 %v1204, %v1398
        %v1511 = vadd.f32 %v1205, %v1403
        %v1512 = vadd.f32 %v1206, %v1406
        %v1513 = vadd.f32 %v1207, %v1411
        %v1514 = vadd.f32 %v1208, %v1414
        %v1515 = vadd.f32 %v1209, %v1419
        %v1516 = vadd.f32 %v1210, %v1422
        %v1517 = vadd.f32 %v1211, %v1427
        %v1518 = vadd.f32 %v1212, %v1430
        %v1519 = vadd.f32 %v1213, %v1435
        %v1520 = vadd.f32 %v1214, %v1438
        %v1521 = vadd.f32 %v1215, %v1443
        %v1522 = vadd.f32 %v1216, %v1446
        %v1523 = vadd.f32 %v1217, %v1451
        %v1524 = vadd.f32 %v1218, %v1454
        %v1525 = vadd.f32 %v1219, %v1459
        %v1526 = vadd.f32 %v1220, %v1462
        %v1527 = vadd.f32 %v1221, %v1467
        %v1528 = vadd.f32 %v1222, %v1470
        %v1529 = vadd.f32 %v1223, %v1475
        %v1530 = vadd.f32 %v1224, %v1478
        %v1531 = vadd.f32 %v1225, %v1483
        %v1532 = vadd.f32 %v1226, %v1486
        %v1533 = vadd.f32 %v1227, %v1491
        %v1534 = vadd.f32 %v1228, %v1494
        %v1535 = vadd.f32 %v1229, %v1499
        %v1536 = vadd.f32 %v1230, %v1502
        %v1537 = vld [vmem:[%s248 + $0x1] sm:$0xff]
        %v1538 = vld [vmem:[%s248 + $0x9] sm:$0xff]
        %v1539 = vld [vmem:[%s248 + $0x19] sm:$0xff]
        %v1540 = vld [vmem:[%s248 + $0x21] sm:$0xff]
        %v1541 = vld [vmem:[%s248 + $0x31] sm:$0xff]
        %v1542 = vld [vmem:[%s248 + $0x39] sm:$0xff]
        %v1543 = vld [vmem:[%s248 + $0x49] sm:$0xff]
        %v1544 = vld [vmem:[%s248 + $0x51] sm:$0xff]
        %v1545 = vld [vmem:[%s248 + $0x61] sm:$0xff]
        %v1546 = vld [vmem:[%s248 + $0x69] sm:$0xff]
        %v1547 = vld [vmem:[%s248 + $0x79] sm:$0xff]
        %v1548 = vld [vmem:[%s248 + $0x81] sm:$0xff]
        %v1549 = vld [vmem:[%s248 + $0x91] sm:$0xff]
        %v1550 = vld [vmem:[%s248 + $0x99] sm:$0xff]
        %v1551 = vld [vmem:[%s248 + $0xa9] sm:$0xff]
        %v1552 = vld [vmem:[%s248 + $0xb1] sm:$0xff]
        %v1553 = vld [vmem:[%s248 + $0xc1] sm:$0xff]
        %v1554 = vld [vmem:[%s248 + $0xc9] sm:$0xff]
        %v1555 = vld [vmem:[%s248 + $0xd9] sm:$0xff]
        %v1556 = vld [vmem:[%s248 + $0xe1] sm:$0xff]
        %v1557 = vld [vmem:[%s248 + $0xf1] sm:$0xff]
        %v1558 = vld [vmem:[%s248 + $0xf9] sm:$0xff]
        %v1559 = vld [vmem:[%s248 + $0x109] sm:$0xff]
        %v1560 = vld [vmem:[%s248 + $0x111] sm:$0xff]
        %v1561 = vld [vmem:[%s248 + $0x121] sm:$0xff]
        %v1562 = vld [vmem:[%s248 + $0x129] sm:$0xff]
        %v1563 = vld [vmem:[%s248 + $0x139] sm:$0xff]
        %v1564 = vld [vmem:[%s248 + $0x141] sm:$0xff]
        %v1565 = vld [vmem:[%s248 + $0x151] sm:$0xff]
        %v1566 = vld [vmem:[%s248 + $0x159] sm:$0xff]
        %v1567 = vld [vmem:[%s248 + $0x169] sm:$0xff]
        %v1568 = vld [vmem:[%s248 + $0x171] sm:$0xff]
        %v1569 = vpack.c.bf16 %v1538, %v1537
        %v1570 = vpack.c.bf16 %v1540, %v1539
        %v1571 = vpack.c.bf16 %v1542, %v1541
        %v1572 = vpack.c.bf16 %v1544, %v1543
        %v1573 = vpack.c.bf16 %v1546, %v1545
        %v1574 = vpack.c.bf16 %v1548, %v1547
        %v1575 = vpack.c.bf16 %v1550, %v1549
        %v1576 = vpack.c.bf16 %v1552, %v1551
        %v1577 = vpack.c.bf16 %v1554, %v1553
        %v1578 = vpack.c.bf16 %v1556, %v1555
        %v1579 = vpack.c.bf16 %v1558, %v1557
        %v1580 = vpack.c.bf16 %v1560, %v1559
        %v1581 = vpack.c.bf16 %v1562, %v1561
        %v1582 = vpack.c.bf16 %v1564, %v1563
        %v1583 = vpack.c.bf16 %v1566, %v1565
        %v1584 = vpack.c.bf16 %v1568, %v1567
        %s1585 = scalar_lea.vmem %s1, 256
        %v1586 = vld [vmem:[%s1585] sm:$0xf]
        %v1587 = vld [vmem:[%s1585 + $0x4] sm:$0xf]
        %v1588 = vld [vmem:[%s1585 + $0x8] sm:$0xf]
        %v1589 = vld [vmem:[%s1585 + $0xc] sm:$0xf]
        %v1590 = vld [vmem:[%s1585 + $0x10] sm:$0xf]
        %v1591 = vld [vmem:[%s1585 + $0x14] sm:$0xf]
        %v1592 = vld [vmem:[%s1585 + $0x18] sm:$0xf]
        %v1593 = vld [vmem:[%s1585 + $0x1c] sm:$0xf]
        %v1594 = vld [vmem:[%s1585 + $0x20] sm:$0xf]
        %v1595 = vld [vmem:[%s1585 + $0x24] sm:$0xf]
        %v1596 = vld [vmem:[%s1585 + $0x28] sm:$0xf]
        %v1597 = vld [vmem:[%s1585 + $0x2c] sm:$0xf]
        %v1598 = vld [vmem:[%s1585 + $0x30] sm:$0xf]
        %v1599 = vld [vmem:[%s1585 + $0x34] sm:$0xf]
        %v1600 = vld [vmem:[%s1585 + $0x38] sm:$0xf]
        %v1601 = vld [vmem:[%s1585 + $0x3c] sm:$0xf]
        %v1618 = vunpack.c.l.b16 %v1586
        %v1619 = vunpack.c.l.b16 %v1587
        %v1620 = vunpack.c.l.b16 %v1588
        %v1621 = vunpack.c.l.b16 %v1589
        %v1622 = vunpack.c.l.b16 %v1590
        %v1623 = vunpack.c.l.b16 %v1591
        %v1624 = vunpack.c.l.b16 %v1592
        %v1625 = vunpack.c.l.b16 %v1593
        %v1626 = vunpack.c.l.b16 %v1594
        %v1627 = vunpack.c.l.b16 %v1595
        %v1628 = vunpack.c.l.b16 %v1596
        %v1629 = vunpack.c.l.b16 %v1597
        %v1630 = vunpack.c.l.b16 %v1598
        %v1631 = vunpack.c.l.b16 %v1599
        %v1632 = vunpack.c.l.b16 %v1600
        %v1633 = vunpack.c.l.b16 %v1601
        %v1634 = vpack.c.b16 %v1619, %v1618
        %v1635 = vpack.c.b16 %v1621, %v1620
        %v1636 = vpack.c.b16 %v1623, %v1622
        %v1637 = vpack.c.b16 %v1625, %v1624
        %v1638 = vpack.c.b16 %v1627, %v1626
        %v1639 = vpack.c.b16 %v1629, %v1628
        %v1640 = vpack.c.b16 %v1631, %v1630
        %v1641 = vpack.c.b16 %v1633, %v1632
        %1650 = vmatprep.subr.bf16.mxu0 0
        %1651 = vmatpush1.bf16.msra.mxu0 %v1634
        %1652 = vmatprep.subr.bf16.mxu0 0
        %1653 = vmatpush1.bf16.msra.mxu0 %v1635
        %1654 = vmatprep.subr.bf16.mxu0 0
        %1655 = vmatpush1.bf16.msra.mxu0 %v1636
        %1656 = vmatprep.subr.bf16.mxu0 0
        %1657 = vmatpush1.bf16.msra.mxu0 %v1637
        %1658 = vmatprep.subr.bf16.mxu0 0
        %1659 = vmatpush1.bf16.msra.mxu0 %v1638
        %1660 = vmatprep.subr.bf16.mxu0 0
        %1661 = vmatpush1.bf16.msra.mxu0 %v1639
        %1662 = vmatprep.subr.bf16.mxu0 0
        %1663 = vmatpush1.bf16.msra.mxu0 %v1640
        %1664 = vmatprep.subr.bf16.mxu0 0
        %1665 = vmatpush1.bf16.msra.mxu0 %v1641
        %1666 = vmatprep.subr.bf16.mxu0 0
        %1667 = vmatpush1.bf16.msra.mxu0 0
        %1668 = vmatprep.subr.bf16.mxu0 0
        %1669 = vmatpush1.bf16.msra.mxu0 0
        %1670 = vmatprep.subr.bf16.mxu0 0
        %1671 = vmatpush1.bf16.msra.mxu0 0
        %1672 = vmatprep.subr.bf16.mxu0 0
        %1673 = vmatpush1.bf16.msra.mxu0 0
        %1674 = vmatprep.subr.bf16.mxu0 0
        %1675 = vmatpush1.bf16.msra.mxu0 0
        %1676 = vmatprep.subr.bf16.mxu0 0
        %1677 = vmatpush1.bf16.msra.mxu0 0
        %1678 = vmatprep.subr.bf16.mxu0 0
        %1679 = vmatpush1.bf16.msra.mxu0 0
        %1680 = vmatprep.subr.bf16.mxu0 0
        %1681 = vmatpush1.bf16.msra.mxu0 0
        %1682 = vmatprep.mubr.bf16.mxu0 0
        %1683 = vmatmul.mubr.bf16.gmra.mrb[0].mxu0 %v1569
        %v1684 = vpop.f32.mrb[0].mxu0
        %v1685 = vadd.f32 0.0, %v1684
        %v1686 = vpop.f32.mrb[0].mxu0
        %v1687 = vpop.f32.mrb[0].mxu0
        %v1688 = vadd.f32 0.0, %v1687
        %v1689 = vpop.f32.mrb[0].mxu0
        %1690 = vmatprep.mubr.bf16.mxu0 0
        %1691 = vmatmul.mubr.bf16.gmra.mrb[0].mxu0 %v1570
        %v1692 = vpop.f32.mrb[0].mxu0
        %v1693 = vadd.f32 0.0, %v1692
        %v1694 = vpop.f32.mrb[0].mxu0
        %v1695 = vpop.f32.mrb[0].mxu0
        %v1696 = vadd.f32 0.0, %v1695
        %v1697 = vpop.f32.mrb[0].mxu0
        %1698 = vmatprep.mubr.bf16.mxu0 0
        %1699 = vmatmul.mubr.bf16.gmra.mrb[0].mxu0 %v1571
        %v1700 = vpop.f32.mrb[0].mxu0
        %v1701 = vadd.f32 0.0, %v1700
        %v1702 = vpop.f32.mrb[0].mxu0
        %v1703 = vpop.f32.mrb[0].mxu0
        %v1704 = vadd.f32 0.0, %v1703
        %v1705 = vpop.f32.mrb[0].mxu0
        %1706 = vmatprep.mubr.bf16.mxu0 0
        %1707 = vmatmul.mubr.bf16.gmra.mrb[0].mxu0 %v1572
        %v1708 = vpop.f32.mrb[0].mxu0
        %v1709 = vadd.f32 0.0, %v1708
        %v1710 = vpop.f32.mrb[0].mxu0
        %v1711 = vpop.f32.mrb[0].mxu0
        %v1712 = vadd.f32 0.0, %v1711
        %v1713 = vpop.f32.mrb[0].mxu0
        %1714 = vmatprep.mubr.bf16.mxu0 0
        %1715 = vmatmul.mubr.bf16.gmra.mrb[0].mxu0 %v1573
        %v1716 = vpop.f32.mrb[0].mxu0
        %v1717 = vadd.f32 0.0, %v1716
        %v1718 = vpop.f32.mrb[0].mxu0
        %v1719 = vpop.f32.mrb[0].mxu0
        %v1720 = vadd.f32 0.0, %v1719
        %v1721 = vpop.f32.mrb[0].mxu0
        %1722 = vmatprep.mubr.bf16.mxu0 0
        %1723 = vmatmul.mubr.bf16.gmra.mrb[0].mxu0 %v1574
        %v1724 = vpop.f32.mrb[0].mxu0
        %v1725 = vadd.f32 0.0, %v1724
        %v1726 = vpop.f32.mrb[0].mxu0
        %v1727 = vpop.f32.mrb[0].mxu0
        %v1728 = vadd.f32 0.0, %v1727
        %v1729 = vpop.f32.mrb[0].mxu0
        %1730 = vmatprep.mubr.bf16.mxu0 0
        %1731 = vmatmul.mubr.bf16.gmra.mrb[0].mxu0 %v1575
        %v1732 = vpop.f32.mrb[0].mxu0
        %v1733 = vadd.f32 0.0, %v1732
        %v1734 = vpop.f32.mrb[0].mxu0
        %v1735 = vpop.f32.mrb[0].mxu0
        %v1736 = vadd.f32 0.0, %v1735
        %v1737 = vpop.f32.mrb[0].mxu0
        %1738 = vmatprep.mubr.bf16.mxu0 0
        %1739 = vmatmul.mubr.bf16.gmra.mrb[0].mxu0 %v1576
        %v1740 = vpop.f32.mrb[0].mxu0
        %v1741 = vadd.f32 0.0, %v1740
        %v1742 = vpop.f32.mrb[0].mxu0
        %v1743 = vpop.f32.mrb[0].mxu0
        %v1744 = vadd.f32 0.0, %v1743
        %v1745 = vpop.f32.mrb[0].mxu0
        %1746 = vmatprep.mubr.bf16.mxu0 0
        %1747 = vmatmul.mubr.bf16.gmra.mrb[0].mxu0 %v1577
        %v1748 = vpop.f32.mrb[0].mxu0
        %v1749 = vadd.f32 0.0, %v1748
        %v1750 = vpop.f32.mrb[0].mxu0
        %v1751 = vpop.f32.mrb[0].mxu0
        %v1752 = vadd.f32 0.0, %v1751
        %v1753 = vpop.f32.mrb[0].mxu0
        %1754 = vmatprep.mubr.bf16.mxu0 0
        %1755 = vmatmul.mubr.bf16.gmra.mrb[0].mxu0 %v1578
        %v1756 = vpop.f32.mrb[0].mxu0
        %v1757 = vadd.f32 0.0, %v1756
        %v1758 = vpop.f32.mrb[0].mxu0
        %v1759 = vpop.f32.mrb[0].mxu0
        %v1760 = vadd.f32 0.0, %v1759
        %v1761 = vpop.f32.mrb[0].mxu0
        %1762 = vmatprep.mubr.bf16.mxu0 0
        %1763 = vmatmul.mubr.bf16.gmra.mrb[0].mxu0 %v1579
        %v1764 = vpop.f32.mrb[0].mxu0
        %v1765 = vadd.f32 0.0, %v1764
        %v1766 = vpop.f32.mrb[0].mxu0
        %v1767 = vpop.f32.mrb[0].mxu0
        %v1768 = vadd.f32 0.0, %v1767
        %v1769 = vpop.f32.mrb[0].mxu0
        %1770 = vmatprep.mubr.bf16.mxu0 0
        %1771 = vmatmul.mubr.bf16.gmra.mrb[0].mxu0 %v1580
        %v1772 = vpop.f32.mrb[0].mxu0
        %v1773 = vadd.f32 0.0, %v1772
        %v1774 = vpop.f32.mrb[0].mxu0
        %v1775 = vpop.f32.mrb[0].mxu0
        %v1776 = vadd.f32 0.0, %v1775
        %v1777 = vpop.f32.mrb[0].mxu0
        %1778 = vmatprep.mubr.bf16.mxu0 0
        %1779 = vmatmul.mubr.bf16.gmra.mrb[0].mxu0 %v1581
        %v1780 = vpop.f32.mrb[0].mxu0
        %v1781 = vadd.f32 0.0, %v1780
        %v1782 = vpop.f32.mrb[0].mxu0
        %v1783 = vpop.f32.mrb[0].mxu0
        %v1784 = vadd.f32 0.0, %v1783
        %v1785 = vpop.f32.mrb[0].mxu0
        %1786 = vmatprep.mubr.bf16.mxu0 0
        %1787 = vmatmul.mubr.bf16.gmra.mrb[0].mxu0 %v1582
        %v1788 = vpop.f32.mrb[0].mxu0
        %v1789 = vadd.f32 0.0, %v1788
        %v1790 = vpop.f32.mrb[0].mxu0
        %v1791 = vpop.f32.mrb[0].mxu0
        %v1792 = vadd.f32 0.0, %v1791
        %v1793 = vpop.f32.mrb[0].mxu0
        %1794 = vmatprep.mubr.bf16.mxu0 0
        %1795 = vmatmul.mubr.bf16.gmra.mrb[0].mxu0 %v1583
        %v1796 = vpop.f32.mrb[0].mxu0
        %v1797 = vadd.f32 0.0, %v1796
        %v1798 = vpop.f32.mrb[0].mxu0
        %v1799 = vpop.f32.mrb[0].mxu0
        %v1800 = vadd.f32 0.0, %v1799
        %v1801 = vpop.f32.mrb[0].mxu0
        %1802 = vmatprep.mubr.bf16.mxu0 0
        %1803 = vmatmul.mubr.bf16.gmra.mrb[0].mxu0 %v1584
        %v1804 = vpop.f32.mrb[0].mxu0
        %v1805 = vadd.f32 0.0, %v1804
        %v1806 = vpop.f32.mrb[0].mxu0
        %v1807 = vpop.f32.mrb[0].mxu0
        %v1808 = vadd.f32 0.0, %v1807
        %v1809 = vpop.f32.mrb[0].mxu0
        %1810 = vdwg.mxu0
        %v1811 = vadd.f32 %v1505, %v1685
        %v1812 = vadd.f32 %v1506, %v1688
        %v1813 = vadd.f32 %v1507, %v1693
        %v1814 = vadd.f32 %v1508, %v1696
        %v1815 = vadd.f32 %v1509, %v1701
        %v1816 = vadd.f32 %v1510, %v1704
        %v1817 = vadd.f32 %v1511, %v1709
        %v1818 = vadd.f32 %v1512, %v1712
        %v1819 = vadd.f32 %v1513, %v1717
        %v1820 = vadd.f32 %v1514, %v1720
        %v1821 = vadd.f32 %v1515, %v1725
        %v1822 = vadd.f32 %v1516, %v1728
        %v1823 = vadd.f32 %v1517, %v1733
        %v1824 = vadd.f32 %v1518, %v1736
        %v1825 = vadd.f32 %v1519, %v1741
        %v1826 = vadd.f32 %v1520, %v1744
        %v1827 = vadd.f32 %v1521, %v1749
        %v1828 = vadd.f32 %v1522, %v1752
        %v1829 = vadd.f32 %v1523, %v1757
        %v1830 = vadd.f32 %v1524, %v1760
        %v1831 = vadd.f32 %v1525, %v1765
        %v1832 = vadd.f32 %v1526, %v1768
        %v1833 = vadd.f32 %v1527, %v1773
        %v1834 = vadd.f32 %v1528, %v1776
        %v1835 = vadd.f32 %v1529, %v1781
        %v1836 = vadd.f32 %v1530, %v1784
        %v1837 = vadd.f32 %v1531, %v1789
        %v1838 = vadd.f32 %v1532, %v1792
        %v1839 = vadd.f32 %v1533, %v1797
        %v1840 = vadd.f32 %v1534, %v1800
        %v1841 = vadd.f32 %v1535, %v1805
        %v1842 = vadd.f32 %v1536, %v1808
        %v1843 = vld [vmem:[%s248 + $0x2] sm:$0xff]
        %v1844 = vld [vmem:[%s248 + $0xa] sm:$0xff]
        %v1845 = vld [vmem:[%s248 + $0x1a] sm:$0xff]
        %v1846 = vld [vmem:[%s248 + $0x22] sm:$0xff]
        %v1847 = vld [vmem:[%s248 + $0x32] sm:$0xff]
        %v1848 = vld [vmem:[%s248 + $0x3a] sm:$0xff]
        %v1849 = vld [vmem:[%s248 + $0x4a] sm:$0xff]
        %v1850 = vld [vmem:[%s248 + $0x52] sm:$0xff]
        %v1851 = vld [vmem:[%s248 + $0x62] sm:$0xff]
        %v1852 = vld [vmem:[%s248 + $0x6a] sm:$0xff]
        %v1853 = vld [vmem:[%s248 + $0x7a] sm:$0xff]
        %v1854 = vld [vmem:[%s248 + $0x82] sm:$0xff]
        %v1855 = vld [vmem:[%s248 + $0x92] sm:$0xff]
        %v1856 = vld [vmem:[%s248 + $0x9a] sm:$0xff]
        %v1857 = vld [vmem:[%s248 + $0xaa] sm:$0xff]
        %v1858 = vld [vmem:[%s248 + $0xb2] sm:$0xff]
        %v1859 = vld [vmem:[%s248 + $0xc2] sm:$0xff]
        %v1860 = vld [vmem:[%s248 + $0xca] sm:$0xff]
        %v1861 = vld [vmem:[%s248 + $0xda] sm:$0xff]
        %v1862 = vld [vmem:[%s248 + $0xe2] sm:$0xff]
        %v1863 = vld [vmem:[%s248 + $0xf2] sm:$0xff]
        %v1864 = vld [vmem:[%s248 + $0xfa] sm:$0xff]
        %v1865 = vld [vmem:[%s248 + $0x10a] sm:$0xff]
        %v1866 = vld [vmem:[%s248 + $0x112] sm:$0xff]
        %v1867 = vld [vmem:[%s248 + $0x122] sm:$0xff]
        %v1868 = vld [vmem:[%s248 + $0x12a] sm:$0xff]
        %v1869 = vld [vmem:[%s248 + $0x13a] sm:$0xff]
        %v1870 = vld [vmem:[%s248 + $0x142] sm:$0xff]
        %v1871 = vld [vmem:[%s248 + $0x152] sm:$0xff]
        %v1872 = vld [vmem:[%s248 + $0x15a] sm:$0xff]
        %v1873 = vld [vmem:[%s248 + $0x16a] sm:$0xff]
        %v1874 = vld [vmem:[%s248 + $0x172] sm:$0xff]
        %v1875 = vpack.c.bf16 %v1844, %v1843
        %v1876 = vpack.c.bf16 %v1846, %v1845
        %v1877 = vpack.c.bf16 %v1848, %v1847
        %v1878 = vpack.c.bf16 %v1850, %v1849
        %v1879 = vpack.c.bf16 %v1852, %v1851
        %v1880 = vpack.c.bf16 %v1854, %v1853
        %v1881 = vpack.c.bf16 %v1856, %v1855
        %v1882 = vpack.c.bf16 %v1858, %v1857
        %v1883 = vpack.c.bf16 %v1860, %v1859
        %v1884 = vpack.c.bf16 %v1862, %v1861
        %v1885 = vpack.c.bf16 %v1864, %v1863
        %v1886 = vpack.c.bf16 %v1866, %v1865
        %v1887 = vpack.c.bf16 %v1868, %v1867
        %v1888 = vpack.c.bf16 %v1870, %v1869
        %v1889 = vpack.c.bf16 %v1872, %v1871
        %v1890 = vpack.c.bf16 %v1874, %v1873
        %s1891 = scalar_lea.vmem %s1, 320
        %v1892 = vld [vmem:[%s1891] sm:$0xf]
        %v1893 = vld [vmem:[%s1891 + $0x4] sm:$0xf]
        %v1894 = vld [vmem:[%s1891 + $0x8] sm:$0xf]
        %v1895 = vld [vmem:[%s1891 + $0xc] sm:$0xf]
        %v1896 = vld [vmem:[%s1891 + $0x10] sm:$0xf]
        %v1897 = vld [vmem:[%s1891 + $0x14] sm:$0xf]
        %v1898 = vld [vmem:[%s1891 + $0x18] sm:$0xf]
        %v1899 = vld [vmem:[%s1891 + $0x1c] sm:$0xf]
        %v1900 = vld [vmem:[%s1891 + $0x20] sm:$0xf]
        %v1901 = vld [vmem:[%s1891 + $0x24] sm:$0xf]
        %v1902 = vld [vmem:[%s1891 + $0x28] sm:$0xf]
        %v1903 = vld [vmem:[%s1891 + $0x2c] sm:$0xf]
        %v1904 = vld [vmem:[%s1891 + $0x30] sm:$0xf]
        %v1905 = vld [vmem:[%s1891 + $0x34] sm:$0xf]
        %v1906 = vld [vmem:[%s1891 + $0x38] sm:$0xf]
        %v1907 = vld [vmem:[%s1891 + $0x3c] sm:$0xf]
        %v1924 = vunpack.c.l.b16 %v1892
        %v1925 = vunpack.c.l.b16 %v1893
        %v1926 = vunpack.c.l.b16 %v1894
        %v1927 = vunpack.c.l.b16 %v1895
        %v1928 = vunpack.c.l.b16 %v1896
        %v1929 = vunpack.c.l.b16 %v1897
        %v1930 = vunpack.c.l.b16 %v1898
        %v1931 = vunpack.c.l.b16 %v1899
        %v1932 = vunpack.c.l.b16 %v1900
        %v1933 = vunpack.c.l.b16 %v1901
        %v1934 = vunpack.c.l.b16 %v1902
        %v1935 = vunpack.c.l.b16 %v1903
        %v1936 = vunpack.c.l.b16 %v1904
        %v1937 = vunpack.c.l.b16 %v1905
        %v1938 = vunpack.c.l.b16 %v1906
        %v1939 = vunpack.c.l.b16 %v1907
        %v1940 = vpack.c.b16 %v1925, %v1924
        %v1941 = vpack.c.b16 %v1927, %v1926
        %v1942 = vpack.c.b16 %v1929, %v1928
        %v1943 = vpack.c.b16 %v1931, %v1930
        %v1944 = vpack.c.b16 %v1933, %v1932
        %v1945 = vpack.c.b16 %v1935, %v1934
        %v1946 = vpack.c.b16 %v1937, %v1936
        %v1947 = vpack.c.b16 %v1939, %v1938
        %1956 = vmatprep.subr.bf16.mxu0 0
        %1957 = vmatpush1.bf16.msra.mxu0 %v1940
        %1958 = vmatprep.subr.bf16.mxu0 0
        %1959 = vmatpush1.bf16.msra.mxu0 %v1941
        %1960 = vmatprep.subr.bf16.mxu0 0
        %1961 = vmatpush1.bf16.msra.mxu0 %v1942
        %1962 = vmatprep.subr.bf16.mxu0 0
        %1963 = vmatpush1.bf16.msra.mxu0 %v1943
        %1964 = vmatprep.subr.bf16.mxu0 0
        %1965 = vmatpush1.bf16.msra.mxu0 %v1944
        %1966 = vmatprep.subr.bf16.mxu0 0
        %1967 = vmatpush1.bf16.msra.mxu0 %v1945
        %1968 = vmatprep.subr.bf16.mxu0 0
        %1969 = vmatpush1.bf16.msra.mxu0 %v1946
        %1970 = vmatprep.subr.bf16.mxu0 0
        %1971 = vmatpush1.bf16.msra.mxu0 %v1947
        %1972 = vmatprep.subr.bf16.mxu0 0
        %1973 = vmatpush1.bf16.msra.mxu0 0
        %1974 = vmatprep.subr.bf16.mxu0 0
        %1975 = vmatpush1.bf16.msra.mxu0 0
        %1976 = vmatprep.subr.bf16.mxu0 0
        %1977 = vmatpush1.bf16.msra.mxu0 0
        %1978 = vmatprep.subr.bf16.mxu0 0
        %1979 = vmatpush1.bf16.msra.mxu0 0
        %1980 = vmatprep.subr.bf16.mxu0 0
        %1981 = vmatpush1.bf16.msra.mxu0 0
        %1982 = vmatprep.subr.bf16.mxu0 0
        %1983 = vmatpush1.bf16.msra.mxu0 0
        %1984 = vmatprep.subr.bf16.mxu0 0
        %1985 = vmatpush1.bf16.msra.mxu0 0
        %1986 = vmatprep.subr.bf16.mxu0 0
        %1987 = vmatpush1.bf16.msra.mxu0 0
        %1988 = vmatprep.mubr.bf16.mxu0 0
        %1989 = vmatmul.mubr.bf16.gmra.mrb[0].mxu0 %v1875
        %v1990 = vpop.f32.mrb[0].mxu0
        %v1991 = vadd.f32 0.0, %v1990
        %v1992 = vpop.f32.mrb[0].mxu0
        %v1993 = vpop.f32.mrb[0].mxu0
        %v1994 = vadd.f32 0.0, %v1993
        %v1995 = vpop.f32.mrb[0].mxu0
        %1996 = vmatprep.mubr.bf16.mxu0 0
        %1997 = vmatmul.mubr.bf16.gmra.mrb[0].mxu0 %v1876
        %v1998 = vpop.f32.mrb[0].mxu0
        %v1999 = vadd.f32 0.0, %v1998
        %v2000 = vpop.f32.mrb[0].mxu0
        %v2001 = vpop.f32.mrb[0].mxu0
        %v2002 = vadd.f32 0.0, %v2001
        %v2003 = vpop.f32.mrb[0].mxu0
        %2004 = vmatprep.mubr.bf16.mxu0 0
        %2005 = vmatmul.mubr.bf16.gmra.mrb[0].mxu0 %v1877
        %v2006 = vpop.f32.mrb[0].mxu0
        %v2007 = vadd.f32 0.0, %v2006
        %v2008 = vpop.f32.mrb[0].mxu0
        %v2009 = vpop.f32.mrb[0].mxu0
        %v2010 = vadd.f32 0.0, %v2009
        %v2011 = vpop.f32.mrb[0].mxu0
        %2012 = vmatprep.mubr.bf16.mxu0 0
        %2013 = vmatmul.mubr.bf16.gmra.mrb[0].mxu0 %v1878
        %v2014 = vpop.f32.mrb[0].mxu0
        %v2015 = vadd.f32 0.0, %v2014
        %v2016 = vpop.f32.mrb[0].mxu0
        %v2017 = vpop.f32.mrb[0].mxu0
        %v2018 = vadd.f32 0.0, %v2017
        %v2019 = vpop.f32.mrb[0].mxu0
        %2020 = vmatprep.mubr.bf16.mxu0 0
        %2021 = vmatmul.mubr.bf16.gmra.mrb[0].mxu0 %v1879
        %v2022 = vpop.f32.mrb[0].mxu0
        %v2023 = vadd.f32 0.0, %v2022
        %v2024 = vpop.f32.mrb[0].mxu0
        %v2025 = vpop.f32.mrb[0].mxu0
        %v2026 = vadd.f32 0.0, %v2025
        %v2027 = vpop.f32.mrb[0].mxu0
        %2028 = vmatprep.mubr.bf16.mxu0 0
        %2029 = vmatmul.mubr.bf16.gmra.mrb[0].mxu0 %v1880
        %v2030 = vpop.f32.mrb[0].mxu0
        %v2031 = vadd.f32 0.0, %v2030
        %v2032 = vpop.f32.mrb[0].mxu0
        %v2033 = vpop.f32.mrb[0].mxu0
        %v2034 = vadd.f32 0.0, %v2033
        %v2035 = vpop.f32.mrb[0].mxu0
        %2036 = vmatprep.mubr.bf16.mxu0 0
        %2037 = vmatmul.mubr.bf16.gmra.mrb[0].mxu0 %v1881
        %v2038 = vpop.f32.mrb[0].mxu0
        %v2039 = vadd.f32 0.0, %v2038
        %v2040 = vpop.f32.mrb[0].mxu0
        %v2041 = vpop.f32.mrb[0].mxu0
        %v2042 = vadd.f32 0.0, %v2041
        %v2043 = vpop.f32.mrb[0].mxu0
        %2044 = vmatprep.mubr.bf16.mxu0 0
        %2045 = vmatmul.mubr.bf16.gmra.mrb[0].mxu0 %v1882
        %v2046 = vpop.f32.mrb[0].mxu0
        %v2047 = vadd.f32 0.0, %v2046
        %v2048 = vpop.f32.mrb[0].mxu0
        %v2049 = vpop.f32.mrb[0].mxu0
        %v2050 = vadd.f32 0.0, %v2049
        %v2051 = vpop.f32.mrb[0].mxu0
        %2052 = vmatprep.mubr.bf16.mxu0 0
        %2053 = vmatmul.mubr.bf16.gmra.mrb[0].mxu0 %v1883
        %v2054 = vpop.f32.mrb[0].mxu0
        %v2055 = vadd.f32 0.0, %v2054
        %v2056 = vpop.f32.mrb[0].mxu0
        %v2057 = vpop.f32.mrb[0].mxu0
        %v2058 = vadd.f32 0.0, %v2057
        %v2059 = vpop.f32.mrb[0].mxu0
        %2060 = vmatprep.mubr.bf16.mxu0 0
        %2061 = vmatmul.mubr.bf16.gmra.mrb[0].mxu0 %v1884
        %v2062 = vpop.f32.mrb[0].mxu0
        %v2063 = vadd.f32 0.0, %v2062
        %v2064 = vpop.f32.mrb[0].mxu0
        %v2065 = vpop.f32.mrb[0].mxu0
        %v2066 = vadd.f32 0.0, %v2065
        %v2067 = vpop.f32.mrb[0].mxu0
        %2068 = vmatprep.mubr.bf16.mxu0 0
        %2069 = vmatmul.mubr.bf16.gmra.mrb[0].mxu0 %v1885
        %v2070 = vpop.f32.mrb[0].mxu0
        %v2071 = vadd.f32 0.0, %v2070
        %v2072 = vpop.f32.mrb[0].mxu0
        %v2073 = vpop.f32.mrb[0].mxu0
        %v2074 = vadd.f32 0.0, %v2073
        %v2075 = vpop.f32.mrb[0].mxu0
        %2076 = vmatprep.mubr.bf16.mxu0 0
        %2077 = vmatmul.mubr.bf16.gmra.mrb[0].mxu0 %v1886
        %v2078 = vpop.f32.mrb[0].mxu0
        %v2079 = vadd.f32 0.0, %v2078
        %v2080 = vpop.f32.mrb[0].mxu0
        %v2081 = vpop.f32.mrb[0].mxu0
        %v2082 = vadd.f32 0.0, %v2081
        %v2083 = vpop.f32.mrb[0].mxu0
        %2084 = vmatprep.mubr.bf16.mxu0 0
        %2085 = vmatmul.mubr.bf16.gmra.mrb[0].mxu0 %v1887
        %v2086 = vpop.f32.mrb[0].mxu0
        %v2087 = vadd.f32 0.0, %v2086
        %v2088 = vpop.f32.mrb[0].mxu0
        %v2089 = vpop.f32.mrb[0].mxu0
        %v2090 = vadd.f32 0.0, %v2089
        %v2091 = vpop.f32.mrb[0].mxu0
        %2092 = vmatprep.mubr.bf16.mxu0 0
        %2093 = vmatmul.mubr.bf16.gmra.mrb[0].mxu0 %v1888
        %v2094 = vpop.f32.mrb[0].mxu0
        %v2095 = vadd.f32 0.0, %v2094
        %v2096 = vpop.f32.mrb[0].mxu0
        %v2097 = vpop.f32.mrb[0].mxu0
        %v2098 = vadd.f32 0.0, %v2097
        %v2099 = vpop.f32.mrb[0].mxu0
        %2100 = vmatprep.mubr.bf16.mxu0 0
        %2101 = vmatmul.mubr.bf16.gmra.mrb[0].mxu0 %v1889
        %v2102 = vpop.f32.mrb[0].mxu0
        %v2103 = vadd.f32 0.0, %v2102
        %v2104 = vpop.f32.mrb[0].mxu0
        %v2105 = vpop.f32.mrb[0].mxu0
        %v2106 = vadd.f32 0.0, %v2105
        %v2107 = vpop.f32.mrb[0].mxu0
        %2108 = vmatprep.mubr.bf16.mxu0 0
        %2109 = vmatmul.mubr.bf16.gmra.mrb[0].mxu0 %v1890
        %v2110 = vpop.f32.mrb[0].mxu0
        %v2111 = vadd.f32 0.0, %v2110
        %v2112 = vpop.f32.mrb[0].mxu0
        %v2113 = vpop.f32.mrb[0].mxu0
        %v2114 = vadd.f32 0.0, %v2113
        %v2115 = vpop.f32.mrb[0].mxu0
        %2116 = vdwg.mxu0
        %v2117 = vadd.f32 %v1811, %v1991
        %v2118 = vadd.f32 %v1812, %v1994
        %v2119 = vadd.f32 %v1813, %v1999
        %v2120 = vadd.f32 %v1814, %v2002
        %v2121 = vadd.f32 %v1815, %v2007
        %v2122 = vadd.f32 %v1816, %v2010
        %v2123 = vadd.f32 %v1817, %v2015
        %v2124 = vadd.f32 %v1818, %v2018
        %v2125 = vadd.f32 %v1819, %v2023
        %v2126 = vadd.f32 %v1820, %v2026
        %v2127 = vadd.f32 %v1821, %v2031
        %v2128 = vadd.f32 %v1822, %v2034
        %v2129 = vadd.f32 %v1823, %v2039
        %v2130 = vadd.f32 %v1824, %v2042
        %v2131 = vadd.f32 %v1825, %v2047
        %v2132 = vadd.f32 %v1826, %v2050
        %v2133 = vadd.f32 %v1827, %v2055
        %v2134 = vadd.f32 %v1828, %v2058
        %v2135 = vadd.f32 %v1829, %v2063
        %v2136 = vadd.f32 %v1830, %v2066
        %v2137 = vadd.f32 %v1831, %v2071
        %v2138 = vadd.f32 %v1832, %v2074
        %v2139 = vadd.f32 %v1833, %v2079
        %v2140 = vadd.f32 %v1834, %v2082
        %v2141 = vadd.f32 %v1835, %v2087
        %v2142 = vadd.f32 %v1836, %v2090
        %v2143 = vadd.f32 %v1837, %v2095
        %v2144 = vadd.f32 %v1838, %v2098
        %v2145 = vadd.f32 %v1839, %v2103
        %v2146 = vadd.f32 %v1840, %v2106
        %v2147 = vadd.f32 %v1841, %v2111
        %v2148 = vadd.f32 %v1842, %v2114
        %s2149 = scalar_lea.vmem [#allocation2], 48
        %v2150 = vld [vmem:[%s2149] sm:$0xff]
        %v2151 = vld [vmem:[%s2149 + $0x8] sm:$0xff]
        %v2152 = vld [vmem:[%s2149 + $0x18] sm:$0xff]
        %v2153 = vld [vmem:[%s2149 + $0x20] sm:$0xff]
        %v2154 = vld [vmem:[%s2149 + $0x30] sm:$0xff]
        %v2155 = vld [vmem:[%s2149 + $0x38] sm:$0xff]
        %v2156 = vld [vmem:[%s2149 + $0x48] sm:$0xff]
        %v2157 = vld [vmem:[%s2149 + $0x50] sm:$0xff]
        %v2158 = vld [vmem:[%s2149 + $0x60] sm:$0xff]
        %v2159 = vld [vmem:[%s2149 + $0x68] sm:$0xff]
        %v2160 = vld [vmem:[%s2149 + $0x78] sm:$0xff]
        %v2161 = vld [vmem:[%s2149 + $0x80] sm:$0xff]
        %v2162 = vld [vmem:[%s2149 + $0x90] sm:$0xff]
        %v2163 = vld [vmem:[%s2149 + $0x98] sm:$0xff]
        %v2164 = vld [vmem:[%s2149 + $0xa8] sm:$0xff]
        %v2165 = vld [vmem:[%s2149 + $0xb0] sm:$0xff]
        %v2166 = vld [vmem:[%s2149 + $0xc0] sm:$0xff]
        %v2167 = vld [vmem:[%s2149 + $0xc8] sm:$0xff]
        %v2168 = vld [vmem:[%s2149 + $0xd8] sm:$0xff]
        %v2169 = vld [vmem:[%s2149 + $0xe0] sm:$0xff]
        %v2170 = vld [vmem:[%s2149 + $0xf0] sm:$0xff]
        %v2171 = vld [vmem:[%s2149 + $0xf8] sm:$0xff]
        %v2172 = vld [vmem:[%s2149 + $0x108] sm:$0xff]
        %v2173 = vld [vmem:[%s2149 + $0x110] sm:$0xff]
        %v2174 = vld [vmem:[%s2149 + $0x120] sm:$0xff]
        %v2175 = vld [vmem:[%s2149 + $0x128] sm:$0xff]
        %v2176 = vld [vmem:[%s2149 + $0x138] sm:$0xff]
        %v2177 = vld [vmem:[%s2149 + $0x140] sm:$0xff]
        %v2178 = vld [vmem:[%s2149 + $0x150] sm:$0xff]
        %v2179 = vld [vmem:[%s2149 + $0x158] sm:$0xff]
        %v2180 = vld [vmem:[%s2149 + $0x168] sm:$0xff]
        %v2181 = vld [vmem:[%s2149 + $0x170] sm:$0xff]
        %v2182 = vpack.c.bf16 %v2151, %v2150
        %v2183 = vpack.c.bf16 %v2153, %v2152
        %v2184 = vpack.c.bf16 %v2155, %v2154
        %v2185 = vpack.c.bf16 %v2157, %v2156
        %v2186 = vpack.c.bf16 %v2159, %v2158
        %v2187 = vpack.c.bf16 %v2161, %v2160
        %v2188 = vpack.c.bf16 %v2163, %v2162
        %v2189 = vpack.c.bf16 %v2165, %v2164
        %v2190 = vpack.c.bf16 %v2167, %v2166
        %v2191 = vpack.c.bf16 %v2169, %v2168
        %v2192 = vpack.c.bf16 %v2171, %v2170
        %v2193 = vpack.c.bf16 %v2173, %v2172
        %v2194 = vpack.c.bf16 %v2175, %v2174
        %v2195 = vpack.c.bf16 %v2177, %v2176
        %v2196 = vpack.c.bf16 %v2179, %v2178
        %v2197 = vpack.c.bf16 %v2181, %v2180
        %s2198 = scalar_lea.vmem %s1, 384
        %v2199 = vld [vmem:[%s2198] sm:$0xf]
        %v2200 = vld [vmem:[%s2198 + $0x4] sm:$0xf]
        %v2201 = vld [vmem:[%s2198 + $0x8] sm:$0xf]
        %v2202 = vld [vmem:[%s2198 + $0xc] sm:$0xf]
        %v2203 = vld [vmem:[%s2198 + $0x10] sm:$0xf]
        %v2204 = vld [vmem:[%s2198 + $0x14] sm:$0xf]
        %v2205 = vld [vmem:[%s2198 + $0x18] sm:$0xf]
        %v2206 = vld [vmem:[%s2198 + $0x1c] sm:$0xf]
        %v2207 = vld [vmem:[%s2198 + $0x20] sm:$0xf]
        %v2208 = vld [vmem:[%s2198 + $0x24] sm:$0xf]
        %v2209 = vld [vmem:[%s2198 + $0x28] sm:$0xf]
        %v2210 = vld [vmem:[%s2198 + $0x2c] sm:$0xf]
        %v2211 = vld [vmem:[%s2198 + $0x30] sm:$0xf]
        %v2212 = vld [vmem:[%s2198 + $0x34] sm:$0xf]
        %v2213 = vld [vmem:[%s2198 + $0x38] sm:$0xf]
        %v2214 = vld [vmem:[%s2198 + $0x3c] sm:$0xf]
        %v2231 = vunpack.c.l.b16 %v2199
        %v2232 = vunpack.c.l.b16 %v2200
        %v2233 = vunpack.c.l.b16 %v2201
        %v2234 = vunpack.c.l.b16 %v2202
        %v2235 = vunpack.c.l.b16 %v2203
        %v2236 = vunpack.c.l.b16 %v2204
        %v2237 = vunpack.c.l.b16 %v2205
        %v2238 = vunpack.c.l.b16 %v2206
        %v2239 = vunpack.c.l.b16 %v2207
        %v2240 = vunpack.c.l.b16 %v2208
        %v2241 = vunpack.c.l.b16 %v2209
        %v2242 = vunpack.c.l.b16 %v2210
        %v2243 = vunpack.c.l.b16 %v2211
        %v2244 = vunpack.c.l.b16 %v2212
        %v2245 = vunpack.c.l.b16 %v2213
        %v2246 = vunpack.c.l.b16 %v2214
        %v2247 = vpack.c.b16 %v2232, %v2231
        %v2248 = vpack.c.b16 %v2234, %v2233
        %v2249 = vpack.c.b16 %v2236, %v2235
        %v2250 = vpack.c.b16 %v2238, %v2237
        %v2251 = vpack.c.b16 %v2240, %v2239
        %v2252 = vpack.c.b16 %v2242, %v2241
        %v2253 = vpack.c.b16 %v2244, %v2243
        %v2254 = vpack.c.b16 %v2246, %v2245
        %2263 = vmatprep.subr.bf16.mxu0 0
        %2264 = vmatpush1.bf16.msra.mxu0 %v2247
        %2265 = vmatprep.subr.bf16.mxu0 0
        %2266 = vmatpush1.bf16.msra.mxu0 %v2248
        %2267 = vmatprep.subr.bf16.mxu0 0
        %2268 = vmatpush1.bf16.msra.mxu0 %v2249
        %2269 = vmatprep.subr.bf16.mxu0 0
        %2270 = vmatpush1.bf16.msra.mxu0 %v2250
        %2271 = vmatprep.subr.bf16.mxu0 0
        %2272 = vmatpush1.bf16.msra.mxu0 %v2251
        %2273 = vmatprep.subr.bf16.mxu0 0
        %2274 = vmatpush1.bf16.msra.mxu0 %v2252
        %2275 = vmatprep.subr.bf16.mxu0 0
        %2276 = vmatpush1.bf16.msra.mxu0 %v2253
        %2277 = vmatprep.subr.bf16.mxu0 0
        %2278 = vmatpush1.bf16.msra.mxu0 %v2254
        %2279 = vmatprep.subr.bf16.mxu0 0
        %2280 = vmatpush1.bf16.msra.mxu0 0
        %2281 = vmatprep.subr.bf16.mxu0 0
        %2282 = vmatpush1.bf16.msra.mxu0 0
        %2283 = vmatprep.subr.bf16.mxu0 0
        %2284 = vmatpush1.bf16.msra.mxu0 0
        %2285 = vmatprep.subr.bf16.mxu0 0
        %2286 = vmatpush1.bf16.msra.mxu0 0
        %2287 = vmatprep.subr.bf16.mxu0 0
        %2288 = vmatpush1.bf16.msra.mxu0 0
        %2289 = vmatprep.subr.bf16.mxu0 0
        %2290 = vmatpush1.bf16.msra.mxu0 0
        %2291 = vmatprep.subr.bf16.mxu0 0
        %2292 = vmatpush1.bf16.msra.mxu0 0
        %2293 = vmatprep.subr.bf16.mxu0 0
        %2294 = vmatpush1.bf16.msra.mxu0 0
        %2295 = vmatprep.mubr.bf16.mxu0 0
        %2296 = vmatmul.mubr.bf16.gmra.mrb[0].mxu0 %v2182
        %v2297 = vpop.f32.mrb[0].mxu0
        %v2298 = vadd.f32 0.0, %v2297
        %v2299 = vpop.f32.mrb[0].mxu0
        %v2300 = vpop.f32.mrb[0].mxu0
        %v2301 = vadd.f32 0.0, %v2300
        %v2302 = vpop.f32.mrb[0].mxu0
        %2303 = vmatprep.mubr.bf16.mxu0 0
        %2304 = vmatmul.mubr.bf16.gmra.mrb[0].mxu0 %v2183
        %v2305 = vpop.f32.mrb[0].mxu0
        %v2306 = vadd.f32 0.0, %v2305
        %v2307 = vpop.f32.mrb[0].mxu0
        %v2308 = vpop.f32.mrb[0].mxu0
        %v2309 = vadd.f32 0.0, %v2308
        %v2310 = vpop.f32.mrb[0].mxu0
        %2311 = vmatprep.mubr.bf16.mxu0 0
        %2312 = vmatmul.mubr.bf16.gmra.mrb[0].mxu0 %v2184
        %v2313 = vpop.f32.mrb[0].mxu0
        %v2314 = vadd.f32 0.0, %v2313
        %v2315 = vpop.f32.mrb[0].mxu0
        %v2316 = vpop.f32.mrb[0].mxu0
        %v2317 = vadd.f32 0.0, %v2316
        %v2318 = vpop.f32.mrb[0].mxu0
        %2319 = vmatprep.mubr.bf16.mxu0 0
        %2320 = vmatmul.mubr.bf16.gmra.mrb[0].mxu0 %v2185
        %v2321 = vpop.f32.mrb[0].mxu0
        %v2322 = vadd.f32 0.0, %v2321
        %v2323 = vpop.f32.mrb[0].mxu0
        %v2324 = vpop.f32.mrb[0].mxu0
        %v2325 = vadd.f32 0.0, %v2324
        %v2326 = vpop.f32.mrb[0].mxu0
        %2327 = vmatprep.mubr.bf16.mxu0 0
        %2328 = vmatmul.mubr.bf16.gmra.mrb[0].mxu0 %v2186
        %v2329 = vpop.f32.mrb[0].mxu0
        %v2330 = vadd.f32 0.0, %v2329
        %v2331 = vpop.f32.mrb[0].mxu0
        %v2332 = vpop.f32.mrb[0].mxu0
        %v2333 = vadd.f32 0.0, %v2332
        %v2334 = vpop.f32.mrb[0].mxu0
        %2335 = vmatprep.mubr.bf16.mxu0 0
        %2336 = vmatmul.mubr.bf16.gmra.mrb[0].mxu0 %v2187
        %v2337 = vpop.f32.mrb[0].mxu0
        %v2338 = vadd.f32 0.0, %v2337
        %v2339 = vpop.f32.mrb[0].mxu0
        %v2340 = vpop.f32.mrb[0].mxu0
        %v2341 = vadd.f32 0.0, %v2340
        %v2342 = vpop.f32.mrb[0].mxu0
        %2343 = vmatprep.mubr.bf16.mxu0 0
        %2344 = vmatmul.mubr.bf16.gmra.mrb[0].mxu0 %v2188
        %v2345 = vpop.f32.mrb[0].mxu0
        %v2346 = vadd.f32 0.0, %v2345
        %v2347 = vpop.f32.mrb[0].mxu0
        %v2348 = vpop.f32.mrb[0].mxu0
        %v2349 = vadd.f32 0.0, %v2348
        %v2350 = vpop.f32.mrb[0].mxu0
        %2351 = vmatprep.mubr.bf16.mxu0 0
        %2352 = vmatmul.mubr.bf16.gmra.mrb[0].mxu0 %v2189
        %v2353 = vpop.f32.mrb[0].mxu0
        %v2354 = vadd.f32 0.0, %v2353
        %v2355 = vpop.f32.mrb[0].mxu0
        %v2356 = vpop.f32.mrb[0].mxu0
        %v2357 = vadd.f32 0.0, %v2356
        %v2358 = vpop.f32.mrb[0].mxu0
        %2359 = vmatprep.mubr.bf16.mxu0 0
        %2360 = vmatmul.mubr.bf16.gmra.mrb[0].mxu0 %v2190
        %v2361 = vpop.f32.mrb[0].mxu0
        %v2362 = vadd.f32 0.0, %v2361
        %v2363 = vpop.f32.mrb[0].mxu0
        %v2364 = vpop.f32.mrb[0].mxu0
        %v2365 = vadd.f32 0.0, %v2364
        %v2366 = vpop.f32.mrb[0].mxu0
        %2367 = vmatprep.mubr.bf16.mxu0 0
        %2368 = vmatmul.mubr.bf16.gmra.mrb[0].mxu0 %v2191
        %v2369 = vpop.f32.mrb[0].mxu0
        %v2370 = vadd.f32 0.0, %v2369
        %v2371 = vpop.f32.mrb[0].mxu0
        %v2372 = vpop.f32.mrb[0].mxu0
        %v2373 = vadd.f32 0.0, %v2372
        %v2374 = vpop.f32.mrb[0].mxu0
        %2375 = vmatprep.mubr.bf16.mxu0 0
        %2376 = vmatmul.mubr.bf16.gmra.mrb[0].mxu0 %v2192
        %v2377 = vpop.f32.mrb[0].mxu0
        %v2378 = vadd.f32 0.0, %v2377
        %v2379 = vpop.f32.mrb[0].mxu0
        %v2380 = vpop.f32.mrb[0].mxu0
        %v2381 = vadd.f32 0.0, %v2380
        %v2382 = vpop.f32.mrb[0].mxu0
        %2383 = vmatprep.mubr.bf16.mxu0 0
        %2384 = vmatmul.mubr.bf16.gmra.mrb[0].mxu0 %v2193
        %v2385 = vpop.f32.mrb[0].mxu0
        %v2386 = vadd.f32 0.0, %v2385
        %v2387 = vpop.f32.mrb[0].mxu0
        %v2388 = vpop.f32.mrb[0].mxu0
        %v2389 = vadd.f32 0.0, %v2388
        %v2390 = vpop.f32.mrb[0].mxu0
        %2391 = vmatprep.mubr.bf16.mxu0 0
        %2392 = vmatmul.mubr.bf16.gmra.mrb[0].mxu0 %v2194
        %v2393 = vpop.f32.mrb[0].mxu0
        %v2394 = vadd.f32 0.0, %v2393
        %v2395 = vpop.f32.mrb[0].mxu0
        %v2396 = vpop.f32.mrb[0].mxu0
        %v2397 = vadd.f32 0.0, %v2396
        %v2398 = vpop.f32.mrb[0].mxu0
        %2399 = vmatprep.mubr.bf16.mxu0 0
        %2400 = vmatmul.mubr.bf16.gmra.mrb[0].mxu0 %v2195
        %v2401 = vpop.f32.mrb[0].mxu0
        %v2402 = vadd.f32 0.0, %v2401
        %v2403 = vpop.f32.mrb[0].mxu0
        %v2404 = vpop.f32.mrb[0].mxu0
        %v2405 = vadd.f32 0.0, %v2404
        %v2406 = vpop.f32.mrb[0].mxu0
        %2407 = vmatprep.mubr.bf16.mxu0 0
        %2408 = vmatmul.mubr.bf16.gmra.mrb[0].mxu0 %v2196
        %v2409 = vpop.f32.mrb[0].mxu0
        %v2410 = vadd.f32 0.0, %v2409
        %v2411 = vpop.f32.mrb[0].mxu0
        %v2412 = vpop.f32.mrb[0].mxu0
        %v2413 = vadd.f32 0.0, %v2412
        %v2414 = vpop.f32.mrb[0].mxu0
        %2415 = vmatprep.mubr.bf16.mxu0 0
        %2416 = vmatmul.mubr.bf16.gmra.mrb[0].mxu0 %v2197
        %v2417 = vpop.f32.mrb[0].mxu0
        %v2418 = vadd.f32 0.0, %v2417
        %v2419 = vpop.f32.mrb[0].mxu0
        %v2420 = vpop.f32.mrb[0].mxu0
        %v2421 = vadd.f32 0.0, %v2420
        %v2422 = vpop.f32.mrb[0].mxu0
        %2423 = vdwg.mxu0
        %v2424 = vadd.f32 %v2117, %v2298
        %v2425 = vadd.f32 %v2118, %v2301
        %v2426 = vadd.f32 %v2119, %v2306
        %v2427 = vadd.f32 %v2120, %v2309
        %v2428 = vadd.f32 %v2121, %v2314
        %v2429 = vadd.f32 %v2122, %v2317
        %v2430 = vadd.f32 %v2123, %v2322
        %v2431 = vadd.f32 %v2124, %v2325
        %v2432 = vadd.f32 %v2125, %v2330
        %v2433 = vadd.f32 %v2126, %v2333
        %v2434 = vadd.f32 %v2127, %v2338
        %v2435 = vadd.f32 %v2128, %v2341
        %v2436 = vadd.f32 %v2129, %v2346
        %v2437 = vadd.f32 %v2130, %v2349
        %v2438 = vadd.f32 %v2131, %v2354
        %v2439 = vadd.f32 %v2132, %v2357
        %v2440 = vadd.f32 %v2133, %v2362
        %v2441 = vadd.f32 %v2134, %v2365
        %v2442 = vadd.f32 %v2135, %v2370
        %v2443 = vadd.f32 %v2136, %v2373
        %v2444 = vadd.f32 %v2137, %v2378
        %v2445 = vadd.f32 %v2138, %v2381
        %v2446 = vadd.f32 %v2139, %v2386
        %v2447 = vadd.f32 %v2140, %v2389
        %v2448 = vadd.f32 %v2141, %v2394
        %v2449 = vadd.f32 %v2142, %v2397
        %v2450 = vadd.f32 %v2143, %v2402
        %v2451 = vadd.f32 %v2144, %v2405
        %v2452 = vadd.f32 %v2145, %v2410
        %v2453 = vadd.f32 %v2146, %v2413
        %v2454 = vadd.f32 %v2147, %v2418
        %v2455 = vadd.f32 %v2148, %v2421
        %v2456 = vld [vmem:[%s2149 + $0x1] sm:$0xff]
        %v2457 = vld [vmem:[%s2149 + $0x9] sm:$0xff]
        %v2458 = vld [vmem:[%s2149 + $0x19] sm:$0xff]
        %v2459 = vld [vmem:[%s2149 + $0x21] sm:$0xff]
        %v2460 = vld [vmem:[%s2149 + $0x31] sm:$0xff]
        %v2461 = vld [vmem:[%s2149 + $0x39] sm:$0xff]
        %v2462 = vld [vmem:[%s2149 + $0x49] sm:$0xff]
        %v2463 = vld [vmem:[%s2149 + $0x51] sm:$0xff]
        %v2464 = vld [vmem:[%s2149 + $0x61] sm:$0xff]
        %v2465 = vld [vmem:[%s2149 + $0x69] sm:$0xff]
        %v2466 = vld [vmem:[%s2149 + $0x79] sm:$0xff]
        %v2467 = vld [vmem:[%s2149 + $0x81] sm:$0xff]
        %v2468 = vld [vmem:[%s2149 + $0x91] sm:$0xff]
        %v2469 = vld [vmem:[%s2149 + $0x99] sm:$0xff]
        %v2470 = vld [vmem:[%s2149 + $0xa9] sm:$0xff]
        %v2471 = vld [vmem:[%s2149 + $0xb1] sm:$0xff]
        %v2472 = vld [vmem:[%s2149 + $0xc1] sm:$0xff]
        %v2473 = vld [vmem:[%s2149 + $0xc9] sm:$0xff]
        %v2474 = vld [vmem:[%s2149 + $0xd9] sm:$0xff]
        %v2475 = vld [vmem:[%s2149 + $0xe1] sm:$0xff]
        %v2476 = vld [vmem:[%s2149 + $0xf1] sm:$0xff]
        %v2477 = vld [vmem:[%s2149 + $0xf9] sm:$0xff]
        %v2478 = vld [vmem:[%s2149 + $0x109] sm:$0xff]
        %v2479 = vld [vmem:[%s2149 + $0x111] sm:$0xff]
        %v2480 = vld [vmem:[%s2149 + $0x121] sm:$0xff]
        %v2481 = vld [vmem:[%s2149 + $0x129] sm:$0xff]
        %v2482 = vld [vmem:[%s2149 + $0x139] sm:$0xff]
        %v2483 = vld [vmem:[%s2149 + $0x141] sm:$0xff]
        %v2484 = vld [vmem:[%s2149 + $0x151] sm:$0xff]
        %v2485 = vld [vmem:[%s2149 + $0x159] sm:$0xff]
        %v2486 = vld [vmem:[%s2149 + $0x169] sm:$0xff]
        %v2487 = vld [vmem:[%s2149 + $0x171] sm:$0xff]
        %v2488 = vpack.c.bf16 %v2457, %v2456
        %v2489 = vpack.c.bf16 %v2459, %v2458
        %v2490 = vpack.c.bf16 %v2461, %v2460
        %v2491 = vpack.c.bf16 %v2463, %v2462
        %v2492 = vpack.c.bf16 %v2465, %v2464
        %v2493 = vpack.c.bf16 %v2467, %v2466
        %v2494 = vpack.c.bf16 %v2469, %v2468
        %v2495 = vpack.c.bf16 %v2471, %v2470
        %v2496 = vpack.c.bf16 %v2473, %v2472
        %v2497 = vpack.c.bf16 %v2475, %v2474
        %v2498 = vpack.c.bf16 %v2477, %v2476
        %v2499 = vpack.c.bf16 %v2479, %v2478
        %v2500 = vpack.c.bf16 %v2481, %v2480
        %v2501 = vpack.c.bf16 %v2483, %v2482
        %v2502 = vpack.c.bf16 %v2485, %v2484
        %v2503 = vpack.c.bf16 %v2487, %v2486
        %s2504 = scalar_lea.vmem %s1, 448
        %v2505 = vld [vmem:[%s2504] sm:$0xf]
        %v2506 = vld [vmem:[%s2504 + $0x4] sm:$0xf]
        %v2507 = vld [vmem:[%s2504 + $0x8] sm:$0xf]
        %v2508 = vld [vmem:[%s2504 + $0xc] sm:$0xf]
        %v2509 = vld [vmem:[%s2504 + $0x10] sm:$0xf]
        %v2510 = vld [vmem:[%s2504 + $0x14] sm:$0xf]
        %v2511 = vld [vmem:[%s2504 + $0x18] sm:$0xf]
        %v2512 = vld [vmem:[%s2504 + $0x1c] sm:$0xf]
        %v2513 = vld [vmem:[%s2504 + $0x20] sm:$0xf]
        %v2514 = vld [vmem:[%s2504 + $0x24] sm:$0xf]
        %v2515 = vld [vmem:[%s2504 + $0x28] sm:$0xf]
        %v2516 = vld [vmem:[%s2504 + $0x2c] sm:$0xf]
        %v2517 = vld [vmem:[%s2504 + $0x30] sm:$0xf]
        %v2518 = vld [vmem:[%s2504 + $0x34] sm:$0xf]
        %v2519 = vld [vmem:[%s2504 + $0x38] sm:$0xf]
        %v2520 = vld [vmem:[%s2504 + $0x3c] sm:$0xf]
        %v2537 = vunpack.c.l.b16 %v2505
        %v2538 = vunpack.c.l.b16 %v2506
        %v2539 = vunpack.c.l.b16 %v2507
        %v2540 = vunpack.c.l.b16 %v2508
        %v2541 = vunpack.c.l.b16 %v2509
        %v2542 = vunpack.c.l.b16 %v2510
        %v2543 = vunpack.c.l.b16 %v2511
        %v2544 = vunpack.c.l.b16 %v2512
        %v2545 = vunpack.c.l.b16 %v2513
        %v2546 = vunpack.c.l.b16 %v2514
        %v2547 = vunpack.c.l.b16 %v2515
        %v2548 = vunpack.c.l.b16 %v2516
        %v2549 = vunpack.c.l.b16 %v2517
        %v2550 = vunpack.c.l.b16 %v2518
        %v2551 = vunpack.c.l.b16 %v2519
        %v2552 = vunpack.c.l.b16 %v2520
        %v2553 = vpack.c.b16 %v2538, %v2537
        %v2554 = vpack.c.b16 %v2540, %v2539
        %v2555 = vpack.c.b16 %v2542, %v2541
        %v2556 = vpack.c.b16 %v2544, %v2543
        %v2557 = vpack.c.b16 %v2546, %v2545
        %v2558 = vpack.c.b16 %v2548, %v2547
        %v2559 = vpack.c.b16 %v2550, %v2549
        %v2560 = vpack.c.b16 %v2552, %v2551
        %2569 = vmatprep.subr.bf16.mxu0 0
        %2570 = vmatpush1.bf16.msra.mxu0 %v2553
        %2571 = vmatprep.subr.bf16.mxu0 0
        %2572 = vmatpush1.bf16.msra.mxu0 %v2554
        %2573 = vmatprep.subr.bf16.mxu0 0
        %2574 = vmatpush1.bf16.msra.mxu0 %v2555
        %2575 = vmatprep.subr.bf16.mxu0 0
        %2576 = vmatpush1.bf16.msra.mxu0 %v2556
        %2577 = vmatprep.subr.bf16.mxu0 0
        %2578 = vmatpush1.bf16.msra.mxu0 %v2557
        %2579 = vmatprep.subr.bf16.mxu0 0
        %2580 = vmatpush1.bf16.msra.mxu0 %v2558
        %2581 = vmatprep.subr.bf16.mxu0 0
        %2582 = vmatpush1.bf16.msra.mxu0 %v2559
        %2583 = vmatprep.subr.bf16.mxu0 0
        %2584 = vmatpush1.bf16.msra.mxu0 %v2560
        %2585 = vmatprep.subr.bf16.mxu0 0
        %2586 = vmatpush1.bf16.msra.mxu0 0
        %2587 = vmatprep.subr.bf16.mxu0 0
        %2588 = vmatpush1.bf16.msra.mxu0 0
        %2589 = vmatprep.subr.bf16.mxu0 0
        %2590 = vmatpush1.bf16.msra.mxu0 0
        %2591 = vmatprep.subr.bf16.mxu0 0
        %2592 = vmatpush1.bf16.msra.mxu0 0
        %2593 = vmatprep.subr.bf16.mxu0 0
        %2594 = vmatpush1.bf16.msra.mxu0 0
        %2595 = vmatprep.subr.bf16.mxu0 0
        %2596 = vmatpush1.bf16.msra.mxu0 0
        %2597 = vmatprep.subr.bf16.mxu0 0
        %2598 = vmatpush1.bf16.msra.mxu0 0
        %2599 = vmatprep.subr.bf16.mxu0 0
        %2600 = vmatpush1.bf16.msra.mxu0 0
        %2601 = vmatprep.mubr.bf16.mxu0 0
        %2602 = vmatmul.mubr.bf16.gmra.mrb[0].mxu0 %v2488
        %v2603 = vpop.f32.mrb[0].mxu0
        %v2604 = vadd.f32 0.0, %v2603
        %v2605 = vpop.f32.mrb[0].mxu0
        %v2606 = vpop.f32.mrb[0].mxu0
        %v2607 = vadd.f32 0.0, %v2606
        %v2608 = vpop.f32.mrb[0].mxu0
        %2609 = vmatprep.mubr.bf16.mxu0 0
        %2610 = vmatmul.mubr.bf16.gmra.mrb[0].mxu0 %v2489
        %v2611 = vpop.f32.mrb[0].mxu0
        %v2612 = vadd.f32 0.0, %v2611
        %v2613 = vpop.f32.mrb[0].mxu0
        %v2614 = vpop.f32.mrb[0].mxu0
        %v2615 = vadd.f32 0.0, %v2614
        %v2616 = vpop.f32.mrb[0].mxu0
        %2617 = vmatprep.mubr.bf16.mxu0 0
        %2618 = vmatmul.mubr.bf16.gmra.mrb[0].mxu0 %v2490
        %v2619 = vpop.f32.mrb[0].mxu0
        %v2620 = vadd.f32 0.0, %v2619
        %v2621 = vpop.f32.mrb[0].mxu0
        %v2622 = vpop.f32.mrb[0].mxu0
        %v2623 = vadd.f32 0.0, %v2622
        %v2624 = vpop.f32.mrb[0].mxu0
        %2625 = vmatprep.mubr.bf16.mxu0 0
        %2626 = vmatmul.mubr.bf16.gmra.mrb[0].mxu0 %v2491
        %v2627 = vpop.f32.mrb[0].mxu0
        %v2628 = vadd.f32 0.0, %v2627
        %v2629 = vpop.f32.mrb[0].mxu0
        %v2630 = vpop.f32.mrb[0].mxu0
        %v2631 = vadd.f32 0.0, %v2630
        %v2632 = vpop.f32.mrb[0].mxu0
        %2633 = vmatprep.mubr.bf16.mxu0 0
        %2634 = vmatmul.mubr.bf16.gmra.mrb[0].mxu0 %v2492
        %v2635 = vpop.f32.mrb[0].mxu0
        %v2636 = vadd.f32 0.0, %v2635
        %v2637 = vpop.f32.mrb[0].mxu0
        %v2638 = vpop.f32.mrb[0].mxu0
        %v2639 = vadd.f32 0.0, %v2638
        %v2640 = vpop.f32.mrb[0].mxu0
        %2641 = vmatprep.mubr.bf16.mxu0 0
        %2642 = vmatmul.mubr.bf16.gmra.mrb[0].mxu0 %v2493
        %v2643 = vpop.f32.mrb[0].mxu0
        %v2644 = vadd.f32 0.0, %v2643
        %v2645 = vpop.f32.mrb[0].mxu0
        %v2646 = vpop.f32.mrb[0].mxu0
        %v2647 = vadd.f32 0.0, %v2646
        %v2648 = vpop.f32.mrb[0].mxu0
        %2649 = vmatprep.mubr.bf16.mxu0 0
        %2650 = vmatmul.mubr.bf16.gmra.mrb[0].mxu0 %v2494
        %v2651 = vpop.f32.mrb[0].mxu0
        %v2652 = vadd.f32 0.0, %v2651
        %v2653 = vpop.f32.mrb[0].mxu0
        %v2654 = vpop.f32.mrb[0].mxu0
        %v2655 = vadd.f32 0.0, %v2654
        %v2656 = vpop.f32.mrb[0].mxu0
        %2657 = vmatprep.mubr.bf16.mxu0 0
        %2658 = vmatmul.mubr.bf16.gmra.mrb[0].mxu0 %v2495
        %v2659 = vpop.f32.mrb[0].mxu0
        %v2660 = vadd.f32 0.0, %v2659
        %v2661 = vpop.f32.mrb[0].mxu0
        %v2662 = vpop.f32.mrb[0].mxu0
        %v2663 = vadd.f32 0.0, %v2662
        %v2664 = vpop.f32.mrb[0].mxu0
        %2665 = vmatprep.mubr.bf16.mxu0 0
        %2666 = vmatmul.mubr.bf16.gmra.mrb[0].mxu0 %v2496
        %v2667 = vpop.f32.mrb[0].mxu0
        %v2668 = vadd.f32 0.0, %v2667
        %v2669 = vpop.f32.mrb[0].mxu0
        %v2670 = vpop.f32.mrb[0].mxu0
        %v2671 = vadd.f32 0.0, %v2670
        %v2672 = vpop.f32.mrb[0].mxu0
        %2673 = vmatprep.mubr.bf16.mxu0 0
        %2674 = vmatmul.mubr.bf16.gmra.mrb[0].mxu0 %v2497
        %v2675 = vpop.f32.mrb[0].mxu0
        %v2676 = vadd.f32 0.0, %v2675
        %v2677 = vpop.f32.mrb[0].mxu0
        %v2678 = vpop.f32.mrb[0].mxu0
        %v2679 = vadd.f32 0.0, %v2678
        %v2680 = vpop.f32.mrb[0].mxu0
        %2681 = vmatprep.mubr.bf16.mxu0 0
        %2682 = vmatmul.mubr.bf16.gmra.mrb[0].mxu0 %v2498
        %v2683 = vpop.f32.mrb[0].mxu0
        %v2684 = vadd.f32 0.0, %v2683
        %v2685 = vpop.f32.mrb[0].mxu0
        %v2686 = vpop.f32.mrb[0].mxu0
        %v2687 = vadd.f32 0.0, %v2686
        %v2688 = vpop.f32.mrb[0].mxu0
        %2689 = vmatprep.mubr.bf16.mxu0 0
        %2690 = vmatmul.mubr.bf16.gmra.mrb[0].mxu0 %v2499
        %v2691 = vpop.f32.mrb[0].mxu0
        %v2692 = vadd.f32 0.0, %v2691
        %v2693 = vpop.f32.mrb[0].mxu0
        %v2694 = vpop.f32.mrb[0].mxu0
        %v2695 = vadd.f32 0.0, %v2694
        %v2696 = vpop.f32.mrb[0].mxu0
        %2697 = vmatprep.mubr.bf16.mxu0 0
        %2698 = vmatmul.mubr.bf16.gmra.mrb[0].mxu0 %v2500
        %v2699 = vpop.f32.mrb[0].mxu0
        %v2700 = vadd.f32 0.0, %v2699
        %v2701 = vpop.f32.mrb[0].mxu0
        %v2702 = vpop.f32.mrb[0].mxu0
        %v2703 = vadd.f32 0.0, %v2702
        %v2704 = vpop.f32.mrb[0].mxu0
        %2705 = vmatprep.mubr.bf16.mxu0 0
        %2706 = vmatmul.mubr.bf16.gmra.mrb[0].mxu0 %v2501
        %v2707 = vpop.f32.mrb[0].mxu0
        %v2708 = vadd.f32 0.0, %v2707
        %v2709 = vpop.f32.mrb[0].mxu0
        %v2710 = vpop.f32.mrb[0].mxu0
        %v2711 = vadd.f32 0.0, %v2710
        %v2712 = vpop.f32.mrb[0].mxu0
        %2713 = vmatprep.mubr.bf16.mxu0 0
        %2714 = vmatmul.mubr.bf16.gmra.mrb[0].mxu0 %v2502
        %v2715 = vpop.f32.mrb[0].mxu0
        %v2716 = vadd.f32 0.0, %v2715
        %v2717 = vpop.f32.mrb[0].mxu0
        %v2718 = vpop.f32.mrb[0].mxu0
        %v2719 = vadd.f32 0.0, %v2718
        %v2720 = vpop.f32.mrb[0].mxu0
        %2721 = vmatprep.mubr.bf16.mxu0 0
        %2722 = vmatmul.mubr.bf16.gmra.mrb[0].mxu0 %v2503
        %v2723 = vpop.f32.mrb[0].mxu0
        %v2724 = vadd.f32 0.0, %v2723
        %v2725 = vpop.f32.mrb[0].mxu0
        %v2726 = vpop.f32.mrb[0].mxu0
        %v2727 = vadd.f32 0.0, %v2726
        %v2728 = vpop.f32.mrb[0].mxu0
        %2729 = vdwg.mxu0
        %v2730 = vadd.f32 %v2424, %v2604
        %v2731 = vadd.f32 %v2425, %v2607
        %v2732 = vadd.f32 %v2426, %v2612
        %v2733 = vadd.f32 %v2427, %v2615
        %v2734 = vadd.f32 %v2428, %v2620
        %v2735 = vadd.f32 %v2429, %v2623
        %v2736 = vadd.f32 %v2430, %v2628
        %v2737 = vadd.f32 %v2431, %v2631
        %v2738 = vadd.f32 %v2432, %v2636
        %v2739 = vadd.f32 %v2433, %v2639
        %v2740 = vadd.f32 %v2434, %v2644
        %v2741 = vadd.f32 %v2435, %v2647
        %v2742 = vadd.f32 %v2436, %v2652
        %v2743 = vadd.f32 %v2437, %v2655
        %v2744 = vadd.f32 %v2438, %v2660
        %v2745 = vadd.f32 %v2439, %v2663
        %v2746 = vadd.f32 %v2440, %v2668
        %v2747 = vadd.f32 %v2441, %v2671
        %v2748 = vadd.f32 %v2442, %v2676
        %v2749 = vadd.f32 %v2443, %v2679
        %v2750 = vadd.f32 %v2444, %v2684
        %v2751 = vadd.f32 %v2445, %v2687
        %v2752 = vadd.f32 %v2446, %v2692
        %v2753 = vadd.f32 %v2447, %v2695
        %v2754 = vadd.f32 %v2448, %v2700
        %v2755 = vadd.f32 %v2449, %v2703
        %v2756 = vadd.f32 %v2450, %v2708
        %v2757 = vadd.f32 %v2451, %v2711
        %v2758 = vadd.f32 %v2452, %v2716
        %v2759 = vadd.f32 %v2453, %v2719
        %v2760 = vadd.f32 %v2454, %v2724
        %v2761 = vadd.f32 %v2455, %v2727
        %v2762 = vld [vmem:[%s2149 + $0x2] sm:$0xff]
        %v2763 = vld [vmem:[%s2149 + $0xa] sm:$0xff]
        %v2764 = vld [vmem:[%s2149 + $0x1a] sm:$0xff]
        %v2765 = vld [vmem:[%s2149 + $0x22] sm:$0xff]
        %v2766 = vld [vmem:[%s2149 + $0x32] sm:$0xff]
        %v2767 = vld [vmem:[%s2149 + $0x3a] sm:$0xff]
        %v2768 = vld [vmem:[%s2149 + $0x4a] sm:$0xff]
        %v2769 = vld [vmem:[%s2149 + $0x52] sm:$0xff]
        %v2770 = vld [vmem:[%s2149 + $0x62] sm:$0xff]
        %v2771 = vld [vmem:[%s2149 + $0x6a] sm:$0xff]
        %v2772 = vld [vmem:[%s2149 + $0x7a] sm:$0xff]
        %v2773 = vld [vmem:[%s2149 + $0x82] sm:$0xff]
        %v2774 = vld [vmem:[%s2149 + $0x92] sm:$0xff]
        %v2775 = vld [vmem:[%s2149 + $0x9a] sm:$0xff]
        %v2776 = vld [vmem:[%s2149 + $0xaa] sm:$0xff]
        %v2777 = vld [vmem:[%s2149 + $0xb2] sm:$0xff]
        %v2778 = vld [vmem:[%s2149 + $0xc2] sm:$0xff]
        %v2779 = vld [vmem:[%s2149 + $0xca] sm:$0xff]
        %v2780 = vld [vmem:[%s2149 + $0xda] sm:$0xff]
        %v2781 = vld [vmem:[%s2149 + $0xe2] sm:$0xff]
        %v2782 = vld [vmem:[%s2149 + $0xf2] sm:$0xff]
        %v2783 = vld [vmem:[%s2149 + $0xfa] sm:$0xff]
        %v2784 = vld [vmem:[%s2149 + $0x10a] sm:$0xff]
        %v2785 = vld [vmem:[%s2149 + $0x112] sm:$0xff]
        %v2786 = vld [vmem:[%s2149 + $0x122] sm:$0xff]
        %v2787 = vld [vmem:[%s2149 + $0x12a] sm:$0xff]
        %v2788 = vld [vmem:[%s2149 + $0x13a] sm:$0xff]
        %v2789 = vld [vmem:[%s2149 + $0x142] sm:$0xff]
        %v2790 = vld [vmem:[%s2149 + $0x152] sm:$0xff]
        %v2791 = vld [vmem:[%s2149 + $0x15a] sm:$0xff]
        %v2792 = vld [vmem:[%s2149 + $0x16a] sm:$0xff]
        %v2793 = vld [vmem:[%s2149 + $0x172] sm:$0xff]
        %v2794 = vpack.c.bf16 %v2763, %v2762
        %v2795 = vpack.c.bf16 %v2765, %v2764
        %v2796 = vpack.c.bf16 %v2767, %v2766
        %v2797 = vpack.c.bf16 %v2769, %v2768
        %v2798 = vpack.c.bf16 %v2771, %v2770
        %v2799 = vpack.c.bf16 %v2773, %v2772
        %v2800 = vpack.c.bf16 %v2775, %v2774
        %v2801 = vpack.c.bf16 %v2777, %v2776
        %v2802 = vpack.c.bf16 %v2779, %v2778
        %v2803 = vpack.c.bf16 %v2781, %v2780
        %v2804 = vpack.c.bf16 %v2783, %v2782
        %v2805 = vpack.c.bf16 %v2785, %v2784
        %v2806 = vpack.c.bf16 %v2787, %v2786
        %v2807 = vpack.c.bf16 %v2789, %v2788
        %v2808 = vpack.c.bf16 %v2791, %v2790
        %v2809 = vpack.c.bf16 %v2793, %v2792
        %s2810 = scalar_lea.vmem %s1, 512
        %v2811 = vld [vmem:[%s2810] sm:$0xf]
        %v2812 = vld [vmem:[%s2810 + $0x4] sm:$0xf]
        %v2813 = vld [vmem:[%s2810 + $0x8] sm:$0xf]
        %v2814 = vld [vmem:[%s2810 + $0xc] sm:$0xf]
        %v2815 = vld [vmem:[%s2810 + $0x10] sm:$0xf]
        %v2816 = vld [vmem:[%s2810 + $0x14] sm:$0xf]
        %v2817 = vld [vmem:[%s2810 + $0x18] sm:$0xf]
        %v2818 = vld [vmem:[%s2810 + $0x1c] sm:$0xf]
        %v2819 = vld [vmem:[%s2810 + $0x20] sm:$0xf]
        %v2820 = vld [vmem:[%s2810 + $0x24] sm:$0xf]
        %v2821 = vld [vmem:[%s2810 + $0x28] sm:$0xf]
        %v2822 = vld [vmem:[%s2810 + $0x2c] sm:$0xf]
        %v2823 = vld [vmem:[%s2810 + $0x30] sm:$0xf]
        %v2824 = vld [vmem:[%s2810 + $0x34] sm:$0xf]
        %v2825 = vld [vmem:[%s2810 + $0x38] sm:$0xf]
        %v2826 = vld [vmem:[%s2810 + $0x3c] sm:$0xf]
        %v2843 = vunpack.c.l.b16 %v2811
        %v2844 = vunpack.c.l.b16 %v2812
        %v2845 = vunpack.c.l.b16 %v2813
        %v2846 = vunpack.c.l.b16 %v2814
        %v2847 = vunpack.c.l.b16 %v2815
        %v2848 = vunpack.c.l.b16 %v2816
        %v2849 = vunpack.c.l.b16 %v2817
        %v2850 = vunpack.c.l.b16 %v2818
        %v2851 = vunpack.c.l.b16 %v2819
        %v2852 = vunpack.c.l.b16 %v2820
        %v2853 = vunpack.c.l.b16 %v2821
        %v2854 = vunpack.c.l.b16 %v2822
        %v2855 = vunpack.c.l.b16 %v2823
        %v2856 = vunpack.c.l.b16 %v2824
        %v2857 = vunpack.c.l.b16 %v2825
        %v2858 = vunpack.c.l.b16 %v2826
        %v2859 = vpack.c.b16 %v2844, %v2843
        %v2860 = vpack.c.b16 %v2846, %v2845
        %v2861 = vpack.c.b16 %v2848, %v2847
        %v2862 = vpack.c.b16 %v2850, %v2849
        %v2863 = vpack.c.b16 %v2852, %v2851
        %v2864 = vpack.c.b16 %v2854, %v2853
        %v2865 = vpack.c.b16 %v2856, %v2855
        %v2866 = vpack.c.b16 %v2858, %v2857
        %2875 = vmatprep.subr.bf16.mxu0 0
        %2876 = vmatpush1.bf16.msra.mxu0 %v2859
        %2877 = vmatprep.subr.bf16.mxu0 0
        %2878 = vmatpush1.bf16.msra.mxu0 %v2860
        %2879 = vmatprep.subr.bf16.mxu0 0
        %2880 = vmatpush1.bf16.msra.mxu0 %v2861
        %2881 = vmatprep.subr.bf16.mxu0 0
        %2882 = vmatpush1.bf16.msra.mxu0 %v2862
        %2883 = vmatprep.subr.bf16.mxu0 0
        %2884 = vmatpush1.bf16.msra.mxu0 %v2863
        %2885 = vmatprep.subr.bf16.mxu0 0
        %2886 = vmatpush1.bf16.msra.mxu0 %v2864
        %2887 = vmatprep.subr.bf16.mxu0 0
        %2888 = vmatpush1.bf16.msra.mxu0 %v2865
        %2889 = vmatprep.subr.bf16.mxu0 0
        %2890 = vmatpush1.bf16.msra.mxu0 %v2866
        %2891 = vmatprep.subr.bf16.mxu0 0
        %2892 = vmatpush1.bf16.msra.mxu0 0
        %2893 = vmatprep.subr.bf16.mxu0 0
        %2894 = vmatpush1.bf16.msra.mxu0 0
        %2895 = vmatprep.subr.bf16.mxu0 0
        %2896 = vmatpush1.bf16.msra.mxu0 0
        %2897 = vmatprep.subr.bf16.mxu0 0
        %2898 = vmatpush1.bf16.msra.mxu0 0
        %2899 = vmatprep.subr.bf16.mxu0 0
        %2900 = vmatpush1.bf16.msra.mxu0 0
        %2901 = vmatprep.subr.bf16.mxu0 0
        %2902 = vmatpush1.bf16.msra.mxu0 0
        %2903 = vmatprep.subr.bf16.mxu0 0
        %2904 = vmatpush1.bf16.msra.mxu0 0
        %2905 = vmatprep.subr.bf16.mxu0 0
        %2906 = vmatpush1.bf16.msra.mxu0 0
        %2907 = vmatprep.mubr.bf16.mxu0 0
        %2908 = vmatmul.mubr.bf16.gmra.mrb[0].mxu0 %v2794
        %v2909 = vpop.f32.mrb[0].mxu0
        %v2910 = vadd.f32 0.0, %v2909
        %v2911 = vpop.f32.mrb[0].mxu0
        %v2912 = vpop.f32.mrb[0].mxu0
        %v2913 = vadd.f32 0.0, %v2912
        %v2914 = vpop.f32.mrb[0].mxu0
        %2915 = vmatprep.mubr.bf16.mxu0 0
        %2916 = vmatmul.mubr.bf16.gmra.mrb[0].mxu0 %v2795
        %v2917 = vpop.f32.mrb[0].mxu0
        %v2918 = vadd.f32 0.0, %v2917
        %v2919 = vpop.f32.mrb[0].mxu0
        %v2920 = vpop.f32.mrb[0].mxu0
        %v2921 = vadd.f32 0.0, %v2920
        %v2922 = vpop.f32.mrb[0].mxu0
        %2923 = vmatprep.mubr.bf16.mxu0 0
        %2924 = vmatmul.mubr.bf16.gmra.mrb[0].mxu0 %v2796
        %v2925 = vpop.f32.mrb[0].mxu0
        %v2926 = vadd.f32 0.0, %v2925
        %v2927 = vpop.f32.mrb[0].mxu0
        %v2928 = vpop.f32.mrb[0].mxu0
        %v2929 = vadd.f32 0.0, %v2928
        %v2930 = vpop.f32.mrb[0].mxu0
        %2931 = vmatprep.mubr.bf16.mxu0 0
        %2932 = vmatmul.mubr.bf16.gmra.mrb[0].mxu0 %v2797
        %v2933 = vpop.f32.mrb[0].mxu0
        %v2934 = vadd.f32 0.0, %v2933
        %v2935 = vpop.f32.mrb[0].mxu0
        %v2936 = vpop.f32.mrb[0].mxu0
        %v2937 = vadd.f32 0.0, %v2936
        %v2938 = vpop.f32.mrb[0].mxu0
        %2939 = vmatprep.mubr.bf16.mxu0 0
        %2940 = vmatmul.mubr.bf16.gmra.mrb[0].mxu0 %v2798
        %v2941 = vpop.f32.mrb[0].mxu0
        %v2942 = vadd.f32 0.0, %v2941
        %v2943 = vpop.f32.mrb[0].mxu0
        %v2944 = vpop.f32.mrb[0].mxu0
        %v2945 = vadd.f32 0.0, %v2944
        %v2946 = vpop.f32.mrb[0].mxu0
        %2947 = vmatprep.mubr.bf16.mxu0 0
        %2948 = vmatmul.mubr.bf16.gmra.mrb[0].mxu0 %v2799
        %v2949 = vpop.f32.mrb[0].mxu0
        %v2950 = vadd.f32 0.0, %v2949
        %v2951 = vpop.f32.mrb[0].mxu0
        %v2952 = vpop.f32.mrb[0].mxu0
        %v2953 = vadd.f32 0.0, %v2952
        %v2954 = vpop.f32.mrb[0].mxu0
        %2955 = vmatprep.mubr.bf16.mxu0 0
        %2956 = vmatmul.mubr.bf16.gmra.mrb[0].mxu0 %v2800
        %v2957 = vpop.f32.mrb[0].mxu0
        %v2958 = vadd.f32 0.0, %v2957
        %v2959 = vpop.f32.mrb[0].mxu0
        %v2960 = vpop.f32.mrb[0].mxu0
        %v2961 = vadd.f32 0.0, %v2960
        %v2962 = vpop.f32.mrb[0].mxu0
        %2963 = vmatprep.mubr.bf16.mxu0 0
        %2964 = vmatmul.mubr.bf16.gmra.mrb[0].mxu0 %v2801
        %v2965 = vpop.f32.mrb[0].mxu0
        %v2966 = vadd.f32 0.0, %v2965
        %v2967 = vpop.f32.mrb[0].mxu0
        %v2968 = vpop.f32.mrb[0].mxu0
        %v2969 = vadd.f32 0.0, %v2968
        %v2970 = vpop.f32.mrb[0].mxu0
        %2971 = vmatprep.mubr.bf16.mxu0 0
        %2972 = vmatmul.mubr.bf16.gmra.mrb[0].mxu0 %v2802
        %v2973 = vpop.f32.mrb[0].mxu0
        %v2974 = vadd.f32 0.0, %v2973
        %v2975 = vpop.f32.mrb[0].mxu0
        %v2976 = vpop.f32.mrb[0].mxu0
        %v2977 = vadd.f32 0.0, %v2976
        %v2978 = vpop.f32.mrb[0].mxu0
        %2979 = vmatprep.mubr.bf16.mxu0 0
        %2980 = vmatmul.mubr.bf16.gmra.mrb[0].mxu0 %v2803
        %v2981 = vpop.f32.mrb[0].mxu0
        %v2982 = vadd.f32 0.0, %v2981
        %v2983 = vpop.f32.mrb[0].mxu0
        %v2984 = vpop.f32.mrb[0].mxu0
        %v2985 = vadd.f32 0.0, %v2984
        %v2986 = vpop.f32.mrb[0].mxu0
        %2987 = vmatprep.mubr.bf16.mxu0 0
        %2988 = vmatmul.mubr.bf16.gmra.mrb[0].mxu0 %v2804
        %v2989 = vpop.f32.mrb[0].mxu0
        %v2990 = vadd.f32 0.0, %v2989
        %v2991 = vpop.f32.mrb[0].mxu0
        %v2992 = vpop.f32.mrb[0].mxu0
        %v2993 = vadd.f32 0.0, %v2992
        %v2994 = vpop.f32.mrb[0].mxu0
        %2995 = vmatprep.mubr.bf16.mxu0 0
        %2996 = vmatmul.mubr.bf16.gmra.mrb[0].mxu0 %v2805
        %v2997 = vpop.f32.mrb[0].mxu0
        %v2998 = vadd.f32 0.0, %v2997
        %v2999 = vpop.f32.mrb[0].mxu0
        %v3000 = vpop.f32.mrb[0].mxu0
        %v3001 = vadd.f32 0.0, %v3000
        %v3002 = vpop.f32.mrb[0].mxu0
        %3003 = vmatprep.mubr.bf16.mxu0 0
        %3004 = vmatmul.mubr.bf16.gmra.mrb[0].mxu0 %v2806
        %v3005 = vpop.f32.mrb[0].mxu0
        %v3006 = vadd.f32 0.0, %v3005
        %v3007 = vpop.f32.mrb[0].mxu0
        %v3008 = vpop.f32.mrb[0].mxu0
        %v3009 = vadd.f32 0.0, %v3008
        %v3010 = vpop.f32.mrb[0].mxu0
        %3011 = vmatprep.mubr.bf16.mxu0 0
        %3012 = vmatmul.mubr.bf16.gmra.mrb[0].mxu0 %v2807
        %v3013 = vpop.f32.mrb[0].mxu0
        %v3014 = vadd.f32 0.0, %v3013
        %v3015 = vpop.f32.mrb[0].mxu0
        %v3016 = vpop.f32.mrb[0].mxu0
        %v3017 = vadd.f32 0.0, %v3016
        %v3018 = vpop.f32.mrb[0].mxu0
        %3019 = vmatprep.mubr.bf16.mxu0 0
        %3020 = vmatmul.mubr.bf16.gmra.mrb[0].mxu0 %v2808
        %v3021 = vpop.f32.mrb[0].mxu0
        %v3022 = vadd.f32 0.0, %v3021
        %v3023 = vpop.f32.mrb[0].mxu0
        %v3024 = vpop.f32.mrb[0].mxu0
        %v3025 = vadd.f32 0.0, %v3024
        %v3026 = vpop.f32.mrb[0].mxu0
        %3027 = vmatprep.mubr.bf16.mxu0 0
        %3028 = vmatmul.mubr.bf16.gmra.mrb[0].mxu0 %v2809
        %v3029 = vpop.f32.mrb[0].mxu0
        %v3030 = vadd.f32 0.0, %v3029
        %v3031 = vpop.f32.mrb[0].mxu0
        %v3032 = vpop.f32.mrb[0].mxu0
        %v3033 = vadd.f32 0.0, %v3032
        %v3034 = vpop.f32.mrb[0].mxu0
        %3035 = vdwg.mxu0
        %v3036 = vadd.f32 %v2730, %v2910
        %v3037 = vadd.f32 %v2731, %v2913
        %v3038 = vadd.f32 %v2732, %v2918
        %v3039 = vadd.f32 %v2733, %v2921
        %v3040 = vadd.f32 %v2734, %v2926
        %v3041 = vadd.f32 %v2735, %v2929
        %v3042 = vadd.f32 %v2736, %v2934
        %v3043 = vadd.f32 %v2737, %v2937
        %v3044 = vadd.f32 %v2738, %v2942
        %v3045 = vadd.f32 %v2739, %v2945
        %v3046 = vadd.f32 %v2740, %v2950
        %v3047 = vadd.f32 %v2741, %v2953
        %v3048 = vadd.f32 %v2742, %v2958
        %v3049 = vadd.f32 %v2743, %v2961
        %v3050 = vadd.f32 %v2744, %v2966
        %v3051 = vadd.f32 %v2745, %v2969
        %v3052 = vadd.f32 %v2746, %v2974
        %v3053 = vadd.f32 %v2747, %v2977
        %v3054 = vadd.f32 %v2748, %v2982
        %v3055 = vadd.f32 %v2749, %v2985
        %v3056 = vadd.f32 %v2750, %v2990
        %v3057 = vadd.f32 %v2751, %v2993
        %v3058 = vadd.f32 %v2752, %v2998
        %v3059 = vadd.f32 %v2753, %v3001
        %v3060 = vadd.f32 %v2754, %v3006
        %v3061 = vadd.f32 %v2755, %v3009
        %v3062 = vadd.f32 %v2756, %v3014
        %v3063 = vadd.f32 %v2757, %v3017
        %v3064 = vadd.f32 %v2758, %v3022
        %v3065 = vadd.f32 %v2759, %v3025
        %v3066 = vadd.f32 %v2760, %v3030
        %v3067 = vadd.f32 %v2761, %v3033
        %v3068 = vld [vmem:[%s2] sm:$0x1]
        %v3070 = vlaneseq
        %v3071 = vshrl.u32 %v3070, 7
        %v3072 = vsub.s32 0, %v3071
        %v3073 = vrot.slane %v3068, %v3072
        %v3075 = vadd.f32 %v3036, %v3073
        %v3076 = vadd.f32 %v3037, %v3073
        %v3077 = vadd.f32 %v3038, %v3073
        %v3078 = vadd.f32 %v3039, %v3073
        %v3079 = vadd.f32 %v3040, %v3073
        %v3080 = vadd.f32 %v3041, %v3073
        %v3081 = vadd.f32 %v3042, %v3073
        %v3082 = vadd.f32 %v3043, %v3073
        %v3083 = vadd.f32 %v3044, %v3073
        %v3084 = vadd.f32 %v3045, %v3073
        %v3085 = vadd.f32 %v3046, %v3073
        %v3086 = vadd.f32 %v3047, %v3073
        %v3087 = vadd.f32 %v3048, %v3073
        %v3088 = vadd.f32 %v3049, %v3073
        %v3089 = vadd.f32 %v3050, %v3073
        %v3090 = vadd.f32 %v3051, %v3073
        %v3091 = vadd.f32 %v3052, %v3073
        %v3092 = vadd.f32 %v3053, %v3073
        %v3093 = vadd.f32 %v3054, %v3073
        %v3094 = vadd.f32 %v3055, %v3073
        %v3095 = vadd.f32 %v3056, %v3073
        %v3096 = vadd.f32 %v3057, %v3073
        %v3097 = vadd.f32 %v3058, %v3073
        %v3098 = vadd.f32 %v3059, %v3073
        %v3099 = vadd.f32 %v3060, %v3073
        %v3100 = vadd.f32 %v3061, %v3073
        %v3101 = vadd.f32 %v3062, %v3073
        %v3102 = vadd.f32 %v3063, %v3073
        %v3103 = vadd.f32 %v3064, %v3073
        %v3104 = vadd.f32 %v3065, %v3073
        %v3105 = vadd.f32 %v3066, %v3073
        %v3106 = vadd.f32 %v3067, %v3073
        %v3107 = vmax.f32 %v3075, 0.0
        %v3108 = vmax.f32 %v3076, 0.0
        %v3109 = vmax.f32 %v3077, 0.0
        %v3110 = vmax.f32 %v3078, 0.0
        %v3111 = vmax.f32 %v3079, 0.0
        %v3112 = vmax.f32 %v3080, 0.0
        %v3113 = vmax.f32 %v3081, 0.0
        %v3114 = vmax.f32 %v3082, 0.0
        %v3115 = vmax.f32 %v3083, 0.0
        %v3116 = vmax.f32 %v3084, 0.0
        %v3117 = vmax.f32 %v3085, 0.0
        %v3118 = vmax.f32 %v3086, 0.0
        %v3119 = vmax.f32 %v3087, 0.0
        %v3120 = vmax.f32 %v3088, 0.0
        %v3121 = vmax.f32 %v3089, 0.0
        %v3122 = vmax.f32 %v3090, 0.0
        %v3123 = vmax.f32 %v3091, 0.0
        %v3124 = vmax.f32 %v3092, 0.0
        %v3125 = vmax.f32 %v3093, 0.0
        %v3126 = vmax.f32 %v3094, 0.0
        %v3127 = vmax.f32 %v3095, 0.0
        %v3128 = vmax.f32 %v3096, 0.0
        %v3129 = vmax.f32 %v3097, 0.0
        %v3130 = vmax.f32 %v3098, 0.0
        %v3131 = vmax.f32 %v3099, 0.0
        %v3132 = vmax.f32 %v3100, 0.0
        %v3133 = vmax.f32 %v3101, 0.0
        %v3134 = vmax.f32 %v3102, 0.0
        %v3135 = vmax.f32 %v3103, 0.0
        %v3136 = vmax.f32 %v3104, 0.0
        %v3137 = vmax.f32 %v3105, 0.0
        %v3138 = vmax.f32 %v3106, 0.0
        %3139 = vst [vmem:[%s248 + $0x1] sm:$0xff] %v3107
        %3140 = vst [vmem:[%s248 + $0x9] sm:$0xff] %v3108
        %3141 = vst [vmem:[%s248 + $0x19] sm:$0xff] %v3109
        %3142 = vst [vmem:[%s248 + $0x21] sm:$0xff] %v3110
        %3143 = vst [vmem:[%s248 + $0x31] sm:$0xff] %v3111
        %3144 = vst [vmem:[%s248 + $0x39] sm:$0xff] %v3112
        %3145 = vst [vmem:[%s248 + $0x49] sm:$0xff] %v3113
        %3146 = vst [vmem:[%s248 + $0x51] sm:$0xff] %v3114
        %3147 = vst [vmem:[%s248 + $0x61] sm:$0xff] %v3115
        %3148 = vst [vmem:[%s248 + $0x69] sm:$0xff] %v3116
        %3149 = vst [vmem:[%s248 + $0x79] sm:$0xff] %v3117
        %3150 = vst [vmem:[%s248 + $0x81] sm:$0xff] %v3118
        %3151 = vst [vmem:[%s248 + $0x91] sm:$0xff] %v3119
        %3152 = vst [vmem:[%s248 + $0x99] sm:$0xff] %v3120
        %3153 = vst [vmem:[%s248 + $0xa9] sm:$0xff] %v3121
        %3154 = vst [vmem:[%s248 + $0xb1] sm:$0xff] %v3122
        %3155 = vst [vmem:[%s248 + $0xc1] sm:$0xff] %v3123
        %3156 = vst [vmem:[%s248 + $0xc9] sm:$0xff] %v3124
        %3157 = vst [vmem:[%s248 + $0xd9] sm:$0xff] %v3125
        %3158 = vst [vmem:[%s248 + $0xe1] sm:$0xff] %v3126
        %3159 = vst [vmem:[%s248 + $0xf1] sm:$0xff] %v3127
        %3160 = vst [vmem:[%s248 + $0xf9] sm:$0xff] %v3128
        %3161 = vst [vmem:[%s248 + $0x109] sm:$0xff] %v3129
        %3162 = vst [vmem:[%s248 + $0x111] sm:$0xff] %v3130
        %3163 = vst [vmem:[%s248 + $0x121] sm:$0xff] %v3131
        %3164 = vst [vmem:[%s248 + $0x129] sm:$0xff] %v3132
        %3165 = vst [vmem:[%s248 + $0x139] sm:$0xff] %v3133
        %3166 = vst [vmem:[%s248 + $0x141] sm:$0xff] %v3134
        %3167 = vst [vmem:[%s248 + $0x151] sm:$0xff] %v3135
        %3168 = vst [vmem:[%s248 + $0x159] sm:$0xff] %v3136
        %3169 = vst [vmem:[%s248 + $0x169] sm:$0xff] %v3137
        %3170 = vst [vmem:[%s248 + $0x171] sm:$0xff] %v3138
        %v3171 = vld [vmem:[#allocation2] sm:$0xff]
        %v3172 = vld [vmem:[#allocation2 + $0x8] sm:$0xff]
        %v3173 = vld [vmem:[#allocation2 + $0x18] sm:$0xff]
        %v3174 = vld [vmem:[#allocation2 + $0x20] sm:$0xff]
        %v3175 = vld [vmem:[#allocation2 + $0x30] sm:$0xff]
        %v3176 = vld [vmem:[#allocation2 + $0x38] sm:$0xff]
        %v3177 = vld [vmem:[#allocation2 + $0x48] sm:$0xff]
        %v3178 = vld [vmem:[#allocation2 + $0x50] sm:$0xff]
        %v3179 = vld [vmem:[#allocation2 + $0x60] sm:$0xff]
        %v3180 = vld [vmem:[#allocation2 + $0x68] sm:$0xff]
        %v3181 = vld [vmem:[#allocation2 + $0x78] sm:$0xff]
        %v3182 = vld [vmem:[#allocation2 + $0x80] sm:$0xff]
        %v3183 = vld [vmem:[#allocation2 + $0x90] sm:$0xff]
        %v3184 = vld [vmem:[#allocation2 + $0x98] sm:$0xff]
        %v3185 = vld [vmem:[#allocation2 + $0xa8] sm:$0xff]
        %v3186 = vld [vmem:[#allocation2 + $0xb0] sm:$0xff]
        %v3187 = vld [vmem:[#allocation2 + $0xc0] sm:$0xff]
        %v3188 = vld [vmem:[#allocation2 + $0xc8] sm:$0xff]
        %v3189 = vld [vmem:[#allocation2 + $0xd8] sm:$0xff]
        %v3190 = vld [vmem:[#allocation2 + $0xe0] sm:$0xff]
        %v3191 = vld [vmem:[#allocation2 + $0xf0] sm:$0xff]
        %v3192 = vld [vmem:[#allocation2 + $0xf8] sm:$0xff]
        %v3193 = vld [vmem:[#allocation2 + $0x108] sm:$0xff]
        %v3194 = vld [vmem:[#allocation2 + $0x110] sm:$0xff]
        %v3195 = vld [vmem:[#allocation2 + $0x120] sm:$0xff]
        %v3196 = vld [vmem:[#allocation2 + $0x128] sm:$0xff]
        %v3197 = vld [vmem:[#allocation2 + $0x138] sm:$0xff]
        %v3198 = vld [vmem:[#allocation2 + $0x140] sm:$0xff]
        %v3199 = vld [vmem:[#allocation2 + $0x150] sm:$0xff]
        %v3200 = vld [vmem:[#allocation2 + $0x158] sm:$0xff]
        %v3201 = vld [vmem:[#allocation2 + $0x168] sm:$0xff]
        %v3202 = vld [vmem:[#allocation2 + $0x170] sm:$0xff]
        %v3203 = vpack.c.bf16 %v3172, %v3171
        %v3204 = vpack.c.bf16 %v3174, %v3173
        %v3205 = vpack.c.bf16 %v3176, %v3175
        %v3206 = vpack.c.bf16 %v3178, %v3177
        %v3207 = vpack.c.bf16 %v3180, %v3179
        %v3208 = vpack.c.bf16 %v3182, %v3181
        %v3209 = vpack.c.bf16 %v3184, %v3183
        %v3210 = vpack.c.bf16 %v3186, %v3185
        %v3211 = vpack.c.bf16 %v3188, %v3187
        %v3212 = vpack.c.bf16 %v3190, %v3189
        %v3213 = vpack.c.bf16 %v3192, %v3191
        %v3214 = vpack.c.bf16 %v3194, %v3193
        %v3215 = vpack.c.bf16 %v3196, %v3195
        %v3216 = vpack.c.bf16 %v3198, %v3197
        %v3217 = vpack.c.bf16 %v3200, %v3199
        %v3218 = vpack.c.bf16 %v3202, %v3201
        %v3219 = vld [vmem:[#allocation3] sm:$0xf]
        %v3220 = vld [vmem:[#allocation3 + $0x4] sm:$0xf]
        %v3221 = vld [vmem:[#allocation3 + $0x8] sm:$0xf]
        %v3222 = vld [vmem:[#allocation3 + $0xc] sm:$0xf]
        %v3223 = vld [vmem:[#allocation3 + $0x10] sm:$0xf]
        %v3224 = vld [vmem:[#allocation3 + $0x14] sm:$0xf]
        %v3225 = vld [vmem:[#allocation3 + $0x18] sm:$0xf]
        %v3226 = vld [vmem:[#allocation3 + $0x1c] sm:$0xf]
        %v3227 = vld [vmem:[#allocation3 + $0x20] sm:$0xf]
        %v3228 = vld [vmem:[#allocation3 + $0x24] sm:$0xf]
        %v3229 = vld [vmem:[#allocation3 + $0x28] sm:$0xf]
        %v3230 = vld [vmem:[#allocation3 + $0x2c] sm:$0xf]
        %v3231 = vld [vmem:[#allocation3 + $0x30] sm:$0xf]
        %v3232 = vld [vmem:[#allocation3 + $0x34] sm:$0xf]
        %v3233 = vld [vmem:[#allocation3 + $0x38] sm:$0xf]
        %v3234 = vld [vmem:[#allocation3 + $0x3c] sm:$0xf]
        %v3235 = vld [vmem:[#allocation2 + $0x1] sm:$0xff]
        %v3236 = vld [vmem:[#allocation2 + $0x9] sm:$0xff]
        %v3237 = vld [vmem:[#allocation2 + $0x19] sm:$0xff]
        %v3238 = vld [vmem:[#allocation2 + $0x21] sm:$0xff]
        %v3239 = vld [vmem:[#allocation2 + $0x31] sm:$0xff]
        %v3240 = vld [vmem:[#allocation2 + $0x39] sm:$0xff]
        %v3241 = vld [vmem:[#allocation2 + $0x49] sm:$0xff]
        %v3242 = vld [vmem:[#allocation2 + $0x51] sm:$0xff]
        %v3243 = vld [vmem:[#allocation2 + $0x61] sm:$0xff]
        %v3244 = vld [vmem:[#allocation2 + $0x69] sm:$0xff]
        %v3245 = vld [vmem:[#allocation2 + $0x79] sm:$0xff]
        %v3246 = vld [vmem:[#allocation2 + $0x81] sm:$0xff]
        %v3247 = vld [vmem:[#allocation2 + $0x91] sm:$0xff]
        %v3248 = vld [vmem:[#allocation2 + $0x99] sm:$0xff]
        %v3249 = vld [vmem:[#allocation2 + $0xa9] sm:$0xff]
        %v3250 = vld [vmem:[#allocation2 + $0xb1] sm:$0xff]
        %v3251 = vld [vmem:[#allocation2 + $0xc1] sm:$0xff]
        %v3252 = vld [vmem:[#allocation2 + $0xc9] sm:$0xff]
        %v3253 = vld [vmem:[#allocation2 + $0xd9] sm:$0xff]
        %v3254 = vld [vmem:[#allocation2 + $0xe1] sm:$0xff]
        %v3255 = vld [vmem:[#allocation2 + $0xf1] sm:$0xff]
        %v3256 = vld [vmem:[#allocation2 + $0xf9] sm:$0xff]
        %v3257 = vld [vmem:[#allocation2 + $0x109] sm:$0xff]
        %v3258 = vld [vmem:[#allocation2 + $0x111] sm:$0xff]
        %v3259 = vld [vmem:[#allocation2 + $0x121] sm:$0xff]
        %v3260 = vld [vmem:[#allocation2 + $0x129] sm:$0xff]
        %v3261 = vld [vmem:[#allocation2 + $0x139] sm:$0xff]
        %v3262 = vld [vmem:[#allocation2 + $0x141] sm:$0xff]
        %v3263 = vld [vmem:[#allocation2 + $0x151] sm:$0xff]
        %v3264 = vld [vmem:[#allocation2 + $0x159] sm:$0xff]
        %v3265 = vld [vmem:[#allocation2 + $0x169] sm:$0xff]
        %v3266 = vld [vmem:[#allocation2 + $0x171] sm:$0xff]
        %v3267 = vpack.c.bf16 %v3236, %v3235
        %v3268 = vpack.c.bf16 %v3238, %v3237
        %v3269 = vpack.c.bf16 %v3240, %v3239
        %v3270 = vpack.c.bf16 %v3242, %v3241
        %v3271 = vpack.c.bf16 %v3244, %v3243
        %v3272 = vpack.c.bf16 %v3246, %v3245
        %v3273 = vpack.c.bf16 %v3248, %v3247
        %v3274 = vpack.c.bf16 %v3250, %v3249
        %v3275 = vpack.c.bf16 %v3252, %v3251
        %v3276 = vpack.c.bf16 %v3254, %v3253
        %v3277 = vpack.c.bf16 %v3256, %v3255
        %v3278 = vpack.c.bf16 %v3258, %v3257
        %v3279 = vpack.c.bf16 %v3260, %v3259
        %v3280 = vpack.c.bf16 %v3262, %v3261
        %v3281 = vpack.c.bf16 %v3264, %v3263
        %v3282 = vpack.c.bf16 %v3266, %v3265
        %s3283 = scalar_lea.vmem [#allocation3], 64
        %v3284 = vld [vmem:[%s3283] sm:$0xf]
        %v3285 = vld [vmem:[%s3283 + $0x4] sm:$0xf]
        %v3286 = vld [vmem:[%s3283 + $0x8] sm:$0xf]
        %v3287 = vld [vmem:[%s3283 + $0xc] sm:$0xf]
        %v3288 = vld [vmem:[%s3283 + $0x10] sm:$0xf]
        %v3289 = vld [vmem:[%s3283 + $0x14] sm:$0xf]
        %v3290 = vld [vmem:[%s3283 + $0x18] sm:$0xf]
        %v3291 = vld [vmem:[%s3283 + $0x1c] sm:$0xf]
        %v3292 = vld [vmem:[%s3283 + $0x20] sm:$0xf]
        %v3293 = vld [vmem:[%s3283 + $0x24] sm:$0xf]
        %v3294 = vld [vmem:[%s3283 + $0x28] sm:$0xf]
        %v3295 = vld [vmem:[%s3283 + $0x2c] sm:$0xf]
        %v3296 = vld [vmem:[%s3283 + $0x30] sm:$0xf]
        %v3297 = vld [vmem:[%s3283 + $0x34] sm:$0xf]
        %v3298 = vld [vmem:[%s3283 + $0x38] sm:$0xf]
        %v3299 = vld [vmem:[%s3283 + $0x3c] sm:$0xf]
        %v3316 = vunpack.c.l.b16 %v3284
        %v3317 = vunpack.c.l.b16 %v3285
        %v3318 = vunpack.c.l.b16 %v3286
        %v3319 = vunpack.c.l.b16 %v3287
        %v3320 = vunpack.c.l.b16 %v3288
        %v3321 = vunpack.c.l.b16 %v3289
        %v3322 = vunpack.c.l.b16 %v3290
        %v3323 = vunpack.c.l.b16 %v3291
        %v3324 = vunpack.c.l.b16 %v3292
        %v3325 = vunpack.c.l.b16 %v3293
        %v3326 = vunpack.c.l.b16 %v3294
        %v3327 = vunpack.c.l.b16 %v3295
        %v3328 = vunpack.c.l.b16 %v3296
        %v3329 = vunpack.c.l.b16 %v3297
        %v3330 = vunpack.c.l.b16 %v3298
        %v3331 = vunpack.c.l.b16 %v3299
        %v3332 = vpack.c.b16 %v3317, %v3316
        %v3333 = vpack.c.b16 %v3319, %v3318
        %v3334 = vpack.c.b16 %v3321, %v3320
        %v3335 = vpack.c.b16 %v3323, %v3322
        %v3336 = vpack.c.b16 %v3325, %v3324
        %v3337 = vpack.c.b16 %v3327, %v3326
        %v3338 = vpack.c.b16 %v3329, %v3328
        %v3339 = vpack.c.b16 %v3331, %v3330
        %3348 = vmatprep.subr.bf16.mxu0 0
        %3349 = vmatpush1.bf16.msra.mxu0 %v3332
        %3350 = vmatprep.subr.bf16.mxu0 0
        %3351 = vmatpush1.bf16.msra.mxu0 %v3333
        %3352 = vmatprep.subr.bf16.mxu0 0
        %3353 = vmatpush1.bf16.msra.mxu0 %v3334
        %3354 = vmatprep.subr.bf16.mxu0 0
        %3355 = vmatpush1.bf16.msra.mxu0 %v3335
        %3356 = vmatprep.subr.bf16.mxu0 0
        %3357 = vmatpush1.bf16.msra.mxu0 %v3336
        %3358 = vmatprep.subr.bf16.mxu0 0
        %3359 = vmatpush1.bf16.msra.mxu0 %v3337
        %3360 = vmatprep.subr.bf16.mxu0 0
        %3361 = vmatpush1.bf16.msra.mxu0 %v3338
        %3362 = vmatprep.subr.bf16.mxu0 0
        %3363 = vmatpush1.bf16.msra.mxu0 %v3339
        %3364 = vmatprep.subr.bf16.mxu0 0
        %3365 = vmatpush1.bf16.msra.mxu0 0
        %3366 = vmatprep.subr.bf16.mxu0 0
        %3367 = vmatpush1.bf16.msra.mxu0 0
        %3368 = vmatprep.subr.bf16.mxu0 0
        %3369 = vmatpush1.bf16.msra.mxu0 0
        %3370 = vmatprep.subr.bf16.mxu0 0
        %3371 = vmatpush1.bf16.msra.mxu0 0
        %3372 = vmatprep.subr.bf16.mxu0 0
        %3373 = vmatpush1.bf16.msra.mxu0 0
        %3374 = vmatprep.subr.bf16.mxu0 0
        %3375 = vmatpush1.bf16.msra.mxu0 0
        %3376 = vmatprep.subr.bf16.mxu0 0
        %3377 = vmatpush1.bf16.msra.mxu0 0
        %3378 = vmatprep.subr.bf16.mxu0 0
        %3379 = vmatpush1.bf16.msra.mxu0 0
        %3380 = vmatprep.mubr.bf16.mxu0 0
        %3381 = vmatmul.mubr.bf16.gmra.mrb[0].mxu0 %v3267
        %v3382 = vpop.f32.mrb[0].mxu0
        %v3383 = vadd.f32 0.0, %v3382
        %v3384 = vpop.f32.mrb[0].mxu0
        %v3385 = vpop.f32.mrb[0].mxu0
        %v3386 = vadd.f32 0.0, %v3385
        %v3387 = vpop.f32.mrb[0].mxu0
        %3388 = vmatprep.mubr.bf16.mxu0 0
        %3389 = vmatmul.mubr.bf16.gmra.mrb[0].mxu0 %v3268
        %v3390 = vpop.f32.mrb[0].mxu0
        %v3391 = vadd.f32 0.0, %v3390
        %v3392 = vpop.f32.mrb[0].mxu0
        %v3393 = vpop.f32.mrb[0].mxu0
        %v3394 = vadd.f32 0.0, %v3393
        %v3395 = vpop.f32.mrb[0].mxu0
        %3396 = vmatprep.mubr.bf16.mxu0 0
        %3397 = vmatmul.mubr.bf16.gmra.mrb[0].mxu0 %v3269
        %v3398 = vpop.f32.mrb[0].mxu0
        %v3399 = vadd.f32 0.0, %v3398
        %v3400 = vpop.f32.mrb[0].mxu0
        %v3401 = vpop.f32.mrb[0].mxu0
        %v3402 = vadd.f32 0.0, %v3401
        %v3403 = vpop.f32.mrb[0].mxu0
        %3404 = vmatprep.mubr.bf16.mxu0 0
        %3405 = vmatmul.mubr.bf16.gmra.mrb[0].mxu0 %v3270
        %v3406 = vpop.f32.mrb[0].mxu0
        %v3407 = vadd.f32 0.0, %v3406
        %v3408 = vpop.f32.mrb[0].mxu0
        %v3409 = vpop.f32.mrb[0].mxu0
        %v3410 = vadd.f32 0.0, %v3409
        %v3411 = vpop.f32.mrb[0].mxu0
        %3412 = vmatprep.mubr.bf16.mxu0 0
        %3413 = vmatmul.mubr.bf16.gmra.mrb[0].mxu0 %v3271
        %v3414 = vpop.f32.mrb[0].mxu0
        %v3415 = vadd.f32 0.0, %v3414
        %v3416 = vpop.f32.mrb[0].mxu0
        %v3417 = vpop.f32.mrb[0].mxu0
        %v3418 = vadd.f32 0.0, %v3417
        %v3419 = vpop.f32.mrb[0].mxu0
        %3420 = vmatprep.mubr.bf16.mxu0 0
        %3421 = vmatmul.mubr.bf16.gmra.mrb[0].mxu0 %v3272
        %v3422 = vpop.f32.mrb[0].mxu0
        %v3423 = vadd.f32 0.0, %v3422
        %v3424 = vpop.f32.mrb[0].mxu0
        %v3425 = vpop.f32.mrb[0].mxu0
        %v3426 = vadd.f32 0.0, %v3425
        %v3427 = vpop.f32.mrb[0].mxu0
        %3428 = vmatprep.mubr.bf16.mxu0 0
        %3429 = vmatmul.mubr.bf16.gmra.mrb[0].mxu0 %v3273
        %v3430 = vpop.f32.mrb[0].mxu0
        %v3431 = vadd.f32 0.0, %v3430
        %v3432 = vpop.f32.mrb[0].mxu0
        %v3433 = vpop.f32.mrb[0].mxu0
        %v3434 = vadd.f32 0.0, %v3433
        %v3435 = vpop.f32.mrb[0].mxu0
        %3436 = vmatprep.mubr.bf16.mxu0 0
        %3437 = vmatmul.mubr.bf16.gmra.mrb[0].mxu0 %v3274
        %v3438 = vpop.f32.mrb[0].mxu0
        %v3439 = vadd.f32 0.0, %v3438
        %v3440 = vpop.f32.mrb[0].mxu0
        %v3441 = vpop.f32.mrb[0].mxu0
        %v3442 = vadd.f32 0.0, %v3441
        %v3443 = vpop.f32.mrb[0].mxu0
        %3444 = vmatprep.mubr.bf16.mxu0 0
        %3445 = vmatmul.mubr.bf16.gmra.mrb[0].mxu0 %v3275
        %v3446 = vpop.f32.mrb[0].mxu0
        %v3447 = vadd.f32 0.0, %v3446
        %v3448 = vpop.f32.mrb[0].mxu0
        %v3449 = vpop.f32.mrb[0].mxu0
        %v3450 = vadd.f32 0.0, %v3449
        %v3451 = vpop.f32.mrb[0].mxu0
        %3452 = vmatprep.mubr.bf16.mxu0 0
        %3453 = vmatmul.mubr.bf16.gmra.mrb[0].mxu0 %v3276
        %v3454 = vpop.f32.mrb[0].mxu0
        %v3455 = vadd.f32 0.0, %v3454
        %v3456 = vpop.f32.mrb[0].mxu0
        %v3457 = vpop.f32.mrb[0].mxu0
        %v3458 = vadd.f32 0.0, %v3457
        %v3459 = vpop.f32.mrb[0].mxu0
        %3460 = vmatprep.mubr.bf16.mxu0 0
        %3461 = vmatmul.mubr.bf16.gmra.mrb[0].mxu0 %v3277
        %v3462 = vpop.f32.mrb[0].mxu0
        %v3463 = vadd.f32 0.0, %v3462
        %v3464 = vpop.f32.mrb[0].mxu0
        %v3465 = vpop.f32.mrb[0].mxu0
        %v3466 = vadd.f32 0.0, %v3465
        %v3467 = vpop.f32.mrb[0].mxu0
        %3468 = vmatprep.mubr.bf16.mxu0 0
        %3469 = vmatmul.mubr.bf16.gmra.mrb[0].mxu0 %v3278
        %v3470 = vpop.f32.mrb[0].mxu0
        %v3471 = vadd.f32 0.0, %v3470
        %v3472 = vpop.f32.mrb[0].mxu0
        %v3473 = vpop.f32.mrb[0].mxu0
        %v3474 = vadd.f32 0.0, %v3473
        %v3475 = vpop.f32.mrb[0].mxu0
        %3476 = vmatprep.mubr.bf16.mxu0 0
        %3477 = vmatmul.mubr.bf16.gmra.mrb[0].mxu0 %v3279
        %v3478 = vpop.f32.mrb[0].mxu0
        %v3479 = vadd.f32 0.0, %v3478
        %v3480 = vpop.f32.mrb[0].mxu0
        %v3481 = vpop.f32.mrb[0].mxu0
        %v3482 = vadd.f32 0.0, %v3481
        %v3483 = vpop.f32.mrb[0].mxu0
        %3484 = vmatprep.mubr.bf16.mxu0 0
        %3485 = vmatmul.mubr.bf16.gmra.mrb[0].mxu0 %v3280
        %v3486 = vpop.f32.mrb[0].mxu0
        %v3487 = vadd.f32 0.0, %v3486
        %v3488 = vpop.f32.mrb[0].mxu0
        %v3489 = vpop.f32.mrb[0].mxu0
        %v3490 = vadd.f32 0.0, %v3489
        %v3491 = vpop.f32.mrb[0].mxu0
        %3492 = vmatprep.mubr.bf16.mxu0 0
        %3493 = vmatmul.mubr.bf16.gmra.mrb[0].mxu0 %v3281
        %v3494 = vpop.f32.mrb[0].mxu0
        %v3495 = vadd.f32 0.0, %v3494
        %v3496 = vpop.f32.mrb[0].mxu0
        %v3497 = vpop.f32.mrb[0].mxu0
        %v3498 = vadd.f32 0.0, %v3497
        %v3499 = vpop.f32.mrb[0].mxu0
        %3500 = vmatprep.mubr.bf16.mxu0 0
        %3501 = vmatmul.mubr.bf16.gmra.mrb[0].mxu0 %v3282
        %v3502 = vpop.f32.mrb[0].mxu0
        %v3503 = vadd.f32 0.0, %v3502
        %v3504 = vpop.f32.mrb[0].mxu0
        %v3505 = vpop.f32.mrb[0].mxu0
        %v3506 = vadd.f32 0.0, %v3505
        %v3507 = vpop.f32.mrb[0].mxu0
        %3508 = vdwg.mxu0
        %v3525 = vunpack.c.l.b16 %v3219
        %v3526 = vunpack.c.l.b16 %v3220
        %v3527 = vunpack.c.l.b16 %v3221
        %v3528 = vunpack.c.l.b16 %v3222
        %v3529 = vunpack.c.l.b16 %v3223
        %v3530 = vunpack.c.l.b16 %v3224
        %v3531 = vunpack.c.l.b16 %v3225
        %v3532 = vunpack.c.l.b16 %v3226
        %v3533 = vunpack.c.l.b16 %v3227
        %v3534 = vunpack.c.l.b16 %v3228
        %v3535 = vunpack.c.l.b16 %v3229
        %v3536 = vunpack.c.l.b16 %v3230
        %v3537 = vunpack.c.l.b16 %v3231
        %v3538 = vunpack.c.l.b16 %v3232
        %v3539 = vunpack.c.l.b16 %v3233
        %v3540 = vunpack.c.l.b16 %v3234
        %v3541 = vpack.c.b16 %v3526, %v3525
        %v3542 = vpack.c.b16 %v3528, %v3527
        %v3543 = vpack.c.b16 %v3530, %v3529
        %v3544 = vpack.c.b16 %v3532, %v3531
        %v3545 = vpack.c.b16 %v3534, %v3533
        %v3546 = vpack.c.b16 %v3536, %v3535
        %v3547 = vpack.c.b16 %v3538, %v3537
        %v3548 = vpack.c.b16 %v3540, %v3539
        %3557 = vmatprep.subr.bf16.mxu0 0
        %3558 = vmatpush1.bf16.msra.mxu0 %v3541
        %3559 = vmatprep.subr.bf16.mxu0 0
        %3560 = vmatpush1.bf16.msra.mxu0 %v3542
        %3561 = vmatprep.subr.bf16.mxu0 0
        %3562 = vmatpush1.bf16.msra.mxu0 %v3543
        %3563 = vmatprep.subr.bf16.mxu0 0
        %3564 = vmatpush1.bf16.msra.mxu0 %v3544
        %3565 = vmatprep.subr.bf16.mxu0 0
        %3566 = vmatpush1.bf16.msra.mxu0 %v3545
        %3567 = vmatprep.subr.bf16.mxu0 0
        %3568 = vmatpush1.bf16.msra.mxu0 %v3546
        %3569 = vmatprep.subr.bf16.mxu0 0
        %3570 = vmatpush1.bf16.msra.mxu0 %v3547
        %3571 = vmatprep.subr.bf16.mxu0 0
        %3572 = vmatpush1.bf16.msra.mxu0 %v3548
        %3573 = vmatprep.subr.bf16.mxu0 0
        %3574 = vmatpush1.bf16.msra.mxu0 0
        %3575 = vmatprep.subr.bf16.mxu0 0
        %3576 = vmatpush1.bf16.msra.mxu0 0
        %3577 = vmatprep.subr.bf16.mxu0 0
        %3578 = vmatpush1.bf16.msra.mxu0 0
        %3579 = vmatprep.subr.bf16.mxu0 0
        %3580 = vmatpush1.bf16.msra.mxu0 0
        %3581 = vmatprep.subr.bf16.mxu0 0
        %3582 = vmatpush1.bf16.msra.mxu0 0
        %3583 = vmatprep.subr.bf16.mxu0 0
        %3584 = vmatpush1.bf16.msra.mxu0 0
        %3585 = vmatprep.subr.bf16.mxu0 0
        %3586 = vmatpush1.bf16.msra.mxu0 0
        %3587 = vmatprep.subr.bf16.mxu0 0
        %3588 = vmatpush1.bf16.msra.mxu0 0
        %3589 = vmatprep.mubr.bf16.mxu0 0
        %3590 = vmatmul.mubr.bf16.gmra.mrb[0].mxu0 %v3203
        %v3591 = vpop.f32.mrb[0].mxu0
        %v3592 = vadd.f32 %v3383, %v3591
        %v3593 = vpop.f32.mrb[0].mxu0
        %v3594 = vpop.f32.mrb[0].mxu0
        %v3595 = vadd.f32 %v3386, %v3594
        %v3596 = vpop.f32.mrb[0].mxu0
        %3597 = vmatprep.mubr.bf16.mxu0 0
        %3598 = vmatmul.mubr.bf16.gmra.mrb[0].mxu0 %v3204
        %v3599 = vpop.f32.mrb[0].mxu0
        %v3600 = vadd.f32 %v3391, %v3599
        %v3601 = vpop.f32.mrb[0].mxu0
        %v3602 = vpop.f32.mrb[0].mxu0
        %v3603 = vadd.f32 %v3394, %v3602
        %v3604 = vpop.f32.mrb[0].mxu0
        %3605 = vmatprep.mubr.bf16.mxu0 0
        %3606 = vmatmul.mubr.bf16.gmra.mrb[0].mxu0 %v3205
        %v3607 = vpop.f32.mrb[0].mxu0
        %v3608 = vadd.f32 %v3399, %v3607
        %v3609 = vpop.f32.mrb[0].mxu0
        %v3610 = vpop.f32.mrb[0].mxu0
        %v3611 = vadd.f32 %v3402, %v3610
        %v3612 = vpop.f32.mrb[0].mxu0
        %3613 = vmatprep.mubr.bf16.mxu0 0
        %3614 = vmatmul.mubr.bf16.gmra.mrb[0].mxu0 %v3206
        %v3615 = vpop.f32.mrb[0].mxu0
        %v3616 = vadd.f32 %v3407, %v3615
        %v3617 = vpop.f32.mrb[0].mxu0
        %v3618 = vpop.f32.mrb[0].mxu0
        %v3619 = vadd.f32 %v3410, %v3618
        %v3620 = vpop.f32.mrb[0].mxu0
        %3621 = vmatprep.mubr.bf16.mxu0 0
        %3622 = vmatmul.mubr.bf16.gmra.mrb[0].mxu0 %v3207
        %v3623 = vpop.f32.mrb[0].mxu0
        %v3624 = vadd.f32 %v3415, %v3623
        %v3625 = vpop.f32.mrb[0].mxu0
        %v3626 = vpop.f32.mrb[0].mxu0
        %v3627 = vadd.f32 %v3418, %v3626
        %v3628 = vpop.f32.mrb[0].mxu0
        %3629 = vmatprep.mubr.bf16.mxu0 0
        %3630 = vmatmul.mubr.bf16.gmra.mrb[0].mxu0 %v3208
        %v3631 = vpop.f32.mrb[0].mxu0
        %v3632 = vadd.f32 %v3423, %v3631
        %v3633 = vpop.f32.mrb[0].mxu0
        %v3634 = vpop.f32.mrb[0].mxu0
        %v3635 = vadd.f32 %v3426, %v3634
        %v3636 = vpop.f32.mrb[0].mxu0
        %3637 = vmatprep.mubr.bf16.mxu0 0
        %3638 = vmatmul.mubr.bf16.gmra.mrb[0].mxu0 %v3209
        %v3639 = vpop.f32.mrb[0].mxu0
        %v3640 = vadd.f32 %v3431, %v3639
        %v3641 = vpop.f32.mrb[0].mxu0
        %v3642 = vpop.f32.mrb[0].mxu0
        %v3643 = vadd.f32 %v3434, %v3642
        %v3644 = vpop.f32.mrb[0].mxu0
        %3645 = vmatprep.mubr.bf16.mxu0 0
        %3646 = vmatmul.mubr.bf16.gmra.mrb[0].mxu0 %v3210
        %v3647 = vpop.f32.mrb[0].mxu0
        %v3648 = vadd.f32 %v3439, %v3647
        %v3649 = vpop.f32.mrb[0].mxu0
        %v3650 = vpop.f32.mrb[0].mxu0
        %v3651 = vadd.f32 %v3442, %v3650
        %v3652 = vpop.f32.mrb[0].mxu0
        %3653 = vmatprep.mubr.bf16.mxu0 0
        %3654 = vmatmul.mubr.bf16.gmra.mrb[0].mxu0 %v3211
        %v3655 = vpop.f32.mrb[0].mxu0
        %v3656 = vadd.f32 %v3447, %v3655
        %v3657 = vpop.f32.mrb[0].mxu0
        %v3658 = vpop.f32.mrb[0].mxu0
        %v3659 = vadd.f32 %v3450, %v3658
        %v3660 = vpop.f32.mrb[0].mxu0
        %3661 = vmatprep.mubr.bf16.mxu0 0
        %3662 = vmatmul.mubr.bf16.gmra.mrb[0].mxu0 %v3212
        %v3663 = vpop.f32.mrb[0].mxu0
        %v3664 = vadd.f32 %v3455, %v3663
        %v3665 = vpop.f32.mrb[0].mxu0
        %v3666 = vpop.f32.mrb[0].mxu0
        %v3667 = vadd.f32 %v3458, %v3666
        %v3668 = vpop.f32.mrb[0].mxu0
        %3669 = vmatprep.mubr.bf16.mxu0 0
        %3670 = vmatmul.mubr.bf16.gmra.mrb[0].mxu0 %v3213
        %v3671 = vpop.f32.mrb[0].mxu0
        %v3672 = vadd.f32 %v3463, %v3671
        %v3673 = vpop.f32.mrb[0].mxu0
        %v3674 = vpop.f32.mrb[0].mxu0
        %v3675 = vadd.f32 %v3466, %v3674
        %v3676 = vpop.f32.mrb[0].mxu0
        %3677 = vmatprep.mubr.bf16.mxu0 0
        %3678 = vmatmul.mubr.bf16.gmra.mrb[0].mxu0 %v3214
        %v3679 = vpop.f32.mrb[0].mxu0
        %v3680 = vadd.f32 %v3471, %v3679
        %v3681 = vpop.f32.mrb[0].mxu0
        %v3682 = vpop.f32.mrb[0].mxu0
        %v3683 = vadd.f32 %v3474, %v3682
        %v3684 = vpop.f32.mrb[0].mxu0
        %3685 = vmatprep.mubr.bf16.mxu0 0
        %3686 = vmatmul.mubr.bf16.gmra.mrb[0].mxu0 %v3215
        %v3687 = vpop.f32.mrb[0].mxu0
        %v3688 = vadd.f32 %v3479, %v3687
        %v3689 = vpop.f32.mrb[0].mxu0
        %v3690 = vpop.f32.mrb[0].mxu0
        %v3691 = vadd.f32 %v3482, %v3690
        %v3692 = vpop.f32.mrb[0].mxu0
        %3693 = vmatprep.mubr.bf16.mxu0 0
        %3694 = vmatmul.mubr.bf16.gmra.mrb[0].mxu0 %v3216
        %v3695 = vpop.f32.mrb[0].mxu0
        %v3696 = vadd.f32 %v3487, %v3695
        %v3697 = vpop.f32.mrb[0].mxu0
        %v3698 = vpop.f32.mrb[0].mxu0
        %v3699 = vadd.f32 %v3490, %v3698
        %v3700 = vpop.f32.mrb[0].mxu0
        %3701 = vmatprep.mubr.bf16.mxu0 0
        %3702 = vmatmul.mubr.bf16.gmra.mrb[0].mxu0 %v3217
        %v3703 = vpop.f32.mrb[0].mxu0
        %v3704 = vadd.f32 %v3495, %v3703
        %v3705 = vpop.f32.mrb[0].mxu0
        %v3706 = vpop.f32.mrb[0].mxu0
        %v3707 = vadd.f32 %v3498, %v3706
        %v3708 = vpop.f32.mrb[0].mxu0
        %3709 = vmatprep.mubr.bf16.mxu0 0
        %3710 = vmatmul.mubr.bf16.gmra.mrb[0].mxu0 %v3218
        %v3711 = vpop.f32.mrb[0].mxu0
        %v3712 = vadd.f32 %v3503, %v3711
        %v3713 = vpop.f32.mrb[0].mxu0
        %v3714 = vpop.f32.mrb[0].mxu0
        %v3715 = vadd.f32 %v3506, %v3714
        %v3716 = vpop.f32.mrb[0].mxu0
        %3717 = vdwg.mxu0
        %v3718 = vld [vmem:[#allocation2 + $0x2] sm:$0xff]
        %v3719 = vld [vmem:[#allocation2 + $0xa] sm:$0xff]
        %v3720 = vld [vmem:[#allocation2 + $0x1a] sm:$0xff]
        %v3721 = vld [vmem:[#allocation2 + $0x22] sm:$0xff]
        %v3722 = vld [vmem:[#allocation2 + $0x32] sm:$0xff]
        %v3723 = vld [vmem:[#allocation2 + $0x3a] sm:$0xff]
        %v3724 = vld [vmem:[#allocation2 + $0x4a] sm:$0xff]
        %v3725 = vld [vmem:[#allocation2 + $0x52] sm:$0xff]
        %v3726 = vld [vmem:[#allocation2 + $0x62] sm:$0xff]
        %v3727 = vld [vmem:[#allocation2 + $0x6a] sm:$0xff]
        %v3728 = vld [vmem:[#allocation2 + $0x7a] sm:$0xff]
        %v3729 = vld [vmem:[#allocation2 + $0x82] sm:$0xff]
        %v3730 = vld [vmem:[#allocation2 + $0x92] sm:$0xff]
        %v3731 = vld [vmem:[#allocation2 + $0x9a] sm:$0xff]
        %v3732 = vld [vmem:[#allocation2 + $0xaa] sm:$0xff]
        %v3733 = vld [vmem:[#allocation2 + $0xb2] sm:$0xff]
        %v3734 = vld [vmem:[#allocation2 + $0xc2] sm:$0xff]
        %v3735 = vld [vmem:[#allocation2 + $0xca] sm:$0xff]
        %v3736 = vld [vmem:[#allocation2 + $0xda] sm:$0xff]
        %v3737 = vld [vmem:[#allocation2 + $0xe2] sm:$0xff]
        %v3738 = vld [vmem:[#allocation2 + $0xf2] sm:$0xff]
        %v3739 = vld [vmem:[#allocation2 + $0xfa] sm:$0xff]
        %v3740 = vld [vmem:[#allocation2 + $0x10a] sm:$0xff]
        %v3741 = vld [vmem:[#allocation2 + $0x112] sm:$0xff]
        %v3742 = vld [vmem:[#allocation2 + $0x122] sm:$0xff]
        %v3743 = vld [vmem:[#allocation2 + $0x12a] sm:$0xff]
        %v3744 = vld [vmem:[#allocation2 + $0x13a] sm:$0xff]
        %v3745 = vld [vmem:[#allocation2 + $0x142] sm:$0xff]
        %v3746 = vld [vmem:[#allocation2 + $0x152] sm:$0xff]
        %v3747 = vld [vmem:[#allocation2 + $0x15a] sm:$0xff]
        %v3748 = vld [vmem:[#allocation2 + $0x16a] sm:$0xff]
        %v3749 = vld [vmem:[#allocation2 + $0x172] sm:$0xff]
        %v3750 = vpack.c.bf16 %v3719, %v3718
        %v3751 = vpack.c.bf16 %v3721, %v3720
        %v3752 = vpack.c.bf16 %v3723, %v3722
        %v3753 = vpack.c.bf16 %v3725, %v3724
        %v3754 = vpack.c.bf16 %v3727, %v3726
        %v3755 = vpack.c.bf16 %v3729, %v3728
        %v3756 = vpack.c.bf16 %v3731, %v3730
        %v3757 = vpack.c.bf16 %v3733, %v3732
        %v3758 = vpack.c.bf16 %v3735, %v3734
        %v3759 = vpack.c.bf16 %v3737, %v3736
        %v3760 = vpack.c.bf16 %v3739, %v3738
        %v3761 = vpack.c.bf16 %v3741, %v3740
        %v3762 = vpack.c.bf16 %v3743, %v3742
        %v3763 = vpack.c.bf16 %v3745, %v3744
        %v3764 = vpack.c.bf16 %v3747, %v3746
        %v3765 = vpack.c.bf16 %v3749, %v3748
        %s3766 = scalar_lea.vmem [#allocation3], 128
        %v3767 = vld [vmem:[%s3766] sm:$0xf]
        %v3768 = vld [vmem:[%s3766 + $0x4] sm:$0xf]
        %v3769 = vld [vmem:[%s3766 + $0x8] sm:$0xf]
        %v3770 = vld [vmem:[%s3766 + $0xc] sm:$0xf]
        %v3771 = vld [vmem:[%s3766 + $0x10] sm:$0xf]
        %v3772 = vld [vmem:[%s3766 + $0x14] sm:$0xf]
        %v3773 = vld [vmem:[%s3766 + $0x18] sm:$0xf]
        %v3774 = vld [vmem:[%s3766 + $0x1c] sm:$0xf]
        %v3775 = vld [vmem:[%s3766 + $0x20] sm:$0xf]
        %v3776 = vld [vmem:[%s3766 + $0x24] sm:$0xf]
        %v3777 = vld [vmem:[%s3766 + $0x28] sm:$0xf]
        %v3778 = vld [vmem:[%s3766 + $0x2c] sm:$0xf]
        %v3779 = vld [vmem:[%s3766 + $0x30] sm:$0xf]
        %v3780 = vld [vmem:[%s3766 + $0x34] sm:$0xf]
        %v3781 = vld [vmem:[%s3766 + $0x38] sm:$0xf]
        %v3782 = vld [vmem:[%s3766 + $0x3c] sm:$0xf]
        %v3799 = vunpack.c.l.b16 %v3767
        %v3800 = vunpack.c.l.b16 %v3768
        %v3801 = vunpack.c.l.b16 %v3769
        %v3802 = vunpack.c.l.b16 %v3770
        %v3803 = vunpack.c.l.b16 %v3771
        %v3804 = vunpack.c.l.b16 %v3772
        %v3805 = vunpack.c.l.b16 %v3773
        %v3806 = vunpack.c.l.b16 %v3774
        %v3807 = vunpack.c.l.b16 %v3775
        %v3808 = vunpack.c.l.b16 %v3776
        %v3809 = vunpack.c.l.b16 %v3777
        %v3810 = vunpack.c.l.b16 %v3778
        %v3811 = vunpack.c.l.b16 %v3779
        %v3812 = vunpack.c.l.b16 %v3780
        %v3813 = vunpack.c.l.b16 %v3781
        %v3814 = vunpack.c.l.b16 %v3782
        %v3815 = vpack.c.b16 %v3800, %v3799
        %v3816 = vpack.c.b16 %v3802, %v3801
        %v3817 = vpack.c.b16 %v3804, %v3803
        %v3818 = vpack.c.b16 %v3806, %v3805
        %v3819 = vpack.c.b16 %v3808, %v3807
        %v3820 = vpack.c.b16 %v3810, %v3809
        %v3821 = vpack.c.b16 %v3812, %v3811
        %v3822 = vpack.c.b16 %v3814, %v3813
        %3831 = vmatprep.subr.bf16.mxu0 0
        %3832 = vmatpush1.bf16.msra.mxu0 %v3815
        %3833 = vmatprep.subr.bf16.mxu0 0
        %3834 = vmatpush1.bf16.msra.mxu0 %v3816
        %3835 = vmatprep.subr.bf16.mxu0 0
        %3836 = vmatpush1.bf16.msra.mxu0 %v3817
        %3837 = vmatprep.subr.bf16.mxu0 0
        %3838 = vmatpush1.bf16.msra.mxu0 %v3818
        %3839 = vmatprep.subr.bf16.mxu0 0
        %3840 = vmatpush1.bf16.msra.mxu0 %v3819
        %3841 = vmatprep.subr.bf16.mxu0 0
        %3842 = vmatpush1.bf16.msra.mxu0 %v3820
        %3843 = vmatprep.subr.bf16.mxu0 0
        %3844 = vmatpush1.bf16.msra.mxu0 %v3821
        %3845 = vmatprep.subr.bf16.mxu0 0
        %3846 = vmatpush1.bf16.msra.mxu0 %v3822
        %3847 = vmatprep.subr.bf16.mxu0 0
        %3848 = vmatpush1.bf16.msra.mxu0 0
        %3849 = vmatprep.subr.bf16.mxu0 0
        %3850 = vmatpush1.bf16.msra.mxu0 0
        %3851 = vmatprep.subr.bf16.mxu0 0
        %3852 = vmatpush1.bf16.msra.mxu0 0
        %3853 = vmatprep.subr.bf16.mxu0 0
        %3854 = vmatpush1.bf16.msra.mxu0 0
        %3855 = vmatprep.subr.bf16.mxu0 0
        %3856 = vmatpush1.bf16.msra.mxu0 0
        %3857 = vmatprep.subr.bf16.mxu0 0
        %3858 = vmatpush1.bf16.msra.mxu0 0
        %3859 = vmatprep.subr.bf16.mxu0 0
        %3860 = vmatpush1.bf16.msra.mxu0 0
        %3861 = vmatprep.subr.bf16.mxu0 0
        %3862 = vmatpush1.bf16.msra.mxu0 0
        %3863 = vmatprep.mubr.bf16.mxu0 0
        %3864 = vmatmul.mubr.bf16.gmra.mrb[0].mxu0 %v3750
        %v3865 = vpop.f32.mrb[0].mxu0
        %v3866 = vadd.f32 0.0, %v3865
        %v3867 = vpop.f32.mrb[0].mxu0
        %v3868 = vpop.f32.mrb[0].mxu0
        %v3869 = vadd.f32 0.0, %v3868
        %v3870 = vpop.f32.mrb[0].mxu0
        %3871 = vmatprep.mubr.bf16.mxu0 0
        %3872 = vmatmul.mubr.bf16.gmra.mrb[0].mxu0 %v3751
        %v3873 = vpop.f32.mrb[0].mxu0
        %v3874 = vadd.f32 0.0, %v3873
        %v3875 = vpop.f32.mrb[0].mxu0
        %v3876 = vpop.f32.mrb[0].mxu0
        %v3877 = vadd.f32 0.0, %v3876
        %v3878 = vpop.f32.mrb[0].mxu0
        %3879 = vmatprep.mubr.bf16.mxu0 0
        %3880 = vmatmul.mubr.bf16.gmra.mrb[0].mxu0 %v3752
        %v3881 = vpop.f32.mrb[0].mxu0
        %v3882 = vadd.f32 0.0, %v3881
        %v3883 = vpop.f32.mrb[0].mxu0
        %v3884 = vpop.f32.mrb[0].mxu0
        %v3885 = vadd.f32 0.0, %v3884
        %v3886 = vpop.f32.mrb[0].mxu0
        %3887 = vmatprep.mubr.bf16.mxu0 0
        %3888 = vmatmul.mubr.bf16.gmra.mrb[0].mxu0 %v3753
        %v3889 = vpop.f32.mrb[0].mxu0
        %v3890 = vadd.f32 0.0, %v3889
        %v3891 = vpop.f32.mrb[0].mxu0
        %v3892 = vpop.f32.mrb[0].mxu0
        %v3893 = vadd.f32 0.0, %v3892
        %v3894 = vpop.f32.mrb[0].mxu0
        %3895 = vmatprep.mubr.bf16.mxu0 0
        %3896 = vmatmul.mubr.bf16.gmra.mrb[0].mxu0 %v3754
        %v3897 = vpop.f32.mrb[0].mxu0
        %v3898 = vadd.f32 0.0, %v3897
        %v3899 = vpop.f32.mrb[0].mxu0
        %v3900 = vpop.f32.mrb[0].mxu0
        %v3901 = vadd.f32 0.0, %v3900
        %v3902 = vpop.f32.mrb[0].mxu0
        %3903 = vmatprep.mubr.bf16.mxu0 0
        %3904 = vmatmul.mubr.bf16.gmra.mrb[0].mxu0 %v3755
        %v3905 = vpop.f32.mrb[0].mxu0
        %v3906 = vadd.f32 0.0, %v3905
        %v3907 = vpop.f32.mrb[0].mxu0
        %v3908 = vpop.f32.mrb[0].mxu0
        %v3909 = vadd.f32 0.0, %v3908
        %v3910 = vpop.f32.mrb[0].mxu0
        %3911 = vmatprep.mubr.bf16.mxu0 0
        %3912 = vmatmul.mubr.bf16.gmra.mrb[0].mxu0 %v3756
        %v3913 = vpop.f32.mrb[0].mxu0
        %v3914 = vadd.f32 0.0, %v3913
        %v3915 = vpop.f32.mrb[0].mxu0
        %v3916 = vpop.f32.mrb[0].mxu0
        %v3917 = vadd.f32 0.0, %v3916
        %v3918 = vpop.f32.mrb[0].mxu0
        %3919 = vmatprep.mubr.bf16.mxu0 0
        %3920 = vmatmul.mubr.bf16.gmra.mrb[0].mxu0 %v3757
        %v3921 = vpop.f32.mrb[0].mxu0
        %v3922 = vadd.f32 0.0, %v3921
        %v3923 = vpop.f32.mrb[0].mxu0
        %v3924 = vpop.f32.mrb[0].mxu0
        %v3925 = vadd.f32 0.0, %v3924
        %v3926 = vpop.f32.mrb[0].mxu0
        %3927 = vmatprep.mubr.bf16.mxu0 0
        %3928 = vmatmul.mubr.bf16.gmra.mrb[0].mxu0 %v3758
        %v3929 = vpop.f32.mrb[0].mxu0
        %v3930 = vadd.f32 0.0, %v3929
        %v3931 = vpop.f32.mrb[0].mxu0
        %v3932 = vpop.f32.mrb[0].mxu0
        %v3933 = vadd.f32 0.0, %v3932
        %v3934 = vpop.f32.mrb[0].mxu0
        %3935 = vmatprep.mubr.bf16.mxu0 0
        %3936 = vmatmul.mubr.bf16.gmra.mrb[0].mxu0 %v3759
        %v3937 = vpop.f32.mrb[0].mxu0
        %v3938 = vadd.f32 0.0, %v3937
        %v3939 = vpop.f32.mrb[0].mxu0
        %v3940 = vpop.f32.mrb[0].mxu0
        %v3941 = vadd.f32 0.0, %v3940
        %v3942 = vpop.f32.mrb[0].mxu0
        %3943 = vmatprep.mubr.bf16.mxu0 0
        %3944 = vmatmul.mubr.bf16.gmra.mrb[0].mxu0 %v3760
        %v3945 = vpop.f32.mrb[0].mxu0
        %v3946 = vadd.f32 0.0, %v3945
        %v3947 = vpop.f32.mrb[0].mxu0
        %v3948 = vpop.f32.mrb[0].mxu0
        %v3949 = vadd.f32 0.0, %v3948
        %v3950 = vpop.f32.mrb[0].mxu0
        %3951 = vmatprep.mubr.bf16.mxu0 0
        %3952 = vmatmul.mubr.bf16.gmra.mrb[0].mxu0 %v3761
        %v3953 = vpop.f32.mrb[0].mxu0
        %v3954 = vadd.f32 0.0, %v3953
        %v3955 = vpop.f32.mrb[0].mxu0
        %v3956 = vpop.f32.mrb[0].mxu0
        %v3957 = vadd.f32 0.0, %v3956
        %v3958 = vpop.f32.mrb[0].mxu0
        %3959 = vmatprep.mubr.bf16.mxu0 0
        %3960 = vmatmul.mubr.bf16.gmra.mrb[0].mxu0 %v3762
        %v3961 = vpop.f32.mrb[0].mxu0
        %v3962 = vadd.f32 0.0, %v3961
        %v3963 = vpop.f32.mrb[0].mxu0
        %v3964 = vpop.f32.mrb[0].mxu0
        %v3965 = vadd.f32 0.0, %v3964
        %v3966 = vpop.f32.mrb[0].mxu0
        %3967 = vmatprep.mubr.bf16.mxu0 0
        %3968 = vmatmul.mubr.bf16.gmra.mrb[0].mxu0 %v3763
        %v3969 = vpop.f32.mrb[0].mxu0
        %v3970 = vadd.f32 0.0, %v3969
        %v3971 = vpop.f32.mrb[0].mxu0
        %v3972 = vpop.f32.mrb[0].mxu0
        %v3973 = vadd.f32 0.0, %v3972
        %v3974 = vpop.f32.mrb[0].mxu0
        %3975 = vmatprep.mubr.bf16.mxu0 0
        %3976 = vmatmul.mubr.bf16.gmra.mrb[0].mxu0 %v3764
        %v3977 = vpop.f32.mrb[0].mxu0
        %v3978 = vadd.f32 0.0, %v3977
        %v3979 = vpop.f32.mrb[0].mxu0
        %v3980 = vpop.f32.mrb[0].mxu0
        %v3981 = vadd.f32 0.0, %v3980
        %v3982 = vpop.f32.mrb[0].mxu0
        %3983 = vmatprep.mubr.bf16.mxu0 0
        %3984 = vmatmul.mubr.bf16.gmra.mrb[0].mxu0 %v3765
        %v3985 = vpop.f32.mrb[0].mxu0
        %v3986 = vadd.f32 0.0, %v3985
        %v3987 = vpop.f32.mrb[0].mxu0
        %v3988 = vpop.f32.mrb[0].mxu0
        %v3989 = vadd.f32 0.0, %v3988
        %v3990 = vpop.f32.mrb[0].mxu0
        %3991 = vdwg.mxu0
        %v3992 = vadd.f32 %v3592, %v3866
        %v3993 = vadd.f32 %v3595, %v3869
        %v3994 = vadd.f32 %v3600, %v3874
        %v3995 = vadd.f32 %v3603, %v3877
        %v3996 = vadd.f32 %v3608, %v3882
        %v3997 = vadd.f32 %v3611, %v3885
        %v3998 = vadd.f32 %v3616, %v3890
        %v3999 = vadd.f32 %v3619, %v3893
        %v4000 = vadd.f32 %v3624, %v3898
        %v4001 = vadd.f32 %v3627, %v3901
        %v4002 = vadd.f32 %v3632, %v3906
        %v4003 = vadd.f32 %v3635, %v3909
        %v4004 = vadd.f32 %v3640, %v3914
        %v4005 = vadd.f32 %v3643, %v3917
        %v4006 = vadd.f32 %v3648, %v3922
        %v4007 = vadd.f32 %v3651, %v3925
        %v4008 = vadd.f32 %v3656, %v3930
        %v4009 = vadd.f32 %v3659, %v3933
        %v4010 = vadd.f32 %v3664, %v3938
        %v4011 = vadd.f32 %v3667, %v3941
        %v4012 = vadd.f32 %v3672, %v3946
        %v4013 = vadd.f32 %v3675, %v3949
        %v4014 = vadd.f32 %v3680, %v3954
        %v4015 = vadd.f32 %v3683, %v3957
        %v4016 = vadd.f32 %v3688, %v3962
        %v4017 = vadd.f32 %v3691, %v3965
        %v4018 = vadd.f32 %v3696, %v3970
        %v4019 = vadd.f32 %v3699, %v3973
        %v4020 = vadd.f32 %v3704, %v3978
        %v4021 = vadd.f32 %v3707, %v3981
        %v4022 = vadd.f32 %v3712, %v3986
        %v4023 = vadd.f32 %v3715, %v3989
        %v4024 = vld [vmem:[%s248] sm:$0xff]
        %v4025 = vld [vmem:[%s248 + $0x8] sm:$0xff]
        %v4026 = vld [vmem:[%s248 + $0x18] sm:$0xff]
        %v4027 = vld [vmem:[%s248 + $0x20] sm:$0xff]
        %v4028 = vld [vmem:[%s248 + $0x30] sm:$0xff]
        %v4029 = vld [vmem:[%s248 + $0x38] sm:$0xff]
        %v4030 = vld [vmem:[%s248 + $0x48] sm:$0xff]
        %v4031 = vld [vmem:[%s248 + $0x50] sm:$0xff]
        %v4032 = vld [vmem:[%s248 + $0x60] sm:$0xff]
        %v4033 = vld [vmem:[%s248 + $0x68] sm:$0xff]
        %v4034 = vld [vmem:[%s248 + $0x78] sm:$0xff]
        %v4035 = vld [vmem:[%s248 + $0x80] sm:$0xff]
        %v4036 = vld [vmem:[%s248 + $0x90] sm:$0xff]
        %v4037 = vld [vmem:[%s248 + $0x98] sm:$0xff]
        %v4038 = vld [vmem:[%s248 + $0xa8] sm:$0xff]
        %v4039 = vld [vmem:[%s248 + $0xb0] sm:$0xff]
        %v4040 = vld [vmem:[%s248 + $0xc0] sm:$0xff]
        %v4041 = vld [vmem:[%s248 + $0xc8] sm:$0xff]
        %v4042 = vld [vmem:[%s248 + $0xd8] sm:$0xff]
        %v4043 = vld [vmem:[%s248 + $0xe0] sm:$0xff]
        %v4044 = vld [vmem:[%s248 + $0xf0] sm:$0xff]
        %v4045 = vld [vmem:[%s248 + $0xf8] sm:$0xff]
        %v4046 = vld [vmem:[%s248 + $0x108] sm:$0xff]
        %v4047 = vld [vmem:[%s248 + $0x110] sm:$0xff]
        %v4048 = vld [vmem:[%s248 + $0x120] sm:$0xff]
        %v4049 = vld [vmem:[%s248 + $0x128] sm:$0xff]
        %v4050 = vld [vmem:[%s248 + $0x138] sm:$0xff]
        %v4051 = vld [vmem:[%s248 + $0x140] sm:$0xff]
        %v4052 = vld [vmem:[%s248 + $0x150] sm:$0xff]
        %v4053 = vld [vmem:[%s248 + $0x158] sm:$0xff]
        %v4054 = vld [vmem:[%s248 + $0x168] sm:$0xff]
        %v4055 = vld [vmem:[%s248 + $0x170] sm:$0xff]
        %v4056 = vpack.c.bf16 %v4025, %v4024
        %v4057 = vpack.c.bf16 %v4027, %v4026
        %v4058 = vpack.c.bf16 %v4029, %v4028
        %v4059 = vpack.c.bf16 %v4031, %v4030
        %v4060 = vpack.c.bf16 %v4033, %v4032
        %v4061 = vpack.c.bf16 %v4035, %v4034
        %v4062 = vpack.c.bf16 %v4037, %v4036
        %v4063 = vpack.c.bf16 %v4039, %v4038
        %v4064 = vpack.c.bf16 %v4041, %v4040
        %v4065 = vpack.c.bf16 %v4043, %v4042
        %v4066 = vpack.c.bf16 %v4045, %v4044
        %v4067 = vpack.c.bf16 %v4047, %v4046
        %v4068 = vpack.c.bf16 %v4049, %v4048
        %v4069 = vpack.c.bf16 %v4051, %v4050
        %v4070 = vpack.c.bf16 %v4053, %v4052
        %v4071 = vpack.c.bf16 %v4055, %v4054
        %s4072 = scalar_lea.vmem [#allocation3], 192
        %v4073 = vld [vmem:[%s4072] sm:$0xf]
        %v4074 = vld [vmem:[%s4072 + $0x4] sm:$0xf]
        %v4075 = vld [vmem:[%s4072 + $0x8] sm:$0xf]
        %v4076 = vld [vmem:[%s4072 + $0xc] sm:$0xf]
        %v4077 = vld [vmem:[%s4072 + $0x10] sm:$0xf]
        %v4078 = vld [vmem:[%s4072 + $0x14] sm:$0xf]
        %v4079 = vld [vmem:[%s4072 + $0x18] sm:$0xf]
        %v4080 = vld [vmem:[%s4072 + $0x1c] sm:$0xf]
        %v4081 = vld [vmem:[%s4072 + $0x20] sm:$0xf]
        %v4082 = vld [vmem:[%s4072 + $0x24] sm:$0xf]
        %v4083 = vld [vmem:[%s4072 + $0x28] sm:$0xf]
        %v4084 = vld [vmem:[%s4072 + $0x2c] sm:$0xf]
        %v4085 = vld [vmem:[%s4072 + $0x30] sm:$0xf]
        %v4086 = vld [vmem:[%s4072 + $0x34] sm:$0xf]
        %v4087 = vld [vmem:[%s4072 + $0x38] sm:$0xf]
        %v4088 = vld [vmem:[%s4072 + $0x3c] sm:$0xf]
        %v4105 = vunpack.c.l.b16 %v4073
        %v4106 = vunpack.c.l.b16 %v4074
        %v4107 = vunpack.c.l.b16 %v4075
        %v4108 = vunpack.c.l.b16 %v4076
        %v4109 = vunpack.c.l.b16 %v4077
        %v4110 = vunpack.c.l.b16 %v4078
        %v4111 = vunpack.c.l.b16 %v4079
        %v4112 = vunpack.c.l.b16 %v4080
        %v4113 = vunpack.c.l.b16 %v4081
        %v4114 = vunpack.c.l.b16 %v4082
        %v4115 = vunpack.c.l.b16 %v4083
        %v4116 = vunpack.c.l.b16 %v4084
        %v4117 = vunpack.c.l.b16 %v4085
        %v4118 = vunpack.c.l.b16 %v4086
        %v4119 = vunpack.c.l.b16 %v4087
        %v4120 = vunpack.c.l.b16 %v4088
        %v4121 = vpack.c.b16 %v4106, %v4105
        %v4122 = vpack.c.b16 %v4108, %v4107
        %v4123 = vpack.c.b16 %v4110, %v4109
        %v4124 = vpack.c.b16 %v4112, %v4111
        %v4125 = vpack.c.b16 %v4114, %v4113
        %v4126 = vpack.c.b16 %v4116, %v4115
        %v4127 = vpack.c.b16 %v4118, %v4117
        %v4128 = vpack.c.b16 %v4120, %v4119
        %4137 = vmatprep.subr.bf16.mxu0 0
        %4138 = vmatpush1.bf16.msra.mxu0 %v4121
        %4139 = vmatprep.subr.bf16.mxu0 0
        %4140 = vmatpush1.bf16.msra.mxu0 %v4122
        %4141 = vmatprep.subr.bf16.mxu0 0
        %4142 = vmatpush1.bf16.msra.mxu0 %v4123
        %4143 = vmatprep.subr.bf16.mxu0 0
        %4144 = vmatpush1.bf16.msra.mxu0 %v4124
        %4145 = vmatprep.subr.bf16.mxu0 0
        %4146 = vmatpush1.bf16.msra.mxu0 %v4125
        %4147 = vmatprep.subr.bf16.mxu0 0
        %4148 = vmatpush1.bf16.msra.mxu0 %v4126
        %4149 = vmatprep.subr.bf16.mxu0 0
        %4150 = vmatpush1.bf16.msra.mxu0 %v4127
        %4151 = vmatprep.subr.bf16.mxu0 0
        %4152 = vmatpush1.bf16.msra.mxu0 %v4128
        %4153 = vmatprep.subr.bf16.mxu0 0
        %4154 = vmatpush1.bf16.msra.mxu0 0
        %4155 = vmatprep.subr.bf16.mxu0 0
        %4156 = vmatpush1.bf16.msra.mxu0 0
        %4157 = vmatprep.subr.bf16.mxu0 0
        %4158 = vmatpush1.bf16.msra.mxu0 0
        %4159 = vmatprep.subr.bf16.mxu0 0
        %4160 = vmatpush1.bf16.msra.mxu0 0
        %4161 = vmatprep.subr.bf16.mxu0 0
        %4162 = vmatpush1.bf16.msra.mxu0 0
        %4163 = vmatprep.subr.bf16.mxu0 0
        %4164 = vmatpush1.bf16.msra.mxu0 0
        %4165 = vmatprep.subr.bf16.mxu0 0
        %4166 = vmatpush1.bf16.msra.mxu0 0
        %4167 = vmatprep.subr.bf16.mxu0 0
        %4168 = vmatpush1.bf16.msra.mxu0 0
        %4169 = vmatprep.mubr.bf16.mxu0 0
        %4170 = vmatmul.mubr.bf16.gmra.mrb[0].mxu0 %v4056
        %v4171 = vpop.f32.mrb[0].mxu0
        %v4172 = vadd.f32 0.0, %v4171
        %v4173 = vpop.f32.mrb[0].mxu0
        %v4174 = vpop.f32.mrb[0].mxu0
        %v4175 = vadd.f32 0.0, %v4174
        %v4176 = vpop.f32.mrb[0].mxu0
        %4177 = vmatprep.mubr.bf16.mxu0 0
        %4178 = vmatmul.mubr.bf16.gmra.mrb[0].mxu0 %v4057
        %v4179 = vpop.f32.mrb[0].mxu0
        %v4180 = vadd.f32 0.0, %v4179
        %v4181 = vpop.f32.mrb[0].mxu0
        %v4182 = vpop.f32.mrb[0].mxu0
        %v4183 = vadd.f32 0.0, %v4182
        %v4184 = vpop.f32.mrb[0].mxu0
        %4185 = vmatprep.mubr.bf16.mxu0 0
        %4186 = vmatmul.mubr.bf16.gmra.mrb[0].mxu0 %v4058
        %v4187 = vpop.f32.mrb[0].mxu0
        %v4188 = vadd.f32 0.0, %v4187
        %v4189 = vpop.f32.mrb[0].mxu0
        %v4190 = vpop.f32.mrb[0].mxu0
        %v4191 = vadd.f32 0.0, %v4190
        %v4192 = vpop.f32.mrb[0].mxu0
        %4193 = vmatprep.mubr.bf16.mxu0 0
        %4194 = vmatmul.mubr.bf16.gmra.mrb[0].mxu0 %v4059
        %v4195 = vpop.f32.mrb[0].mxu0
        %v4196 = vadd.f32 0.0, %v4195
        %v4197 = vpop.f32.mrb[0].mxu0
        %v4198 = vpop.f32.mrb[0].mxu0
        %v4199 = vadd.f32 0.0, %v4198
        %v4200 = vpop.f32.mrb[0].mxu0
        %4201 = vmatprep.mubr.bf16.mxu0 0
        %4202 = vmatmul.mubr.bf16.gmra.mrb[0].mxu0 %v4060
        %v4203 = vpop.f32.mrb[0].mxu0
        %v4204 = vadd.f32 0.0, %v4203
        %v4205 = vpop.f32.mrb[0].mxu0
        %v4206 = vpop.f32.mrb[0].mxu0
        %v4207 = vadd.f32 0.0, %v4206
        %v4208 = vpop.f32.mrb[0].mxu0
        %4209 = vmatprep.mubr.bf16.mxu0 0
        %4210 = vmatmul.mubr.bf16.gmra.mrb[0].mxu0 %v4061
        %v4211 = vpop.f32.mrb[0].mxu0
        %v4212 = vadd.f32 0.0, %v4211
        %v4213 = vpop.f32.mrb[0].mxu0
        %v4214 = vpop.f32.mrb[0].mxu0
        %v4215 = vadd.f32 0.0, %v4214
        %v4216 = vpop.f32.mrb[0].mxu0
        %4217 = vmatprep.mubr.bf16.mxu0 0
        %4218 = vmatmul.mubr.bf16.gmra.mrb[0].mxu0 %v4062
        %v4219 = vpop.f32.mrb[0].mxu0
        %v4220 = vadd.f32 0.0, %v4219
        %v4221 = vpop.f32.mrb[0].mxu0
        %v4222 = vpop.f32.mrb[0].mxu0
        %v4223 = vadd.f32 0.0, %v4222
        %v4224 = vpop.f32.mrb[0].mxu0
        %4225 = vmatprep.mubr.bf16.mxu0 0
        %4226 = vmatmul.mubr.bf16.gmra.mrb[0].mxu0 %v4063
        %v4227 = vpop.f32.mrb[0].mxu0
        %v4228 = vadd.f32 0.0, %v4227
        %v4229 = vpop.f32.mrb[0].mxu0
        %v4230 = vpop.f32.mrb[0].mxu0
        %v4231 = vadd.f32 0.0, %v4230
        %v4232 = vpop.f32.mrb[0].mxu0
        %4233 = vmatprep.mubr.bf16.mxu0 0
        %4234 = vmatmul.mubr.bf16.gmra.mrb[0].mxu0 %v4064
        %v4235 = vpop.f32.mrb[0].mxu0
        %v4236 = vadd.f32 0.0, %v4235
        %v4237 = vpop.f32.mrb[0].mxu0
        %v4238 = vpop.f32.mrb[0].mxu0
        %v4239 = vadd.f32 0.0, %v4238
        %v4240 = vpop.f32.mrb[0].mxu0
        %4241 = vmatprep.mubr.bf16.mxu0 0
        %4242 = vmatmul.mubr.bf16.gmra.mrb[0].mxu0 %v4065
        %v4243 = vpop.f32.mrb[0].mxu0
        %v4244 = vadd.f32 0.0, %v4243
        %v4245 = vpop.f32.mrb[0].mxu0
        %v4246 = vpop.f32.mrb[0].mxu0
        %v4247 = vadd.f32 0.0, %v4246
        %v4248 = vpop.f32.mrb[0].mxu0
        %4249 = vmatprep.mubr.bf16.mxu0 0
        %4250 = vmatmul.mubr.bf16.gmra.mrb[0].mxu0 %v4066
        %v4251 = vpop.f32.mrb[0].mxu0
        %v4252 = vadd.f32 0.0, %v4251
        %v4253 = vpop.f32.mrb[0].mxu0
        %v4254 = vpop.f32.mrb[0].mxu0
        %v4255 = vadd.f32 0.0, %v4254
        %v4256 = vpop.f32.mrb[0].mxu0
        %4257 = vmatprep.mubr.bf16.mxu0 0
        %4258 = vmatmul.mubr.bf16.gmra.mrb[0].mxu0 %v4067
        %v4259 = vpop.f32.mrb[0].mxu0
        %v4260 = vadd.f32 0.0, %v4259
        %v4261 = vpop.f32.mrb[0].mxu0
        %v4262 = vpop.f32.mrb[0].mxu0
        %v4263 = vadd.f32 0.0, %v4262
        %v4264 = vpop.f32.mrb[0].mxu0
        %4265 = vmatprep.mubr.bf16.mxu0 0
        %4266 = vmatmul.mubr.bf16.gmra.mrb[0].mxu0 %v4068
        %v4267 = vpop.f32.mrb[0].mxu0
        %v4268 = vadd.f32 0.0, %v4267
        %v4269 = vpop.f32.mrb[0].mxu0
        %v4270 = vpop.f32.mrb[0].mxu0
        %v4271 = vadd.f32 0.0, %v4270
        %v4272 = vpop.f32.mrb[0].mxu0
        %4273 = vmatprep.mubr.bf16.mxu0 0
        %4274 = vmatmul.mubr.bf16.gmra.mrb[0].mxu0 %v4069
        %v4275 = vpop.f32.mrb[0].mxu0
        %v4276 = vadd.f32 0.0, %v4275
        %v4277 = vpop.f32.mrb[0].mxu0
        %v4278 = vpop.f32.mrb[0].mxu0
        %v4279 = vadd.f32 0.0, %v4278
        %v4280 = vpop.f32.mrb[0].mxu0
        %4281 = vmatprep.mubr.bf16.mxu0 0
        %4282 = vmatmul.mubr.bf16.gmra.mrb[0].mxu0 %v4070
        %v4283 = vpop.f32.mrb[0].mxu0
        %v4284 = vadd.f32 0.0, %v4283
        %v4285 = vpop.f32.mrb[0].mxu0
        %v4286 = vpop.f32.mrb[0].mxu0
        %v4287 = vadd.f32 0.0, %v4286
        %v4288 = vpop.f32.mrb[0].mxu0
        %4289 = vmatprep.mubr.bf16.mxu0 0
        %4290 = vmatmul.mubr.bf16.gmra.mrb[0].mxu0 %v4071
        %v4291 = vpop.f32.mrb[0].mxu0
        %v4292 = vadd.f32 0.0, %v4291
        %v4293 = vpop.f32.mrb[0].mxu0
        %v4294 = vpop.f32.mrb[0].mxu0
        %v4295 = vadd.f32 0.0, %v4294
        %v4296 = vpop.f32.mrb[0].mxu0
        %4297 = vdwg.mxu0
        %v4298 = vadd.f32 %v3992, %v4172
        %v4299 = vadd.f32 %v3993, %v4175
        %v4300 = vadd.f32 %v3994, %v4180
        %v4301 = vadd.f32 %v3995, %v4183
        %v4302 = vadd.f32 %v3996, %v4188
        %v4303 = vadd.f32 %v3997, %v4191
        %v4304 = vadd.f32 %v3998, %v4196
        %v4305 = vadd.f32 %v3999, %v4199
        %v4306 = vadd.f32 %v4000, %v4204
        %v4307 = vadd.f32 %v4001, %v4207
        %v4308 = vadd.f32 %v4002, %v4212
        %v4309 = vadd.f32 %v4003, %v4215
        %v4310 = vadd.f32 %v4004, %v4220
        %v4311 = vadd.f32 %v4005, %v4223
        %v4312 = vadd.f32 %v4006, %v4228
        %v4313 = vadd.f32 %v4007, %v4231
        %v4314 = vadd.f32 %v4008, %v4236
        %v4315 = vadd.f32 %v4009, %v4239
        %v4316 = vadd.f32 %v4010, %v4244
        %v4317 = vadd.f32 %v4011, %v4247
        %v4318 = vadd.f32 %v4012, %v4252
        %v4319 = vadd.f32 %v4013, %v4255
        %v4320 = vadd.f32 %v4014, %v4260
        %v4321 = vadd.f32 %v4015, %v4263
        %v4322 = vadd.f32 %v4016, %v4268
        %v4323 = vadd.f32 %v4017, %v4271
        %v4324 = vadd.f32 %v4018, %v4276
        %v4325 = vadd.f32 %v4019, %v4279
        %v4326 = vadd.f32 %v4020, %v4284
        %v4327 = vadd.f32 %v4021, %v4287
        %v4328 = vadd.f32 %v4022, %v4292
        %v4329 = vadd.f32 %v4023, %v4295
        %v4330 = vld [vmem:[%s248 + $0x1] sm:$0xff]
        %v4331 = vld [vmem:[%s248 + $0x9] sm:$0xff]
        %v4332 = vld [vmem:[%s248 + $0x19] sm:$0xff]
        %v4333 = vld [vmem:[%s248 + $0x21] sm:$0xff]
        %v4334 = vld [vmem:[%s248 + $0x31] sm:$0xff]
        %v4335 = vld [vmem:[%s248 + $0x39] sm:$0xff]
        %v4336 = vld [vmem:[%s248 + $0x49] sm:$0xff]
        %v4337 = vld [vmem:[%s248 + $0x51] sm:$0xff]
        %v4338 = vld [vmem:[%s248 + $0x61] sm:$0xff]
        %v4339 = vld [vmem:[%s248 + $0x69] sm:$0xff]
        %v4340 = vld [vmem:[%s248 + $0x79] sm:$0xff]
        %v4341 = vld [vmem:[%s248 + $0x81] sm:$0xff]
        %v4342 = vld [vmem:[%s248 + $0x91] sm:$0xff]
        %v4343 = vld [vmem:[%s248 + $0x99] sm:$0xff]
        %v4344 = vld [vmem:[%s248 + $0xa9] sm:$0xff]
        %v4345 = vld [vmem:[%s248 + $0xb1] sm:$0xff]
        %v4346 = vld [vmem:[%s248 + $0xc1] sm:$0xff]
        %v4347 = vld [vmem:[%s248 + $0xc9] sm:$0xff]
        %v4348 = vld [vmem:[%s248 + $0xd9] sm:$0xff]
        %v4349 = vld [vmem:[%s248 + $0xe1] sm:$0xff]
        %v4350 = vld [vmem:[%s248 + $0xf1] sm:$0xff]
        %v4351 = vld [vmem:[%s248 + $0xf9] sm:$0xff]
        %v4352 = vld [vmem:[%s248 + $0x109] sm:$0xff]
        %v4353 = vld [vmem:[%s248 + $0x111] sm:$0xff]
        %v4354 = vld [vmem:[%s248 + $0x121] sm:$0xff]
        %v4355 = vld [vmem:[%s248 + $0x129] sm:$0xff]
        %v4356 = vld [vmem:[%s248 + $0x139] sm:$0xff]
        %v4357 = vld [vmem:[%s248 + $0x141] sm:$0xff]
        %v4358 = vld [vmem:[%s248 + $0x151] sm:$0xff]
        %v4359 = vld [vmem:[%s248 + $0x159] sm:$0xff]
        %v4360 = vld [vmem:[%s248 + $0x169] sm:$0xff]
        %v4361 = vld [vmem:[%s248 + $0x171] sm:$0xff]
        %v4362 = vpack.c.bf16 %v4331, %v4330
        %v4363 = vpack.c.bf16 %v4333, %v4332
        %v4364 = vpack.c.bf16 %v4335, %v4334
        %v4365 = vpack.c.bf16 %v4337, %v4336
        %v4366 = vpack.c.bf16 %v4339, %v4338
        %v4367 = vpack.c.bf16 %v4341, %v4340
        %v4368 = vpack.c.bf16 %v4343, %v4342
        %v4369 = vpack.c.bf16 %v4345, %v4344
        %v4370 = vpack.c.bf16 %v4347, %v4346
        %v4371 = vpack.c.bf16 %v4349, %v4348
        %v4372 = vpack.c.bf16 %v4351, %v4350
        %v4373 = vpack.c.bf16 %v4353, %v4352
        %v4374 = vpack.c.bf16 %v4355, %v4354
        %v4375 = vpack.c.bf16 %v4357, %v4356
        %v4376 = vpack.c.bf16 %v4359, %v4358
        %v4377 = vpack.c.bf16 %v4361, %v4360
        %s4378 = scalar_lea.vmem [#allocation3], 256
        %v4379 = vld [vmem:[%s4378] sm:$0xf]
        %v4380 = vld [vmem:[%s4378 + $0x4] sm:$0xf]
        %v4381 = vld [vmem:[%s4378 + $0x8] sm:$0xf]
        %v4382 = vld [vmem:[%s4378 + $0xc] sm:$0xf]
        %v4383 = vld [vmem:[%s4378 + $0x10] sm:$0xf]
        %v4384 = vld [vmem:[%s4378 + $0x14] sm:$0xf]
        %v4385 = vld [vmem:[%s4378 + $0x18] sm:$0xf]
        %v4386 = vld [vmem:[%s4378 + $0x1c] sm:$0xf]
        %v4387 = vld [vmem:[%s4378 + $0x20] sm:$0xf]
        %v4388 = vld [vmem:[%s4378 + $0x24] sm:$0xf]
        %v4389 = vld [vmem:[%s4378 + $0x28] sm:$0xf]
        %v4390 = vld [vmem:[%s4378 + $0x2c] sm:$0xf]
        %v4391 = vld [vmem:[%s4378 + $0x30] sm:$0xf]
        %v4392 = vld [vmem:[%s4378 + $0x34] sm:$0xf]
        %v4393 = vld [vmem:[%s4378 + $0x38] sm:$0xf]
        %v4394 = vld [vmem:[%s4378 + $0x3c] sm:$0xf]
        %v4411 = vunpack.c.l.b16 %v4379
        %v4412 = vunpack.c.l.b16 %v4380
        %v4413 = vunpack.c.l.b16 %v4381
        %v4414 = vunpack.c.l.b16 %v4382
        %v4415 = vunpack.c.l.b16 %v4383
        %v4416 = vunpack.c.l.b16 %v4384
        %v4417 = vunpack.c.l.b16 %v4385
        %v4418 = vunpack.c.l.b16 %v4386
        %v4419 = vunpack.c.l.b16 %v4387
        %v4420 = vunpack.c.l.b16 %v4388
        %v4421 = vunpack.c.l.b16 %v4389
        %v4422 = vunpack.c.l.b16 %v4390
        %v4423 = vunpack.c.l.b16 %v4391
        %v4424 = vunpack.c.l.b16 %v4392
        %v4425 = vunpack.c.l.b16 %v4393
        %v4426 = vunpack.c.l.b16 %v4394
        %v4427 = vpack.c.b16 %v4412, %v4411
        %v4428 = vpack.c.b16 %v4414, %v4413
        %v4429 = vpack.c.b16 %v4416, %v4415
        %v4430 = vpack.c.b16 %v4418, %v4417
        %v4431 = vpack.c.b16 %v4420, %v4419
        %v4432 = vpack.c.b16 %v4422, %v4421
        %v4433 = vpack.c.b16 %v4424, %v4423
        %v4434 = vpack.c.b16 %v4426, %v4425
        %4443 = vmatprep.subr.bf16.mxu0 0
        %4444 = vmatpush1.bf16.msra.mxu0 %v4427
        %4445 = vmatprep.subr.bf16.mxu0 0
        %4446 = vmatpush1.bf16.msra.mxu0 %v4428
        %4447 = vmatprep.subr.bf16.mxu0 0
        %4448 = vmatpush1.bf16.msra.mxu0 %v4429
        %4449 = vmatprep.subr.bf16.mxu0 0
        %4450 = vmatpush1.bf16.msra.mxu0 %v4430
        %4451 = vmatprep.subr.bf16.mxu0 0
        %4452 = vmatpush1.bf16.msra.mxu0 %v4431
        %4453 = vmatprep.subr.bf16.mxu0 0
        %4454 = vmatpush1.bf16.msra.mxu0 %v4432
        %4455 = vmatprep.subr.bf16.mxu0 0
        %4456 = vmatpush1.bf16.msra.mxu0 %v4433
        %4457 = vmatprep.subr.bf16.mxu0 0
        %4458 = vmatpush1.bf16.msra.mxu0 %v4434
        %4459 = vmatprep.subr.bf16.mxu0 0
        %4460 = vmatpush1.bf16.msra.mxu0 0
        %4461 = vmatprep.subr.bf16.mxu0 0
        %4462 = vmatpush1.bf16.msra.mxu0 0
        %4463 = vmatprep.subr.bf16.mxu0 0
        %4464 = vmatpush1.bf16.msra.mxu0 0
        %4465 = vmatprep.subr.bf16.mxu0 0
        %4466 = vmatpush1.bf16.msra.mxu0 0
        %4467 = vmatprep.subr.bf16.mxu0 0
        %4468 = vmatpush1.bf16.msra.mxu0 0
        %4469 = vmatprep.subr.bf16.mxu0 0
        %4470 = vmatpush1.bf16.msra.mxu0 0
        %4471 = vmatprep.subr.bf16.mxu0 0
        %4472 = vmatpush1.bf16.msra.mxu0 0
        %4473 = vmatprep.subr.bf16.mxu0 0
        %4474 = vmatpush1.bf16.msra.mxu0 0
        %4475 = vmatprep.mubr.bf16.mxu0 0
        %4476 = vmatmul.mubr.bf16.gmra.mrb[0].mxu0 %v4362
        %v4477 = vpop.f32.mrb[0].mxu0
        %v4478 = vadd.f32 0.0, %v4477
        %v4479 = vpop.f32.mrb[0].mxu0
        %v4480 = vpop.f32.mrb[0].mxu0
        %v4481 = vadd.f32 0.0, %v4480
        %v4482 = vpop.f32.mrb[0].mxu0
        %4483 = vmatprep.mubr.bf16.mxu0 0
        %4484 = vmatmul.mubr.bf16.gmra.mrb[0].mxu0 %v4363
        %v4485 = vpop.f32.mrb[0].mxu0
        %v4486 = vadd.f32 0.0, %v4485
        %v4487 = vpop.f32.mrb[0].mxu0
        %v4488 = vpop.f32.mrb[0].mxu0
        %v4489 = vadd.f32 0.0, %v4488
        %v4490 = vpop.f32.mrb[0].mxu0
        %4491 = vmatprep.mubr.bf16.mxu0 0
        %4492 = vmatmul.mubr.bf16.gmra.mrb[0].mxu0 %v4364
        %v4493 = vpop.f32.mrb[0].mxu0
        %v4494 = vadd.f32 0.0, %v4493
        %v4495 = vpop.f32.mrb[0].mxu0
        %v4496 = vpop.f32.mrb[0].mxu0
        %v4497 = vadd.f32 0.0, %v4496
        %v4498 = vpop.f32.mrb[0].mxu0
        %4499 = vmatprep.mubr.bf16.mxu0 0
        %4500 = vmatmul.mubr.bf16.gmra.mrb[0].mxu0 %v4365
        %v4501 = vpop.f32.mrb[0].mxu0
        %v4502 = vadd.f32 0.0, %v4501
        %v4503 = vpop.f32.mrb[0].mxu0
        %v4504 = vpop.f32.mrb[0].mxu0
        %v4505 = vadd.f32 0.0, %v4504
        %v4506 = vpop.f32.mrb[0].mxu0
        %4507 = vmatprep.mubr.bf16.mxu0 0
        %4508 = vmatmul.mubr.bf16.gmra.mrb[0].mxu0 %v4366
        %v4509 = vpop.f32.mrb[0].mxu0
        %v4510 = vadd.f32 0.0, %v4509
        %v4511 = vpop.f32.mrb[0].mxu0
        %v4512 = vpop.f32.mrb[0].mxu0
        %v4513 = vadd.f32 0.0, %v4512
        %v4514 = vpop.f32.mrb[0].mxu0
        %4515 = vmatprep.mubr.bf16.mxu0 0
        %4516 = vmatmul.mubr.bf16.gmra.mrb[0].mxu0 %v4367
        %v4517 = vpop.f32.mrb[0].mxu0
        %v4518 = vadd.f32 0.0, %v4517
        %v4519 = vpop.f32.mrb[0].mxu0
        %v4520 = vpop.f32.mrb[0].mxu0
        %v4521 = vadd.f32 0.0, %v4520
        %v4522 = vpop.f32.mrb[0].mxu0
        %4523 = vmatprep.mubr.bf16.mxu0 0
        %4524 = vmatmul.mubr.bf16.gmra.mrb[0].mxu0 %v4368
        %v4525 = vpop.f32.mrb[0].mxu0
        %v4526 = vadd.f32 0.0, %v4525
        %v4527 = vpop.f32.mrb[0].mxu0
        %v4528 = vpop.f32.mrb[0].mxu0
        %v4529 = vadd.f32 0.0, %v4528
        %v4530 = vpop.f32.mrb[0].mxu0
        %4531 = vmatprep.mubr.bf16.mxu0 0
        %4532 = vmatmul.mubr.bf16.gmra.mrb[0].mxu0 %v4369
        %v4533 = vpop.f32.mrb[0].mxu0
        %v4534 = vadd.f32 0.0, %v4533
        %v4535 = vpop.f32.mrb[0].mxu0
        %v4536 = vpop.f32.mrb[0].mxu0
        %v4537 = vadd.f32 0.0, %v4536
        %v4538 = vpop.f32.mrb[0].mxu0
        %4539 = vmatprep.mubr.bf16.mxu0 0
        %4540 = vmatmul.mubr.bf16.gmra.mrb[0].mxu0 %v4370
        %v4541 = vpop.f32.mrb[0].mxu0
        %v4542 = vadd.f32 0.0, %v4541
        %v4543 = vpop.f32.mrb[0].mxu0
        %v4544 = vpop.f32.mrb[0].mxu0
        %v4545 = vadd.f32 0.0, %v4544
        %v4546 = vpop.f32.mrb[0].mxu0
        %4547 = vmatprep.mubr.bf16.mxu0 0
        %4548 = vmatmul.mubr.bf16.gmra.mrb[0].mxu0 %v4371
        %v4549 = vpop.f32.mrb[0].mxu0
        %v4550 = vadd.f32 0.0, %v4549
        %v4551 = vpop.f32.mrb[0].mxu0
        %v4552 = vpop.f32.mrb[0].mxu0
        %v4553 = vadd.f32 0.0, %v4552
        %v4554 = vpop.f32.mrb[0].mxu0
        %4555 = vmatprep.mubr.bf16.mxu0 0
        %4556 = vmatmul.mubr.bf16.gmra.mrb[0].mxu0 %v4372
        %v4557 = vpop.f32.mrb[0].mxu0
        %v4558 = vadd.f32 0.0, %v4557
        %v4559 = vpop.f32.mrb[0].mxu0
        %v4560 = vpop.f32.mrb[0].mxu0
        %v4561 = vadd.f32 0.0, %v4560
        %v4562 = vpop.f32.mrb[0].mxu0
        %4563 = vmatprep.mubr.bf16.mxu0 0
        %4564 = vmatmul.mubr.bf16.gmra.mrb[0].mxu0 %v4373
        %v4565 = vpop.f32.mrb[0].mxu0
        %v4566 = vadd.f32 0.0, %v4565
        %v4567 = vpop.f32.mrb[0].mxu0
        %v4568 = vpop.f32.mrb[0].mxu0
        %v4569 = vadd.f32 0.0, %v4568
        %v4570 = vpop.f32.mrb[0].mxu0
        %4571 = vmatprep.mubr.bf16.mxu0 0
        %4572 = vmatmul.mubr.bf16.gmra.mrb[0].mxu0 %v4374
        %v4573 = vpop.f32.mrb[0].mxu0
        %v4574 = vadd.f32 0.0, %v4573
        %v4575 = vpop.f32.mrb[0].mxu0
        %v4576 = vpop.f32.mrb[0].mxu0
        %v4577 = vadd.f32 0.0, %v4576
        %v4578 = vpop.f32.mrb[0].mxu0
        %4579 = vmatprep.mubr.bf16.mxu0 0
        %4580 = vmatmul.mubr.bf16.gmra.mrb[0].mxu0 %v4375
        %v4581 = vpop.f32.mrb[0].mxu0
        %v4582 = vadd.f32 0.0, %v4581
        %v4583 = vpop.f32.mrb[0].mxu0
        %v4584 = vpop.f32.mrb[0].mxu0
        %v4585 = vadd.f32 0.0, %v4584
        %v4586 = vpop.f32.mrb[0].mxu0
        %4587 = vmatprep.mubr.bf16.mxu0 0
        %4588 = vmatmul.mubr.bf16.gmra.mrb[0].mxu0 %v4376
        %v4589 = vpop.f32.mrb[0].mxu0
        %v4590 = vadd.f32 0.0, %v4589
        %v4591 = vpop.f32.mrb[0].mxu0
        %v4592 = vpop.f32.mrb[0].mxu0
        %v4593 = vadd.f32 0.0, %v4592
        %v4594 = vpop.f32.mrb[0].mxu0
        %4595 = vmatprep.mubr.bf16.mxu0 0
        %4596 = vmatmul.mubr.bf16.gmra.mrb[0].mxu0 %v4377
        %v4597 = vpop.f32.mrb[0].mxu0
        %v4598 = vadd.f32 0.0, %v4597
        %v4599 = vpop.f32.mrb[0].mxu0
        %v4600 = vpop.f32.mrb[0].mxu0
        %v4601 = vadd.f32 0.0, %v4600
        %v4602 = vpop.f32.mrb[0].mxu0
        %4603 = vdwg.mxu0
        %v4604 = vadd.f32 %v4298, %v4478
        %v4605 = vadd.f32 %v4299, %v4481
        %v4606 = vadd.f32 %v4300, %v4486
        %v4607 = vadd.f32 %v4301, %v4489
        %v4608 = vadd.f32 %v4302, %v4494
        %v4609 = vadd.f32 %v4303, %v4497
        %v4610 = vadd.f32 %v4304, %v4502
        %v4611 = vadd.f32 %v4305, %v4505
        %v4612 = vadd.f32 %v4306, %v4510
        %v4613 = vadd.f32 %v4307, %v4513
        %v4614 = vadd.f32 %v4308, %v4518
        %v4615 = vadd.f32 %v4309, %v4521
        %v4616 = vadd.f32 %v4310, %v4526
        %v4617 = vadd.f32 %v4311, %v4529
        %v4618 = vadd.f32 %v4312, %v4534
        %v4619 = vadd.f32 %v4313, %v4537
        %v4620 = vadd.f32 %v4314, %v4542
        %v4621 = vadd.f32 %v4315, %v4545
        %v4622 = vadd.f32 %v4316, %v4550
        %v4623 = vadd.f32 %v4317, %v4553
        %v4624 = vadd.f32 %v4318, %v4558
        %v4625 = vadd.f32 %v4319, %v4561
        %v4626 = vadd.f32 %v4320, %v4566
        %v4627 = vadd.f32 %v4321, %v4569
        %v4628 = vadd.f32 %v4322, %v4574
        %v4629 = vadd.f32 %v4323, %v4577
        %v4630 = vadd.f32 %v4324, %v4582
        %v4631 = vadd.f32 %v4325, %v4585
        %v4632 = vadd.f32 %v4326, %v4590
        %v4633 = vadd.f32 %v4327, %v4593
        %v4634 = vadd.f32 %v4328, %v4598
        %v4635 = vadd.f32 %v4329, %v4601
        %v4636 = vld [vmem:[%s248 + $0x2] sm:$0xff]
        %v4637 = vld [vmem:[%s248 + $0xa] sm:$0xff]
        %v4638 = vld [vmem:[%s248 + $0x1a] sm:$0xff]
        %v4639 = vld [vmem:[%s248 + $0x22] sm:$0xff]
        %v4640 = vld [vmem:[%s248 + $0x32] sm:$0xff]
        %v4641 = vld [vmem:[%s248 + $0x3a] sm:$0xff]
        %v4642 = vld [vmem:[%s248 + $0x4a] sm:$0xff]
        %v4643 = vld [vmem:[%s248 + $0x52] sm:$0xff]
        %v4644 = vld [vmem:[%s248 + $0x62] sm:$0xff]
        %v4645 = vld [vmem:[%s248 + $0x6a] sm:$0xff]
        %v4646 = vld [vmem:[%s248 + $0x7a] sm:$0xff]
        %v4647 = vld [vmem:[%s248 + $0x82] sm:$0xff]
        %v4648 = vld [vmem:[%s248 + $0x92] sm:$0xff]
        %v4649 = vld [vmem:[%s248 + $0x9a] sm:$0xff]
        %v4650 = vld [vmem:[%s248 + $0xaa] sm:$0xff]
        %v4651 = vld [vmem:[%s248 + $0xb2] sm:$0xff]
        %v4652 = vld [vmem:[%s248 + $0xc2] sm:$0xff]
        %v4653 = vld [vmem:[%s248 + $0xca] sm:$0xff]
        %v4654 = vld [vmem:[%s248 + $0xda] sm:$0xff]
        %v4655 = vld [vmem:[%s248 + $0xe2] sm:$0xff]
        %v4656 = vld [vmem:[%s248 + $0xf2] sm:$0xff]
        %v4657 = vld [vmem:[%s248 + $0xfa] sm:$0xff]
        %v4658 = vld [vmem:[%s248 + $0x10a] sm:$0xff]
        %v4659 = vld [vmem:[%s248 + $0x112] sm:$0xff]
        %v4660 = vld [vmem:[%s248 + $0x122] sm:$0xff]
        %v4661 = vld [vmem:[%s248 + $0x12a] sm:$0xff]
        %v4662 = vld [vmem:[%s248 + $0x13a] sm:$0xff]
        %v4663 = vld [vmem:[%s248 + $0x142] sm:$0xff]
        %v4664 = vld [vmem:[%s248 + $0x152] sm:$0xff]
        %v4665 = vld [vmem:[%s248 + $0x15a] sm:$0xff]
        %v4666 = vld [vmem:[%s248 + $0x16a] sm:$0xff]
        %v4667 = vld [vmem:[%s248 + $0x172] sm:$0xff]
        %v4668 = vpack.c.bf16 %v4637, %v4636
        %v4669 = vpack.c.bf16 %v4639, %v4638
        %v4670 = vpack.c.bf16 %v4641, %v4640
        %v4671 = vpack.c.bf16 %v4643, %v4642
        %v4672 = vpack.c.bf16 %v4645, %v4644
        %v4673 = vpack.c.bf16 %v4647, %v4646
        %v4674 = vpack.c.bf16 %v4649, %v4648
        %v4675 = vpack.c.bf16 %v4651, %v4650
        %v4676 = vpack.c.bf16 %v4653, %v4652
        %v4677 = vpack.c.bf16 %v4655, %v4654
        %v4678 = vpack.c.bf16 %v4657, %v4656
        %v4679 = vpack.c.bf16 %v4659, %v4658
        %v4680 = vpack.c.bf16 %v4661, %v4660
        %v4681 = vpack.c.bf16 %v4663, %v4662
        %v4682 = vpack.c.bf16 %v4665, %v4664
        %v4683 = vpack.c.bf16 %v4667, %v4666
        %s4684 = scalar_lea.vmem [#allocation3], 320
        %v4685 = vld [vmem:[%s4684] sm:$0xf]
        %v4686 = vld [vmem:[%s4684 + $0x4] sm:$0xf]
        %v4687 = vld [vmem:[%s4684 + $0x8] sm:$0xf]
        %v4688 = vld [vmem:[%s4684 + $0xc] sm:$0xf]
        %v4689 = vld [vmem:[%s4684 + $0x10] sm:$0xf]
        %v4690 = vld [vmem:[%s4684 + $0x14] sm:$0xf]
        %v4691 = vld [vmem:[%s4684 + $0x18] sm:$0xf]
        %v4692 = vld [vmem:[%s4684 + $0x1c] sm:$0xf]
        %v4693 = vld [vmem:[%s4684 + $0x20] sm:$0xf]
        %v4694 = vld [vmem:[%s4684 + $0x24] sm:$0xf]
        %v4695 = vld [vmem:[%s4684 + $0x28] sm:$0xf]
        %v4696 = vld [vmem:[%s4684 + $0x2c] sm:$0xf]
        %v4697 = vld [vmem:[%s4684 + $0x30] sm:$0xf]
        %v4698 = vld [vmem:[%s4684 + $0x34] sm:$0xf]
        %v4699 = vld [vmem:[%s4684 + $0x38] sm:$0xf]
        %v4700 = vld [vmem:[%s4684 + $0x3c] sm:$0xf]
        %v4717 = vunpack.c.l.b16 %v4685
        %v4718 = vunpack.c.l.b16 %v4686
        %v4719 = vunpack.c.l.b16 %v4687
        %v4720 = vunpack.c.l.b16 %v4688
        %v4721 = vunpack.c.l.b16 %v4689
        %v4722 = vunpack.c.l.b16 %v4690
        %v4723 = vunpack.c.l.b16 %v4691
        %v4724 = vunpack.c.l.b16 %v4692
        %v4725 = vunpack.c.l.b16 %v4693
        %v4726 = vunpack.c.l.b16 %v4694
        %v4727 = vunpack.c.l.b16 %v4695
        %v4728 = vunpack.c.l.b16 %v4696
        %v4729 = vunpack.c.l.b16 %v4697
        %v4730 = vunpack.c.l.b16 %v4698
        %v4731 = vunpack.c.l.b16 %v4699
        %v4732 = vunpack.c.l.b16 %v4700
        %v4733 = vpack.c.b16 %v4718, %v4717
        %v4734 = vpack.c.b16 %v4720, %v4719
        %v4735 = vpack.c.b16 %v4722, %v4721
        %v4736 = vpack.c.b16 %v4724, %v4723
        %v4737 = vpack.c.b16 %v4726, %v4725
        %v4738 = vpack.c.b16 %v4728, %v4727
        %v4739 = vpack.c.b16 %v4730, %v4729
        %v4740 = vpack.c.b16 %v4732, %v4731
        %4749 = vmatprep.subr.bf16.mxu0 0
        %4750 = vmatpush1.bf16.msra.mxu0 %v4733
        %4751 = vmatprep.subr.bf16.mxu0 0
        %4752 = vmatpush1.bf16.msra.mxu0 %v4734
        %4753 = vmatprep.subr.bf16.mxu0 0
        %4754 = vmatpush1.bf16.msra.mxu0 %v4735
        %4755 = vmatprep.subr.bf16.mxu0 0
        %4756 = vmatpush1.bf16.msra.mxu0 %v4736
        %4757 = vmatprep.subr.bf16.mxu0 0
        %4758 = vmatpush1.bf16.msra.mxu0 %v4737
        %4759 = vmatprep.subr.bf16.mxu0 0
        %4760 = vmatpush1.bf16.msra.mxu0 %v4738
        %4761 = vmatprep.subr.bf16.mxu0 0
        %4762 = vmatpush1.bf16.msra.mxu0 %v4739
        %4763 = vmatprep.subr.bf16.mxu0 0
        %4764 = vmatpush1.bf16.msra.mxu0 %v4740
        %4765 = vmatprep.subr.bf16.mxu0 0
        %4766 = vmatpush1.bf16.msra.mxu0 0
        %4767 = vmatprep.subr.bf16.mxu0 0
        %4768 = vmatpush1.bf16.msra.mxu0 0
        %4769 = vmatprep.subr.bf16.mxu0 0
        %4770 = vmatpush1.bf16.msra.mxu0 0
        %4771 = vmatprep.subr.bf16.mxu0 0
        %4772 = vmatpush1.bf16.msra.mxu0 0
        %4773 = vmatprep.subr.bf16.mxu0 0
        %4774 = vmatpush1.bf16.msra.mxu0 0
        %4775 = vmatprep.subr.bf16.mxu0 0
        %4776 = vmatpush1.bf16.msra.mxu0 0
        %4777 = vmatprep.subr.bf16.mxu0 0
        %4778 = vmatpush1.bf16.msra.mxu0 0
        %4779 = vmatprep.subr.bf16.mxu0 0
        %4780 = vmatpush1.bf16.msra.mxu0 0
        %4781 = vmatprep.mubr.bf16.mxu0 0
        %4782 = vmatmul.mubr.bf16.gmra.mrb[0].mxu0 %v4668
        %v4783 = vpop.f32.mrb[0].mxu0
        %v4784 = vadd.f32 0.0, %v4783
        %v4785 = vpop.f32.mrb[0].mxu0
        %v4786 = vpop.f32.mrb[0].mxu0
        %v4787 = vadd.f32 0.0, %v4786
        %v4788 = vpop.f32.mrb[0].mxu0
        %4789 = vmatprep.mubr.bf16.mxu0 0
        %4790 = vmatmul.mubr.bf16.gmra.mrb[0].mxu0 %v4669
        %v4791 = vpop.f32.mrb[0].mxu0
        %v4792 = vadd.f32 0.0, %v4791
        %v4793 = vpop.f32.mrb[0].mxu0
        %v4794 = vpop.f32.mrb[0].mxu0
        %v4795 = vadd.f32 0.0, %v4794
        %v4796 = vpop.f32.mrb[0].mxu0
        %4797 = vmatprep.mubr.bf16.mxu0 0
        %4798 = vmatmul.mubr.bf16.gmra.mrb[0].mxu0 %v4670
        %v4799 = vpop.f32.mrb[0].mxu0
        %v4800 = vadd.f32 0.0, %v4799
        %v4801 = vpop.f32.mrb[0].mxu0
        %v4802 = vpop.f32.mrb[0].mxu0
        %v4803 = vadd.f32 0.0, %v4802
        %v4804 = vpop.f32.mrb[0].mxu0
        %4805 = vmatprep.mubr.bf16.mxu0 0
        %4806 = vmatmul.mubr.bf16.gmra.mrb[0].mxu0 %v4671
        %v4807 = vpop.f32.mrb[0].mxu0
        %v4808 = vadd.f32 0.0, %v4807
        %v4809 = vpop.f32.mrb[0].mxu0
        %v4810 = vpop.f32.mrb[0].mxu0
        %v4811 = vadd.f32 0.0, %v4810
        %v4812 = vpop.f32.mrb[0].mxu0
        %4813 = vmatprep.mubr.bf16.mxu0 0
        %4814 = vmatmul.mubr.bf16.gmra.mrb[0].mxu0 %v4672
        %v4815 = vpop.f32.mrb[0].mxu0
        %v4816 = vadd.f32 0.0, %v4815
        %v4817 = vpop.f32.mrb[0].mxu0
        %v4818 = vpop.f32.mrb[0].mxu0
        %v4819 = vadd.f32 0.0, %v4818
        %v4820 = vpop.f32.mrb[0].mxu0
        %4821 = vmatprep.mubr.bf16.mxu0 0
        %4822 = vmatmul.mubr.bf16.gmra.mrb[0].mxu0 %v4673
        %v4823 = vpop.f32.mrb[0].mxu0
        %v4824 = vadd.f32 0.0, %v4823
        %v4825 = vpop.f32.mrb[0].mxu0
        %v4826 = vpop.f32.mrb[0].mxu0
        %v4827 = vadd.f32 0.0, %v4826
        %v4828 = vpop.f32.mrb[0].mxu0
        %4829 = vmatprep.mubr.bf16.mxu0 0
        %4830 = vmatmul.mubr.bf16.gmra.mrb[0].mxu0 %v4674
        %v4831 = vpop.f32.mrb[0].mxu0
        %v4832 = vadd.f32 0.0, %v4831
        %v4833 = vpop.f32.mrb[0].mxu0
        %v4834 = vpop.f32.mrb[0].mxu0
        %v4835 = vadd.f32 0.0, %v4834
        %v4836 = vpop.f32.mrb[0].mxu0
        %4837 = vmatprep.mubr.bf16.mxu0 0
        %4838 = vmatmul.mubr.bf16.gmra.mrb[0].mxu0 %v4675
        %v4839 = vpop.f32.mrb[0].mxu0
        %v4840 = vadd.f32 0.0, %v4839
        %v4841 = vpop.f32.mrb[0].mxu0
        %v4842 = vpop.f32.mrb[0].mxu0
        %v4843 = vadd.f32 0.0, %v4842
        %v4844 = vpop.f32.mrb[0].mxu0
        %4845 = vmatprep.mubr.bf16.mxu0 0
        %4846 = vmatmul.mubr.bf16.gmra.mrb[0].mxu0 %v4676
        %v4847 = vpop.f32.mrb[0].mxu0
        %v4848 = vadd.f32 0.0, %v4847
        %v4849 = vpop.f32.mrb[0].mxu0
        %v4850 = vpop.f32.mrb[0].mxu0
        %v4851 = vadd.f32 0.0, %v4850
        %v4852 = vpop.f32.mrb[0].mxu0
        %4853 = vmatprep.mubr.bf16.mxu0 0
        %4854 = vmatmul.mubr.bf16.gmra.mrb[0].mxu0 %v4677
        %v4855 = vpop.f32.mrb[0].mxu0
        %v4856 = vadd.f32 0.0, %v4855
        %v4857 = vpop.f32.mrb[0].mxu0
        %v4858 = vpop.f32.mrb[0].mxu0
        %v4859 = vadd.f32 0.0, %v4858
        %v4860 = vpop.f32.mrb[0].mxu0
        %4861 = vmatprep.mubr.bf16.mxu0 0
        %4862 = vmatmul.mubr.bf16.gmra.mrb[0].mxu0 %v4678
        %v4863 = vpop.f32.mrb[0].mxu0
        %v4864 = vadd.f32 0.0, %v4863
        %v4865 = vpop.f32.mrb[0].mxu0
        %v4866 = vpop.f32.mrb[0].mxu0
        %v4867 = vadd.f32 0.0, %v4866
        %v4868 = vpop.f32.mrb[0].mxu0
        %4869 = vmatprep.mubr.bf16.mxu0 0
        %4870 = vmatmul.mubr.bf16.gmra.mrb[0].mxu0 %v4679
        %v4871 = vpop.f32.mrb[0].mxu0
        %v4872 = vadd.f32 0.0, %v4871
        %v4873 = vpop.f32.mrb[0].mxu0
        %v4874 = vpop.f32.mrb[0].mxu0
        %v4875 = vadd.f32 0.0, %v4874
        %v4876 = vpop.f32.mrb[0].mxu0
        %4877 = vmatprep.mubr.bf16.mxu0 0
        %4878 = vmatmul.mubr.bf16.gmra.mrb[0].mxu0 %v4680
        %v4879 = vpop.f32.mrb[0].mxu0
        %v4880 = vadd.f32 0.0, %v4879
        %v4881 = vpop.f32.mrb[0].mxu0
        %v4882 = vpop.f32.mrb[0].mxu0
        %v4883 = vadd.f32 0.0, %v4882
        %v4884 = vpop.f32.mrb[0].mxu0
        %4885 = vmatprep.mubr.bf16.mxu0 0
        %4886 = vmatmul.mubr.bf16.gmra.mrb[0].mxu0 %v4681
        %v4887 = vpop.f32.mrb[0].mxu0
        %v4888 = vadd.f32 0.0, %v4887
        %v4889 = vpop.f32.mrb[0].mxu0
        %v4890 = vpop.f32.mrb[0].mxu0
        %v4891 = vadd.f32 0.0, %v4890
        %v4892 = vpop.f32.mrb[0].mxu0
        %4893 = vmatprep.mubr.bf16.mxu0 0
        %4894 = vmatmul.mubr.bf16.gmra.mrb[0].mxu0 %v4682
        %v4895 = vpop.f32.mrb[0].mxu0
        %v4896 = vadd.f32 0.0, %v4895
        %v4897 = vpop.f32.mrb[0].mxu0
        %v4898 = vpop.f32.mrb[0].mxu0
        %v4899 = vadd.f32 0.0, %v4898
        %v4900 = vpop.f32.mrb[0].mxu0
        %4901 = vmatprep.mubr.bf16.mxu0 0
        %4902 = vmatmul.mubr.bf16.gmra.mrb[0].mxu0 %v4683
        %v4903 = vpop.f32.mrb[0].mxu0
        %v4904 = vadd.f32 0.0, %v4903
        %v4905 = vpop.f32.mrb[0].mxu0
        %v4906 = vpop.f32.mrb[0].mxu0
        %v4907 = vadd.f32 0.0, %v4906
        %v4908 = vpop.f32.mrb[0].mxu0
        %4909 = vdwg.mxu0
        %v4910 = vadd.f32 %v4604, %v4784
        %v4911 = vadd.f32 %v4605, %v4787
        %v4912 = vadd.f32 %v4606, %v4792
        %v4913 = vadd.f32 %v4607, %v4795
        %v4914 = vadd.f32 %v4608, %v4800
        %v4915 = vadd.f32 %v4609, %v4803
        %v4916 = vadd.f32 %v4610, %v4808
        %v4917 = vadd.f32 %v4611, %v4811
        %v4918 = vadd.f32 %v4612, %v4816
        %v4919 = vadd.f32 %v4613, %v4819
        %v4920 = vadd.f32 %v4614, %v4824
        %v4921 = vadd.f32 %v4615, %v4827
        %v4922 = vadd.f32 %v4616, %v4832
        %v4923 = vadd.f32 %v4617, %v4835
        %v4924 = vadd.f32 %v4618, %v4840
        %v4925 = vadd.f32 %v4619, %v4843
        %v4926 = vadd.f32 %v4620, %v4848
        %v4927 = vadd.f32 %v4621, %v4851
        %v4928 = vadd.f32 %v4622, %v4856
        %v4929 = vadd.f32 %v4623, %v4859
        %v4930 = vadd.f32 %v4624, %v4864
        %v4931 = vadd.f32 %v4625, %v4867
        %v4932 = vadd.f32 %v4626, %v4872
        %v4933 = vadd.f32 %v4627, %v4875
        %v4934 = vadd.f32 %v4628, %v4880
        %v4935 = vadd.f32 %v4629, %v4883
        %v4936 = vadd.f32 %v4630, %v4888
        %v4937 = vadd.f32 %v4631, %v4891
        %v4938 = vadd.f32 %v4632, %v4896
        %v4939 = vadd.f32 %v4633, %v4899
        %v4940 = vadd.f32 %v4634, %v4904
        %v4941 = vadd.f32 %v4635, %v4907
        %v4942 = vld [vmem:[%s2149] sm:$0xff]
        %v4943 = vld [vmem:[%s2149 + $0x8] sm:$0xff]
        %v4944 = vld [vmem:[%s2149 + $0x18] sm:$0xff]
        %v4945 = vld [vmem:[%s2149 + $0x20] sm:$0xff]
        %v4946 = vld [vmem:[%s2149 + $0x30] sm:$0xff]
        %v4947 = vld [vmem:[%s2149 + $0x38] sm:$0xff]
        %v4948 = vld [vmem:[%s2149 + $0x48] sm:$0xff]
        %v4949 = vld [vmem:[%s2149 + $0x50] sm:$0xff]
        %v4950 = vld [vmem:[%s2149 + $0x60] sm:$0xff]
        %v4951 = vld [vmem:[%s2149 + $0x68] sm:$0xff]
        %v4952 = vld [vmem:[%s2149 + $0x78] sm:$0xff]
        %v4953 = vld [vmem:[%s2149 + $0x80] sm:$0xff]
        %v4954 = vld [vmem:[%s2149 + $0x90] sm:$0xff]
        %v4955 = vld [vmem:[%s2149 + $0x98] sm:$0xff]
        %v4956 = vld [vmem:[%s2149 + $0xa8] sm:$0xff]
        %v4957 = vld [vmem:[%s2149 + $0xb0] sm:$0xff]
        %v4958 = vld [vmem:[%s2149 + $0xc0] sm:$0xff]
        %v4959 = vld [vmem:[%s2149 + $0xc8] sm:$0xff]
        %v4960 = vld [vmem:[%s2149 + $0xd8] sm:$0xff]
        %v4961 = vld [vmem:[%s2149 + $0xe0] sm:$0xff]
        %v4962 = vld [vmem:[%s2149 + $0xf0] sm:$0xff]
        %v4963 = vld [vmem:[%s2149 + $0xf8] sm:$0xff]
        %v4964 = vld [vmem:[%s2149 + $0x108] sm:$0xff]
        %v4965 = vld [vmem:[%s2149 + $0x110] sm:$0xff]
        %v4966 = vld [vmem:[%s2149 + $0x120] sm:$0xff]
        %v4967 = vld [vmem:[%s2149 + $0x128] sm:$0xff]
        %v4968 = vld [vmem:[%s2149 + $0x138] sm:$0xff]
        %v4969 = vld [vmem:[%s2149 + $0x140] sm:$0xff]
        %v4970 = vld [vmem:[%s2149 + $0x150] sm:$0xff]
        %v4971 = vld [vmem:[%s2149 + $0x158] sm:$0xff]
        %v4972 = vld [vmem:[%s2149 + $0x168] sm:$0xff]
        %v4973 = vld [vmem:[%s2149 + $0x170] sm:$0xff]
        %v4974 = vpack.c.bf16 %v4943, %v4942
        %v4975 = vpack.c.bf16 %v4945, %v4944
        %v4976 = vpack.c.bf16 %v4947, %v4946
        %v4977 = vpack.c.bf16 %v4949, %v4948
        %v4978 = vpack.c.bf16 %v4951, %v4950
        %v4979 = vpack.c.bf16 %v4953, %v4952
        %v4980 = vpack.c.bf16 %v4955, %v4954
        %v4981 = vpack.c.bf16 %v4957, %v4956
        %v4982 = vpack.c.bf16 %v4959, %v4958
        %v4983 = vpack.c.bf16 %v4961, %v4960
        %v4984 = vpack.c.bf16 %v4963, %v4962
        %v4985 = vpack.c.bf16 %v4965, %v4964
        %v4986 = vpack.c.bf16 %v4967, %v4966
        %v4987 = vpack.c.bf16 %v4969, %v4968
        %v4988 = vpack.c.bf16 %v4971, %v4970
        %v4989 = vpack.c.bf16 %v4973, %v4972
        %s4990 = scalar_lea.vmem [#allocation3], 384
        %v4991 = vld [vmem:[%s4990] sm:$0xf]
        %v4992 = vld [vmem:[%s4990 + $0x4] sm:$0xf]
        %v4993 = vld [vmem:[%s4990 + $0x8] sm:$0xf]
        %v4994 = vld [vmem:[%s4990 + $0xc] sm:$0xf]
        %v4995 = vld [vmem:[%s4990 + $0x10] sm:$0xf]
        %v4996 = vld [vmem:[%s4990 + $0x14] sm:$0xf]
        %v4997 = vld [vmem:[%s4990 + $0x18] sm:$0xf]
        %v4998 = vld [vmem:[%s4990 + $0x1c] sm:$0xf]
        %v4999 = vld [vmem:[%s4990 + $0x20] sm:$0xf]
        %v5000 = vld [vmem:[%s4990 + $0x24] sm:$0xf]
        %v5001 = vld [vmem:[%s4990 + $0x28] sm:$0xf]
        %v5002 = vld [vmem:[%s4990 + $0x2c] sm:$0xf]
        %v5003 = vld [vmem:[%s4990 + $0x30] sm:$0xf]
        %v5004 = vld [vmem:[%s4990 + $0x34] sm:$0xf]
        %v5005 = vld [vmem:[%s4990 + $0x38] sm:$0xf]
        %v5006 = vld [vmem:[%s4990 + $0x3c] sm:$0xf]
        %v5023 = vunpack.c.l.b16 %v4991
        %v5024 = vunpack.c.l.b16 %v4992
        %v5025 = vunpack.c.l.b16 %v4993
        %v5026 = vunpack.c.l.b16 %v4994
        %v5027 = vunpack.c.l.b16 %v4995
        %v5028 = vunpack.c.l.b16 %v4996
        %v5029 = vunpack.c.l.b16 %v4997
        %v5030 = vunpack.c.l.b16 %v4998
        %v5031 = vunpack.c.l.b16 %v4999
        %v5032 = vunpack.c.l.b16 %v5000
        %v5033 = vunpack.c.l.b16 %v5001
        %v5034 = vunpack.c.l.b16 %v5002
        %v5035 = vunpack.c.l.b16 %v5003
        %v5036 = vunpack.c.l.b16 %v5004
        %v5037 = vunpack.c.l.b16 %v5005
        %v5038 = vunpack.c.l.b16 %v5006
        %v5039 = vpack.c.b16 %v5024, %v5023
        %v5040 = vpack.c.b16 %v5026, %v5025
        %v5041 = vpack.c.b16 %v5028, %v5027
        %v5042 = vpack.c.b16 %v5030, %v5029
        %v5043 = vpack.c.b16 %v5032, %v5031
        %v5044 = vpack.c.b16 %v5034, %v5033
        %v5045 = vpack.c.b16 %v5036, %v5035
        %v5046 = vpack.c.b16 %v5038, %v5037
        %5055 = vmatprep.subr.bf16.mxu0 0
        %5056 = vmatpush1.bf16.msra.mxu0 %v5039
        %5057 = vmatprep.subr.bf16.mxu0 0
        %5058 = vmatpush1.bf16.msra.mxu0 %v5040
        %5059 = vmatprep.subr.bf16.mxu0 0
        %5060 = vmatpush1.bf16.msra.mxu0 %v5041
        %5061 = vmatprep.subr.bf16.mxu0 0
        %5062 = vmatpush1.bf16.msra.mxu0 %v5042
        %5063 = vmatprep.subr.bf16.mxu0 0
        %5064 = vmatpush1.bf16.msra.mxu0 %v5043
        %5065 = vmatprep.subr.bf16.mxu0 0
        %5066 = vmatpush1.bf16.msra.mxu0 %v5044
        %5067 = vmatprep.subr.bf16.mxu0 0
        %5068 = vmatpush1.bf16.msra.mxu0 %v5045
        %5069 = vmatprep.subr.bf16.mxu0 0
        %5070 = vmatpush1.bf16.msra.mxu0 %v5046
        %5071 = vmatprep.subr.bf16.mxu0 0
        %5072 = vmatpush1.bf16.msra.mxu0 0
        %5073 = vmatprep.subr.bf16.mxu0 0
        %5074 = vmatpush1.bf16.msra.mxu0 0
        %5075 = vmatprep.subr.bf16.mxu0 0
        %5076 = vmatpush1.bf16.msra.mxu0 0
        %5077 = vmatprep.subr.bf16.mxu0 0
        %5078 = vmatpush1.bf16.msra.mxu0 0
        %5079 = vmatprep.subr.bf16.mxu0 0
        %5080 = vmatpush1.bf16.msra.mxu0 0
        %5081 = vmatprep.subr.bf16.mxu0 0
        %5082 = vmatpush1.bf16.msra.mxu0 0
        %5083 = vmatprep.subr.bf16.mxu0 0
        %5084 = vmatpush1.bf16.msra.mxu0 0
        %5085 = vmatprep.subr.bf16.mxu0 0
        %5086 = vmatpush1.bf16.msra.mxu0 0
        %5087 = vmatprep.mubr.bf16.mxu0 0
        %5088 = vmatmul.mubr.bf16.gmra.mrb[0].mxu0 %v4974
        %v5089 = vpop.f32.mrb[0].mxu0
        %v5090 = vadd.f32 0.0, %v5089
        %v5091 = vpop.f32.mrb[0].mxu0
        %v5092 = vpop.f32.mrb[0].mxu0
        %v5093 = vadd.f32 0.0, %v5092
        %v5094 = vpop.f32.mrb[0].mxu0
        %5095 = vmatprep.mubr.bf16.mxu0 0
        %5096 = vmatmul.mubr.bf16.gmra.mrb[0].mxu0 %v4975
        %v5097 = vpop.f32.mrb[0].mxu0
        %v5098 = vadd.f32 0.0, %v5097
        %v5099 = vpop.f32.mrb[0].mxu0
        %v5100 = vpop.f32.mrb[0].mxu0
        %v5101 = vadd.f32 0.0, %v5100
        %v5102 = vpop.f32.mrb[0].mxu0
        %5103 = vmatprep.mubr.bf16.mxu0 0
        %5104 = vmatmul.mubr.bf16.gmra.mrb[0].mxu0 %v4976
        %v5105 = vpop.f32.mrb[0].mxu0
        %v5106 = vadd.f32 0.0, %v5105
        %v5107 = vpop.f32.mrb[0].mxu0
        %v5108 = vpop.f32.mrb[0].mxu0
        %v5109 = vadd.f32 0.0, %v5108
        %v5110 = vpop.f32.mrb[0].mxu0
        %5111 = vmatprep.mubr.bf16.mxu0 0
        %5112 = vmatmul.mubr.bf16.gmra.mrb[0].mxu0 %v4977
        %v5113 = vpop.f32.mrb[0].mxu0
        %v5114 = vadd.f32 0.0, %v5113
        %v5115 = vpop.f32.mrb[0].mxu0
        %v5116 = vpop.f32.mrb[0].mxu0
        %v5117 = vadd.f32 0.0, %v5116
        %v5118 = vpop.f32.mrb[0].mxu0
        %5119 = vmatprep.mubr.bf16.mxu0 0
        %5120 = vmatmul.mubr.bf16.gmra.mrb[0].mxu0 %v4978
        %v5121 = vpop.f32.mrb[0].mxu0
        %v5122 = vadd.f32 0.0, %v5121
        %v5123 = vpop.f32.mrb[0].mxu0
        %v5124 = vpop.f32.mrb[0].mxu0
        %v5125 = vadd.f32 0.0, %v5124
        %v5126 = vpop.f32.mrb[0].mxu0
        %5127 = vmatprep.mubr.bf16.mxu0 0
        %5128 = vmatmul.mubr.bf16.gmra.mrb[0].mxu0 %v4979
        %v5129 = vpop.f32.mrb[0].mxu0
        %v5130 = vadd.f32 0.0, %v5129
        %v5131 = vpop.f32.mrb[0].mxu0
        %v5132 = vpop.f32.mrb[0].mxu0
        %v5133 = vadd.f32 0.0, %v5132
        %v5134 = vpop.f32.mrb[0].mxu0
        %5135 = vmatprep.mubr.bf16.mxu0 0
        %5136 = vmatmul.mubr.bf16.gmra.mrb[0].mxu0 %v4980
        %v5137 = vpop.f32.mrb[0].mxu0
        %v5138 = vadd.f32 0.0, %v5137
        %v5139 = vpop.f32.mrb[0].mxu0
        %v5140 = vpop.f32.mrb[0].mxu0
        %v5141 = vadd.f32 0.0, %v5140
        %v5142 = vpop.f32.mrb[0].mxu0
        %5143 = vmatprep.mubr.bf16.mxu0 0
        %5144 = vmatmul.mubr.bf16.gmra.mrb[0].mxu0 %v4981
        %v5145 = vpop.f32.mrb[0].mxu0
        %v5146 = vadd.f32 0.0, %v5145
        %v5147 = vpop.f32.mrb[0].mxu0
        %v5148 = vpop.f32.mrb[0].mxu0
        %v5149 = vadd.f32 0.0, %v5148
        %v5150 = vpop.f32.mrb[0].mxu0
        %5151 = vmatprep.mubr.bf16.mxu0 0
        %5152 = vmatmul.mubr.bf16.gmra.mrb[0].mxu0 %v4982
        %v5153 = vpop.f32.mrb[0].mxu0
        %v5154 = vadd.f32 0.0, %v5153
        %v5155 = vpop.f32.mrb[0].mxu0
        %v5156 = vpop.f32.mrb[0].mxu0
        %v5157 = vadd.f32 0.0, %v5156
        %v5158 = vpop.f32.mrb[0].mxu0
        %5159 = vmatprep.mubr.bf16.mxu0 0
        %5160 = vmatmul.mubr.bf16.gmra.mrb[0].mxu0 %v4983
        %v5161 = vpop.f32.mrb[0].mxu0
        %v5162 = vadd.f32 0.0, %v5161
        %v5163 = vpop.f32.mrb[0].mxu0
        %v5164 = vpop.f32.mrb[0].mxu0
        %v5165 = vadd.f32 0.0, %v5164
        %v5166 = vpop.f32.mrb[0].mxu0
        %5167 = vmatprep.mubr.bf16.mxu0 0
        %5168 = vmatmul.mubr.bf16.gmra.mrb[0].mxu0 %v4984
        %v5169 = vpop.f32.mrb[0].mxu0
        %v5170 = vadd.f32 0.0, %v5169
        %v5171 = vpop.f32.mrb[0].mxu0
        %v5172 = vpop.f32.mrb[0].mxu0
        %v5173 = vadd.f32 0.0, %v5172
        %v5174 = vpop.f32.mrb[0].mxu0
        %5175 = vmatprep.mubr.bf16.mxu0 0
        %5176 = vmatmul.mubr.bf16.gmra.mrb[0].mxu0 %v4985
        %v5177 = vpop.f32.mrb[0].mxu0
        %v5178 = vadd.f32 0.0, %v5177
        %v5179 = vpop.f32.mrb[0].mxu0
        %v5180 = vpop.f32.mrb[0].mxu0
        %v5181 = vadd.f32 0.0, %v5180
        %v5182 = vpop.f32.mrb[0].mxu0
        %5183 = vmatprep.mubr.bf16.mxu0 0
        %5184 = vmatmul.mubr.bf16.gmra.mrb[0].mxu0 %v4986
        %v5185 = vpop.f32.mrb[0].mxu0
        %v5186 = vadd.f32 0.0, %v5185
        %v5187 = vpop.f32.mrb[0].mxu0
        %v5188 = vpop.f32.mrb[0].mxu0
        %v5189 = vadd.f32 0.0, %v5188
        %v5190 = vpop.f32.mrb[0].mxu0
        %5191 = vmatprep.mubr.bf16.mxu0 0
        %5192 = vmatmul.mubr.bf16.gmra.mrb[0].mxu0 %v4987
        %v5193 = vpop.f32.mrb[0].mxu0
        %v5194 = vadd.f32 0.0, %v5193
        %v5195 = vpop.f32.mrb[0].mxu0
        %v5196 = vpop.f32.mrb[0].mxu0
        %v5197 = vadd.f32 0.0, %v5196
        %v5198 = vpop.f32.mrb[0].mxu0
        %5199 = vmatprep.mubr.bf16.mxu0 0
        %5200 = vmatmul.mubr.bf16.gmra.mrb[0].mxu0 %v4988
        %v5201 = vpop.f32.mrb[0].mxu0
        %v5202 = vadd.f32 0.0, %v5201
        %v5203 = vpop.f32.mrb[0].mxu0
        %v5204 = vpop.f32.mrb[0].mxu0
        %v5205 = vadd.f32 0.0, %v5204
        %v5206 = vpop.f32.mrb[0].mxu0
        %5207 = vmatprep.mubr.bf16.mxu0 0
        %5208 = vmatmul.mubr.bf16.gmra.mrb[0].mxu0 %v4989
        %v5209 = vpop.f32.mrb[0].mxu0
        %v5210 = vadd.f32 0.0, %v5209
        %v5211 = vpop.f32.mrb[0].mxu0
        %v5212 = vpop.f32.mrb[0].mxu0
        %v5213 = vadd.f32 0.0, %v5212
        %v5214 = vpop.f32.mrb[0].mxu0
        %5215 = vdwg.mxu0
        %v5216 = vadd.f32 %v4910, %v5090
        %v5217 = vadd.f32 %v4911, %v5093
        %v5218 = vadd.f32 %v4912, %v5098
        %v5219 = vadd.f32 %v4913, %v5101
        %v5220 = vadd.f32 %v4914, %v5106
        %v5221 = vadd.f32 %v4915, %v5109
        %v5222 = vadd.f32 %v4916, %v5114
        %v5223 = vadd.f32 %v4917, %v5117
        %v5224 = vadd.f32 %v4918, %v5122
        %v5225 = vadd.f32 %v4919, %v5125
        %v5226 = vadd.f32 %v4920, %v5130
        %v5227 = vadd.f32 %v4921, %v5133
        %v5228 = vadd.f32 %v4922, %v5138
        %v5229 = vadd.f32 %v4923, %v5141
        %v5230 = vadd.f32 %v4924, %v5146
        %v5231 = vadd.f32 %v4925, %v5149
        %v5232 = vadd.f32 %v4926, %v5154
        %v5233 = vadd.f32 %v4927, %v5157
        %v5234 = vadd.f32 %v4928, %v5162
        %v5235 = vadd.f32 %v4929, %v5165
        %v5236 = vadd.f32 %v4930, %v5170
        %v5237 = vadd.f32 %v4931, %v5173
        %v5238 = vadd.f32 %v4932, %v5178
        %v5239 = vadd.f32 %v4933, %v5181
        %v5240 = vadd.f32 %v4934, %v5186
        %v5241 = vadd.f32 %v4935, %v5189
        %v5242 = vadd.f32 %v4936, %v5194
        %v5243 = vadd.f32 %v4937, %v5197
        %v5244 = vadd.f32 %v4938, %v5202
        %v5245 = vadd.f32 %v4939, %v5205
        %v5246 = vadd.f32 %v4940, %v5210
        %v5247 = vadd.f32 %v4941, %v5213
        %v5248 = vld [vmem:[%s2149 + $0x1] sm:$0xff]
        %v5249 = vld [vmem:[%s2149 + $0x9] sm:$0xff]
        %v5250 = vld [vmem:[%s2149 + $0x19] sm:$0xff]
        %v5251 = vld [vmem:[%s2149 + $0x21] sm:$0xff]
        %v5252 = vld [vmem:[%s2149 + $0x31] sm:$0xff]
        %v5253 = vld [vmem:[%s2149 + $0x39] sm:$0xff]
        %v5254 = vld [vmem:[%s2149 + $0x49] sm:$0xff]
        %v5255 = vld [vmem:[%s2149 + $0x51] sm:$0xff]
        %v5256 = vld [vmem:[%s2149 + $0x61] sm:$0xff]
        %v5257 = vld [vmem:[%s2149 + $0x69] sm:$0xff]
        %v5258 = vld [vmem:[%s2149 + $0x79] sm:$0xff]
        %v5259 = vld [vmem:[%s2149 + $0x81] sm:$0xff]
        %v5260 = vld [vmem:[%s2149 + $0x91] sm:$0xff]
        %v5261 = vld [vmem:[%s2149 + $0x99] sm:$0xff]
        %v5262 = vld [vmem:[%s2149 + $0xa9] sm:$0xff]
        %v5263 = vld [vmem:[%s2149 + $0xb1] sm:$0xff]
        %v5264 = vld [vmem:[%s2149 + $0xc1] sm:$0xff]
        %v5265 = vld [vmem:[%s2149 + $0xc9] sm:$0xff]
        %v5266 = vld [vmem:[%s2149 + $0xd9] sm:$0xff]
        %v5267 = vld [vmem:[%s2149 + $0xe1] sm:$0xff]
        %v5268 = vld [vmem:[%s2149 + $0xf1] sm:$0xff]
        %v5269 = vld [vmem:[%s2149 + $0xf9] sm:$0xff]
        %v5270 = vld [vmem:[%s2149 + $0x109] sm:$0xff]
        %v5271 = vld [vmem:[%s2149 + $0x111] sm:$0xff]
        %v5272 = vld [vmem:[%s2149 + $0x121] sm:$0xff]
        %v5273 = vld [vmem:[%s2149 + $0x129] sm:$0xff]
        %v5274 = vld [vmem:[%s2149 + $0x139] sm:$0xff]
        %v5275 = vld [vmem:[%s2149 + $0x141] sm:$0xff]
        %v5276 = vld [vmem:[%s2149 + $0x151] sm:$0xff]
        %v5277 = vld [vmem:[%s2149 + $0x159] sm:$0xff]
        %v5278 = vld [vmem:[%s2149 + $0x169] sm:$0xff]
        %v5279 = vld [vmem:[%s2149 + $0x171] sm:$0xff]
        %v5280 = vpack.c.bf16 %v5249, %v5248
        %v5281 = vpack.c.bf16 %v5251, %v5250
        %v5282 = vpack.c.bf16 %v5253, %v5252
        %v5283 = vpack.c.bf16 %v5255, %v5254
        %v5284 = vpack.c.bf16 %v5257, %v5256
        %v5285 = vpack.c.bf16 %v5259, %v5258
        %v5286 = vpack.c.bf16 %v5261, %v5260
        %v5287 = vpack.c.bf16 %v5263, %v5262
        %v5288 = vpack.c.bf16 %v5265, %v5264
        %v5289 = vpack.c.bf16 %v5267, %v5266
        %v5290 = vpack.c.bf16 %v5269, %v5268
        %v5291 = vpack.c.bf16 %v5271, %v5270
        %v5292 = vpack.c.bf16 %v5273, %v5272
        %v5293 = vpack.c.bf16 %v5275, %v5274
        %v5294 = vpack.c.bf16 %v5277, %v5276
        %v5295 = vpack.c.bf16 %v5279, %v5278
        %s5296 = scalar_lea.vmem [#allocation3], 448
        %v5297 = vld [vmem:[%s5296] sm:$0xf]
        %v5298 = vld [vmem:[%s5296 + $0x4] sm:$0xf]
        %v5299 = vld [vmem:[%s5296 + $0x8] sm:$0xf]
        %v5300 = vld [vmem:[%s5296 + $0xc] sm:$0xf]
        %v5301 = vld [vmem:[%s5296 + $0x10] sm:$0xf]
        %v5302 = vld [vmem:[%s5296 + $0x14] sm:$0xf]
        %v5303 = vld [vmem:[%s5296 + $0x18] sm:$0xf]
        %v5304 = vld [vmem:[%s5296 + $0x1c] sm:$0xf]
        %v5305 = vld [vmem:[%s5296 + $0x20] sm:$0xf]
        %v5306 = vld [vmem:[%s5296 + $0x24] sm:$0xf]
        %v5307 = vld [vmem:[%s5296 + $0x28] sm:$0xf]
        %v5308 = vld [vmem:[%s5296 + $0x2c] sm:$0xf]
        %v5309 = vld [vmem:[%s5296 + $0x30] sm:$0xf]
        %v5310 = vld [vmem:[%s5296 + $0x34] sm:$0xf]
        %v5311 = vld [vmem:[%s5296 + $0x38] sm:$0xf]
        %v5312 = vld [vmem:[%s5296 + $0x3c] sm:$0xf]
        %v5329 = vunpack.c.l.b16 %v5297
        %v5330 = vunpack.c.l.b16 %v5298
        %v5331 = vunpack.c.l.b16 %v5299
        %v5332 = vunpack.c.l.b16 %v5300
        %v5333 = vunpack.c.l.b16 %v5301
        %v5334 = vunpack.c.l.b16 %v5302
        %v5335 = vunpack.c.l.b16 %v5303
        %v5336 = vunpack.c.l.b16 %v5304
        %v5337 = vunpack.c.l.b16 %v5305
        %v5338 = vunpack.c.l.b16 %v5306
        %v5339 = vunpack.c.l.b16 %v5307
        %v5340 = vunpack.c.l.b16 %v5308
        %v5341 = vunpack.c.l.b16 %v5309
        %v5342 = vunpack.c.l.b16 %v5310
        %v5343 = vunpack.c.l.b16 %v5311
        %v5344 = vunpack.c.l.b16 %v5312
        %v5345 = vpack.c.b16 %v5330, %v5329
        %v5346 = vpack.c.b16 %v5332, %v5331
        %v5347 = vpack.c.b16 %v5334, %v5333
        %v5348 = vpack.c.b16 %v5336, %v5335
        %v5349 = vpack.c.b16 %v5338, %v5337
        %v5350 = vpack.c.b16 %v5340, %v5339
        %v5351 = vpack.c.b16 %v5342, %v5341
        %v5352 = vpack.c.b16 %v5344, %v5343
        %5361 = vmatprep.subr.bf16.mxu0 0
        %5362 = vmatpush1.bf16.msra.mxu0 %v5345
        %5363 = vmatprep.subr.bf16.mxu0 0
        %5364 = vmatpush1.bf16.msra.mxu0 %v5346
        %5365 = vmatprep.subr.bf16.mxu0 0
        %5366 = vmatpush1.bf16.msra.mxu0 %v5347
        %5367 = vmatprep.subr.bf16.mxu0 0
        %5368 = vmatpush1.bf16.msra.mxu0 %v5348
        %5369 = vmatprep.subr.bf16.mxu0 0
        %5370 = vmatpush1.bf16.msra.mxu0 %v5349
        %5371 = vmatprep.subr.bf16.mxu0 0
        %5372 = vmatpush1.bf16.msra.mxu0 %v5350
        %5373 = vmatprep.subr.bf16.mxu0 0
        %5374 = vmatpush1.bf16.msra.mxu0 %v5351
        %5375 = vmatprep.subr.bf16.mxu0 0
        %5376 = vmatpush1.bf16.msra.mxu0 %v5352
        %5377 = vmatprep.subr.bf16.mxu0 0
        %5378 = vmatpush1.bf16.msra.mxu0 0
        %5379 = vmatprep.subr.bf16.mxu0 0
        %5380 = vmatpush1.bf16.msra.mxu0 0
        %5381 = vmatprep.subr.bf16.mxu0 0
        %5382 = vmatpush1.bf16.msra.mxu0 0
        %5383 = vmatprep.subr.bf16.mxu0 0
        %5384 = vmatpush1.bf16.msra.mxu0 0
        %5385 = vmatprep.subr.bf16.mxu0 0
        %5386 = vmatpush1.bf16.msra.mxu0 0
        %5387 = vmatprep.subr.bf16.mxu0 0
        %5388 = vmatpush1.bf16.msra.mxu0 0
        %5389 = vmatprep.subr.bf16.mxu0 0
        %5390 = vmatpush1.bf16.msra.mxu0 0
        %5391 = vmatprep.subr.bf16.mxu0 0
        %5392 = vmatpush1.bf16.msra.mxu0 0
        %5393 = vmatprep.mubr.bf16.mxu0 0
        %5394 = vmatmul.mubr.bf16.gmra.mrb[0].mxu0 %v5280
        %v5395 = vpop.f32.mrb[0].mxu0
        %v5396 = vadd.f32 0.0, %v5395
        %v5397 = vpop.f32.mrb[0].mxu0
        %v5398 = vpop.f32.mrb[0].mxu0
        %v5399 = vadd.f32 0.0, %v5398
        %v5400 = vpop.f32.mrb[0].mxu0
        %5401 = vmatprep.mubr.bf16.mxu0 0
        %5402 = vmatmul.mubr.bf16.gmra.mrb[0].mxu0 %v5281
        %v5403 = vpop.f32.mrb[0].mxu0
        %v5404 = vadd.f32 0.0, %v5403
        %v5405 = vpop.f32.mrb[0].mxu0
        %v5406 = vpop.f32.mrb[0].mxu0
        %v5407 = vadd.f32 0.0, %v5406
        %v5408 = vpop.f32.mrb[0].mxu0
        %5409 = vmatprep.mubr.bf16.mxu0 0
        %5410 = vmatmul.mubr.bf16.gmra.mrb[0].mxu0 %v5282
        %v5411 = vpop.f32.mrb[0].mxu0
        %v5412 = vadd.f32 0.0, %v5411
        %v5413 = vpop.f32.mrb[0].mxu0
        %v5414 = vpop.f32.mrb[0].mxu0
        %v5415 = vadd.f32 0.0, %v5414
        %v5416 = vpop.f32.mrb[0].mxu0
        %5417 = vmatprep.mubr.bf16.mxu0 0
        %5418 = vmatmul.mubr.bf16.gmra.mrb[0].mxu0 %v5283
        %v5419 = vpop.f32.mrb[0].mxu0
        %v5420 = vadd.f32 0.0, %v5419
        %v5421 = vpop.f32.mrb[0].mxu0
        %v5422 = vpop.f32.mrb[0].mxu0
        %v5423 = vadd.f32 0.0, %v5422
        %v5424 = vpop.f32.mrb[0].mxu0
        %5425 = vmatprep.mubr.bf16.mxu0 0
        %5426 = vmatmul.mubr.bf16.gmra.mrb[0].mxu0 %v5284
        %v5427 = vpop.f32.mrb[0].mxu0
        %v5428 = vadd.f32 0.0, %v5427
        %v5429 = vpop.f32.mrb[0].mxu0
        %v5430 = vpop.f32.mrb[0].mxu0
        %v5431 = vadd.f32 0.0, %v5430
        %v5432 = vpop.f32.mrb[0].mxu0
        %5433 = vmatprep.mubr.bf16.mxu0 0
        %5434 = vmatmul.mubr.bf16.gmra.mrb[0].mxu0 %v5285
        %v5435 = vpop.f32.mrb[0].mxu0
        %v5436 = vadd.f32 0.0, %v5435
        %v5437 = vpop.f32.mrb[0].mxu0
        %v5438 = vpop.f32.mrb[0].mxu0
        %v5439 = vadd.f32 0.0, %v5438
        %v5440 = vpop.f32.mrb[0].mxu0
        %5441 = vmatprep.mubr.bf16.mxu0 0
        %5442 = vmatmul.mubr.bf16.gmra.mrb[0].mxu0 %v5286
        %v5443 = vpop.f32.mrb[0].mxu0
        %v5444 = vadd.f32 0.0, %v5443
        %v5445 = vpop.f32.mrb[0].mxu0
        %v5446 = vpop.f32.mrb[0].mxu0
        %v5447 = vadd.f32 0.0, %v5446
        %v5448 = vpop.f32.mrb[0].mxu0
        %5449 = vmatprep.mubr.bf16.mxu0 0
        %5450 = vmatmul.mubr.bf16.gmra.mrb[0].mxu0 %v5287
        %v5451 = vpop.f32.mrb[0].mxu0
        %v5452 = vadd.f32 0.0, %v5451
        %v5453 = vpop.f32.mrb[0].mxu0
        %v5454 = vpop.f32.mrb[0].mxu0
        %v5455 = vadd.f32 0.0, %v5454
        %v5456 = vpop.f32.mrb[0].mxu0
        %5457 = vmatprep.mubr.bf16.mxu0 0
        %5458 = vmatmul.mubr.bf16.gmra.mrb[0].mxu0 %v5288
        %v5459 = vpop.f32.mrb[0].mxu0
        %v5460 = vadd.f32 0.0, %v5459
        %v5461 = vpop.f32.mrb[0].mxu0
        %v5462 = vpop.f32.mrb[0].mxu0
        %v5463 = vadd.f32 0.0, %v5462
        %v5464 = vpop.f32.mrb[0].mxu0
        %5465 = vmatprep.mubr.bf16.mxu0 0
        %5466 = vmatmul.mubr.bf16.gmra.mrb[0].mxu0 %v5289
        %v5467 = vpop.f32.mrb[0].mxu0
        %v5468 = vadd.f32 0.0, %v5467
        %v5469 = vpop.f32.mrb[0].mxu0
        %v5470 = vpop.f32.mrb[0].mxu0
        %v5471 = vadd.f32 0.0, %v5470
        %v5472 = vpop.f32.mrb[0].mxu0
        %5473 = vmatprep.mubr.bf16.mxu0 0
        %5474 = vmatmul.mubr.bf16.gmra.mrb[0].mxu0 %v5290
        %v5475 = vpop.f32.mrb[0].mxu0
        %v5476 = vadd.f32 0.0, %v5475
        %v5477 = vpop.f32.mrb[0].mxu0
        %v5478 = vpop.f32.mrb[0].mxu0
        %v5479 = vadd.f32 0.0, %v5478
        %v5480 = vpop.f32.mrb[0].mxu0
        %5481 = vmatprep.mubr.bf16.mxu0 0
        %5482 = vmatmul.mubr.bf16.gmra.mrb[0].mxu0 %v5291
        %v5483 = vpop.f32.mrb[0].mxu0
        %v5484 = vadd.f32 0.0, %v5483
        %v5485 = vpop.f32.mrb[0].mxu0
        %v5486 = vpop.f32.mrb[0].mxu0
        %v5487 = vadd.f32 0.0, %v5486
        %v5488 = vpop.f32.mrb[0].mxu0
        %5489 = vmatprep.mubr.bf16.mxu0 0
        %5490 = vmatmul.mubr.bf16.gmra.mrb[0].mxu0 %v5292
        %v5491 = vpop.f32.mrb[0].mxu0
        %v5492 = vadd.f32 0.0, %v5491
        %v5493 = vpop.f32.mrb[0].mxu0
        %v5494 = vpop.f32.mrb[0].mxu0
        %v5495 = vadd.f32 0.0, %v5494
        %v5496 = vpop.f32.mrb[0].mxu0
        %5497 = vmatprep.mubr.bf16.mxu0 0
        %5498 = vmatmul.mubr.bf16.gmra.mrb[0].mxu0 %v5293
        %v5499 = vpop.f32.mrb[0].mxu0
        %v5500 = vadd.f32 0.0, %v5499
        %v5501 = vpop.f32.mrb[0].mxu0
        %v5502 = vpop.f32.mrb[0].mxu0
        %v5503 = vadd.f32 0.0, %v5502
        %v5504 = vpop.f32.mrb[0].mxu0
        %5505 = vmatprep.mubr.bf16.mxu0 0
        %5506 = vmatmul.mubr.bf16.gmra.mrb[0].mxu0 %v5294
        %v5507 = vpop.f32.mrb[0].mxu0
        %v5508 = vadd.f32 0.0, %v5507
        %v5509 = vpop.f32.mrb[0].mxu0
        %v5510 = vpop.f32.mrb[0].mxu0
        %v5511 = vadd.f32 0.0, %v5510
        %v5512 = vpop.f32.mrb[0].mxu0
        %5513 = vmatprep.mubr.bf16.mxu0 0
        %5514 = vmatmul.mubr.bf16.gmra.mrb[0].mxu0 %v5295
        %v5515 = vpop.f32.mrb[0].mxu0
        %v5516 = vadd.f32 0.0, %v5515
        %v5517 = vpop.f32.mrb[0].mxu0
        %v5518 = vpop.f32.mrb[0].mxu0
        %v5519 = vadd.f32 0.0, %v5518
        %v5520 = vpop.f32.mrb[0].mxu0
        %5521 = vdwg.mxu0
        %v5522 = vadd.f32 %v5216, %v5396
        %v5523 = vadd.f32 %v5217, %v5399
        %v5524 = vadd.f32 %v5218, %v5404
        %v5525 = vadd.f32 %v5219, %v5407
        %v5526 = vadd.f32 %v5220, %v5412
        %v5527 = vadd.f32 %v5221, %v5415
        %v5528 = vadd.f32 %v5222, %v5420
        %v5529 = vadd.f32 %v5223, %v5423
        %v5530 = vadd.f32 %v5224, %v5428
        %v5531 = vadd.f32 %v5225, %v5431
        %v5532 = vadd.f32 %v5226, %v5436
        %v5533 = vadd.f32 %v5227, %v5439
        %v5534 = vadd.f32 %v5228, %v5444
        %v5535 = vadd.f32 %v5229, %v5447
        %v5536 = vadd.f32 %v5230, %v5452
        %v5537 = vadd.f32 %v5231, %v5455
        %v5538 = vadd.f32 %v5232, %v5460
        %v5539 = vadd.f32 %v5233, %v5463
        %v5540 = vadd.f32 %v5234, %v5468
        %v5541 = vadd.f32 %v5235, %v5471
        %v5542 = vadd.f32 %v5236, %v5476
        %v5543 = vadd.f32 %v5237, %v5479
        %v5544 = vadd.f32 %v5238, %v5484
        %v5545 = vadd.f32 %v5239, %v5487
        %v5546 = vadd.f32 %v5240, %v5492
        %v5547 = vadd.f32 %v5241, %v5495
        %v5548 = vadd.f32 %v5242, %v5500
        %v5549 = vadd.f32 %v5243, %v5503
        %v5550 = vadd.f32 %v5244, %v5508
        %v5551 = vadd.f32 %v5245, %v5511
        %v5552 = vadd.f32 %v5246, %v5516
        %v5553 = vadd.f32 %v5247, %v5519
        %v5554 = vld [vmem:[%s2149 + $0x2] sm:$0xff]
        %v5555 = vld [vmem:[%s2149 + $0xa] sm:$0xff]
        %v5556 = vld [vmem:[%s2149 + $0x1a] sm:$0xff]
        %v5557 = vld [vmem:[%s2149 + $0x22] sm:$0xff]
        %v5558 = vld [vmem:[%s2149 + $0x32] sm:$0xff]
        %v5559 = vld [vmem:[%s2149 + $0x3a] sm:$0xff]
        %v5560 = vld [vmem:[%s2149 + $0x4a] sm:$0xff]
        %v5561 = vld [vmem:[%s2149 + $0x52] sm:$0xff]
        %v5562 = vld [vmem:[%s2149 + $0x62] sm:$0xff]
        %v5563 = vld [vmem:[%s2149 + $0x6a] sm:$0xff]
        %v5564 = vld [vmem:[%s2149 + $0x7a] sm:$0xff]
        %v5565 = vld [vmem:[%s2149 + $0x82] sm:$0xff]
        %v5566 = vld [vmem:[%s2149 + $0x92] sm:$0xff]
        %v5567 = vld [vmem:[%s2149 + $0x9a] sm:$0xff]
        %v5568 = vld [vmem:[%s2149 + $0xaa] sm:$0xff]
        %v5569 = vld [vmem:[%s2149 + $0xb2] sm:$0xff]
        %v5570 = vld [vmem:[%s2149 + $0xc2] sm:$0xff]
        %v5571 = vld [vmem:[%s2149 + $0xca] sm:$0xff]
        %v5572 = vld [vmem:[%s2149 + $0xda] sm:$0xff]
        %v5573 = vld [vmem:[%s2149 + $0xe2] sm:$0xff]
        %v5574 = vld [vmem:[%s2149 + $0xf2] sm:$0xff]
        %v5575 = vld [vmem:[%s2149 + $0xfa] sm:$0xff]
        %v5576 = vld [vmem:[%s2149 + $0x10a] sm:$0xff]
        %v5577 = vld [vmem:[%s2149 + $0x112] sm:$0xff]
        %v5578 = vld [vmem:[%s2149 + $0x122] sm:$0xff]
        %v5579 = vld [vmem:[%s2149 + $0x12a] sm:$0xff]
        %v5580 = vld [vmem:[%s2149 + $0x13a] sm:$0xff]
        %v5581 = vld [vmem:[%s2149 + $0x142] sm:$0xff]
        %v5582 = vld [vmem:[%s2149 + $0x152] sm:$0xff]
        %v5583 = vld [vmem:[%s2149 + $0x15a] sm:$0xff]
        %v5584 = vld [vmem:[%s2149 + $0x16a] sm:$0xff]
        %v5585 = vld [vmem:[%s2149 + $0x172] sm:$0xff]
        %v5586 = vpack.c.bf16 %v5555, %v5554
        %v5587 = vpack.c.bf16 %v5557, %v5556
        %v5588 = vpack.c.bf16 %v5559, %v5558
        %v5589 = vpack.c.bf16 %v5561, %v5560
        %v5590 = vpack.c.bf16 %v5563, %v5562
        %v5591 = vpack.c.bf16 %v5565, %v5564
        %v5592 = vpack.c.bf16 %v5567, %v5566
        %v5593 = vpack.c.bf16 %v5569, %v5568
        %v5594 = vpack.c.bf16 %v5571, %v5570
        %v5595 = vpack.c.bf16 %v5573, %v5572
        %v5596 = vpack.c.bf16 %v5575, %v5574
        %v5597 = vpack.c.bf16 %v5577, %v5576
        %v5598 = vpack.c.bf16 %v5579, %v5578
        %v5599 = vpack.c.bf16 %v5581, %v5580
        %v5600 = vpack.c.bf16 %v5583, %v5582
        %v5601 = vpack.c.bf16 %v5585, %v5584
        %s5602 = scalar_lea.vmem [#allocation3], 512
        %v5603 = vld [vmem:[%s5602] sm:$0xf]
        %v5604 = vld [vmem:[%s5602 + $0x4] sm:$0xf]
        %v5605 = vld [vmem:[%s5602 + $0x8] sm:$0xf]
        %v5606 = vld [vmem:[%s5602 + $0xc] sm:$0xf]
        %v5607 = vld [vmem:[%s5602 + $0x10] sm:$0xf]
        %v5608 = vld [vmem:[%s5602 + $0x14] sm:$0xf]
        %v5609 = vld [vmem:[%s5602 + $0x18] sm:$0xf]
        %v5610 = vld [vmem:[%s5602 + $0x1c] sm:$0xf]
        %v5611 = vld [vmem:[%s5602 + $0x20] sm:$0xf]
        %v5612 = vld [vmem:[%s5602 + $0x24] sm:$0xf]
        %v5613 = vld [vmem:[%s5602 + $0x28] sm:$0xf]
        %v5614 = vld [vmem:[%s5602 + $0x2c] sm:$0xf]
        %v5615 = vld [vmem:[%s5602 + $0x30] sm:$0xf]
        %v5616 = vld [vmem:[%s5602 + $0x34] sm:$0xf]
        %v5617 = vld [vmem:[%s5602 + $0x38] sm:$0xf]
        %v5618 = vld [vmem:[%s5602 + $0x3c] sm:$0xf]
        %v5635 = vunpack.c.l.b16 %v5603
        %v5636 = vunpack.c.l.b16 %v5604
        %v5637 = vunpack.c.l.b16 %v5605
        %v5638 = vunpack.c.l.b16 %v5606
        %v5639 = vunpack.c.l.b16 %v5607
        %v5640 = vunpack.c.l.b16 %v5608
        %v5641 = vunpack.c.l.b16 %v5609
        %v5642 = vunpack.c.l.b16 %v5610
        %v5643 = vunpack.c.l.b16 %v5611
        %v5644 = vunpack.c.l.b16 %v5612
        %v5645 = vunpack.c.l.b16 %v5613
        %v5646 = vunpack.c.l.b16 %v5614
        %v5647 = vunpack.c.l.b16 %v5615
        %v5648 = vunpack.c.l.b16 %v5616
        %v5649 = vunpack.c.l.b16 %v5617
        %v5650 = vunpack.c.l.b16 %v5618
        %v5651 = vpack.c.b16 %v5636, %v5635
        %v5652 = vpack.c.b16 %v5638, %v5637
        %v5653 = vpack.c.b16 %v5640, %v5639
        %v5654 = vpack.c.b16 %v5642, %v5641
        %v5655 = vpack.c.b16 %v5644, %v5643
        %v5656 = vpack.c.b16 %v5646, %v5645
        %v5657 = vpack.c.b16 %v5648, %v5647
        %v5658 = vpack.c.b16 %v5650, %v5649
        %5667 = vmatprep.subr.bf16.mxu0 0
        %5668 = vmatpush1.bf16.msra.mxu0 %v5651
        %5669 = vmatprep.subr.bf16.mxu0 0
        %5670 = vmatpush1.bf16.msra.mxu0 %v5652
        %5671 = vmatprep.subr.bf16.mxu0 0
        %5672 = vmatpush1.bf16.msra.mxu0 %v5653
        %5673 = vmatprep.subr.bf16.mxu0 0
        %5674 = vmatpush1.bf16.msra.mxu0 %v5654
        %5675 = vmatprep.subr.bf16.mxu0 0
        %5676 = vmatpush1.bf16.msra.mxu0 %v5655
        %5677 = vmatprep.subr.bf16.mxu0 0
        %5678 = vmatpush1.bf16.msra.mxu0 %v5656
        %5679 = vmatprep.subr.bf16.mxu0 0
        %5680 = vmatpush1.bf16.msra.mxu0 %v5657
        %5681 = vmatprep.subr.bf16.mxu0 0
        %5682 = vmatpush1.bf16.msra.mxu0 %v5658
        %5683 = vmatprep.subr.bf16.mxu0 0
        %5684 = vmatpush1.bf16.msra.mxu0 0
        %5685 = vmatprep.subr.bf16.mxu0 0
        %5686 = vmatpush1.bf16.msra.mxu0 0
        %5687 = vmatprep.subr.bf16.mxu0 0
        %5688 = vmatpush1.bf16.msra.mxu0 0
        %5689 = vmatprep.subr.bf16.mxu0 0
        %5690 = vmatpush1.bf16.msra.mxu0 0
        %5691 = vmatprep.subr.bf16.mxu0 0
        %5692 = vmatpush1.bf16.msra.mxu0 0
        %5693 = vmatprep.subr.bf16.mxu0 0
        %5694 = vmatpush1.bf16.msra.mxu0 0
        %5695 = vmatprep.subr.bf16.mxu0 0
        %5696 = vmatpush1.bf16.msra.mxu0 0
        %5697 = vmatprep.subr.bf16.mxu0 0
        %5698 = vmatpush1.bf16.msra.mxu0 0
        %5699 = vmatprep.mubr.bf16.mxu0 0
        %5700 = vmatmul.mubr.bf16.gmra.mrb[0].mxu0 %v5586
        %v5701 = vpop.f32.mrb[0].mxu0
        %v5702 = vadd.f32 0.0, %v5701
        %v5703 = vpop.f32.mrb[0].mxu0
        %v5704 = vpop.f32.mrb[0].mxu0
        %v5705 = vadd.f32 0.0, %v5704
        %v5706 = vpop.f32.mrb[0].mxu0
        %5707 = vmatprep.mubr.bf16.mxu0 0
        %5708 = vmatmul.mubr.bf16.gmra.mrb[0].mxu0 %v5587
        %v5709 = vpop.f32.mrb[0].mxu0
        %v5710 = vadd.f32 0.0, %v5709
        %v5711 = vpop.f32.mrb[0].mxu0
        %v5712 = vpop.f32.mrb[0].mxu0
        %v5713 = vadd.f32 0.0, %v5712
        %v5714 = vpop.f32.mrb[0].mxu0
        %5715 = vmatprep.mubr.bf16.mxu0 0
        %5716 = vmatmul.mubr.bf16.gmra.mrb[0].mxu0 %v5588
        %v5717 = vpop.f32.mrb[0].mxu0
        %v5718 = vadd.f32 0.0, %v5717
        %v5719 = vpop.f32.mrb[0].mxu0
        %v5720 = vpop.f32.mrb[0].mxu0
        %v5721 = vadd.f32 0.0, %v5720
        %v5722 = vpop.f32.mrb[0].mxu0
        %5723 = vmatprep.mubr.bf16.mxu0 0
        %5724 = vmatmul.mubr.bf16.gmra.mrb[0].mxu0 %v5589
        %v5725 = vpop.f32.mrb[0].mxu0
        %v5726 = vadd.f32 0.0, %v5725
        %v5727 = vpop.f32.mrb[0].mxu0
        %v5728 = vpop.f32.mrb[0].mxu0
        %v5729 = vadd.f32 0.0, %v5728
        %v5730 = vpop.f32.mrb[0].mxu0
        %5731 = vmatprep.mubr.bf16.mxu0 0
        %5732 = vmatmul.mubr.bf16.gmra.mrb[0].mxu0 %v5590
        %v5733 = vpop.f32.mrb[0].mxu0
        %v5734 = vadd.f32 0.0, %v5733
        %v5735 = vpop.f32.mrb[0].mxu0
        %v5736 = vpop.f32.mrb[0].mxu0
        %v5737 = vadd.f32 0.0, %v5736
        %v5738 = vpop.f32.mrb[0].mxu0
        %5739 = vmatprep.mubr.bf16.mxu0 0
        %5740 = vmatmul.mubr.bf16.gmra.mrb[0].mxu0 %v5591
        %v5741 = vpop.f32.mrb[0].mxu0
        %v5742 = vadd.f32 0.0, %v5741
        %v5743 = vpop.f32.mrb[0].mxu0
        %v5744 = vpop.f32.mrb[0].mxu0
        %v5745 = vadd.f32 0.0, %v5744
        %v5746 = vpop.f32.mrb[0].mxu0
        %5747 = vmatprep.mubr.bf16.mxu0 0
        %5748 = vmatmul.mubr.bf16.gmra.mrb[0].mxu0 %v5592
        %v5749 = vpop.f32.mrb[0].mxu0
        %v5750 = vadd.f32 0.0, %v5749
        %v5751 = vpop.f32.mrb[0].mxu0
        %v5752 = vpop.f32.mrb[0].mxu0
        %v5753 = vadd.f32 0.0, %v5752
        %v5754 = vpop.f32.mrb[0].mxu0
        %5755 = vmatprep.mubr.bf16.mxu0 0
        %5756 = vmatmul.mubr.bf16.gmra.mrb[0].mxu0 %v5593
        %v5757 = vpop.f32.mrb[0].mxu0
        %v5758 = vadd.f32 0.0, %v5757
        %v5759 = vpop.f32.mrb[0].mxu0
        %v5760 = vpop.f32.mrb[0].mxu0
        %v5761 = vadd.f32 0.0, %v5760
        %v5762 = vpop.f32.mrb[0].mxu0
        %5763 = vmatprep.mubr.bf16.mxu0 0
        %5764 = vmatmul.mubr.bf16.gmra.mrb[0].mxu0 %v5594
        %v5765 = vpop.f32.mrb[0].mxu0
        %v5766 = vadd.f32 0.0, %v5765
        %v5767 = vpop.f32.mrb[0].mxu0
        %v5768 = vpop.f32.mrb[0].mxu0
        %v5769 = vadd.f32 0.0, %v5768
        %v5770 = vpop.f32.mrb[0].mxu0
        %5771 = vmatprep.mubr.bf16.mxu0 0
        %5772 = vmatmul.mubr.bf16.gmra.mrb[0].mxu0 %v5595
        %v5773 = vpop.f32.mrb[0].mxu0
        %v5774 = vadd.f32 0.0, %v5773
        %v5775 = vpop.f32.mrb[0].mxu0
        %v5776 = vpop.f32.mrb[0].mxu0
        %v5777 = vadd.f32 0.0, %v5776
        %v5778 = vpop.f32.mrb[0].mxu0
        %5779 = vmatprep.mubr.bf16.mxu0 0
        %5780 = vmatmul.mubr.bf16.gmra.mrb[0].mxu0 %v5596
        %v5781 = vpop.f32.mrb[0].mxu0
        %v5782 = vadd.f32 0.0, %v5781
        %v5783 = vpop.f32.mrb[0].mxu0
        %v5784 = vpop.f32.mrb[0].mxu0
        %v5785 = vadd.f32 0.0, %v5784
        %v5786 = vpop.f32.mrb[0].mxu0
        %5787 = vmatprep.mubr.bf16.mxu0 0
        %5788 = vmatmul.mubr.bf16.gmra.mrb[0].mxu0 %v5597
        %v5789 = vpop.f32.mrb[0].mxu0
        %v5790 = vadd.f32 0.0, %v5789
        %v5791 = vpop.f32.mrb[0].mxu0
        %v5792 = vpop.f32.mrb[0].mxu0
        %v5793 = vadd.f32 0.0, %v5792
        %v5794 = vpop.f32.mrb[0].mxu0
        %5795 = vmatprep.mubr.bf16.mxu0 0
        %5796 = vmatmul.mubr.bf16.gmra.mrb[0].mxu0 %v5598
        %v5797 = vpop.f32.mrb[0].mxu0
        %v5798 = vadd.f32 0.0, %v5797
        %v5799 = vpop.f32.mrb[0].mxu0
        %v5800 = vpop.f32.mrb[0].mxu0
        %v5801 = vadd.f32 0.0, %v5800
        %v5802 = vpop.f32.mrb[0].mxu0
        %5803 = vmatprep.mubr.bf16.mxu0 0
        %5804 = vmatmul.mubr.bf16.gmra.mrb[0].mxu0 %v5599
        %v5805 = vpop.f32.mrb[0].mxu0
        %v5806 = vadd.f32 0.0, %v5805
        %v5807 = vpop.f32.mrb[0].mxu0
        %v5808 = vpop.f32.mrb[0].mxu0
        %v5809 = vadd.f32 0.0, %v5808
        %v5810 = vpop.f32.mrb[0].mxu0
        %5811 = vmatprep.mubr.bf16.mxu0 0
        %5812 = vmatmul.mubr.bf16.gmra.mrb[0].mxu0 %v5600
        %v5813 = vpop.f32.mrb[0].mxu0
        %v5814 = vadd.f32 0.0, %v5813
        %v5815 = vpop.f32.mrb[0].mxu0
        %v5816 = vpop.f32.mrb[0].mxu0
        %v5817 = vadd.f32 0.0, %v5816
        %v5818 = vpop.f32.mrb[0].mxu0
        %5819 = vmatprep.mubr.bf16.mxu0 0
        %5820 = vmatmul.mubr.bf16.gmra.mrb[0].mxu0 %v5601
        %v5821 = vpop.f32.mrb[0].mxu0
        %v5822 = vadd.f32 0.0, %v5821
        %v5823 = vpop.f32.mrb[0].mxu0
        %v5824 = vpop.f32.mrb[0].mxu0
        %v5825 = vadd.f32 0.0, %v5824
        %v5826 = vpop.f32.mrb[0].mxu0
        %5827 = vdwg.mxu0
        %v5828 = vadd.f32 %v5522, %v5702
        %v5829 = vadd.f32 %v5523, %v5705
        %v5830 = vadd.f32 %v5524, %v5710
        %v5831 = vadd.f32 %v5525, %v5713
        %v5832 = vadd.f32 %v5526, %v5718
        %v5833 = vadd.f32 %v5527, %v5721
        %v5834 = vadd.f32 %v5528, %v5726
        %v5835 = vadd.f32 %v5529, %v5729
        %v5836 = vadd.f32 %v5530, %v5734
        %v5837 = vadd.f32 %v5531, %v5737
        %v5838 = vadd.f32 %v5532, %v5742
        %v5839 = vadd.f32 %v5533, %v5745
        %v5840 = vadd.f32 %v5534, %v5750
        %v5841 = vadd.f32 %v5535, %v5753
        %v5842 = vadd.f32 %v5536, %v5758
        %v5843 = vadd.f32 %v5537, %v5761
        %v5844 = vadd.f32 %v5538, %v5766
        %v5845 = vadd.f32 %v5539, %v5769
        %v5846 = vadd.f32 %v5540, %v5774
        %v5847 = vadd.f32 %v5541, %v5777
        %v5848 = vadd.f32 %v5542, %v5782
        %v5849 = vadd.f32 %v5543, %v5785
        %v5850 = vadd.f32 %v5544, %v5790
        %v5851 = vadd.f32 %v5545, %v5793
        %v5852 = vadd.f32 %v5546, %v5798
        %v5853 = vadd.f32 %v5547, %v5801
        %v5854 = vadd.f32 %v5548, %v5806
        %v5855 = vadd.f32 %v5549, %v5809
        %v5856 = vadd.f32 %v5550, %v5814
        %v5857 = vadd.f32 %v5551, %v5817
        %v5858 = vadd.f32 %v5552, %v5822
        %v5859 = vadd.f32 %v5553, %v5825
        %v5860 = vld [vmem:[%s4] sm:$0x1]
        %v5862 = vlaneseq
        %v5863 = vshrl.u32 %v5862, 7
        %v5864 = vsub.s32 0, %v5863
        %v5865 = vrot.slane %v5860, %v5864
        %v5867 = vadd.f32 %v5828, %v5865
        %v5868 = vadd.f32 %v5829, %v5865
        %v5869 = vadd.f32 %v5830, %v5865
        %v5870 = vadd.f32 %v5831, %v5865
        %v5871 = vadd.f32 %v5832, %v5865
        %v5872 = vadd.f32 %v5833, %v5865
        %v5873 = vadd.f32 %v5834, %v5865
        %v5874 = vadd.f32 %v5835, %v5865
        %v5875 = vadd.f32 %v5836, %v5865
        %v5876 = vadd.f32 %v5837, %v5865
        %v5877 = vadd.f32 %v5838, %v5865
        %v5878 = vadd.f32 %v5839, %v5865
        %v5879 = vadd.f32 %v5840, %v5865
        %v5880 = vadd.f32 %v5841, %v5865
        %v5881 = vadd.f32 %v5842, %v5865
        %v5882 = vadd.f32 %v5843, %v5865
        %v5883 = vadd.f32 %v5844, %v5865
        %v5884 = vadd.f32 %v5845, %v5865
        %v5885 = vadd.f32 %v5846, %v5865
        %v5886 = vadd.f32 %v5847, %v5865
        %v5887 = vadd.f32 %v5848, %v5865
        %v5888 = vadd.f32 %v5849, %v5865
        %v5889 = vadd.f32 %v5850, %v5865
        %v5890 = vadd.f32 %v5851, %v5865
        %v5891 = vadd.f32 %v5852, %v5865
        %v5892 = vadd.f32 %v5853, %v5865
        %v5893 = vadd.f32 %v5854, %v5865
        %v5894 = vadd.f32 %v5855, %v5865
        %v5895 = vadd.f32 %v5856, %v5865
        %v5896 = vadd.f32 %v5857, %v5865
        %v5897 = vadd.f32 %v5858, %v5865
        %v5898 = vadd.f32 %v5859, %v5865
        %v5899 = vadd.f32 %v281, %v5867
        %v5900 = vadd.f32 %v282, %v5868
        %v5901 = vadd.f32 %v283, %v5869
        %v5902 = vadd.f32 %v284, %v5870
        %v5903 = vadd.f32 %v285, %v5871
        %v5904 = vadd.f32 %v286, %v5872
        %v5905 = vadd.f32 %v287, %v5873
        %v5906 = vadd.f32 %v288, %v5874
        %v5907 = vadd.f32 %v289, %v5875
        %v5908 = vadd.f32 %v290, %v5876
        %v5909 = vadd.f32 %v291, %v5877
        %v5910 = vadd.f32 %v292, %v5878
        %v5911 = vadd.f32 %v293, %v5879
        %v5912 = vadd.f32 %v294, %v5880
        %v5913 = vadd.f32 %v295, %v5881
        %v5914 = vadd.f32 %v296, %v5882
        %v5915 = vadd.f32 %v297, %v5883
        %v5916 = vadd.f32 %v298, %v5884
        %v5917 = vadd.f32 %v299, %v5885
        %v5918 = vadd.f32 %v300, %v5886
        %v5919 = vadd.f32 %v301, %v5887
        %v5920 = vadd.f32 %v302, %v5888
        %v5921 = vadd.f32 %v303, %v5889
        %v5922 = vadd.f32 %v304, %v5890
        %v5923 = vadd.f32 %v305, %v5891
        %v5924 = vadd.f32 %v306, %v5892
        %v5925 = vadd.f32 %v307, %v5893
        %v5926 = vadd.f32 %v308, %v5894
        %v5927 = vadd.f32 %v309, %v5895
        %v5928 = vadd.f32 %v310, %v5896
        %v5929 = vadd.f32 %v311, %v5897
        %v5930 = vadd.f32 %v312, %v5898
        %5931 = vst.msk [vmem:[%s239] sm:$0xff] %vm313, %v5899
        %5932 = vst.msk [vmem:[%s239 + $0x8] sm:$0xff] %vm313, %v5900
        %5933 = vst.msk [vmem:[%s239 + $0x10] sm:$0xff] %vm313, %v5901
        %5934 = vst.msk [vmem:[%s239 + $0x18] sm:$0xff] %vm313, %v5902
        %5935 = vst.msk [vmem:[%s239 + $0x20] sm:$0xff] %vm313, %v5903
        %5936 = vst.msk [vmem:[%s239 + $0x28] sm:$0xff] %vm313, %v5904
        %5937 = vst.msk [vmem:[%s239 + $0x30] sm:$0xff] %vm313, %v5905
        %5938 = vst.msk [vmem:[%s239 + $0x38] sm:$0xff] %vm313, %v5906
        %5939 = vst.msk [vmem:[%s239 + $0x40] sm:$0xff] %vm313, %v5907
        %5940 = vst.msk [vmem:[%s239 + $0x48] sm:$0xff] %vm313, %v5908
        %5941 = vst.msk [vmem:[%s239 + $0x50] sm:$0xff] %vm313, %v5909
        %5942 = vst.msk [vmem:[%s239 + $0x58] sm:$0xff] %vm313, %v5910
        %5943 = vst.msk [vmem:[%s239 + $0x60] sm:$0xff] %vm313, %v5911
        %5944 = vst.msk [vmem:[%s239 + $0x68] sm:$0xff] %vm313, %v5912
        %5945 = vst.msk [vmem:[%s239 + $0x70] sm:$0xff] %vm313, %v5913
        %5946 = vst.msk [vmem:[%s239 + $0x78] sm:$0xff] %vm313, %v5914
        %5947 = vst.msk [vmem:[%s239 + $0x80] sm:$0xff] %vm313, %v5915
        %5948 = vst.msk [vmem:[%s239 + $0x88] sm:$0xff] %vm313, %v5916
        %5949 = vst.msk [vmem:[%s239 + $0x90] sm:$0xff] %vm313, %v5917
        %5950 = vst.msk [vmem:[%s239 + $0x98] sm:$0xff] %vm313, %v5918
        %5951 = vst.msk [vmem:[%s239 + $0xa0] sm:$0xff] %vm313, %v5919
        %5952 = vst.msk [vmem:[%s239 + $0xa8] sm:$0xff] %vm313, %v5920
        %5953 = vst.msk [vmem:[%s239 + $0xb0] sm:$0xff] %vm313, %v5921
        %5954 = vst.msk [vmem:[%s239 + $0xb8] sm:$0xff] %vm313, %v5922
        %5955 = vst.msk [vmem:[%s239 + $0xc0] sm:$0xff] %vm313, %v5923
        %5956 = vst.msk [vmem:[%s239 + $0xc8] sm:$0xff] %vm313, %v5924
        %5957 = vst.msk [vmem:[%s239 + $0xd0] sm:$0xff] %vm313, %v5925
        %5958 = vst.msk [vmem:[%s239 + $0xd8] sm:$0xff] %vm313, %v5926
        %5959 = vst.msk [vmem:[%s239 + $0xe0] sm:$0xff] %vm313, %v5927
        %5960 = vst.msk [vmem:[%s239 + $0xe8] sm:$0xff] %vm313, %v5928
        %5961 = vst.msk [vmem:[%s239 + $0xf0] sm:$0xff] %vm313, %v5929
        %5962 = vst.msk [vmem:[%s239 + $0xf8] sm:$0xff] %vm313, %v5930
        %p5963 = scmp.lt.s32.totalorder %s17, 1
        %s5964 = scalar_select %p5963, %s17, 1
        %s5965 = smul.addr %s5964, 32
        %s5966 = smul.addr %s5965, 8
        %s5967 = scalar_lea.vmem %s5, %s5966
        // Predicated region
        $region45: #{tpu_custom_call.1} parent=39 // pred_check
          %p5968 = pneg %p145
        $region46: #{tpu_custom_call.1} parent=39 // pred_check_branch
          %5970 = sbr.rel (%p5968) target = $region48
        $region47: #{tpu_custom_call.1} parent=39 // pred_region
          _
        $region48: #{tpu_custom_call.1} parent=39 // pred_fallthru
          _
      $region40: #{tpu_custom_call.1} parent=5 // pred_fallthru
        _
      %p5971 = scmp.le.s32.totalorder 2, %s12
      // Predicated region
      $region49: #{tpu_custom_call.1} parent=5 // pred_check
        %p5972 = pneg %p5971
      $region50: #{tpu_custom_call.1} parent=5 // pred_check_branch
        %5974 = sbr.rel (%p5972) target = $region52
      $region51: #{tpu_custom_call.1} parent=5 // pred_region
        %s5975 = ssub.s32 %s12, 2
        // Predicated region
        $region53: #{tpu_custom_call.1} parent=51 // pred_check
          %p5976 = pneg %p151
        $region54: #{tpu_custom_call.1} parent=51 // pred_check_branch
          %5978 = sbr.rel (%p5976) target = $region56
        $region55: #{tpu_custom_call.1} parent=51 // pred_region
          %p5979 = scmp.lt.s32.totalorder %s18, 1
          %s5980 = scalar_select %p5979, %s18, 1
          %s5981 = smul.addr %s5980, 32
          %s5982 = smul.addr %s5981, 8
          %s5983 = scalar_lea.vmem %s5, %s5982
        $region56: #{tpu_custom_call.1} parent=51 // pred_fallthru
          _
      $region52: #{tpu_custom_call.1} parent=5 // pred_fallthru
        _
    $region6: #{tpu_custom_call.1} parent=1 // loop_footer
      %s16 = sadd.s32 1, %s12
    $region7: #{tpu_custom_call.1} parent=1 // loop_footer_branch
      %11 = sbr.rel target = $region3
    $region8: #{tpu_custom_call.1} parent=1 // loop_exit
      _
    %5984 = vsyncpa [#allocation4], 1
    %s5985 = scalar_lea.sflag [#allocation4], 1
    %5986 = vsyncpa %s5985, 1

</llo_original>
